<compile_context>
chip_gen: v6e
topology: v6e:2x2x1
jax: 0.10.0
libtpu: 0.0.40
codegen_flags: <defaults>
</compile_context>

<pallas_src>
import jax
import jax.numpy as jnp
from jax.experimental import pallas as pl
from jax.experimental.pallas import tpu as pltpu

LAYER_DIMS = [166, 560, 360, 900, 760, 563, 163]  # input -> ... -> output
N_LAYERS = len(LAYER_DIMS) - 1


def _round_up(x, m):
    return (x + m - 1) // m * m


# Lane-grain (128) padded widths; padded rows/cols are zero so they never leak
# through tanh into later layers (tanh(0) = 0, and the matching weight rows are 0).
PAD_DIMS = [_round_up(d, 128) for d in LAYER_DIMS]  # [256, 640, 384, 1024, 768, 640, 256]


def mlp_kernel(x_ref, *refs):
    """Fused 6-layer MLP: (Linear -> tanh) x 5 -> Linear, for one batch tile.

    refs = (w1, b1, ..., w6, b6, out_ref).  Weights bf16 [in_pad, out_pad],
    biases f32 [1, out_pad]; matmuls accumulate in f32 on the MXU.
    """
    out_ref = refs[-1]
    param_refs = refs[:-1]

    h = x_ref[...]  # f32 [TB, 256]
    for i in range(N_LAYERS):
        w = param_refs[2 * i][...]        # bf16 [in_pad, out_pad]
        b = param_refs[2 * i + 1][...]    # f32  [1, out_pad]
        # bf16 operands -> MXU, f32 accumulation; bias-add + tanh in f32
        # (v5e VPU/EUP have no bf16 path).
        # TODO(synk): on v6e/v7x, computing tanh in bf16 halves EUP work; gate by chip.
        h = jnp.dot(h.astype(jnp.bfloat16), w,
                    preferred_element_type=jnp.float32) + b
        if i < N_LAYERS - 1:  # final layer has no tanh
            h = jnp.tanh(h)
    out_ref[...] = h.astype(out_ref.dtype)


def init_params(key):
    """Deterministic PyTorch-style init: U(-1/sqrt(fan_in), +1/sqrt(fan_in)), f32."""
    params = []
    for i in range(N_LAYERS):
        fan_in, fan_out = LAYER_DIMS[i], LAYER_DIMS[i + 1]
        key, wk, bk = jax.random.split(key, 3)
        bound = 1.0 / float(fan_in) ** 0.5
        w = jax.random.uniform(wk, (fan_in, fan_out), jnp.float32, -bound, bound)
        b = jax.random.uniform(bk, (1, fan_out), jnp.float32, -bound, bound)
        params.append((w, b))
    return params


def prepare_params(params_f32):
    """Zero-pad every layer to PAD_DIMS, weights -> bf16, biases stay f32."""
    prepped = []
    for i, (w, b) in enumerate(params_f32):
        in_p, out_p = PAD_DIMS[i], PAD_DIMS[i + 1]
        wp = jnp.zeros((in_p, out_p), jnp.float32).at[:w.shape[0], :w.shape[1]].set(w)
        bp = jnp.zeros((1, out_p), jnp.float32).at[:, :b.shape[1]].set(b)
        # TODO(synk): int8 (v5e/v6e) / fp8 (v7x) per-output-channel weight quantization
        # would halve the dominant weight HBM traffic; kept bf16 for accuracy here.
        prepped.append((wp.astype(jnp.bfloat16), bp))
    return prepped


def neural_network6(x, prepped_params, batch_tile=None):
    """Run the fused MLP kernel.  x: [B, 166] f32 -> [B, 163] f32."""
    B, F = x.shape
    assert F == LAYER_DIMS[0], (B, F)

    if batch_tile is None:
        # 256 matches the v6e/v7x MXU rows; for small B just round up to the
        # f32 sublane grain so grid=(1,).
        batch_tile = 256 if B >= 256 else _round_up(max(B, 8), 8)
    tb = batch_tile
    b_pad = _round_up(B, tb)

    # Zero-pad batch to a tile multiple and features 166 -> 256 (lane grain).
    x_p = jnp.zeros((b_pad, PAD_DIMS[0]), jnp.float32).at[:B, :F].set(
        x.astype(jnp.float32))

    flat_args = []
    in_specs = [pl.BlockSpec((tb, PAD_DIMS[0]), lambda i: (i, 0))]
    for li, (w, b) in enumerate(prepped_params):
        flat_args += [w, b]
        # Constant index maps: weights/biases are DMA'd once and stay
        # VMEM-resident across all batch tiles.
        in_specs += [
            pl.BlockSpec((PAD_DIMS[li], PAD_DIMS[li + 1]), lambda i: (0, 0)),
            pl.BlockSpec((1, PAD_DIMS[li + 1]), lambda i: (0, 0)),
        ]
    out_spec = pl.BlockSpec((tb, PAD_DIMS[-1]), lambda i: (i, 0))

    # Cost estimate (padded dims = what the MXU actually executes).
    flops = 2 * b_pad * sum(PAD_DIMS[i] * PAD_DIMS[i + 1] for i in range(N_LAYERS))
    transcendentals = b_pad * sum(PAD_DIMS[1:-1])
    bytes_accessed = (x_p.size * 4
                      + sum(int(a.size) * a.dtype.itemsize for a in flat_args)
                      + b_pad * PAD_DIMS[-1] * 4)

    # VMEM budget: double-buffered ins/outs + activation temporaries + headroom.
    param_bytes = sum(int(a.size) * a.dtype.itemsize for a in flat_args)
    io_tile_bytes = tb * (PAD_DIMS[0] + PAD_DIMS[-1]) * 4
    temp_bytes = 6 * tb * max(PAD_DIMS) * 4
    vmem_limit = 2 * (param_bytes + io_tile_bytes) + temp_bytes + (2 << 20)
    vmem_limit = min(_round_up(vmem_limit, 1 << 20), 64 * 1024 * 1024)

    # TODO(synk): for the tiny-batch latency case, a manual per-layer weight
    # double-buffer (memory_space=pl.ANY + make_async_copy) could hide compute
    # under the weight stream; batch tiling is the dominant lever so it is
    # not implemented here.
    out_padded = pl.pallas_call(
        mlp_kernel,
        out_shape=jax.ShapeDtypeStruct((b_pad, PAD_DIMS[-1]), jnp.float32),
        grid=(b_pad // tb,),
        in_specs=in_specs,
        out_specs=out_spec,
        compiler_params=pltpu.CompilerParams(
            dimension_semantics=("parallel",),  # megacore sharding on v7x
            vmem_limit_bytes=int(vmem_limit)),
        cost_estimate=pl.CostEstimate(
            flops=flops,
            transcendentals=transcendentals,
            bytes_accessed=bytes_accessed),
    )(x_p, *flat_args)

    # TODO(synk): downstream consumers can take the padded (B, 256) slab
    # directly to avoid this slice on the latency path.
    return out_padded[:B, :LAYER_DIMS[-1]]


def reference(x, prepped_params):
    """Pure-JAX reference using the same padded bf16 weights / f32 accumulation."""
    B, F = x.shape
    h = jnp.zeros((B, PAD_DIMS[0]), jnp.float32).at[:, :F].set(x.astype(jnp.float32))
    for i, (w, b) in enumerate(prepped_params):
        h = jnp.dot(h.astype(jnp.bfloat16), w,
                    preferred_element_type=jnp.float32) + b
        if i < N_LAYERS - 1:
            h = jnp.tanh(h)
    return h[:, :LAYER_DIMS[-1]]


if __name__ == "__main__":
    key = jax.random.PRNGKey(0)
    pkey, xkey = jax.random.split(key)

    params = prepare_params(init_params(pkey))
    B = 16
    x = jax.random.normal(xkey, (B, LAYER_DIMS[0]), dtype=jnp.float32)

    # batch_tile=8 -> grid=(2,): exercises the batch-tiled, weight-resident path.
    out = jax.block_until_ready(neural_network6(x, params, batch_tile=8))
    ref = jax.block_until_ready(reference(x, params))

    assert out.shape == (B, LAYER_DIMS[-1]), out.shape
    assert jnp.allclose(out, ref, atol=2e-3, rtol=2e-3), "mismatch vs reference"

    print("KERNEL_OK")
</pallas_src>

<mosaic_0001>
module attributes {stable_mosaic.version = 11 : i64} {
  func.func @mlp_kernel(%arg0: i32, %arg1: memref<8x256xf32, #tpu.memory_space<vmem>>, %arg2: memref<256x640xbf16, #tpu.memory_space<vmem>>, %arg3: memref<1x640xf32, #tpu.memory_space<vmem>>, %arg4: memref<640x384xbf16, #tpu.memory_space<vmem>>, %arg5: memref<1x384xf32, #tpu.memory_space<vmem>>, %arg6: memref<384x1024xbf16, #tpu.memory_space<vmem>>, %arg7: memref<1x1024xf32, #tpu.memory_space<vmem>>, %arg8: memref<1024x768xbf16, #tpu.memory_space<vmem>>, %arg9: memref<1x768xf32, #tpu.memory_space<vmem>>, %arg10: memref<768x640xbf16, #tpu.memory_space<vmem>>, %arg11: memref<1x640xf32, #tpu.memory_space<vmem>>, %arg12: memref<640x256xbf16, #tpu.memory_space<vmem>>, %arg13: memref<1x256xf32, #tpu.memory_space<vmem>>, %arg14: memref<8x256xf32, #tpu.memory_space<vmem>>) attributes {dimension_semantics = [#tpu.dimension_semantics<parallel>], iteration_bounds = array<i64: 2>, scalar_prefetch = 0 : i64, scratch_operands = 0 : i64, tpu.core_type = #tpu.core_type<tc>, window_params = [{transform_indices = @transform_0, window_bounds = array<i64: 8, 256>}, {pipeline_mode = #tpu.pipeline_mode<synchronous>, transform_indices = @transform_1, window_bounds = array<i64: 256, 640>}, {pipeline_mode = #tpu.pipeline_mode<synchronous>, transform_indices = @transform_2, window_bounds = array<i64: 1, 640>}, {pipeline_mode = #tpu.pipeline_mode<synchronous>, transform_indices = @transform_3, window_bounds = array<i64: 640, 384>}, {pipeline_mode = #tpu.pipeline_mode<synchronous>, transform_indices = @transform_4, window_bounds = array<i64: 1, 384>}, {pipeline_mode = #tpu.pipeline_mode<synchronous>, transform_indices = @transform_5, window_bounds = array<i64: 384, 1024>}, {pipeline_mode = #tpu.pipeline_mode<synchronous>, transform_indices = @transform_6, window_bounds = array<i64: 1, 1024>}, {pipeline_mode = #tpu.pipeline_mode<synchronous>, transform_indices = @transform_7, window_bounds = array<i64: 1024, 768>}, {pipeline_mode = #tpu.pipeline_mode<synchronous>, transform_indices = @transform_8, window_bounds = array<i64: 1, 768>}, {pipeline_mode = #tpu.pipeline_mode<synchronous>, transform_indices = @transform_9, window_bounds = array<i64: 768, 640>}, {pipeline_mode = #tpu.pipeline_mode<synchronous>, transform_indices = @transform_10, window_bounds = array<i64: 1, 640>}, {pipeline_mode = #tpu.pipeline_mode<synchronous>, transform_indices = @transform_11, window_bounds = array<i64: 640, 256>}, {pipeline_mode = #tpu.pipeline_mode<synchronous>, transform_indices = @transform_12, window_bounds = array<i64: 1, 256>}, {transform_indices = @transform_13, window_bounds = array<i64: 8, 256>}]} {
    %c0 = arith.constant 0 : index
    %c0_0 = arith.constant 0 : index
    %0 = vector.load %arg1[%c0, %c0_0] : memref<8x256xf32, #tpu.memory_space<vmem>>, vector<8x256xf32>
    %c0_1 = arith.constant 0 : index
    %c0_2 = arith.constant 0 : index
    %1 = vector.load %arg2[%c0_1, %c0_2] : memref<256x640xbf16, #tpu.memory_space<vmem>>, vector<256x640xbf16>
    %c0_3 = arith.constant 0 : index
    %c0_4 = arith.constant 0 : index
    %2 = vector.load %arg3[%c0_3, %c0_4] : memref<1x640xf32, #tpu.memory_space<vmem>>, vector<1x640xf32>
    %3 = arith.truncf %0 : vector<8x256xf32> to vector<8x256xbf16>
    %cst = arith.constant dense<0.000000e+00> : vector<8x640xf32>
    %4 = tpu.matmul %3, %1, %cst {dimension_numbers = #tpu.dot_dimension_numbers<[1], [0], [0], [1], [0, 0, 1, 1], [], []>} : vector<8x256xbf16>, vector<256x640xbf16>, vector<8x640xf32> -> vector<8x640xf32>
    %5 = vector.broadcast %2 : vector<1x640xf32> to vector<8x640xf32>
    %6 = arith.addf %4, %5 : vector<8x640xf32>
    %7 = math.tanh %6 : vector<8x640xf32>
    %c0_5 = arith.constant 0 : index
    %c0_6 = arith.constant 0 : index
    %8 = vector.load %arg4[%c0_5, %c0_6] : memref<640x384xbf16, #tpu.memory_space<vmem>>, vector<640x384xbf16>
    %c0_7 = arith.constant 0 : index
    %c0_8 = arith.constant 0 : index
    %9 = vector.load %arg5[%c0_7, %c0_8] : memref<1x384xf32, #tpu.memory_space<vmem>>, vector<1x384xf32>
    %10 = arith.truncf %7 : vector<8x640xf32> to vector<8x640xbf16>
    %cst_9 = arith.constant dense<0.000000e+00> : vector<8x384xf32>
    %11 = tpu.matmul %10, %8, %cst_9 {dimension_numbers = #tpu.dot_dimension_numbers<[1], [0], [0], [1], [0, 0, 1, 1], [], []>} : vector<8x640xbf16>, vector<640x384xbf16>, vector<8x384xf32> -> vector<8x384xf32>
    %12 = vector.broadcast %9 : vector<1x384xf32> to vector<8x384xf32>
    %13 = arith.addf %11, %12 : vector<8x384xf32>
    %14 = math.tanh %13 : vector<8x384xf32>
    %c0_10 = arith.constant 0 : index
    %c0_11 = arith.constant 0 : index
    %15 = vector.load %arg6[%c0_10, %c0_11] : memref<384x1024xbf16, #tpu.memory_space<vmem>>, vector<384x1024xbf16>
    %c0_12 = arith.constant 0 : index
    %c0_13 = arith.constant 0 : index
    %16 = vector.load %arg7[%c0_12, %c0_13] : memref<1x1024xf32, #tpu.memory_space<vmem>>, vector<1x1024xf32>
    %17 = arith.truncf %14 : vector<8x384xf32> to vector<8x384xbf16>
    %cst_14 = arith.constant dense<0.000000e+00> : vector<8x1024xf32>
    %18 = tpu.matmul %17, %15, %cst_14 {dimension_numbers = #tpu.dot_dimension_numbers<[1], [0], [0], [1], [0, 0, 1, 1], [], []>} : vector<8x384xbf16>, vector<384x1024xbf16>, vector<8x1024xf32> -> vector<8x1024xf32>
    %19 = vector.broadcast %16 : vector<1x1024xf32> to vector<8x1024xf32>
    %20 = arith.addf %18, %19 : vector<8x1024xf32>
    %21 = math.tanh %20 : vector<8x1024xf32>
    %c0_15 = arith.constant 0 : index
    %c0_16 = arith.constant 0 : index
    %22 = vector.load %arg8[%c0_15, %c0_16] : memref<1024x768xbf16, #tpu.memory_space<vmem>>, vector<1024x768xbf16>
    %c0_17 = arith.constant 0 : index
    %c0_18 = arith.constant 0 : index
    %23 = vector.load %arg9[%c0_17, %c0_18] : memref<1x768xf32, #tpu.memory_space<vmem>>, vector<1x768xf32>
    %24 = arith.truncf %21 : vector<8x1024xf32> to vector<8x1024xbf16>
    %cst_19 = arith.constant dense<0.000000e+00> : vector<8x768xf32>
    %25 = tpu.matmul %24, %22, %cst_19 {dimension_numbers = #tpu.dot_dimension_numbers<[1], [0], [0], [1], [0, 0, 1, 1], [], []>} : vector<8x1024xbf16>, vector<1024x768xbf16>, vector<8x768xf32> -> vector<8x768xf32>
    %26 = vector.broadcast %23 : vector<1x768xf32> to vector<8x768xf32>
    %27 = arith.addf %25, %26 : vector<8x768xf32>
    %28 = math.tanh %27 : vector<8x768xf32>
    %c0_20 = arith.constant 0 : index
    %c0_21 = arith.constant 0 : index
    %29 = vector.load %arg10[%c0_20, %c0_21] : memref<768x640xbf16, #tpu.memory_space<vmem>>, vector<768x640xbf16>
    %c0_22 = arith.constant 0 : index
    %c0_23 = arith.constant 0 : index
    %30 = vector.load %arg11[%c0_22, %c0_23] : memref<1x640xf32, #tpu.memory_space<vmem>>, vector<1x640xf32>
    %31 = arith.truncf %28 : vector<8x768xf32> to vector<8x768xbf16>
    %cst_24 = arith.constant dense<0.000000e+00> : vector<8x640xf32>
    %32 = tpu.matmul %31, %29, %cst_24 {dimension_numbers = #tpu.dot_dimension_numbers<[1], [0], [0], [1], [0, 0, 1, 1], [], []>} : vector<8x768xbf16>, vector<768x640xbf16>, vector<8x640xf32> -> vector<8x640xf32>
    %33 = vector.broadcast %30 : vector<1x640xf32> to vector<8x640xf32>
    %34 = arith.addf %32, %33 : vector<8x640xf32>
    %35 = math.tanh %34 : vector<8x640xf32>
    %c0_25 = arith.constant 0 : index
    %c0_26 = arith.constant 0 : index
    %36 = vector.load %arg12[%c0_25, %c0_26] : memref<640x256xbf16, #tpu.memory_space<vmem>>, vector<640x256xbf16>
    %c0_27 = arith.constant 0 : index
    %c0_28 = arith.constant 0 : index
    %37 = vector.load %arg13[%c0_27, %c0_28] : memref<1x256xf32, #tpu.memory_space<vmem>>, vector<1x256xf32>
    %38 = arith.truncf %35 : vector<8x640xf32> to vector<8x640xbf16>
    %cst_29 = arith.constant dense<0.000000e+00> : vector<8x256xf32>
    %39 = tpu.matmul %38, %36, %cst_29 {dimension_numbers = #tpu.dot_dimension_numbers<[1], [0], [0], [1], [0, 0, 1, 1], [], []>} : vector<8x640xbf16>, vector<640x256xbf16>, vector<8x256xf32> -> vector<8x256xf32>
    %40 = vector.broadcast %37 : vector<1x256xf32> to vector<8x256xf32>
    %41 = arith.addf %39, %40 : vector<8x256xf32>
    %c0_30 = arith.constant 0 : index
    %c0_31 = arith.constant 0 : index
    %42 = vector.load %arg14[%c0_30, %c0_31] : memref<8x256xf32, #tpu.memory_space<vmem>>, vector<8x256xf32>
    tpu.vector_store %arg14[%c0_30, %c0_31], %41 {strides = array<i32>} : memref<8x256xf32, #tpu.memory_space<vmem>>, vector<8x256xf32>,
    return
  }
  func.func @transform_0(%arg0: i32) -> (i32, i32) {
    %c0_i32 = arith.constant 0 : i32
    %c0_i32_0 = arith.constant 0 : i32
    return %arg0, %c0_i32 : i32, i32
  }
  func.func @transform_1(%arg0: i32) -> (i32, i32) {
    %c0_i32 = arith.constant 0 : i32
    %c0_i32_0 = arith.constant 0 : i32
    %c0_i32_1 = arith.constant 0 : i32
    return %c0_i32, %c0_i32_0 : i32, i32
  }
  func.func @transform_2(%arg0: i32) -> (i32, i32) {
    %c0_i32 = arith.constant 0 : i32
    %c0_i32_0 = arith.constant 0 : i32
    %c0_i32_1 = arith.constant 0 : i32
    return %c0_i32, %c0_i32_0 : i32, i32
  }
  func.func @transform_3(%arg0: i32) -> (i32, i32) {
    %c0_i32 = arith.constant 0 : i32
    %c0_i32_0 = arith.constant 0 : i32
    %c0_i32_1 = arith.constant 0 : i32
    return %c0_i32, %c0_i32_0 : i32, i32
  }
  func.func @transform_4(%arg0: i32) -> (i32, i32) {
    %c0_i32 = arith.constant 0 : i32
    %c0_i32_0 = arith.constant 0 : i32
    %c0_i32_1 = arith.constant 0 : i32
    return %c0_i32, %c0_i32_0 : i32, i32
  }
  func.func @transform_5(%arg0: i32) -> (i32, i32) {
    %c0_i32 = arith.constant 0 : i32
    %c0_i32_0 = arith.constant 0 : i32
    %c0_i32_1 = arith.constant 0 : i32
    return %c0_i32, %c0_i32_0 : i32, i32
  }
  func.func @transform_6(%arg0: i32) -> (i32, i32) {
    %c0_i32 = arith.constant 0 : i32
    %c0_i32_0 = arith.constant 0 : i32
    %c0_i32_1 = arith.constant 0 : i32
    return %c0_i32, %c0_i32_0 : i32, i32
  }
  func.func @transform_7(%arg0: i32) -> (i32, i32) {
    %c0_i32 = arith.constant 0 : i32
    %c0_i32_0 = arith.constant 0 : i32
    %c0_i32_1 = arith.constant 0 : i32
    return %c0_i32, %c0_i32_0 : i32, i32
  }
  func.func @transform_8(%arg0: i32) -> (i32, i32) {
    %c0_i32 = arith.constant 0 : i32
    %c0_i32_0 = arith.constant 0 : i32
    %c0_i32_1 = arith.constant 0 : i32
    return %c0_i32, %c0_i32_0 : i32, i32
  }
  func.func @transform_9(%arg0: i32) -> (i32, i32) {
    %c0_i32 = arith.constant 0 : i32
    %c0_i32_0 = arith.constant 0 : i32
    %c0_i32_1 = arith.constant 0 : i32
    return %c0_i32, %c0_i32_0 : i32, i32
  }
  func.func @transform_10(%arg0: i32) -> (i32, i32) {
    %c0_i32 = arith.constant 0 : i32
    %c0_i32_0 = arith.constant 0 : i32
    %c0_i32_1 = arith.constant 0 : i32
    return %c0_i32, %c0_i32_0 : i32, i32
  }
  func.func @transform_11(%arg0: i32) -> (i32, i32) {
    %c0_i32 = arith.constant 0 : i32
    %c0_i32_0 = arith.constant 0 : i32
    %c0_i32_1 = arith.constant 0 : i32
    return %c0_i32, %c0_i32_0 : i32, i32
  }
  func.func @transform_12(%arg0: i32) -> (i32, i32) {
    %c0_i32 = arith.constant 0 : i32
    %c0_i32_0 = arith.constant 0 : i32
    %c0_i32_1 = arith.constant 0 : i32
    return %c0_i32, %c0_i32_0 : i32, i32
  }
  func.func @transform_13(%arg0: i32) -> (i32, i32) {
    %c0_i32 = arith.constant 0 : i32
    %c0_i32_0 = arith.constant 0 : i32
    return %arg0, %c0_i32 : i32, i32
  }
}

</mosaic_0001>

<llo_original>
// kernel: tpu_custom_call.1
$region0: #{tpu_custom_call.1}
  #allocation0 [shape = 'u32[]', space=smem, size = 0x4, offset = 0x4, fixed_abs, tag = 'smem constant byte address 0x4 - core index']
  #allocation1 [shape = 'u32[144,128]{1,0:T(1,128)}', space=vmem, size = 0x12000, scoped, tag = 'internal scratch']
  %s0 = inlined_call_operand.hbm [shape: f32[16,256], index: 0, kind: input, shape index: {}]
  %s1 = inlined_call_operand.hbm [shape: bf16[256,640], index: 1, kind: input, shape index: {}]
  %s2 = inlined_call_operand.hbm [shape: f32[1,640], index: 2, kind: input, shape index: {}]
  %s3 = inlined_call_operand.hbm [shape: bf16[640,384], index: 3, kind: input, shape index: {}]
  %s4 = inlined_call_operand.hbm [shape: f32[1,384], index: 4, kind: input, shape index: {}]
  %s5 = inlined_call_operand.hbm [shape: bf16[384,1024], index: 5, kind: input, shape index: {}]
  %s6 = inlined_call_operand.hbm [shape: f32[1,1024], index: 6, kind: input, shape index: {}]
  %s7 = inlined_call_operand.hbm [shape: bf16[1024,768], index: 7, kind: input, shape index: {}]
  %s8 = inlined_call_operand.hbm [shape: f32[1,768], index: 8, kind: input, shape index: {}]
  %s9 = inlined_call_operand.hbm [shape: bf16[768,640], index: 9, kind: input, shape index: {}]
  %s10 = inlined_call_operand.hbm [shape: f32[1,640], index: 10, kind: input, shape index: {}]
  %s11 = inlined_call_operand.hbm [shape: bf16[640,256], index: 11, kind: input, shape index: {}]
  %s12 = inlined_call_operand.hbm [shape: f32[1,256], index: 12, kind: input, shape index: {}]
  %s13 = inlined_call_operand.hbm [shape: f32[16,256], index: 13, kind: output, shape index: {}]
  %s14 = sld [smem:[#allocation0]]
  $region137: #{tpu_custom_call.1} parent=0
    _
  %s16 = ssub.s32 1, %s14
  %s17 = scalar_select 0, %s16, %s14
  $region1: #{tpu_custom_call.1} parent=0
    #allocation2 [shape = 'u8[16384]{0}', space=vmem, size = 0x4000, scoped, tag = 'input window, operand 0']
    #allocation3 [shape = 's32[2]{0}', space=sflag, size = 0x8, scoped, tag = 'scoped memory for tpu_custom_call.1']
    #allocation4 [shape = 's32[2]{0}', space=sflag, size = 0x8, scoped, tag = 'scoped memory for tpu_custom_call.1']
    #allocation5 [shape = 'u8[327680]{0}', space=vmem, size = 0x50000, scoped, tag = 'input window, operand 1, single buffered']
    #allocation6 [shape = 's32[1]{0}', space=sflag, size = 0x4, scoped, tag = 'scoped memory for tpu_custom_call.1']
    #allocation7 [shape = 'u8[2560]{0}', space=vmem, size = 0xc00, scoped, tag = 'input window, operand 2, single buffered']
    #allocation8 [shape = 'u8[491520]{0}', space=vmem, size = 0x78000, scoped, tag = 'input window, operand 3, single buffered']
    #allocation9 [shape = 's32[1]{0}', space=sflag, size = 0x4, scoped, tag = 'scoped memory for tpu_custom_call.1']
    #allocation10 [shape = 'u8[1536]{0}', space=vmem, size = 0x800, scoped, tag = 'input window, operand 4, single buffered']
    #allocation11 [shape = 'u8[786432]{0}', space=vmem, size = 0xc0000, scoped, tag = 'input window, operand 5, single buffered']
    #allocation12 [shape = 's32[1]{0}', space=sflag, size = 0x4, scoped, tag = 'scoped memory for tpu_custom_call.1']
    #allocation13 [shape = 'u8[4096]{0}', space=vmem, size = 0x1000, scoped, tag = 'input window, operand 6, single buffered']
    #allocation14 [shape = 'u8[1572864]{0}', space=vmem, size = 0x180000, scoped, tag = 'input window, operand 7, single buffered']
    #allocation15 [shape = 's32[1]{0}', space=sflag, size = 0x4, scoped, tag = 'scoped memory for tpu_custom_call.1']
    #allocation16 [shape = 'u8[3072]{0}', space=vmem, size = 0xc00, scoped, tag = 'input window, operand 8, single buffered']
    #allocation17 [shape = 'u8[983040]{0}', space=vmem, size = 0xf0000, scoped, tag = 'input window, operand 9, single buffered']
    #allocation18 [shape = 's32[1]{0}', space=sflag, size = 0x4, scoped, tag = 'scoped memory for tpu_custom_call.1']
    #allocation19 [shape = 'u8[2560]{0}', space=vmem, size = 0xc00, scoped, tag = 'input window, operand 10, single buffered']
    #allocation20 [shape = 'u8[327680]{0}', space=vmem, size = 0x50000, scoped, tag = 'input window, operand 11, single buffered']
    #allocation21 [shape = 's32[1]{0}', space=sflag, size = 0x4, scoped, tag = 'scoped memory for tpu_custom_call.1']
    #allocation22 [shape = 'u8[1024]{0}', space=vmem, size = 0x400, scoped, tag = 'input window, operand 12, single buffered']
    #allocation23 [shape = 'u8[16384]{0}', space=vmem, size = 0x4000, scoped, tag = 'output window, operand 0']
    %18 = vsyncpa [#allocation3], 0
    %s19 = scalar_lea.sflag [#allocation3], 1
    %20 = vsyncpa %s19, 0
    %21 = vsyncpa [#allocation6], 0
    %22 = vsyncpa [#allocation9], 0
    %23 = vsyncpa [#allocation12], 0
    %24 = vsyncpa [#allocation15], 0
    %25 = vsyncpa [#allocation18], 0
    %26 = vsyncpa [#allocation21], 0
    %27 = vsyncpa [#allocation4], 0
    %s28 = scalar_lea.sflag [#allocation4], 1
    %29 = vsyncpa %s28, 0
    loop: start=0, step=1, limit=4
    $region2: #{tpu_custom_call.1} parent=1 // loop_pre_header
      _
    $region3: #{tpu_custom_call.1} parent=1 // loop_header
      %s31 = sphi 0, %s35
      %p32 = scmp.ge.s32.totalorder %s31, 4
      %s41 = sphi 0, %s43
      %s44 = sphi 0, %s41
      %s45 = sphi 0, %s44
      %s61 = sphi 0, %s45
      %s65 = sphi 0, %s65
      %s67 = sphi 0, %s65
      %s68 = sphi 0, %s67
      %s82 = sphi 0, %s68
      %s86 = sphi 0, %s86
      %s88 = sphi 0, %s86
      %s89 = sphi 0, %s88
      %s103 = sphi 0, %s89
      %s107 = sphi 0, %s107
      %s109 = sphi 0, %s107
      %s110 = sphi 0, %s109
      %s124 = sphi 0, %s110
      %s128 = sphi 0, %s128
      %s130 = sphi 0, %s128
      %s131 = sphi 0, %s130
      %s145 = sphi 0, %s131
      %s149 = sphi 0, %s149
      %s151 = sphi 0, %s149
      %s152 = sphi 0, %s151
      %s166 = sphi 0, %s152
      %s170 = sphi 0, %s170
      %s172 = sphi 0, %s170
      %s173 = sphi 0, %s172
      %s187 = sphi 0, %s173
      %s191 = sphi 0, %s191
      %s193 = sphi 0, %s191
      %s194 = sphi 0, %s193
      %s208 = sphi 0, %s194
      %s212 = sphi 0, %s212
      %s214 = sphi 0, %s212
      %s215 = sphi 0, %s214
      %s229 = sphi 0, %s215
      %s233 = sphi 0, %s233
      %s235 = sphi 0, %s233
      %s236 = sphi 0, %s235
      %s250 = sphi 0, %s236
      %s254 = sphi 0, %s254
      %s256 = sphi 0, %s254
      %s257 = sphi 0, %s256
      %s271 = sphi 0, %s257
      %s275 = sphi 0, %s275
      %s277 = sphi 0, %s275
      %s278 = sphi 0, %s277
      %s292 = sphi 0, %s278
      %s296 = sphi 0, %s296
      %s298 = sphi 0, %s296
      %s299 = sphi 0, %s298
      %s313 = sphi 0, %s299
      %s319 = sphi 0, %s321
      %s322 = sphi 0, %s319
      %s323 = sphi 0, %s322
      %s339 = sphi 0, %s323
    $region4: #{tpu_custom_call.1} parent=1 // loop_header_branch
      %34 = sbr.rel (%p32) target = $region8
    $region5: #{tpu_custom_call.1} parent=1 // loop_body
      %s36 = ssub.s32 %s31, 1
      %s37 = ssub.s32 %s31, 2
      %s38 = sadd.s32 %s31, 1
      %s39 = ssub.s32 %s31, %s38
      %p40 = scmp.eq.s32.totalorder %s39, 0
      %s42 = sadd.s32 %s41, 1
      %s43 = scalar_select %p40, %s41, %s42
      %p46 = pneg %p40
      %p47 = scmp.eq.s32.totalorder %s31, 1
      %p48 = por %p46, %p47
      %p49 = scmp.ne.s32.totalorder %s41, %s44
      %p50 = scmp.eq.s32.totalorder %s31, 0
      %p51 = por %p49, %p50
      %p52 = scmp.ne.s32.totalorder %s41, %s44
      %p53 = scmp.eq.s32.totalorder %s36, 1
      %p54 = por %p52, %p53
      %p55 = scmp.ne.s32.totalorder %s44, %s45
      %p56 = scmp.eq.s32.totalorder %s36, 0
      %p57 = por %p55, %p56
      %p58 = scmp.ne.s32.totalorder %s44, %s45
      %p59 = scmp.eq.s32.totalorder %s37, 1
      %p60 = por %p58, %p59
      %p62 = scmp.ne.s32.totalorder %s45, %s61
      %p63 = scmp.eq.s32.totalorder %s37, 0
      %p64 = por %p62, %p63
      %s66 = sadd.s32 %s65, 1
      %p69 = scmp.eq.s32.totalorder %s31, 1
      %p70 = scmp.ne.s32.totalorder %s65, %s67
      %p71 = scmp.eq.s32.totalorder %s31, 0
      %p72 = por %p70, %p71
      %p73 = scmp.ne.s32.totalorder %s65, %s67
      %p74 = scmp.eq.s32.totalorder %s36, 1
      %p75 = por %p73, %p74
      %p76 = scmp.ne.s32.totalorder %s67, %s68
      %p77 = scmp.eq.s32.totalorder %s36, 0
      %p78 = por %p76, %p77
      %p79 = scmp.ne.s32.totalorder %s67, %s68
      %p80 = scmp.eq.s32.totalorder %s37, 1
      %p81 = por %p79, %p80
      %p83 = scmp.ne.s32.totalorder %s68, %s82
      %p84 = scmp.eq.s32.totalorder %s37, 0
      %p85 = por %p83, %p84
      %s87 = sadd.s32 %s86, 1
      %p90 = scmp.eq.s32.totalorder %s31, 1
      %p91 = scmp.ne.s32.totalorder %s86, %s88
      %p92 = scmp.eq.s32.totalorder %s31, 0
      %p93 = por %p91, %p92
      %p94 = scmp.ne.s32.totalorder %s86, %s88
      %p95 = scmp.eq.s32.totalorder %s36, 1
      %p96 = por %p94, %p95
      %p97 = scmp.ne.s32.totalorder %s88, %s89
      %p98 = scmp.eq.s32.totalorder %s36, 0
      %p99 = por %p97, %p98
      %p100 = scmp.ne.s32.totalorder %s88, %s89
      %p101 = scmp.eq.s32.totalorder %s37, 1
      %p102 = por %p100, %p101
      %p104 = scmp.ne.s32.totalorder %s89, %s103
      %p105 = scmp.eq.s32.totalorder %s37, 0
      %p106 = por %p104, %p105
      %s108 = sadd.s32 %s107, 1
      %p111 = scmp.eq.s32.totalorder %s31, 1
      %p112 = scmp.ne.s32.totalorder %s107, %s109
      %p113 = scmp.eq.s32.totalorder %s31, 0
      %p114 = por %p112, %p113
      %p115 = scmp.ne.s32.totalorder %s107, %s109
      %p116 = scmp.eq.s32.totalorder %s36, 1
      %p117 = por %p115, %p116
      %p118 = scmp.ne.s32.totalorder %s109, %s110
      %p119 = scmp.eq.s32.totalorder %s36, 0
      %p120 = por %p118, %p119
      %p121 = scmp.ne.s32.totalorder %s109, %s110
      %p122 = scmp.eq.s32.totalorder %s37, 1
      %p123 = por %p121, %p122
      %p125 = scmp.ne.s32.totalorder %s110, %s124
      %p126 = scmp.eq.s32.totalorder %s37, 0
      %p127 = por %p125, %p126
      %s129 = sadd.s32 %s128, 1
      %p132 = scmp.eq.s32.totalorder %s31, 1
      %p133 = scmp.ne.s32.totalorder %s128, %s130
      %p134 = scmp.eq.s32.totalorder %s31, 0
      %p135 = por %p133, %p134
      %p136 = scmp.ne.s32.totalorder %s128, %s130
      %p137 = scmp.eq.s32.totalorder %s36, 1
      %p138 = por %p136, %p137
      %p139 = scmp.ne.s32.totalorder %s130, %s131
      %p140 = scmp.eq.s32.totalorder %s36, 0
      %p141 = por %p139, %p140
      %p142 = scmp.ne.s32.totalorder %s130, %s131
      %p143 = scmp.eq.s32.totalorder %s37, 1
      %p144 = por %p142, %p143
      %p146 = scmp.ne.s32.totalorder %s131, %s145
      %p147 = scmp.eq.s32.totalorder %s37, 0
      %p148 = por %p146, %p147
      %s150 = sadd.s32 %s149, 1
      %p153 = scmp.eq.s32.totalorder %s31, 1
      %p154 = scmp.ne.s32.totalorder %s149, %s151
      %p155 = scmp.eq.s32.totalorder %s31, 0
      %p156 = por %p154, %p155
      %p157 = scmp.ne.s32.totalorder %s149, %s151
      %p158 = scmp.eq.s32.totalorder %s36, 1
      %p159 = por %p157, %p158
      %p160 = scmp.ne.s32.totalorder %s151, %s152
      %p161 = scmp.eq.s32.totalorder %s36, 0
      %p162 = por %p160, %p161
      %p163 = scmp.ne.s32.totalorder %s151, %s152
      %p164 = scmp.eq.s32.totalorder %s37, 1
      %p165 = por %p163, %p164
      %p167 = scmp.ne.s32.totalorder %s152, %s166
      %p168 = scmp.eq.s32.totalorder %s37, 0
      %p169 = por %p167, %p168
      %s171 = sadd.s32 %s170, 1
      %p174 = scmp.eq.s32.totalorder %s31, 1
      %p175 = scmp.ne.s32.totalorder %s170, %s172
      %p176 = scmp.eq.s32.totalorder %s31, 0
      %p177 = por %p175, %p176
      %p178 = scmp.ne.s32.totalorder %s170, %s172
      %p179 = scmp.eq.s32.totalorder %s36, 1
      %p180 = por %p178, %p179
      %p181 = scmp.ne.s32.totalorder %s172, %s173
      %p182 = scmp.eq.s32.totalorder %s36, 0
      %p183 = por %p181, %p182
      %p184 = scmp.ne.s32.totalorder %s172, %s173
      %p185 = scmp.eq.s32.totalorder %s37, 1
      %p186 = por %p184, %p185
      %p188 = scmp.ne.s32.totalorder %s173, %s187
      %p189 = scmp.eq.s32.totalorder %s37, 0
      %p190 = por %p188, %p189
      %s192 = sadd.s32 %s191, 1
      %p195 = scmp.eq.s32.totalorder %s31, 1
      %p196 = scmp.ne.s32.totalorder %s191, %s193
      %p197 = scmp.eq.s32.totalorder %s31, 0
      %p198 = por %p196, %p197
      %p199 = scmp.ne.s32.totalorder %s191, %s193
      %p200 = scmp.eq.s32.totalorder %s36, 1
      %p201 = por %p199, %p200
      %p202 = scmp.ne.s32.totalorder %s193, %s194
      %p203 = scmp.eq.s32.totalorder %s36, 0
      %p204 = por %p202, %p203
      %p205 = scmp.ne.s32.totalorder %s193, %s194
      %p206 = scmp.eq.s32.totalorder %s37, 1
      %p207 = por %p205, %p206
      %p209 = scmp.ne.s32.totalorder %s194, %s208
      %p210 = scmp.eq.s32.totalorder %s37, 0
      %p211 = por %p209, %p210
      %s213 = sadd.s32 %s212, 1
      %p216 = scmp.eq.s32.totalorder %s31, 1
      %p217 = scmp.ne.s32.totalorder %s212, %s214
      %p218 = scmp.eq.s32.totalorder %s31, 0
      %p219 = por %p217, %p218
      %p220 = scmp.ne.s32.totalorder %s212, %s214
      %p221 = scmp.eq.s32.totalorder %s36, 1
      %p222 = por %p220, %p221
      %p223 = scmp.ne.s32.totalorder %s214, %s215
      %p224 = scmp.eq.s32.totalorder %s36, 0
      %p225 = por %p223, %p224
      %p226 = scmp.ne.s32.totalorder %s214, %s215
      %p227 = scmp.eq.s32.totalorder %s37, 1
      %p228 = por %p226, %p227
      %p230 = scmp.ne.s32.totalorder %s215, %s229
      %p231 = scmp.eq.s32.totalorder %s37, 0
      %p232 = por %p230, %p231
      %s234 = sadd.s32 %s233, 1
      %p237 = scmp.eq.s32.totalorder %s31, 1
      %p238 = scmp.ne.s32.totalorder %s233, %s235
      %p239 = scmp.eq.s32.totalorder %s31, 0
      %p240 = por %p238, %p239
      %p241 = scmp.ne.s32.totalorder %s233, %s235
      %p242 = scmp.eq.s32.totalorder %s36, 1
      %p243 = por %p241, %p242
      %p244 = scmp.ne.s32.totalorder %s235, %s236
      %p245 = scmp.eq.s32.totalorder %s36, 0
      %p246 = por %p244, %p245
      %p247 = scmp.ne.s32.totalorder %s235, %s236
      %p248 = scmp.eq.s32.totalorder %s37, 1
      %p249 = por %p247, %p248
      %p251 = scmp.ne.s32.totalorder %s236, %s250
      %p252 = scmp.eq.s32.totalorder %s37, 0
      %p253 = por %p251, %p252
      %s255 = sadd.s32 %s254, 1
      %p258 = scmp.eq.s32.totalorder %s31, 1
      %p259 = scmp.ne.s32.totalorder %s254, %s256
      %p260 = scmp.eq.s32.totalorder %s31, 0
      %p261 = por %p259, %p260
      %p262 = scmp.ne.s32.totalorder %s254, %s256
      %p263 = scmp.eq.s32.totalorder %s36, 1
      %p264 = por %p262, %p263
      %p265 = scmp.ne.s32.totalorder %s256, %s257
      %p266 = scmp.eq.s32.totalorder %s36, 0
      %p267 = por %p265, %p266
      %p268 = scmp.ne.s32.totalorder %s256, %s257
      %p269 = scmp.eq.s32.totalorder %s37, 1
      %p270 = por %p268, %p269
      %p272 = scmp.ne.s32.totalorder %s257, %s271
      %p273 = scmp.eq.s32.totalorder %s37, 0
      %p274 = por %p272, %p273
      %s276 = sadd.s32 %s275, 1
      %p279 = scmp.eq.s32.totalorder %s31, 1
      %p280 = scmp.ne.s32.totalorder %s275, %s277
      %p281 = scmp.eq.s32.totalorder %s31, 0
      %p282 = por %p280, %p281
      %p283 = scmp.ne.s32.totalorder %s275, %s277
      %p284 = scmp.eq.s32.totalorder %s36, 1
      %p285 = por %p283, %p284
      %p286 = scmp.ne.s32.totalorder %s277, %s278
      %p287 = scmp.eq.s32.totalorder %s36, 0
      %p288 = por %p286, %p287
      %p289 = scmp.ne.s32.totalorder %s277, %s278
      %p290 = scmp.eq.s32.totalorder %s37, 1
      %p291 = por %p289, %p290
      %p293 = scmp.ne.s32.totalorder %s278, %s292
      %p294 = scmp.eq.s32.totalorder %s37, 0
      %p295 = por %p293, %p294
      %s297 = sadd.s32 %s296, 1
      %p300 = scmp.eq.s32.totalorder %s31, 1
      %p301 = scmp.ne.s32.totalorder %s296, %s298
      %p302 = scmp.eq.s32.totalorder %s31, 0
      %p303 = por %p301, %p302
      %p304 = scmp.ne.s32.totalorder %s296, %s298
      %p305 = scmp.eq.s32.totalorder %s36, 1
      %p306 = por %p304, %p305
      %p307 = scmp.ne.s32.totalorder %s298, %s299
      %p308 = scmp.eq.s32.totalorder %s36, 0
      %p309 = por %p307, %p308
      %p310 = scmp.ne.s32.totalorder %s298, %s299
      %p311 = scmp.eq.s32.totalorder %s37, 1
      %p312 = por %p310, %p311
      %p314 = scmp.ne.s32.totalorder %s299, %s313
      %p315 = scmp.eq.s32.totalorder %s37, 0
      %p316 = por %p314, %p315
      %s317 = ssub.s32 %s31, %s38
      %p318 = scmp.eq.s32.totalorder %s317, 0
      %s320 = sadd.s32 %s319, 1
      %s321 = scalar_select %p318, %s319, %s320
      %p324 = pneg %p318
      %p325 = scmp.eq.s32.totalorder %s31, 1
      %p326 = por %p324, %p325
      %p327 = scmp.ne.s32.totalorder %s319, %s322
      %p328 = scmp.eq.s32.totalorder %s31, 0
      %p329 = por %p327, %p328
      %p330 = scmp.ne.s32.totalorder %s319, %s322
      %p331 = scmp.eq.s32.totalorder %s36, 1
      %p332 = por %p330, %p331
      %p333 = scmp.ne.s32.totalorder %s322, %s323
      %p334 = scmp.eq.s32.totalorder %s36, 0
      %p335 = por %p333, %p334
      %p336 = scmp.ne.s32.totalorder %s322, %s323
      %p337 = scmp.eq.s32.totalorder %s37, 1
      %p338 = por %p336, %p337
      %p340 = scmp.ne.s32.totalorder %s323, %s339
      %p341 = scmp.eq.s32.totalorder %s37, 0
      %p342 = por %p340, %p341
      %p343 = scmp.le.s32.totalorder 1, %s31
      %p344 = scmp.lt.s32.totalorder %s31, 3
      %p345 = pnand %p343, %p344
      %p346 = pneg %p345
      // Predicated region
      $region9: #{tpu_custom_call.1} parent=5 // pred_check
        _
      $region10: #{tpu_custom_call.1} parent=5 // pred_check_branch
        %348 = sbr.rel (%p345) target = $region12
      $region11: #{tpu_custom_call.1} parent=5 // pred_region
        %s349 = ssub.s32 %s31, 1
        // Predicated region
        $region13: #{tpu_custom_call.1} parent=11 // pred_check
          %p350 = pneg %p78
        $region14: #{tpu_custom_call.1} parent=11 // pred_check_branch
          %352 = sbr.rel (%p350) target = $region16
        $region15: #{tpu_custom_call.1} parent=11 // pred_region
          %s354 = ssub.s32 10240, 10240
          %355 = vsyncadd [#allocation6], %s354
          %s356 = sshll.u32 [#allocation5], 4
          %s357 = int_to_ptr.vmem [resolvable:$true] %s356
          %362 = dma.hbm_to_vmem [thread:$0]  %s1, 10240, %s357, [#allocation6], 320, 320, 20
        $region16: #{tpu_custom_call.1} parent=11 // pred_fallthru
          _
        // Predicated region
        $region17: #{tpu_custom_call.1} parent=11 // pred_check
          %p363 = pneg %p99
        $region18: #{tpu_custom_call.1} parent=11 // pred_check_branch
          %365 = sbr.rel (%p363) target = $region20
        $region19: #{tpu_custom_call.1} parent=11 // pred_region
          %s367 = ssub.s32 80, 80
          %368 = vsyncadd [#allocation6], %s367
          %s370 = sshll.u32 [#allocation7], 4
          %s371 = int_to_ptr.vmem [resolvable:$true] %s370
          %373 = dma.hbm_to_vmem [thread:$0]  %s2, 80, %s371, [#allocation6]
        $region20: #{tpu_custom_call.1} parent=11 // pred_fallthru
          _
        // Predicated region
        $region21: #{tpu_custom_call.1} parent=11 // pred_check
          %p374 = pneg %p120
        $region22: #{tpu_custom_call.1} parent=11 // pred_check_branch
          %376 = sbr.rel (%p374) target = $region24
        $region23: #{tpu_custom_call.1} parent=11 // pred_region
          %s378 = ssub.s32 15360, 15360
          %379 = vsyncadd [#allocation9], %s378
          %s380 = sshll.u32 [#allocation8], 4
          %s381 = int_to_ptr.vmem [resolvable:$true] %s380
          %386 = dma.hbm_to_vmem [thread:$0]  %s3, 15360, %s381, [#allocation9], 192, 192, 12
        $region24: #{tpu_custom_call.1} parent=11 // pred_fallthru
          _
        // Predicated region
        $region25: #{tpu_custom_call.1} parent=11 // pred_check
          %p387 = pneg %p141
        $region26: #{tpu_custom_call.1} parent=11 // pred_check_branch
          %389 = sbr.rel (%p387) target = $region28
        $region27: #{tpu_custom_call.1} parent=11 // pred_region
          %s391 = ssub.s32 48, 48
          %392 = vsyncadd [#allocation9], %s391
          %s394 = sshll.u32 [#allocation10], 4
          %s395 = int_to_ptr.vmem [resolvable:$true] %s394
          %397 = dma.hbm_to_vmem [thread:$0]  %s4, 48, %s395, [#allocation9]
        $region28: #{tpu_custom_call.1} parent=11 // pred_fallthru
          _
        // Predicated region
        $region29: #{tpu_custom_call.1} parent=11 // pred_check
          %p398 = pneg %p162
        $region30: #{tpu_custom_call.1} parent=11 // pred_check_branch
          %400 = sbr.rel (%p398) target = $region32
        $region31: #{tpu_custom_call.1} parent=11 // pred_region
          %s402 = ssub.s32 24576, 24576
          %403 = vsyncadd [#allocation12], %s402
          %s404 = sshll.u32 [#allocation11], 4
          %s405 = int_to_ptr.vmem [resolvable:$true] %s404
          %410 = dma.hbm_to_vmem [thread:$0]  %s5, 24576, %s405, [#allocation12], 512, 512, 32
        $region32: #{tpu_custom_call.1} parent=11 // pred_fallthru
          _
        // Predicated region
        $region33: #{tpu_custom_call.1} parent=11 // pred_check
          %p411 = pneg %p183
        $region34: #{tpu_custom_call.1} parent=11 // pred_check_branch
          %413 = sbr.rel (%p411) target = $region36
        $region35: #{tpu_custom_call.1} parent=11 // pred_region
          %s415 = ssub.s32 128, 128
          %416 = vsyncadd [#allocation12], %s415
          %s418 = sshll.u32 [#allocation13], 4
          %s419 = int_to_ptr.vmem [resolvable:$true] %s418
          %421 = dma.hbm_to_vmem [thread:$0]  %s6, 128, %s419, [#allocation12]
        $region36: #{tpu_custom_call.1} parent=11 // pred_fallthru
          _
        // Predicated region
        $region37: #{tpu_custom_call.1} parent=11 // pred_check
          %p422 = pneg %p204
        $region38: #{tpu_custom_call.1} parent=11 // pred_check_branch
          %424 = sbr.rel (%p422) target = $region40
        $region39: #{tpu_custom_call.1} parent=11 // pred_region
          %s426 = ssub.s32 49152, 49152
          %427 = vsyncadd [#allocation15], %s426
          %s428 = sshll.u32 [#allocation14], 4
          %s429 = int_to_ptr.vmem [resolvable:$true] %s428
          %434 = dma.hbm_to_vmem [thread:$0]  %s7, 49152, %s429, [#allocation15], 384, 384, 24
        $region40: #{tpu_custom_call.1} parent=11 // pred_fallthru
          _
        // Predicated region
        $region41: #{tpu_custom_call.1} parent=11 // pred_check
          %p435 = pneg %p225
        $region42: #{tpu_custom_call.1} parent=11 // pred_check_branch
          %437 = sbr.rel (%p435) target = $region44
        $region43: #{tpu_custom_call.1} parent=11 // pred_region
          %s439 = ssub.s32 96, 96
          %440 = vsyncadd [#allocation15], %s439
          %s442 = sshll.u32 [#allocation16], 4
          %s443 = int_to_ptr.vmem [resolvable:$true] %s442
          %445 = dma.hbm_to_vmem [thread:$0]  %s8, 96, %s443, [#allocation15]
        $region44: #{tpu_custom_call.1} parent=11 // pred_fallthru
          _
        // Predicated region
        $region45: #{tpu_custom_call.1} parent=11 // pred_check
          %p446 = pneg %p246
        $region46: #{tpu_custom_call.1} parent=11 // pred_check_branch
          %448 = sbr.rel (%p446) target = $region48
        $region47: #{tpu_custom_call.1} parent=11 // pred_region
          %s450 = ssub.s32 30720, 30720
          %451 = vsyncadd [#allocation18], %s450
          %s452 = sshll.u32 [#allocation17], 4
          %s453 = int_to_ptr.vmem [resolvable:$true] %s452
          %458 = dma.hbm_to_vmem [thread:$0]  %s9, 30720, %s453, [#allocation18], 320, 320, 20
        $region48: #{tpu_custom_call.1} parent=11 // pred_fallthru
          _
        // Predicated region
        $region49: #{tpu_custom_call.1} parent=11 // pred_check
          %p459 = pneg %p267
        $region50: #{tpu_custom_call.1} parent=11 // pred_check_branch
          %461 = sbr.rel (%p459) target = $region52
        $region51: #{tpu_custom_call.1} parent=11 // pred_region
          %s463 = ssub.s32 80, 80
          %464 = vsyncadd [#allocation18], %s463
          %s466 = sshll.u32 [#allocation19], 4
          %s467 = int_to_ptr.vmem [resolvable:$true] %s466
          %469 = dma.hbm_to_vmem [thread:$0]  %s10, 80, %s467, [#allocation18]
        $region52: #{tpu_custom_call.1} parent=11 // pred_fallthru
          _
        // Predicated region
        $region53: #{tpu_custom_call.1} parent=11 // pred_check
          %p470 = pneg %p288
        $region54: #{tpu_custom_call.1} parent=11 // pred_check_branch
          %472 = sbr.rel (%p470) target = $region56
        $region55: #{tpu_custom_call.1} parent=11 // pred_region
          %s474 = ssub.s32 10240, 10240
          %475 = vsyncadd [#allocation21], %s474
          %s476 = sshll.u32 [#allocation20], 4
          %s477 = int_to_ptr.vmem [resolvable:$true] %s476
          %482 = dma.hbm_to_vmem [thread:$0]  %s11, 10240, %s477, [#allocation21], 128, 128, 8
        $region56: #{tpu_custom_call.1} parent=11 // pred_fallthru
          _
        // Predicated region
        $region57: #{tpu_custom_call.1} parent=11 // pred_check
          %p483 = pneg %p309
        $region58: #{tpu_custom_call.1} parent=11 // pred_check_branch
          %485 = sbr.rel (%p483) target = $region60
        $region59: #{tpu_custom_call.1} parent=11 // pred_region
          %s487 = ssub.s32 32, 32
          %488 = vsyncadd [#allocation21], %s487
          %s490 = sshll.u32 [#allocation22], 4
          %s491 = int_to_ptr.vmem [resolvable:$true] %s490
          %493 = dma.hbm_to_vmem [thread:$0]  %s12, 32, %s491, [#allocation21]
        $region60: #{tpu_custom_call.1} parent=11 // pred_fallthru
          _
      $region12: #{tpu_custom_call.1} parent=5 // pred_fallthru
        _
      %p494 = scmp.lt.s32.totalorder %s31, 2
      // Predicated region
      $region61: #{tpu_custom_call.1} parent=5 // pred_check
        %p495 = pneg %p494
      $region62: #{tpu_custom_call.1} parent=5 // pred_check_branch
        %497 = sbr.rel (%p495) target = $region64
      $region63: #{tpu_custom_call.1} parent=5 // pred_region
        // Predicated region
        $region65: #{tpu_custom_call.1} parent=63 // pred_check
          %p498 = pneg %p51
        $region66: #{tpu_custom_call.1} parent=63 // pred_check_branch
          %500 = sbr.rel (%p498) target = $region68
        $region67: #{tpu_custom_call.1} parent=63 // pred_region
          %s501 = sand.u32 %s41, 1
          %s502 = scalar_lea.sflag [#allocation3], %s501
          %s503 = sand.u32 %s41, 1
          %s504 = smul.addr %s503, 16
          %s505 = scalar_lea.vmem [#allocation2], %s504
          %s507 = ssub.s32 256, 256
          %508 = vsyncadd %s502, %s507
          %s509 = smul.addr %s31, 2
          %s510 = smul.addr %s509, 128
          %s511 = scalar_lea.hbm %s0, %s510
          %s513 = sshll.u32 %s505, 4
          %s514 = int_to_ptr.vmem [resolvable:$true] %s513
          %516 = dma.hbm_to_vmem [thread:$0]  %s511, 256, %s514, %s502
        $region68: #{tpu_custom_call.1} parent=63 // pred_fallthru
          _
      $region64: #{tpu_custom_call.1} parent=5 // pred_fallthru
        _
      %p517 = scmp.le.s32.totalorder 1, %s31
      %p518 = scmp.lt.s32.totalorder %s31, 3
      %p519 = pnand %p517, %p518
      %p520 = pneg %p519
      // Predicated region
      $region69: #{tpu_custom_call.1} parent=5 // pred_check
        _
      $region70: #{tpu_custom_call.1} parent=5 // pred_check_branch
        %522 = sbr.rel (%p519) target = $region72
      $region71: #{tpu_custom_call.1} parent=5 // pred_region
        %s523 = ssub.s32 %s31, 1
        %s524 = sand.u32 %s44, 1
        %s525 = scalar_lea.sflag [#allocation3], %s524
        %s526 = sand.u32 %s44, 1
        %s527 = smul.addr %s526, 16
        %s528 = scalar_lea.vmem [#allocation2], %s527
        // Predicated region
        $region73: #{tpu_custom_call.1} parent=71 // pred_check
          %p529 = pneg %p57
        $region74: #{tpu_custom_call.1} parent=71 // pred_check_branch
          %531 = sbr.rel (%p529) target = $region76
        $region75: #{tpu_custom_call.1} parent=71 // pred_region
          %532 = dma.done %s525, 256
        $region76: #{tpu_custom_call.1} parent=71 // pred_fallthru
          _
        // Predicated region
        $region77: #{tpu_custom_call.1} parent=71 // pred_check
          %p533 = pneg %p78
        $region78: #{tpu_custom_call.1} parent=71 // pred_check_branch
          %535 = sbr.rel (%p533) target = $region80
        $region79: #{tpu_custom_call.1} parent=71 // pred_region
          %536 = dma.done [#allocation6], 10240
        $region80: #{tpu_custom_call.1} parent=71 // pred_fallthru
          _
        // Predicated region
        $region81: #{tpu_custom_call.1} parent=71 // pred_check
          %p537 = pneg %p99
        $region82: #{tpu_custom_call.1} parent=71 // pred_check_branch
          %539 = sbr.rel (%p537) target = $region84
        $region83: #{tpu_custom_call.1} parent=71 // pred_region
          %540 = dma.done [#allocation6], 80
        $region84: #{tpu_custom_call.1} parent=71 // pred_fallthru
          _
        // Predicated region
        $region85: #{tpu_custom_call.1} parent=71 // pred_check
          %p541 = pneg %p120
        $region86: #{tpu_custom_call.1} parent=71 // pred_check_branch
          %543 = sbr.rel (%p541) target = $region88
        $region87: #{tpu_custom_call.1} parent=71 // pred_region
          %544 = dma.done [#allocation9], 15360
        $region88: #{tpu_custom_call.1} parent=71 // pred_fallthru
          _
        // Predicated region
        $region89: #{tpu_custom_call.1} parent=71 // pred_check
          %p545 = pneg %p141
        $region90: #{tpu_custom_call.1} parent=71 // pred_check_branch
          %547 = sbr.rel (%p545) target = $region92
        $region91: #{tpu_custom_call.1} parent=71 // pred_region
          %548 = dma.done [#allocation9], 48
        $region92: #{tpu_custom_call.1} parent=71 // pred_fallthru
          _
        // Predicated region
        $region93: #{tpu_custom_call.1} parent=71 // pred_check
          %p549 = pneg %p162
        $region94: #{tpu_custom_call.1} parent=71 // pred_check_branch
          %551 = sbr.rel (%p549) target = $region96
        $region95: #{tpu_custom_call.1} parent=71 // pred_region
          %552 = dma.done [#allocation12], 24576
        $region96: #{tpu_custom_call.1} parent=71 // pred_fallthru
          _
        // Predicated region
        $region97: #{tpu_custom_call.1} parent=71 // pred_check
          %p553 = pneg %p183
        $region98: #{tpu_custom_call.1} parent=71 // pred_check_branch
          %555 = sbr.rel (%p553) target = $region100
        $region99: #{tpu_custom_call.1} parent=71 // pred_region
          %556 = dma.done [#allocation12], 128
        $region100: #{tpu_custom_call.1} parent=71 // pred_fallthru
          _
        // Predicated region
        $region101: #{tpu_custom_call.1} parent=71 // pred_check
          %p557 = pneg %p204
        $region102: #{tpu_custom_call.1} parent=71 // pred_check_branch
          %559 = sbr.rel (%p557) target = $region104
        $region103: #{tpu_custom_call.1} parent=71 // pred_region
          %560 = dma.done [#allocation15], 49152
        $region104: #{tpu_custom_call.1} parent=71 // pred_fallthru
          _
        // Predicated region
        $region105: #{tpu_custom_call.1} parent=71 // pred_check
          %p561 = pneg %p225
        $region106: #{tpu_custom_call.1} parent=71 // pred_check_branch
          %563 = sbr.rel (%p561) target = $region108
        $region107: #{tpu_custom_call.1} parent=71 // pred_region
          %564 = dma.done [#allocation15], 96
        $region108: #{tpu_custom_call.1} parent=71 // pred_fallthru
          _
        // Predicated region
        $region109: #{tpu_custom_call.1} parent=71 // pred_check
          %p565 = pneg %p246
        $region110: #{tpu_custom_call.1} parent=71 // pred_check_branch
          %567 = sbr.rel (%p565) target = $region112
        $region111: #{tpu_custom_call.1} parent=71 // pred_region
          %568 = dma.done [#allocation18], 30720
        $region112: #{tpu_custom_call.1} parent=71 // pred_fallthru
          _
        // Predicated region
        $region113: #{tpu_custom_call.1} parent=71 // pred_check
          %p569 = pneg %p267
        $region114: #{tpu_custom_call.1} parent=71 // pred_check_branch
          %571 = sbr.rel (%p569) target = $region116
        $region115: #{tpu_custom_call.1} parent=71 // pred_region
          %572 = dma.done [#allocation18], 80
        $region116: #{tpu_custom_call.1} parent=71 // pred_fallthru
          _
        // Predicated region
        $region117: #{tpu_custom_call.1} parent=71 // pred_check
          %p573 = pneg %p288
        $region118: #{tpu_custom_call.1} parent=71 // pred_check_branch
          %575 = sbr.rel (%p573) target = $region120
        $region119: #{tpu_custom_call.1} parent=71 // pred_region
          %576 = dma.done [#allocation21], 10240
        $region120: #{tpu_custom_call.1} parent=71 // pred_fallthru
          _
        // Predicated region
        $region121: #{tpu_custom_call.1} parent=71 // pred_check
          %p577 = pneg %p309
        $region122: #{tpu_custom_call.1} parent=71 // pred_check_branch
          %579 = sbr.rel (%p577) target = $region124
        $region123: #{tpu_custom_call.1} parent=71 // pred_region
          %580 = dma.done [#allocation21], 32
        $region124: #{tpu_custom_call.1} parent=71 // pred_fallthru
          _
        %s581 = sand.u32 %s44, 1
        %s582 = scalar_lea.sflag [#allocation3], %s581
        %s583 = sand.u32 %s44, 1
        %s584 = smul.addr %s583, 16
        %s585 = scalar_lea.vmem [#allocation2], %s584
        %p586 = pneg %p57
        %p587 = pneg %p54
        %p588 = pneg %p78
        %p589 = pneg %p75
        %p590 = pneg %p99
        %p591 = pneg %p96
        %p592 = pneg %p120
        %p593 = pneg %p117
        %p594 = pneg %p141
        %p595 = pneg %p138
        %p596 = pneg %p162
        %p597 = pneg %p159
        %p598 = pneg %p183
        %p599 = pneg %p180
        %p600 = pneg %p204
        %p601 = pneg %p201
        %p602 = pneg %p225
        %p603 = pneg %p222
        %p604 = pneg %p246
        %p605 = pneg %p243
        %p606 = pneg %p267
        %p607 = pneg %p264
        %p608 = pneg %p288
        %p609 = pneg %p285
        %p610 = pneg %p309
        %p611 = pneg %p306
        %p612 = pneg %p335
        %p613 = pneg %p332
        %s614 = sand.u32 %s322, 1
        %s615 = scalar_lea.sflag [#allocation4], %s614
        %s616 = sand.u32 %s322, 1
        %s617 = smul.addr %s616, 16
        %s618 = scalar_lea.vmem [#allocation23], %s617
        %v620 = vld [vmem:[%s528] sm:$0xff]
        %v621 = vld [vmem:[%s528 + $0x8] sm:$0xff]
        %v622 = vld [vmem:[#allocation5] sm:$0xff]
        %v623 = vld [vmem:[#allocation5 + $0x8] sm:$0xff]
        %v624 = vld [vmem:[#allocation5 + $0x10] sm:$0xf]
        %v625 = vld [vmem:[#allocation5 + $0x14] sm:$0xff]
        %v626 = vld [vmem:[#allocation5 + $0x1c] sm:$0xff]
        %v627 = vld [vmem:[#allocation5 + $0x24] sm:$0xf]
        %v628 = vld [vmem:[#allocation5 + $0x28] sm:$0xff]
        %v629 = vld [vmem:[#allocation5 + $0x30] sm:$0xff]
        %v630 = vld [vmem:[#allocation5 + $0x38] sm:$0xf]
        %v631 = vld [vmem:[#allocation5 + $0x3c] sm:$0xff]
        %v632 = vld [vmem:[#allocation5 + $0x44] sm:$0xff]
        %v633 = vld [vmem:[#allocation5 + $0x4c] sm:$0xf]
        %v634 = vld [vmem:[#allocation5 + $0x50] sm:$0xff]
        %v635 = vld [vmem:[#allocation5 + $0x58] sm:$0xff]
        %v636 = vld [vmem:[#allocation5 + $0x60] sm:$0xf]
        %v637 = vld [vmem:[#allocation5 + $0x64] sm:$0xff]
        %v638 = vld [vmem:[#allocation5 + $0x6c] sm:$0xff]
        %v639 = vld [vmem:[#allocation5 + $0x74] sm:$0xf]
        %v640 = vld [vmem:[#allocation5 + $0x78] sm:$0xff]
        %v641 = vld [vmem:[#allocation5 + $0x80] sm:$0xff]
        %v642 = vld [vmem:[#allocation5 + $0x88] sm:$0xf]
        %v643 = vld [vmem:[#allocation5 + $0x8c] sm:$0xff]
        %v644 = vld [vmem:[#allocation5 + $0x94] sm:$0xff]
        %v645 = vld [vmem:[#allocation5 + $0x9c] sm:$0xf]
        %v646 = vld [vmem:[#allocation5 + $0xa0] sm:$0xff]
        %v647 = vld [vmem:[#allocation5 + $0xa8] sm:$0xff]
        %v648 = vld [vmem:[#allocation5 + $0xb0] sm:$0xf]
        %v649 = vld [vmem:[#allocation5 + $0xb4] sm:$0xff]
        %v650 = vld [vmem:[#allocation5 + $0xbc] sm:$0xff]
        %v651 = vld [vmem:[#allocation5 + $0xc4] sm:$0xf]
        %v652 = vld [vmem:[#allocation5 + $0xc8] sm:$0xff]
        %v653 = vld [vmem:[#allocation5 + $0xd0] sm:$0xff]
        %v654 = vld [vmem:[#allocation5 + $0xd8] sm:$0xf]
        %v655 = vld [vmem:[#allocation5 + $0xdc] sm:$0xff]
        %v656 = vld [vmem:[#allocation5 + $0xe4] sm:$0xff]
        %v657 = vld [vmem:[#allocation5 + $0xec] sm:$0xf]
        %v658 = vld [vmem:[#allocation5 + $0xf0] sm:$0xff]
        %v659 = vld [vmem:[#allocation5 + $0xf8] sm:$0xff]
        %v660 = vld [vmem:[#allocation5 + $0x100] sm:$0xf]
        %v661 = vld [vmem:[#allocation5 + $0x104] sm:$0xff]
        %v662 = vld [vmem:[#allocation5 + $0x10c] sm:$0xff]
        %v663 = vld [vmem:[#allocation5 + $0x114] sm:$0xf]
        %v664 = vld [vmem:[#allocation5 + $0x118] sm:$0xff]
        %v665 = vld [vmem:[#allocation5 + $0x120] sm:$0xff]
        %v666 = vld [vmem:[#allocation5 + $0x128] sm:$0xf]
        %v667 = vld [vmem:[#allocation5 + $0x12c] sm:$0xff]
        %v668 = vld [vmem:[#allocation5 + $0x134] sm:$0xff]
        %v669 = vld [vmem:[#allocation5 + $0x13c] sm:$0xf]
        %v670 = vld [vmem:[#allocation5 + $0x140] sm:$0xff]
        %v671 = vld [vmem:[#allocation5 + $0x148] sm:$0xff]
        %v672 = vld [vmem:[#allocation5 + $0x150] sm:$0xf]
        %v673 = vld [vmem:[#allocation5 + $0x154] sm:$0xff]
        %v674 = vld [vmem:[#allocation5 + $0x15c] sm:$0xff]
        %v675 = vld [vmem:[#allocation5 + $0x164] sm:$0xf]
        %v676 = vld [vmem:[#allocation5 + $0x168] sm:$0xff]
        %v677 = vld [vmem:[#allocation5 + $0x170] sm:$0xff]
        %v678 = vld [vmem:[#allocation5 + $0x178] sm:$0xf]
        %v679 = vld [vmem:[#allocation5 + $0x17c] sm:$0xff]
        %v680 = vld [vmem:[#allocation5 + $0x184] sm:$0xff]
        %v681 = vld [vmem:[#allocation5 + $0x18c] sm:$0xf]
        %v682 = vld [vmem:[#allocation5 + $0x190] sm:$0xff]
        %v683 = vld [vmem:[#allocation5 + $0x198] sm:$0xff]
        %v684 = vld [vmem:[#allocation5 + $0x1a0] sm:$0xf]
        %v685 = vld [vmem:[#allocation5 + $0x1a4] sm:$0xff]
        %v686 = vld [vmem:[#allocation5 + $0x1ac] sm:$0xff]
        %v687 = vld [vmem:[#allocation5 + $0x1b4] sm:$0xf]
        %v688 = vld [vmem:[#allocation5 + $0x1b8] sm:$0xff]
        %v689 = vld [vmem:[#allocation5 + $0x1c0] sm:$0xff]
        %v690 = vld [vmem:[#allocation5 + $0x1c8] sm:$0xf]
        %v691 = vld [vmem:[#allocation5 + $0x1cc] sm:$0xff]
        %v692 = vld [vmem:[#allocation5 + $0x1d4] sm:$0xff]
        %v693 = vld [vmem:[#allocation5 + $0x1dc] sm:$0xf]
        %v694 = vld [vmem:[#allocation5 + $0x1e0] sm:$0xff]
        %v695 = vld [vmem:[#allocation5 + $0x1e8] sm:$0xff]
        %v696 = vld [vmem:[#allocation5 + $0x1f0] sm:$0xf]
        %v697 = vld [vmem:[#allocation5 + $0x1f4] sm:$0xff]
        %v698 = vld [vmem:[#allocation5 + $0x1fc] sm:$0xff]
        %v699 = vld [vmem:[#allocation5 + $0x204] sm:$0xf]
        %v700 = vld [vmem:[#allocation5 + $0x208] sm:$0xff]
        %v701 = vld [vmem:[#allocation5 + $0x210] sm:$0xff]
        %v702 = vld [vmem:[#allocation5 + $0x218] sm:$0xf]
        %v703 = vld [vmem:[#allocation5 + $0x21c] sm:$0xff]
        %v704 = vld [vmem:[#allocation5 + $0x224] sm:$0xff]
        %v705 = vld [vmem:[#allocation5 + $0x22c] sm:$0xf]
        %v706 = vld [vmem:[#allocation5 + $0x230] sm:$0xff]
        %v707 = vld [vmem:[#allocation5 + $0x238] sm:$0xff]
        %v708 = vld [vmem:[#allocation5 + $0x240] sm:$0xf]
        %v709 = vld [vmem:[#allocation5 + $0x244] sm:$0xff]
        %v710 = vld [vmem:[#allocation5 + $0x24c] sm:$0xff]
        %v711 = vld [vmem:[#allocation5 + $0x254] sm:$0xf]
        %v712 = vld [vmem:[#allocation5 + $0x258] sm:$0xff]
        %v713 = vld [vmem:[#allocation5 + $0x260] sm:$0xff]
        %v714 = vld [vmem:[#allocation5 + $0x268] sm:$0xf]
        %v715 = vld [vmem:[#allocation5 + $0x26c] sm:$0xff]
        %v716 = vld [vmem:[#allocation5 + $0x274] sm:$0xff]
        %v717 = vld [vmem:[#allocation5 + $0x27c] sm:$0xf]
        %v718 = vld [vmem:[#allocation7] sm:$0x1f]
        %v719 = vpack.c.bf16 %v620, %v620
        %v720 = vpack.c.bf16 %v621, %v621
        %v722 = vlaneseq
        %v723 = vshrl.u32 %v722, 7
        %v724 = vsub.s32 0, %v723
        %v725 = vrot.slane %v718, %v724
        %v726 = vlaneseq
        %v727 = vshrl.u32 %v726, 7
        %v728 = vsub.s32 1, %v727
        %v729 = vrot.slane %v718, %v728
        %v730 = vlaneseq
        %v731 = vshrl.u32 %v730, 7
        %v732 = vsub.s32 2, %v731
        %v733 = vrot.slane %v718, %v732
        %v734 = vlaneseq
        %v735 = vshrl.u32 %v734, 7
        %v736 = vsub.s32 3, %v735
        %v737 = vrot.slane %v718, %v736
        %v738 = vlaneseq
        %v739 = vshrl.u32 %v738, 7
        %v740 = vsub.s32 4, %v739
        %v741 = vrot.slane %v718, %v740
        %v843 = vunpack.c.l.b16 %v622
        %v844 = vunpack.c.h.b16 %v622
        %v845 = vunpack.c.l.b16 %v623
        %v846 = vunpack.c.h.b16 %v623
        %v847 = vunpack.c.l.b16 %v624
        %v848 = vunpack.c.l.b16 %v625
        %v849 = vunpack.c.h.b16 %v625
        %v850 = vunpack.c.l.b16 %v626
        %v851 = vunpack.c.h.b16 %v626
        %v852 = vunpack.c.l.b16 %v627
        %v853 = vunpack.c.l.b16 %v628
        %v854 = vunpack.c.h.b16 %v628
        %v855 = vunpack.c.l.b16 %v629
        %v856 = vunpack.c.h.b16 %v629
        %v857 = vunpack.c.l.b16 %v630
        %v858 = vunpack.c.l.b16 %v631
        %v859 = vunpack.c.h.b16 %v631
        %v860 = vunpack.c.l.b16 %v632
        %v861 = vunpack.c.h.b16 %v632
        %v862 = vunpack.c.l.b16 %v633
        %v863 = vunpack.c.l.b16 %v634
        %v864 = vunpack.c.h.b16 %v634
        %v865 = vunpack.c.l.b16 %v635
        %v866 = vunpack.c.h.b16 %v635
        %v867 = vunpack.c.l.b16 %v636
        %v868 = vunpack.c.l.b16 %v637
        %v869 = vunpack.c.h.b16 %v637
        %v870 = vunpack.c.l.b16 %v638
        %v871 = vunpack.c.h.b16 %v638
        %v872 = vunpack.c.l.b16 %v639
        %v873 = vunpack.c.l.b16 %v640
        %v874 = vunpack.c.h.b16 %v640
        %v875 = vunpack.c.l.b16 %v641
        %v876 = vunpack.c.h.b16 %v641
        %v877 = vunpack.c.l.b16 %v642
        %v878 = vunpack.c.l.b16 %v643
        %v879 = vunpack.c.h.b16 %v643
        %v880 = vunpack.c.l.b16 %v644
        %v881 = vunpack.c.h.b16 %v644
        %v882 = vunpack.c.l.b16 %v645
        %v883 = vunpack.c.l.b16 %v646
        %v884 = vunpack.c.h.b16 %v646
        %v885 = vunpack.c.l.b16 %v647
        %v886 = vunpack.c.h.b16 %v647
        %v887 = vunpack.c.l.b16 %v648
        %v888 = vunpack.c.l.b16 %v649
        %v889 = vunpack.c.h.b16 %v649
        %v890 = vunpack.c.l.b16 %v650
        %v891 = vunpack.c.h.b16 %v650
        %v892 = vunpack.c.l.b16 %v651
        %v893 = vunpack.c.l.b16 %v652
        %v894 = vunpack.c.h.b16 %v652
        %v895 = vunpack.c.l.b16 %v653
        %v896 = vunpack.c.h.b16 %v653
        %v897 = vunpack.c.l.b16 %v654
        %v898 = vunpack.c.l.b16 %v655
        %v899 = vunpack.c.h.b16 %v655
        %v900 = vunpack.c.l.b16 %v656
        %v901 = vunpack.c.h.b16 %v656
        %v902 = vunpack.c.l.b16 %v657
        %v903 = vunpack.c.l.b16 %v658
        %v904 = vunpack.c.h.b16 %v658
        %v905 = vunpack.c.l.b16 %v659
        %v906 = vunpack.c.h.b16 %v659
        %v907 = vunpack.c.l.b16 %v660
        %v908 = vunpack.c.l.b16 %v661
        %v909 = vunpack.c.h.b16 %v661
        %v910 = vunpack.c.l.b16 %v662
        %v911 = vunpack.c.h.b16 %v662
        %v912 = vunpack.c.l.b16 %v663
        %v913 = vunpack.c.l.b16 %v664
        %v914 = vunpack.c.h.b16 %v664
        %v915 = vunpack.c.l.b16 %v665
        %v916 = vunpack.c.h.b16 %v665
        %v917 = vunpack.c.l.b16 %v666
        %v918 = vunpack.c.l.b16 %v667
        %v919 = vunpack.c.h.b16 %v667
        %v920 = vunpack.c.l.b16 %v668
        %v921 = vunpack.c.h.b16 %v668
        %v922 = vunpack.c.l.b16 %v669
        %v923 = vunpack.c.l.b16 %v670
        %v924 = vunpack.c.h.b16 %v670
        %v925 = vunpack.c.l.b16 %v671
        %v926 = vunpack.c.h.b16 %v671
        %v927 = vunpack.c.l.b16 %v672
        %v928 = vunpack.c.l.b16 %v673
        %v929 = vunpack.c.h.b16 %v673
        %v930 = vunpack.c.l.b16 %v674
        %v931 = vunpack.c.h.b16 %v674
        %v932 = vunpack.c.l.b16 %v675
        %v933 = vunpack.c.l.b16 %v676
        %v934 = vunpack.c.h.b16 %v676
        %v935 = vunpack.c.l.b16 %v677
        %v936 = vunpack.c.h.b16 %v677
        %v937 = vunpack.c.l.b16 %v678
        %v938 = vunpack.c.l.b16 %v679
        %v939 = vunpack.c.h.b16 %v679
        %v940 = vunpack.c.l.b16 %v680
        %v941 = vunpack.c.h.b16 %v680
        %v942 = vunpack.c.l.b16 %v681
        %v943 = vunpack.c.l.b16 %v682
        %v944 = vunpack.c.h.b16 %v682
        %v945 = vunpack.c.l.b16 %v683
        %v946 = vunpack.c.h.b16 %v683
        %v947 = vunpack.c.l.b16 %v684
        %v948 = vunpack.c.l.b16 %v685
        %v949 = vunpack.c.h.b16 %v685
        %v950 = vunpack.c.l.b16 %v686
        %v951 = vunpack.c.h.b16 %v686
        %v952 = vunpack.c.l.b16 %v687
        %v953 = vunpack.c.l.b16 %v688
        %v954 = vunpack.c.h.b16 %v688
        %v955 = vunpack.c.l.b16 %v689
        %v956 = vunpack.c.h.b16 %v689
        %v957 = vunpack.c.l.b16 %v690
        %v958 = vunpack.c.l.b16 %v691
        %v959 = vunpack.c.h.b16 %v691
        %v960 = vunpack.c.l.b16 %v692
        %v961 = vunpack.c.h.b16 %v692
        %v962 = vunpack.c.l.b16 %v693
        %v963 = vunpack.c.l.b16 %v694
        %v964 = vunpack.c.h.b16 %v694
        %v965 = vunpack.c.l.b16 %v695
        %v966 = vunpack.c.h.b16 %v695
        %v967 = vunpack.c.l.b16 %v696
        %v968 = vunpack.c.l.b16 %v697
        %v969 = vunpack.c.h.b16 %v697
        %v970 = vunpack.c.l.b16 %v698
        %v971 = vunpack.c.h.b16 %v698
        %v972 = vunpack.c.l.b16 %v699
        %v973 = vunpack.c.l.b16 %v700
        %v974 = vunpack.c.h.b16 %v700
        %v975 = vunpack.c.l.b16 %v701
        %v976 = vunpack.c.h.b16 %v701
        %v977 = vunpack.c.l.b16 %v702
        %v978 = vunpack.c.l.b16 %v703
        %v979 = vunpack.c.h.b16 %v703
        %v980 = vunpack.c.l.b16 %v704
        %v981 = vunpack.c.h.b16 %v704
        %v982 = vunpack.c.l.b16 %v705
        %v983 = vunpack.c.l.b16 %v706
        %v984 = vunpack.c.h.b16 %v706
        %v985 = vunpack.c.l.b16 %v707
        %v986 = vunpack.c.h.b16 %v707
        %v987 = vunpack.c.l.b16 %v708
        %v988 = vunpack.c.l.b16 %v709
        %v989 = vunpack.c.h.b16 %v709
        %v990 = vunpack.c.l.b16 %v710
        %v991 = vunpack.c.h.b16 %v710
        %v992 = vunpack.c.l.b16 %v711
        %v993 = vunpack.c.l.b16 %v712
        %v994 = vunpack.c.h.b16 %v712
        %v995 = vunpack.c.l.b16 %v713
        %v996 = vunpack.c.h.b16 %v713
        %v997 = vunpack.c.l.b16 %v714
        %v998 = vunpack.c.l.b16 %v715
        %v999 = vunpack.c.h.b16 %v715
        %v1000 = vunpack.c.l.b16 %v716
        %v1001 = vunpack.c.h.b16 %v716
        %v1002 = vunpack.c.l.b16 %v717
        %v1003 = vpack.c.b16 %v848, %v843
        %v1004 = vpack.c.b16 %v849, %v844
        %v1005 = vpack.c.b16 %v850, %v845
        %v1006 = vpack.c.b16 %v851, %v846
        %v1007 = vpack.c.b16 %v852, %v847
        %v1008 = vpack.c.b16 %v858, %v853
        %v1009 = vpack.c.b16 %v859, %v854
        %v1010 = vpack.c.b16 %v860, %v855
        %v1011 = vpack.c.b16 %v861, %v856
        %v1012 = vpack.c.b16 %v862, %v857
        %v1013 = vpack.c.b16 %v868, %v863
        %v1014 = vpack.c.b16 %v869, %v864
        %v1015 = vpack.c.b16 %v870, %v865
        %v1016 = vpack.c.b16 %v871, %v866
        %v1017 = vpack.c.b16 %v872, %v867
        %v1018 = vpack.c.b16 %v878, %v873
        %v1019 = vpack.c.b16 %v879, %v874
        %v1020 = vpack.c.b16 %v880, %v875
        %v1021 = vpack.c.b16 %v881, %v876
        %v1022 = vpack.c.b16 %v882, %v877
        %v1023 = vpack.c.b16 %v888, %v883
        %v1024 = vpack.c.b16 %v889, %v884
        %v1025 = vpack.c.b16 %v890, %v885
        %v1026 = vpack.c.b16 %v891, %v886
        %v1027 = vpack.c.b16 %v892, %v887
        %v1028 = vpack.c.b16 %v898, %v893
        %v1029 = vpack.c.b16 %v899, %v894
        %v1030 = vpack.c.b16 %v900, %v895
        %v1031 = vpack.c.b16 %v901, %v896
        %v1032 = vpack.c.b16 %v902, %v897
        %v1033 = vpack.c.b16 %v908, %v903
        %v1034 = vpack.c.b16 %v909, %v904
        %v1035 = vpack.c.b16 %v910, %v905
        %v1036 = vpack.c.b16 %v911, %v906
        %v1037 = vpack.c.b16 %v912, %v907
        %v1038 = vpack.c.b16 %v918, %v913
        %v1039 = vpack.c.b16 %v919, %v914
        %v1040 = vpack.c.b16 %v920, %v915
        %v1041 = vpack.c.b16 %v921, %v916
        %v1042 = vpack.c.b16 %v922, %v917
        %v1043 = vpack.c.b16 %v928, %v923
        %v1044 = vpack.c.b16 %v929, %v924
        %v1045 = vpack.c.b16 %v930, %v925
        %v1046 = vpack.c.b16 %v931, %v926
        %v1047 = vpack.c.b16 %v932, %v927
        %v1048 = vpack.c.b16 %v938, %v933
        %v1049 = vpack.c.b16 %v939, %v934
        %v1050 = vpack.c.b16 %v940, %v935
        %v1051 = vpack.c.b16 %v941, %v936
        %v1052 = vpack.c.b16 %v942, %v937
        %v1053 = vpack.c.b16 %v948, %v943
        %v1054 = vpack.c.b16 %v949, %v944
        %v1055 = vpack.c.b16 %v950, %v945
        %v1056 = vpack.c.b16 %v951, %v946
        %v1057 = vpack.c.b16 %v952, %v947
        %v1058 = vpack.c.b16 %v958, %v953
        %v1059 = vpack.c.b16 %v959, %v954
        %v1060 = vpack.c.b16 %v960, %v955
        %v1061 = vpack.c.b16 %v961, %v956
        %v1062 = vpack.c.b16 %v962, %v957
        %v1063 = vpack.c.b16 %v968, %v963
        %v1064 = vpack.c.b16 %v969, %v964
        %v1065 = vpack.c.b16 %v970, %v965
        %v1066 = vpack.c.b16 %v971, %v966
        %v1067 = vpack.c.b16 %v972, %v967
        %v1068 = vpack.c.b16 %v978, %v973
        %v1069 = vpack.c.b16 %v979, %v974
        %v1070 = vpack.c.b16 %v980, %v975
        %v1071 = vpack.c.b16 %v981, %v976
        %v1072 = vpack.c.b16 %v982, %v977
        %v1073 = vpack.c.b16 %v988, %v983
        %v1074 = vpack.c.b16 %v989, %v984
        %v1075 = vpack.c.b16 %v990, %v985
        %v1076 = vpack.c.b16 %v991, %v986
        %v1077 = vpack.c.b16 %v992, %v987
        %v1078 = vpack.c.b16 %v998, %v993
        %v1079 = vpack.c.b16 %v999, %v994
        %v1080 = vpack.c.b16 %v1000, %v995
        %v1081 = vpack.c.b16 %v1001, %v996
        %v1082 = vpack.c.b16 %v1002, %v997
        %1163 = vmatprep.subr.bf16.mxu0 %v1039
        %1164 = vmatpush1.bf16.msra.mxu0 %v1038
        %1165 = vmatprep.subr.bf16.mxu0 %v1034
        %1166 = vmatpush1.bf16.msra.mxu0 %v1033
        %1167 = vmatprep.subr.bf16.mxu0 %v1029
        %1168 = vmatpush1.bf16.msra.mxu0 %v1028
        %1169 = vmatprep.subr.bf16.mxu0 %v1024
        %1170 = vmatpush1.bf16.msra.mxu0 %v1023
        %1171 = vmatprep.subr.bf16.mxu0 %v1019
        %1172 = vmatpush1.bf16.msra.mxu0 %v1018
        %1173 = vmatprep.subr.bf16.mxu0 %v1014
        %1174 = vmatpush1.bf16.msra.mxu0 %v1013
        %1175 = vmatprep.subr.bf16.mxu0 %v1009
        %1176 = vmatpush1.bf16.msra.mxu0 %v1008
        %1177 = vmatprep.subr.bf16.mxu0 %v1004
        %1178 = vmatpush1.bf16.msra.mxu0 %v1003
        %1179 = vmatprep.subr.bf16.mxu0 %v1079
        %1180 = vmatpush2.bf16.msra.mxu0 %v1078
        %1181 = vmatprep.subr.bf16.mxu0 %v1074
        %1182 = vmatpush2.bf16.msra.mxu0 %v1073
        %1183 = vmatprep.subr.bf16.mxu0 %v1069
        %1184 = vmatpush2.bf16.msra.mxu0 %v1068
        %1185 = vmatprep.subr.bf16.mxu0 %v1064
        %1186 = vmatpush2.bf16.msra.mxu0 %v1063
        %1187 = vmatprep.subr.bf16.mxu0 %v1059
        %1188 = vmatpush2.bf16.msra.mxu0 %v1058
        %1189 = vmatprep.subr.bf16.mxu0 %v1054
        %1190 = vmatpush2.bf16.msra.mxu0 %v1053
        %1191 = vmatprep.subr.bf16.mxu0 %v1049
        %1192 = vmatpush2.bf16.msra.mxu0 %v1048
        %1193 = vmatprep.subr.bf16.mxu0 %v1044
        %1194 = vmatpush2.bf16.msra.mxu0 %v1043
        %1195 = vmatprep.mubr.bf16.mxu0 %v720
        %1196 = vmatmul.mubr.bf16.gmra.mxu0 %v719
        %v1197 = vpop.f32.mrf.mxu0
        %v1198 = vadd.f32 %v725, %v1197
        %v1199 = vpop.f32.mrf.mxu0
        %v1200 = vadd.f32 %v729, %v1199
        %v1201 = vpop.f32.mrf.mxu0
        %v1202 = vpop.f32.mrf.mxu0
        %1203 = vdwg.mxu0
        %1204 = vmatprep.subr.bf16.mxu0 %v1041
        %1205 = vmatpush1.bf16.msra.mxu0 %v1040
        %1206 = vmatprep.subr.bf16.mxu0 %v1036
        %1207 = vmatpush1.bf16.msra.mxu0 %v1035
        %1208 = vmatprep.subr.bf16.mxu0 %v1031
        %1209 = vmatpush1.bf16.msra.mxu0 %v1030
        %1210 = vmatprep.subr.bf16.mxu0 %v1026
        %1211 = vmatpush1.bf16.msra.mxu0 %v1025
        %1212 = vmatprep.subr.bf16.mxu0 %v1021
        %1213 = vmatpush1.bf16.msra.mxu0 %v1020
        %1214 = vmatprep.subr.bf16.mxu0 %v1016
        %1215 = vmatpush1.bf16.msra.mxu0 %v1015
        %1216 = vmatprep.subr.bf16.mxu0 %v1011
        %1217 = vmatpush1.bf16.msra.mxu0 %v1010
        %1218 = vmatprep.subr.bf16.mxu0 %v1006
        %1219 = vmatpush1.bf16.msra.mxu0 %v1005
        %1220 = vmatprep.subr.bf16.mxu0 %v1081
        %1221 = vmatpush2.bf16.msra.mxu0 %v1080
        %1222 = vmatprep.subr.bf16.mxu0 %v1076
        %1223 = vmatpush2.bf16.msra.mxu0 %v1075
        %1224 = vmatprep.subr.bf16.mxu0 %v1071
        %1225 = vmatpush2.bf16.msra.mxu0 %v1070
        %1226 = vmatprep.subr.bf16.mxu0 %v1066
        %1227 = vmatpush2.bf16.msra.mxu0 %v1065
        %1228 = vmatprep.subr.bf16.mxu0 %v1061
        %1229 = vmatpush2.bf16.msra.mxu0 %v1060
        %1230 = vmatprep.subr.bf16.mxu0 %v1056
        %1231 = vmatpush2.bf16.msra.mxu0 %v1055
        %1232 = vmatprep.subr.bf16.mxu0 %v1051
        %1233 = vmatpush2.bf16.msra.mxu0 %v1050
        %1234 = vmatprep.subr.bf16.mxu0 %v1046
        %1235 = vmatpush2.bf16.msra.mxu0 %v1045
        %1236 = vmatprep.mubr.bf16.mxu0 %v720
        %1237 = vmatmul.mubr.bf16.gmra.mxu0 %v719
        %v1238 = vpop.f32.mrf.mxu0
        %v1239 = vadd.f32 %v733, %v1238
        %v1240 = vpop.f32.mrf.mxu0
        %v1241 = vadd.f32 %v737, %v1240
        %v1242 = vpop.f32.mrf.mxu0
        %v1243 = vpop.f32.mrf.mxu0
        %1244 = vdwg.mxu0
        %1245 = vmatprep.subr.bf16.mxu0 0
        %1246 = vmatpush1.bf16.msra.mxu0 %v1042
        %1247 = vmatprep.subr.bf16.mxu0 0
        %1248 = vmatpush1.bf16.msra.mxu0 %v1037
        %1249 = vmatprep.subr.bf16.mxu0 0
        %1250 = vmatpush1.bf16.msra.mxu0 %v1032
        %1251 = vmatprep.subr.bf16.mxu0 0
        %1252 = vmatpush1.bf16.msra.mxu0 %v1027
        %1253 = vmatprep.subr.bf16.mxu0 0
        %1254 = vmatpush1.bf16.msra.mxu0 %v1022
        %1255 = vmatprep.subr.bf16.mxu0 0
        %1256 = vmatpush1.bf16.msra.mxu0 %v1017
        %1257 = vmatprep.subr.bf16.mxu0 0
        %1258 = vmatpush1.bf16.msra.mxu0 %v1012
        %1259 = vmatprep.subr.bf16.mxu0 0
        %1260 = vmatpush1.bf16.msra.mxu0 %v1007
        %1261 = vmatprep.subr.bf16.mxu0 0
        %1262 = vmatpush2.bf16.msra.mxu0 %v1082
        %1263 = vmatprep.subr.bf16.mxu0 0
        %1264 = vmatpush2.bf16.msra.mxu0 %v1077
        %1265 = vmatprep.subr.bf16.mxu0 0
        %1266 = vmatpush2.bf16.msra.mxu0 %v1072
        %1267 = vmatprep.subr.bf16.mxu0 0
        %1268 = vmatpush2.bf16.msra.mxu0 %v1067
        %1269 = vmatprep.subr.bf16.mxu0 0
        %1270 = vmatpush2.bf16.msra.mxu0 %v1062
        %1271 = vmatprep.subr.bf16.mxu0 0
        %1272 = vmatpush2.bf16.msra.mxu0 %v1057
        %1273 = vmatprep.subr.bf16.mxu0 0
        %1274 = vmatpush2.bf16.msra.mxu0 %v1052
        %1275 = vmatprep.subr.bf16.mxu0 0
        %1276 = vmatpush2.bf16.msra.mxu0 %v1047
        %1277 = vmatprep.mubr.bf16.mxu0 %v720
        %1278 = vmatmul.mubr.bf16.gmra.mxu0 %v719
        %v1279 = vpop.f32.mrf.mxu0
        %v1280 = vadd.f32 %v741, %v1279
        %v1281 = vpop.f32.mrf.mxu0
        %v1282 = vpop.f32.mrf.mxu0
        %v1283 = vpop.f32.mrf.mxu0
        %1284 = vdwg.mxu0
        %v1285 = vtanh.pop %v1198
        %v1286 = vtanh.pop %v1200
        %v1287 = vtanh.pop %v1239
        %v1288 = vtanh.pop %v1241
        %v1289 = vtanh.pop %v1280
        %v1290 = vld [vmem:[#allocation8] sm:$0xff]
        %v1291 = vld [vmem:[#allocation8 + $0x8] sm:$0xf]
        %v1292 = vld [vmem:[#allocation8 + $0xc] sm:$0xff]
        %v1293 = vld [vmem:[#allocation8 + $0x14] sm:$0xf]
        %v1294 = vld [vmem:[#allocation8 + $0x18] sm:$0xff]
        %v1295 = vld [vmem:[#allocation8 + $0x20] sm:$0xf]
        %v1296 = vld [vmem:[#allocation8 + $0x24] sm:$0xff]
        %v1297 = vld [vmem:[#allocation8 + $0x2c] sm:$0xf]
        %v1298 = vld [vmem:[#allocation8 + $0x30] sm:$0xff]
        %v1299 = vld [vmem:[#allocation8 + $0x38] sm:$0xf]
        %v1300 = vld [vmem:[#allocation8 + $0x3c] sm:$0xff]
        %v1301 = vld [vmem:[#allocation8 + $0x44] sm:$0xf]
        %v1302 = vld [vmem:[#allocation8 + $0x48] sm:$0xff]
        %v1303 = vld [vmem:[#allocation8 + $0x50] sm:$0xf]
        %v1304 = vld [vmem:[#allocation8 + $0x54] sm:$0xff]
        %v1305 = vld [vmem:[#allocation8 + $0x5c] sm:$0xf]
        %v1306 = vld [vmem:[#allocation8 + $0x60] sm:$0xff]
        %v1307 = vld [vmem:[#allocation8 + $0x68] sm:$0xf]
        %v1308 = vld [vmem:[#allocation8 + $0x6c] sm:$0xff]
        %v1309 = vld [vmem:[#allocation8 + $0x74] sm:$0xf]
        %v1310 = vld [vmem:[#allocation8 + $0x78] sm:$0xff]
        %v1311 = vld [vmem:[#allocation8 + $0x80] sm:$0xf]
        %v1312 = vld [vmem:[#allocation8 + $0x84] sm:$0xff]
        %v1313 = vld [vmem:[#allocation8 + $0x8c] sm:$0xf]
        %v1314 = vld [vmem:[#allocation8 + $0x90] sm:$0xff]
        %v1315 = vld [vmem:[#allocation8 + $0x98] sm:$0xf]
        %v1316 = vld [vmem:[#allocation8 + $0x9c] sm:$0xff]
        %v1317 = vld [vmem:[#allocation8 + $0xa4] sm:$0xf]
        %v1318 = vld [vmem:[#allocation8 + $0xa8] sm:$0xff]
        %v1319 = vld [vmem:[#allocation8 + $0xb0] sm:$0xf]
        %v1320 = vld [vmem:[#allocation8 + $0xb4] sm:$0xff]
        %v1321 = vld [vmem:[#allocation8 + $0xbc] sm:$0xf]
        %v1322 = vld [vmem:[#allocation8 + $0xc0] sm:$0xff]
        %v1323 = vld [vmem:[#allocation8 + $0xc8] sm:$0xf]
        %v1324 = vld [vmem:[#allocation8 + $0xcc] sm:$0xff]
        %v1325 = vld [vmem:[#allocation8 + $0xd4] sm:$0xf]
        %v1326 = vld [vmem:[#allocation8 + $0xd8] sm:$0xff]
        %v1327 = vld [vmem:[#allocation8 + $0xe0] sm:$0xf]
        %v1328 = vld [vmem:[#allocation8 + $0xe4] sm:$0xff]
        %v1329 = vld [vmem:[#allocation8 + $0xec] sm:$0xf]
        %v1330 = vld [vmem:[#allocation8 + $0xf0] sm:$0xff]
        %v1331 = vld [vmem:[#allocation8 + $0xf8] sm:$0xf]
        %v1332 = vld [vmem:[#allocation8 + $0xfc] sm:$0xff]
        %v1333 = vld [vmem:[#allocation8 + $0x104] sm:$0xf]
        %v1334 = vld [vmem:[#allocation8 + $0x108] sm:$0xff]
        %v1335 = vld [vmem:[#allocation8 + $0x110] sm:$0xf]
        %v1336 = vld [vmem:[#allocation8 + $0x114] sm:$0xff]
        %v1337 = vld [vmem:[#allocation8 + $0x11c] sm:$0xf]
        %v1338 = vld [vmem:[#allocation8 + $0x120] sm:$0xff]
        %v1339 = vld [vmem:[#allocation8 + $0x128] sm:$0xf]
        %v1340 = vld [vmem:[#allocation8 + $0x12c] sm:$0xff]
        %v1341 = vld [vmem:[#allocation8 + $0x134] sm:$0xf]
        %v1342 = vld [vmem:[#allocation8 + $0x138] sm:$0xff]
        %v1343 = vld [vmem:[#allocation8 + $0x140] sm:$0xf]
        %v1344 = vld [vmem:[#allocation8 + $0x144] sm:$0xff]
        %v1345 = vld [vmem:[#allocation8 + $0x14c] sm:$0xf]
        %v1346 = vld [vmem:[#allocation8 + $0x150] sm:$0xff]
        %v1347 = vld [vmem:[#allocation8 + $0x158] sm:$0xf]
        %v1348 = vld [vmem:[#allocation8 + $0x15c] sm:$0xff]
        %v1349 = vld [vmem:[#allocation8 + $0x164] sm:$0xf]
        %v1350 = vld [vmem:[#allocation8 + $0x168] sm:$0xff]
        %v1351 = vld [vmem:[#allocation8 + $0x170] sm:$0xf]
        %v1352 = vld [vmem:[#allocation8 + $0x174] sm:$0xff]
        %v1353 = vld [vmem:[#allocation8 + $0x17c] sm:$0xf]
        %v1354 = vld [vmem:[#allocation8 + $0x180] sm:$0xff]
        %v1355 = vld [vmem:[#allocation8 + $0x188] sm:$0xf]
        %v1356 = vld [vmem:[#allocation8 + $0x18c] sm:$0xff]
        %v1357 = vld [vmem:[#allocation8 + $0x194] sm:$0xf]
        %v1358 = vld [vmem:[#allocation8 + $0x198] sm:$0xff]
        %v1359 = vld [vmem:[#allocation8 + $0x1a0] sm:$0xf]
        %v1360 = vld [vmem:[#allocation8 + $0x1a4] sm:$0xff]
        %v1361 = vld [vmem:[#allocation8 + $0x1ac] sm:$0xf]
        %v1362 = vld [vmem:[#allocation8 + $0x1b0] sm:$0xff]
        %v1363 = vld [vmem:[#allocation8 + $0x1b8] sm:$0xf]
        %v1364 = vld [vmem:[#allocation8 + $0x1bc] sm:$0xff]
        %v1365 = vld [vmem:[#allocation8 + $0x1c4] sm:$0xf]
        %v1366 = vld [vmem:[#allocation8 + $0x1c8] sm:$0xff]
        %v1367 = vld [vmem:[#allocation8 + $0x1d0] sm:$0xf]
        %v1368 = vld [vmem:[#allocation8 + $0x1d4] sm:$0xff]
        %v1369 = vld [vmem:[#allocation8 + $0x1dc] sm:$0xf]
        %v1370 = vld [vmem:[#allocation8 + $0x1e0] sm:$0xff]
        %v1371 = vld [vmem:[#allocation8 + $0x1e8] sm:$0xf]
        %v1372 = vld [vmem:[#allocation8 + $0x1ec] sm:$0xff]
        %v1373 = vld [vmem:[#allocation8 + $0x1f4] sm:$0xf]
        %v1374 = vld [vmem:[#allocation8 + $0x1f8] sm:$0xff]
        %v1375 = vld [vmem:[#allocation8 + $0x200] sm:$0xf]
        %v1376 = vld [vmem:[#allocation8 + $0x204] sm:$0xff]
        %v1377 = vld [vmem:[#allocation8 + $0x20c] sm:$0xf]
        %v1378 = vld [vmem:[#allocation8 + $0x210] sm:$0xff]
        %v1379 = vld [vmem:[#allocation8 + $0x218] sm:$0xf]
        %v1380 = vld [vmem:[#allocation8 + $0x21c] sm:$0xff]
        %v1381 = vld [vmem:[#allocation8 + $0x224] sm:$0xf]
        %v1382 = vld [vmem:[#allocation8 + $0x228] sm:$0xff]
        %v1383 = vld [vmem:[#allocation8 + $0x230] sm:$0xf]
        %v1384 = vld [vmem:[#allocation8 + $0x234] sm:$0xff]
        %v1385 = vld [vmem:[#allocation8 + $0x23c] sm:$0xf]
        %v1386 = vld [vmem:[#allocation8 + $0x240] sm:$0xff]
        %v1387 = vld [vmem:[#allocation8 + $0x248] sm:$0xf]
        %v1388 = vld [vmem:[#allocation8 + $0x24c] sm:$0xff]
        %v1389 = vld [vmem:[#allocation8 + $0x254] sm:$0xf]
        %v1390 = vld [vmem:[#allocation8 + $0x258] sm:$0xff]
        %v1391 = vld [vmem:[#allocation8 + $0x260] sm:$0xf]
        %v1392 = vld [vmem:[#allocation8 + $0x264] sm:$0xff]
        %v1393 = vld [vmem:[#allocation8 + $0x26c] sm:$0xf]
        %v1394 = vld [vmem:[#allocation8 + $0x270] sm:$0xff]
        %v1395 = vld [vmem:[#allocation8 + $0x278] sm:$0xf]
        %v1396 = vld [vmem:[#allocation8 + $0x27c] sm:$0xff]
        %v1397 = vld [vmem:[#allocation8 + $0x284] sm:$0xf]
        %v1398 = vld [vmem:[#allocation8 + $0x288] sm:$0xff]
        %v1399 = vld [vmem:[#allocation8 + $0x290] sm:$0xf]
        %v1400 = vld [vmem:[#allocation8 + $0x294] sm:$0xff]
        %v1401 = vld [vmem:[#allocation8 + $0x29c] sm:$0xf]
        %v1402 = vld [vmem:[#allocation8 + $0x2a0] sm:$0xff]
        %v1403 = vld [vmem:[#allocation8 + $0x2a8] sm:$0xf]
        %v1404 = vld [vmem:[#allocation8 + $0x2ac] sm:$0xff]
        %v1405 = vld [vmem:[#allocation8 + $0x2b4] sm:$0xf]
        %v1406 = vld [vmem:[#allocation8 + $0x2b8] sm:$0xff]
        %v1407 = vld [vmem:[#allocation8 + $0x2c0] sm:$0xf]
        %v1408 = vld [vmem:[#allocation8 + $0x2c4] sm:$0xff]
        %v1409 = vld [vmem:[#allocation8 + $0x2cc] sm:$0xf]
        %v1410 = vld [vmem:[#allocation8 + $0x2d0] sm:$0xff]
        %v1411 = vld [vmem:[#allocation8 + $0x2d8] sm:$0xf]
        %v1412 = vld [vmem:[#allocation8 + $0x2dc] sm:$0xff]
        %v1413 = vld [vmem:[#allocation8 + $0x2e4] sm:$0xf]
        %v1414 = vld [vmem:[#allocation8 + $0x2e8] sm:$0xff]
        %v1415 = vld [vmem:[#allocation8 + $0x2f0] sm:$0xf]
        %v1416 = vld [vmem:[#allocation8 + $0x2f4] sm:$0xff]
        %v1417 = vld [vmem:[#allocation8 + $0x2fc] sm:$0xf]
        %v1418 = vld [vmem:[#allocation8 + $0x300] sm:$0xff]
        %v1419 = vld [vmem:[#allocation8 + $0x308] sm:$0xf]
        %v1420 = vld [vmem:[#allocation8 + $0x30c] sm:$0xff]
        %v1421 = vld [vmem:[#allocation8 + $0x314] sm:$0xf]
        %v1422 = vld [vmem:[#allocation8 + $0x318] sm:$0xff]
        %v1423 = vld [vmem:[#allocation8 + $0x320] sm:$0xf]
        %v1424 = vld [vmem:[#allocation8 + $0x324] sm:$0xff]
        %v1425 = vld [vmem:[#allocation8 + $0x32c] sm:$0xf]
        %v1426 = vld [vmem:[#allocation8 + $0x330] sm:$0xff]
        %v1427 = vld [vmem:[#allocation8 + $0x338] sm:$0xf]
        %v1428 = vld [vmem:[#allocation8 + $0x33c] sm:$0xff]
        %v1429 = vld [vmem:[#allocation8 + $0x344] sm:$0xf]
        %v1430 = vld [vmem:[#allocation8 + $0x348] sm:$0xff]
        %v1431 = vld [vmem:[#allocation8 + $0x350] sm:$0xf]
        %v1432 = vld [vmem:[#allocation8 + $0x354] sm:$0xff]
        %v1433 = vld [vmem:[#allocation8 + $0x35c] sm:$0xf]
        %v1434 = vld [vmem:[#allocation8 + $0x360] sm:$0xff]
        %v1435 = vld [vmem:[#allocation8 + $0x368] sm:$0xf]
        %v1436 = vld [vmem:[#allocation8 + $0x36c] sm:$0xff]
        %v1437 = vld [vmem:[#allocation8 + $0x374] sm:$0xf]
        %v1438 = vld [vmem:[#allocation8 + $0x378] sm:$0xff]
        %v1439 = vld [vmem:[#allocation8 + $0x380] sm:$0xf]
        %v1440 = vld [vmem:[#allocation8 + $0x384] sm:$0xff]
        %v1441 = vld [vmem:[#allocation8 + $0x38c] sm:$0xf]
        %v1442 = vld [vmem:[#allocation8 + $0x390] sm:$0xff]
        %v1443 = vld [vmem:[#allocation8 + $0x398] sm:$0xf]
        %v1444 = vld [vmem:[#allocation8 + $0x39c] sm:$0xff]
        %v1445 = vld [vmem:[#allocation8 + $0x3a4] sm:$0xf]
        %v1446 = vld [vmem:[#allocation8 + $0x3a8] sm:$0xff]
        %v1447 = vld [vmem:[#allocation8 + $0x3b0] sm:$0xf]
        %v1448 = vld [vmem:[#allocation8 + $0x3b4] sm:$0xff]
        %v1449 = vld [vmem:[#allocation8 + $0x3bc] sm:$0xf]
        %v1450 = vld [vmem:[#allocation10] sm:$0x7]
        %v1451 = vpack.c.bf16 %v1285, %v1285
        %v1452 = vpack.c.bf16 %v1286, %v1286
        %v1453 = vpack.c.bf16 %v1287, %v1287
        %v1454 = vpack.c.bf16 %v1288, %v1288
        %v1455 = vpack.c.bf16 %v1289, %v1289
        %v1457 = vlaneseq
        %v1458 = vshrl.u32 %v1457, 7
        %v1459 = vsub.s32 0, %v1458
        %v1460 = vrot.slane %v1450, %v1459
        %v1461 = vlaneseq
        %v1462 = vshrl.u32 %v1461, 7
        %v1463 = vsub.s32 1, %v1462
        %v1464 = vrot.slane %v1450, %v1463
        %v1465 = vlaneseq
        %v1466 = vshrl.u32 %v1465, 7
        %v1467 = vsub.s32 2, %v1466
        %v1468 = vrot.slane %v1450, %v1467
        %v1632 = vunpack.c.l.b16 %v1290
        %v1633 = vunpack.c.h.b16 %v1290
        %v1634 = vunpack.c.l.b16 %v1291
        %v1635 = vunpack.c.l.b16 %v1292
        %v1636 = vunpack.c.h.b16 %v1292
        %v1637 = vunpack.c.l.b16 %v1293
        %v1638 = vunpack.c.l.b16 %v1294
        %v1639 = vunpack.c.h.b16 %v1294
        %v1640 = vunpack.c.l.b16 %v1295
        %v1641 = vunpack.c.l.b16 %v1296
        %v1642 = vunpack.c.h.b16 %v1296
        %v1643 = vunpack.c.l.b16 %v1297
        %v1644 = vunpack.c.l.b16 %v1298
        %v1645 = vunpack.c.h.b16 %v1298
        %v1646 = vunpack.c.l.b16 %v1299
        %v1647 = vunpack.c.l.b16 %v1300
        %v1648 = vunpack.c.h.b16 %v1300
        %v1649 = vunpack.c.l.b16 %v1301
        %v1650 = vunpack.c.l.b16 %v1302
        %v1651 = vunpack.c.h.b16 %v1302
        %v1652 = vunpack.c.l.b16 %v1303
        %v1653 = vunpack.c.l.b16 %v1304
        %v1654 = vunpack.c.h.b16 %v1304
        %v1655 = vunpack.c.l.b16 %v1305
        %v1656 = vunpack.c.l.b16 %v1306
        %v1657 = vunpack.c.h.b16 %v1306
        %v1658 = vunpack.c.l.b16 %v1307
        %v1659 = vunpack.c.l.b16 %v1308
        %v1660 = vunpack.c.h.b16 %v1308
        %v1661 = vunpack.c.l.b16 %v1309
        %v1662 = vunpack.c.l.b16 %v1310
        %v1663 = vunpack.c.h.b16 %v1310
        %v1664 = vunpack.c.l.b16 %v1311
        %v1665 = vunpack.c.l.b16 %v1312
        %v1666 = vunpack.c.h.b16 %v1312
        %v1667 = vunpack.c.l.b16 %v1313
        %v1668 = vunpack.c.l.b16 %v1314
        %v1669 = vunpack.c.h.b16 %v1314
        %v1670 = vunpack.c.l.b16 %v1315
        %v1671 = vunpack.c.l.b16 %v1316
        %v1672 = vunpack.c.h.b16 %v1316
        %v1673 = vunpack.c.l.b16 %v1317
        %v1674 = vunpack.c.l.b16 %v1318
        %v1675 = vunpack.c.h.b16 %v1318
        %v1676 = vunpack.c.l.b16 %v1319
        %v1677 = vunpack.c.l.b16 %v1320
        %v1678 = vunpack.c.h.b16 %v1320
        %v1679 = vunpack.c.l.b16 %v1321
        %v1680 = vunpack.c.l.b16 %v1322
        %v1681 = vunpack.c.h.b16 %v1322
        %v1682 = vunpack.c.l.b16 %v1323
        %v1683 = vunpack.c.l.b16 %v1324
        %v1684 = vunpack.c.h.b16 %v1324
        %v1685 = vunpack.c.l.b16 %v1325
        %v1686 = vunpack.c.l.b16 %v1326
        %v1687 = vunpack.c.h.b16 %v1326
        %v1688 = vunpack.c.l.b16 %v1327
        %v1689 = vunpack.c.l.b16 %v1328
        %v1690 = vunpack.c.h.b16 %v1328
        %v1691 = vunpack.c.l.b16 %v1329
        %v1692 = vunpack.c.l.b16 %v1330
        %v1693 = vunpack.c.h.b16 %v1330
        %v1694 = vunpack.c.l.b16 %v1331
        %v1695 = vunpack.c.l.b16 %v1332
        %v1696 = vunpack.c.h.b16 %v1332
        %v1697 = vunpack.c.l.b16 %v1333
        %v1698 = vunpack.c.l.b16 %v1334
        %v1699 = vunpack.c.h.b16 %v1334
        %v1700 = vunpack.c.l.b16 %v1335
        %v1701 = vunpack.c.l.b16 %v1336
        %v1702 = vunpack.c.h.b16 %v1336
        %v1703 = vunpack.c.l.b16 %v1337
        %v1704 = vunpack.c.l.b16 %v1338
        %v1705 = vunpack.c.h.b16 %v1338
        %v1706 = vunpack.c.l.b16 %v1339
        %v1707 = vunpack.c.l.b16 %v1340
        %v1708 = vunpack.c.h.b16 %v1340
        %v1709 = vunpack.c.l.b16 %v1341
        %v1710 = vunpack.c.l.b16 %v1342
        %v1711 = vunpack.c.h.b16 %v1342
        %v1712 = vunpack.c.l.b16 %v1343
        %v1713 = vunpack.c.l.b16 %v1344
        %v1714 = vunpack.c.h.b16 %v1344
        %v1715 = vunpack.c.l.b16 %v1345
        %v1716 = vunpack.c.l.b16 %v1346
        %v1717 = vunpack.c.h.b16 %v1346
        %v1718 = vunpack.c.l.b16 %v1347
        %v1719 = vunpack.c.l.b16 %v1348
        %v1720 = vunpack.c.h.b16 %v1348
        %v1721 = vunpack.c.l.b16 %v1349
        %v1722 = vunpack.c.l.b16 %v1350
        %v1723 = vunpack.c.h.b16 %v1350
        %v1724 = vunpack.c.l.b16 %v1351
        %v1725 = vunpack.c.l.b16 %v1352
        %v1726 = vunpack.c.h.b16 %v1352
        %v1727 = vunpack.c.l.b16 %v1353
        %v1728 = vunpack.c.l.b16 %v1354
        %v1729 = vunpack.c.h.b16 %v1354
        %v1730 = vunpack.c.l.b16 %v1355
        %v1731 = vunpack.c.l.b16 %v1356
        %v1732 = vunpack.c.h.b16 %v1356
        %v1733 = vunpack.c.l.b16 %v1357
        %v1734 = vunpack.c.l.b16 %v1358
        %v1735 = vunpack.c.h.b16 %v1358
        %v1736 = vunpack.c.l.b16 %v1359
        %v1737 = vunpack.c.l.b16 %v1360
        %v1738 = vunpack.c.h.b16 %v1360
        %v1739 = vunpack.c.l.b16 %v1361
        %v1740 = vunpack.c.l.b16 %v1362
        %v1741 = vunpack.c.h.b16 %v1362
        %v1742 = vunpack.c.l.b16 %v1363
        %v1743 = vunpack.c.l.b16 %v1364
        %v1744 = vunpack.c.h.b16 %v1364
        %v1745 = vunpack.c.l.b16 %v1365
        %v1746 = vunpack.c.l.b16 %v1366
        %v1747 = vunpack.c.h.b16 %v1366
        %v1748 = vunpack.c.l.b16 %v1367
        %v1749 = vunpack.c.l.b16 %v1368
        %v1750 = vunpack.c.h.b16 %v1368
        %v1751 = vunpack.c.l.b16 %v1369
        %v1752 = vunpack.c.l.b16 %v1370
        %v1753 = vunpack.c.h.b16 %v1370
        %v1754 = vunpack.c.l.b16 %v1371
        %v1755 = vunpack.c.l.b16 %v1372
        %v1756 = vunpack.c.h.b16 %v1372
        %v1757 = vunpack.c.l.b16 %v1373
        %v1758 = vunpack.c.l.b16 %v1374
        %v1759 = vunpack.c.h.b16 %v1374
        %v1760 = vunpack.c.l.b16 %v1375
        %v1761 = vunpack.c.l.b16 %v1376
        %v1762 = vunpack.c.h.b16 %v1376
        %v1763 = vunpack.c.l.b16 %v1377
        %v1764 = vunpack.c.l.b16 %v1378
        %v1765 = vunpack.c.h.b16 %v1378
        %v1766 = vunpack.c.l.b16 %v1379
        %v1767 = vunpack.c.l.b16 %v1380
        %v1768 = vunpack.c.h.b16 %v1380
        %v1769 = vunpack.c.l.b16 %v1381
        %v1770 = vunpack.c.l.b16 %v1382
        %v1771 = vunpack.c.h.b16 %v1382
        %v1772 = vunpack.c.l.b16 %v1383
        %v1773 = vunpack.c.l.b16 %v1384
        %v1774 = vunpack.c.h.b16 %v1384
        %v1775 = vunpack.c.l.b16 %v1385
        %v1776 = vunpack.c.l.b16 %v1386
        %v1777 = vunpack.c.h.b16 %v1386
        %v1778 = vunpack.c.l.b16 %v1387
        %v1779 = vunpack.c.l.b16 %v1388
        %v1780 = vunpack.c.h.b16 %v1388
        %v1781 = vunpack.c.l.b16 %v1389
        %v1782 = vunpack.c.l.b16 %v1390
        %v1783 = vunpack.c.h.b16 %v1390
        %v1784 = vunpack.c.l.b16 %v1391
        %v1785 = vunpack.c.l.b16 %v1392
        %v1786 = vunpack.c.h.b16 %v1392
        %v1787 = vunpack.c.l.b16 %v1393
        %v1788 = vunpack.c.l.b16 %v1394
        %v1789 = vunpack.c.h.b16 %v1394
        %v1790 = vunpack.c.l.b16 %v1395
        %v1791 = vunpack.c.l.b16 %v1396
        %v1792 = vunpack.c.h.b16 %v1396
        %v1793 = vunpack.c.l.b16 %v1397
        %v1794 = vunpack.c.l.b16 %v1398
        %v1795 = vunpack.c.h.b16 %v1398
        %v1796 = vunpack.c.l.b16 %v1399
        %v1797 = vunpack.c.l.b16 %v1400
        %v1798 = vunpack.c.h.b16 %v1400
        %v1799 = vunpack.c.l.b16 %v1401
        %v1800 = vunpack.c.l.b16 %v1402
        %v1801 = vunpack.c.h.b16 %v1402
        %v1802 = vunpack.c.l.b16 %v1403
        %v1803 = vunpack.c.l.b16 %v1404
        %v1804 = vunpack.c.h.b16 %v1404
        %v1805 = vunpack.c.l.b16 %v1405
        %v1806 = vunpack.c.l.b16 %v1406
        %v1807 = vunpack.c.h.b16 %v1406
        %v1808 = vunpack.c.l.b16 %v1407
        %v1809 = vunpack.c.l.b16 %v1408
        %v1810 = vunpack.c.h.b16 %v1408
        %v1811 = vunpack.c.l.b16 %v1409
        %v1812 = vunpack.c.l.b16 %v1410
        %v1813 = vunpack.c.h.b16 %v1410
        %v1814 = vunpack.c.l.b16 %v1411
        %v1815 = vunpack.c.l.b16 %v1412
        %v1816 = vunpack.c.h.b16 %v1412
        %v1817 = vunpack.c.l.b16 %v1413
        %v1818 = vunpack.c.l.b16 %v1414
        %v1819 = vunpack.c.h.b16 %v1414
        %v1820 = vunpack.c.l.b16 %v1415
        %v1821 = vunpack.c.l.b16 %v1416
        %v1822 = vunpack.c.h.b16 %v1416
        %v1823 = vunpack.c.l.b16 %v1417
        %v1824 = vunpack.c.l.b16 %v1418
        %v1825 = vunpack.c.h.b16 %v1418
        %v1826 = vunpack.c.l.b16 %v1419
        %v1827 = vunpack.c.l.b16 %v1420
        %v1828 = vunpack.c.h.b16 %v1420
        %v1829 = vunpack.c.l.b16 %v1421
        %v1830 = vunpack.c.l.b16 %v1422
        %v1831 = vunpack.c.h.b16 %v1422
        %v1832 = vunpack.c.l.b16 %v1423
        %v1833 = vunpack.c.l.b16 %v1424
        %v1834 = vunpack.c.h.b16 %v1424
        %v1835 = vunpack.c.l.b16 %v1425
        %v1836 = vunpack.c.l.b16 %v1426
        %v1837 = vunpack.c.h.b16 %v1426
        %v1838 = vunpack.c.l.b16 %v1427
        %v1839 = vunpack.c.l.b16 %v1428
        %v1840 = vunpack.c.h.b16 %v1428
        %v1841 = vunpack.c.l.b16 %v1429
        %v1842 = vunpack.c.l.b16 %v1430
        %v1843 = vunpack.c.h.b16 %v1430
        %v1844 = vunpack.c.l.b16 %v1431
        %v1845 = vunpack.c.l.b16 %v1432
        %v1846 = vunpack.c.h.b16 %v1432
        %v1847 = vunpack.c.l.b16 %v1433
        %v1848 = vunpack.c.l.b16 %v1434
        %v1849 = vunpack.c.h.b16 %v1434
        %v1850 = vunpack.c.l.b16 %v1435
        %v1851 = vunpack.c.l.b16 %v1436
        %v1852 = vunpack.c.h.b16 %v1436
        %v1853 = vunpack.c.l.b16 %v1437
        %v1854 = vunpack.c.l.b16 %v1438
        %v1855 = vunpack.c.h.b16 %v1438
        %v1856 = vunpack.c.l.b16 %v1439
        %v1857 = vunpack.c.l.b16 %v1440
        %v1858 = vunpack.c.h.b16 %v1440
        %v1859 = vunpack.c.l.b16 %v1441
        %v1860 = vunpack.c.l.b16 %v1442
        %v1861 = vunpack.c.h.b16 %v1442
        %v1862 = vunpack.c.l.b16 %v1443
        %v1863 = vunpack.c.l.b16 %v1444
        %v1864 = vunpack.c.h.b16 %v1444
        %v1865 = vunpack.c.l.b16 %v1445
        %v1866 = vunpack.c.l.b16 %v1446
        %v1867 = vunpack.c.h.b16 %v1446
        %v1868 = vunpack.c.l.b16 %v1447
        %v1869 = vunpack.c.l.b16 %v1448
        %v1870 = vunpack.c.h.b16 %v1448
        %v1871 = vunpack.c.l.b16 %v1449
        %v1872 = vpack.c.b16 %v1635, %v1632
        %v1873 = vpack.c.b16 %v1636, %v1633
        %v1874 = vpack.c.b16 %v1637, %v1634
        %v1875 = vpack.c.b16 %v1641, %v1638
        %v1876 = vpack.c.b16 %v1642, %v1639
        %v1877 = vpack.c.b16 %v1643, %v1640
        %v1878 = vpack.c.b16 %v1647, %v1644
        %v1879 = vpack.c.b16 %v1648, %v1645
        %v1880 = vpack.c.b16 %v1649, %v1646
        %v1881 = vpack.c.b16 %v1653, %v1650
        %v1882 = vpack.c.b16 %v1654, %v1651
        %v1883 = vpack.c.b16 %v1655, %v1652
        %v1884 = vpack.c.b16 %v1659, %v1656
        %v1885 = vpack.c.b16 %v1660, %v1657
        %v1886 = vpack.c.b16 %v1661, %v1658
        %v1887 = vpack.c.b16 %v1665, %v1662
        %v1888 = vpack.c.b16 %v1666, %v1663
        %v1889 = vpack.c.b16 %v1667, %v1664
        %v1890 = vpack.c.b16 %v1671, %v1668
        %v1891 = vpack.c.b16 %v1672, %v1669
        %v1892 = vpack.c.b16 %v1673, %v1670
        %v1893 = vpack.c.b16 %v1677, %v1674
        %v1894 = vpack.c.b16 %v1678, %v1675
        %v1895 = vpack.c.b16 %v1679, %v1676
        %v1896 = vpack.c.b16 %v1683, %v1680
        %v1897 = vpack.c.b16 %v1684, %v1681
        %v1898 = vpack.c.b16 %v1685, %v1682
        %v1899 = vpack.c.b16 %v1689, %v1686
        %v1900 = vpack.c.b16 %v1690, %v1687
        %v1901 = vpack.c.b16 %v1691, %v1688
        %v1902 = vpack.c.b16 %v1695, %v1692
        %v1903 = vpack.c.b16 %v1696, %v1693
        %v1904 = vpack.c.b16 %v1697, %v1694
        %v1905 = vpack.c.b16 %v1701, %v1698
        %v1906 = vpack.c.b16 %v1702, %v1699
        %v1907 = vpack.c.b16 %v1703, %v1700
        %v1908 = vpack.c.b16 %v1707, %v1704
        %v1909 = vpack.c.b16 %v1708, %v1705
        %v1910 = vpack.c.b16 %v1709, %v1706
        %v1911 = vpack.c.b16 %v1713, %v1710
        %v1912 = vpack.c.b16 %v1714, %v1711
        %v1913 = vpack.c.b16 %v1715, %v1712
        %v1914 = vpack.c.b16 %v1719, %v1716
        %v1915 = vpack.c.b16 %v1720, %v1717
        %v1916 = vpack.c.b16 %v1721, %v1718
        %v1917 = vpack.c.b16 %v1725, %v1722
        %v1918 = vpack.c.b16 %v1726, %v1723
        %v1919 = vpack.c.b16 %v1727, %v1724
        %v1920 = vpack.c.b16 %v1731, %v1728
        %v1921 = vpack.c.b16 %v1732, %v1729
        %v1922 = vpack.c.b16 %v1733, %v1730
        %v1923 = vpack.c.b16 %v1737, %v1734
        %v1924 = vpack.c.b16 %v1738, %v1735
        %v1925 = vpack.c.b16 %v1739, %v1736
        %v1926 = vpack.c.b16 %v1743, %v1740
        %v1927 = vpack.c.b16 %v1744, %v1741
        %v1928 = vpack.c.b16 %v1745, %v1742
        %v1929 = vpack.c.b16 %v1749, %v1746
        %v1930 = vpack.c.b16 %v1750, %v1747
        %v1931 = vpack.c.b16 %v1751, %v1748
        %v1932 = vpack.c.b16 %v1755, %v1752
        %v1933 = vpack.c.b16 %v1756, %v1753
        %v1934 = vpack.c.b16 %v1757, %v1754
        %v1935 = vpack.c.b16 %v1761, %v1758
        %v1936 = vpack.c.b16 %v1762, %v1759
        %v1937 = vpack.c.b16 %v1763, %v1760
        %v1938 = vpack.c.b16 %v1767, %v1764
        %v1939 = vpack.c.b16 %v1768, %v1765
        %v1940 = vpack.c.b16 %v1769, %v1766
        %v1941 = vpack.c.b16 %v1773, %v1770
        %v1942 = vpack.c.b16 %v1774, %v1771
        %v1943 = vpack.c.b16 %v1775, %v1772
        %v1944 = vpack.c.b16 %v1779, %v1776
        %v1945 = vpack.c.b16 %v1780, %v1777
        %v1946 = vpack.c.b16 %v1781, %v1778
        %v1947 = vpack.c.b16 %v1785, %v1782
        %v1948 = vpack.c.b16 %v1786, %v1783
        %v1949 = vpack.c.b16 %v1787, %v1784
        %v1950 = vpack.c.b16 %v1791, %v1788
        %v1951 = vpack.c.b16 %v1792, %v1789
        %v1952 = vpack.c.b16 %v1793, %v1790
        %v1953 = vpack.c.b16 %v1797, %v1794
        %v1954 = vpack.c.b16 %v1798, %v1795
        %v1955 = vpack.c.b16 %v1799, %v1796
        %v1956 = vpack.c.b16 %v1803, %v1800
        %v1957 = vpack.c.b16 %v1804, %v1801
        %v1958 = vpack.c.b16 %v1805, %v1802
        %v1959 = vpack.c.b16 %v1809, %v1806
        %v1960 = vpack.c.b16 %v1810, %v1807
        %v1961 = vpack.c.b16 %v1811, %v1808
        %v1962 = vpack.c.b16 %v1815, %v1812
        %v1963 = vpack.c.b16 %v1816, %v1813
        %v1964 = vpack.c.b16 %v1817, %v1814
        %v1965 = vpack.c.b16 %v1821, %v1818
        %v1966 = vpack.c.b16 %v1822, %v1819
        %v1967 = vpack.c.b16 %v1823, %v1820
        %v1968 = vpack.c.b16 %v1827, %v1824
        %v1969 = vpack.c.b16 %v1828, %v1825
        %v1970 = vpack.c.b16 %v1829, %v1826
        %v1971 = vpack.c.b16 %v1833, %v1830
        %v1972 = vpack.c.b16 %v1834, %v1831
        %v1973 = vpack.c.b16 %v1835, %v1832
        %v1974 = vpack.c.b16 %v1839, %v1836
        %v1975 = vpack.c.b16 %v1840, %v1837
        %v1976 = vpack.c.b16 %v1841, %v1838
        %v1977 = vpack.c.b16 %v1845, %v1842
        %v1978 = vpack.c.b16 %v1846, %v1843
        %v1979 = vpack.c.b16 %v1847, %v1844
        %v1980 = vpack.c.b16 %v1851, %v1848
        %v1981 = vpack.c.b16 %v1852, %v1849
        %v1982 = vpack.c.b16 %v1853, %v1850
        %v1983 = vpack.c.b16 %v1857, %v1854
        %v1984 = vpack.c.b16 %v1858, %v1855
        %v1985 = vpack.c.b16 %v1859, %v1856
        %v1986 = vpack.c.b16 %v1863, %v1860
        %v1987 = vpack.c.b16 %v1864, %v1861
        %v1988 = vpack.c.b16 %v1865, %v1862
        %v1989 = vpack.c.b16 %v1869, %v1866
        %v1990 = vpack.c.b16 %v1870, %v1867
        %v1991 = vpack.c.b16 %v1871, %v1868
        %2112 = vmatprep.subr.bf16.mxu0 %v1894
        %2113 = vmatpush1.bf16.msra.mxu0 %v1893
        %2114 = vmatprep.subr.bf16.mxu0 %v1891
        %2115 = vmatpush1.bf16.msra.mxu0 %v1890
        %2116 = vmatprep.subr.bf16.mxu0 %v1888
        %2117 = vmatpush1.bf16.msra.mxu0 %v1887
        %2118 = vmatprep.subr.bf16.mxu0 %v1885
        %2119 = vmatpush1.bf16.msra.mxu0 %v1884
        %2120 = vmatprep.subr.bf16.mxu0 %v1882
        %2121 = vmatpush1.bf16.msra.mxu0 %v1881
        %2122 = vmatprep.subr.bf16.mxu0 %v1879
        %2123 = vmatpush1.bf16.msra.mxu0 %v1878
        %2124 = vmatprep.subr.bf16.mxu0 %v1876
        %2125 = vmatpush1.bf16.msra.mxu0 %v1875
        %2126 = vmatprep.subr.bf16.mxu0 %v1873
        %2127 = vmatpush1.bf16.msra.mxu0 %v1872
        %2128 = vmatprep.subr.bf16.mxu0 %v1918
        %2129 = vmatpush2.bf16.msra.mxu0 %v1917
        %2130 = vmatprep.subr.bf16.mxu0 %v1915
        %2131 = vmatpush2.bf16.msra.mxu0 %v1914
        %2132 = vmatprep.subr.bf16.mxu0 %v1912
        %2133 = vmatpush2.bf16.msra.mxu0 %v1911
        %2134 = vmatprep.subr.bf16.mxu0 %v1909
        %2135 = vmatpush2.bf16.msra.mxu0 %v1908
        %2136 = vmatprep.subr.bf16.mxu0 %v1906
        %2137 = vmatpush2.bf16.msra.mxu0 %v1905
        %2138 = vmatprep.subr.bf16.mxu0 %v1903
        %2139 = vmatpush2.bf16.msra.mxu0 %v1902
        %2140 = vmatprep.subr.bf16.mxu0 %v1900
        %2141 = vmatpush2.bf16.msra.mxu0 %v1899
        %2142 = vmatprep.subr.bf16.mxu0 %v1897
        %2143 = vmatpush2.bf16.msra.mxu0 %v1896
        %2144 = vmatprep.mubr.bf16.mxu0 %v1452
        %2145 = vmatmul.mubr.bf16.gmra.mxu0 %v1451
        %v2146 = vpop.f32.mrf.mxu0
        %v2147 = vadd.f32 %v1460, %v2146
        %v2148 = vpop.f32.mrf.mxu0
        %v2149 = vadd.f32 %v1464, %v2148
        %v2150 = vpop.f32.mrf.mxu0
        %v2151 = vpop.f32.mrf.mxu0
        %2152 = vdwg.mxu0
        %2153 = vmatprep.subr.bf16.mxu0 %v1942
        %2154 = vmatpush1.bf16.msra.mxu0 %v1941
        %2155 = vmatprep.subr.bf16.mxu0 %v1939
        %2156 = vmatpush1.bf16.msra.mxu0 %v1938
        %2157 = vmatprep.subr.bf16.mxu0 %v1936
        %2158 = vmatpush1.bf16.msra.mxu0 %v1935
        %2159 = vmatprep.subr.bf16.mxu0 %v1933
        %2160 = vmatpush1.bf16.msra.mxu0 %v1932
        %2161 = vmatprep.subr.bf16.mxu0 %v1930
        %2162 = vmatpush1.bf16.msra.mxu0 %v1929
        %2163 = vmatprep.subr.bf16.mxu0 %v1927
        %2164 = vmatpush1.bf16.msra.mxu0 %v1926
        %2165 = vmatprep.subr.bf16.mxu0 %v1924
        %2166 = vmatpush1.bf16.msra.mxu0 %v1923
        %2167 = vmatprep.subr.bf16.mxu0 %v1921
        %2168 = vmatpush1.bf16.msra.mxu0 %v1920
        %2169 = vmatprep.subr.bf16.mxu0 %v1966
        %2170 = vmatpush2.bf16.msra.mxu0 %v1965
        %2171 = vmatprep.subr.bf16.mxu0 %v1963
        %2172 = vmatpush2.bf16.msra.mxu0 %v1962
        %2173 = vmatprep.subr.bf16.mxu0 %v1960
        %2174 = vmatpush2.bf16.msra.mxu0 %v1959
        %2175 = vmatprep.subr.bf16.mxu0 %v1957
        %2176 = vmatpush2.bf16.msra.mxu0 %v1956
        %2177 = vmatprep.subr.bf16.mxu0 %v1954
        %2178 = vmatpush2.bf16.msra.mxu0 %v1953
        %2179 = vmatprep.subr.bf16.mxu0 %v1951
        %2180 = vmatpush2.bf16.msra.mxu0 %v1950
        %2181 = vmatprep.subr.bf16.mxu0 %v1948
        %2182 = vmatpush2.bf16.msra.mxu0 %v1947
        %2183 = vmatprep.subr.bf16.mxu0 %v1945
        %2184 = vmatpush2.bf16.msra.mxu0 %v1944
        %2185 = vmatprep.mubr.bf16.mxu0 %v1454
        %2186 = vmatmul.mubr.bf16.gmra.mxu0 %v1453
        %v2187 = vpop.f32.mrf.mxu0
        %v2188 = vadd.f32 %v2147, %v2187
        %v2189 = vpop.f32.mrf.mxu0
        %v2190 = vadd.f32 %v2149, %v2189
        %v2191 = vpop.f32.mrf.mxu0
        %v2192 = vpop.f32.mrf.mxu0
        %2193 = vdwg.mxu0
        %2194 = vmatprep.subr.bf16.mxu0 %v1990
        %2195 = vmatpush1.bf16.msra.mxu0 %v1989
        %2196 = vmatprep.subr.bf16.mxu0 %v1987
        %2197 = vmatpush1.bf16.msra.mxu0 %v1986
        %2198 = vmatprep.subr.bf16.mxu0 %v1984
        %2199 = vmatpush1.bf16.msra.mxu0 %v1983
        %2200 = vmatprep.subr.bf16.mxu0 %v1981
        %2201 = vmatpush1.bf16.msra.mxu0 %v1980
        %2202 = vmatprep.subr.bf16.mxu0 %v1978
        %2203 = vmatpush1.bf16.msra.mxu0 %v1977
        %2204 = vmatprep.subr.bf16.mxu0 %v1975
        %2205 = vmatpush1.bf16.msra.mxu0 %v1974
        %2206 = vmatprep.subr.bf16.mxu0 %v1972
        %2207 = vmatpush1.bf16.msra.mxu0 %v1971
        %2208 = vmatprep.subr.bf16.mxu0 %v1969
        %2209 = vmatpush1.bf16.msra.mxu0 %v1968
        %2210 = vmatprep.subr.bf16.mxu0 0
        %2211 = vmatpush2.bf16.msra.mxu0 0
        %2212 = vmatprep.subr.bf16.mxu0 0
        %2213 = vmatpush2.bf16.msra.mxu0 0
        %2214 = vmatprep.subr.bf16.mxu0 0
        %2215 = vmatpush2.bf16.msra.mxu0 0
        %2216 = vmatprep.subr.bf16.mxu0 0
        %2217 = vmatpush2.bf16.msra.mxu0 0
        %2218 = vmatprep.subr.bf16.mxu0 0
        %2219 = vmatpush2.bf16.msra.mxu0 0
        %2220 = vmatprep.subr.bf16.mxu0 0
        %2221 = vmatpush2.bf16.msra.mxu0 0
        %2222 = vmatprep.subr.bf16.mxu0 0
        %2223 = vmatpush2.bf16.msra.mxu0 0
        %2224 = vmatprep.subr.bf16.mxu0 0
        %2225 = vmatpush2.bf16.msra.mxu0 0
        %2226 = vmatprep.mubr.bf16.mxu0 0
        %2227 = vmatmul.mubr.bf16.gmra.mxu0 %v1455
        %v2228 = vpop.f32.mrf.mxu0
        %v2229 = vadd.f32 %v2188, %v2228
        %v2230 = vpop.f32.mrf.mxu0
        %v2231 = vadd.f32 %v2190, %v2230
        %v2232 = vpop.f32.mrf.mxu0
        %v2233 = vpop.f32.mrf.mxu0
        %2234 = vdwg.mxu0
        %2235 = vmatprep.subr.bf16.mxu0 0
        %2236 = vmatpush1.bf16.msra.mxu0 %v1895
        %2237 = vmatprep.subr.bf16.mxu0 0
        %2238 = vmatpush1.bf16.msra.mxu0 %v1892
        %2239 = vmatprep.subr.bf16.mxu0 0
        %2240 = vmatpush1.bf16.msra.mxu0 %v1889
        %2241 = vmatprep.subr.bf16.mxu0 0
        %2242 = vmatpush1.bf16.msra.mxu0 %v1886
        %2243 = vmatprep.subr.bf16.mxu0 0
        %2244 = vmatpush1.bf16.msra.mxu0 %v1883
        %2245 = vmatprep.subr.bf16.mxu0 0
        %2246 = vmatpush1.bf16.msra.mxu0 %v1880
        %2247 = vmatprep.subr.bf16.mxu0 0
        %2248 = vmatpush1.bf16.msra.mxu0 %v1877
        %2249 = vmatprep.subr.bf16.mxu0 0
        %2250 = vmatpush1.bf16.msra.mxu0 %v1874
        %2251 = vmatprep.subr.bf16.mxu0 0
        %2252 = vmatpush2.bf16.msra.mxu0 %v1919
        %2253 = vmatprep.subr.bf16.mxu0 0
        %2254 = vmatpush2.bf16.msra.mxu0 %v1916
        %2255 = vmatprep.subr.bf16.mxu0 0
        %2256 = vmatpush2.bf16.msra.mxu0 %v1913
        %2257 = vmatprep.subr.bf16.mxu0 0
        %2258 = vmatpush2.bf16.msra.mxu0 %v1910
        %2259 = vmatprep.subr.bf16.mxu0 0
        %2260 = vmatpush2.bf16.msra.mxu0 %v1907
        %2261 = vmatprep.subr.bf16.mxu0 0
        %2262 = vmatpush2.bf16.msra.mxu0 %v1904
        %2263 = vmatprep.subr.bf16.mxu0 0
        %2264 = vmatpush2.bf16.msra.mxu0 %v1901
        %2265 = vmatprep.subr.bf16.mxu0 0
        %2266 = vmatpush2.bf16.msra.mxu0 %v1898
        %2267 = vmatprep.mubr.bf16.mxu0 %v1452
        %2268 = vmatmul.mubr.bf16.gmra.mxu0 %v1451
        %v2269 = vpop.f32.mrf.mxu0
        %v2270 = vadd.f32 %v1468, %v2269
        %v2271 = vpop.f32.mrf.mxu0
        %v2272 = vpop.f32.mrf.mxu0
        %v2273 = vpop.f32.mrf.mxu0
        %2274 = vdwg.mxu0
        %2275 = vmatprep.subr.bf16.mxu0 0
        %2276 = vmatpush1.bf16.msra.mxu0 %v1943
        %2277 = vmatprep.subr.bf16.mxu0 0
        %2278 = vmatpush1.bf16.msra.mxu0 %v1940
        %2279 = vmatprep.subr.bf16.mxu0 0
        %2280 = vmatpush1.bf16.msra.mxu0 %v1937
        %2281 = vmatprep.subr.bf16.mxu0 0
        %2282 = vmatpush1.bf16.msra.mxu0 %v1934
        %2283 = vmatprep.subr.bf16.mxu0 0
        %2284 = vmatpush1.bf16.msra.mxu0 %v1931
        %2285 = vmatprep.subr.bf16.mxu0 0
        %2286 = vmatpush1.bf16.msra.mxu0 %v1928
        %2287 = vmatprep.subr.bf16.mxu0 0
        %2288 = vmatpush1.bf16.msra.mxu0 %v1925
        %2289 = vmatprep.subr.bf16.mxu0 0
        %2290 = vmatpush1.bf16.msra.mxu0 %v1922
        %2291 = vmatprep.subr.bf16.mxu0 0
        %2292 = vmatpush2.bf16.msra.mxu0 %v1967
        %2293 = vmatprep.subr.bf16.mxu0 0
        %2294 = vmatpush2.bf16.msra.mxu0 %v1964
        %2295 = vmatprep.subr.bf16.mxu0 0
        %2296 = vmatpush2.bf16.msra.mxu0 %v1961
        %2297 = vmatprep.subr.bf16.mxu0 0
        %2298 = vmatpush2.bf16.msra.mxu0 %v1958
        %2299 = vmatprep.subr.bf16.mxu0 0
        %2300 = vmatpush2.bf16.msra.mxu0 %v1955
        %2301 = vmatprep.subr.bf16.mxu0 0
        %2302 = vmatpush2.bf16.msra.mxu0 %v1952
        %2303 = vmatprep.subr.bf16.mxu0 0
        %2304 = vmatpush2.bf16.msra.mxu0 %v1949
        %2305 = vmatprep.subr.bf16.mxu0 0
        %2306 = vmatpush2.bf16.msra.mxu0 %v1946
        %2307 = vmatprep.mubr.bf16.mxu0 %v1454
        %2308 = vmatmul.mubr.bf16.gmra.mxu0 %v1453
        %v2309 = vpop.f32.mrf.mxu0
        %v2310 = vadd.f32 %v2270, %v2309
        %v2311 = vpop.f32.mrf.mxu0
        %v2312 = vpop.f32.mrf.mxu0
        %v2313 = vpop.f32.mrf.mxu0
        %2314 = vdwg.mxu0
        %2315 = vmatprep.subr.bf16.mxu0 0
        %2316 = vmatpush1.bf16.msra.mxu0 %v1991
        %2317 = vmatprep.subr.bf16.mxu0 0
        %2318 = vmatpush1.bf16.msra.mxu0 %v1988
        %2319 = vmatprep.subr.bf16.mxu0 0
        %2320 = vmatpush1.bf16.msra.mxu0 %v1985
        %2321 = vmatprep.subr.bf16.mxu0 0
        %2322 = vmatpush1.bf16.msra.mxu0 %v1982
        %2323 = vmatprep.subr.bf16.mxu0 0
        %2324 = vmatpush1.bf16.msra.mxu0 %v1979
        %2325 = vmatprep.subr.bf16.mxu0 0
        %2326 = vmatpush1.bf16.msra.mxu0 %v1976
        %2327 = vmatprep.subr.bf16.mxu0 0
        %2328 = vmatpush1.bf16.msra.mxu0 %v1973
        %2329 = vmatprep.subr.bf16.mxu0 0
        %2330 = vmatpush1.bf16.msra.mxu0 %v1970
        %2331 = vmatprep.subr.bf16.mxu0 0
        %2332 = vmatpush2.bf16.msra.mxu0 0
        %2333 = vmatprep.subr.bf16.mxu0 0
        %2334 = vmatpush2.bf16.msra.mxu0 0
        %2335 = vmatprep.subr.bf16.mxu0 0
        %2336 = vmatpush2.bf16.msra.mxu0 0
        %2337 = vmatprep.subr.bf16.mxu0 0
        %2338 = vmatpush2.bf16.msra.mxu0 0
        %2339 = vmatprep.subr.bf16.mxu0 0
        %2340 = vmatpush2.bf16.msra.mxu0 0
        %2341 = vmatprep.subr.bf16.mxu0 0
        %2342 = vmatpush2.bf16.msra.mxu0 0
        %2343 = vmatprep.subr.bf16.mxu0 0
        %2344 = vmatpush2.bf16.msra.mxu0 0
        %2345 = vmatprep.subr.bf16.mxu0 0
        %2346 = vmatpush2.bf16.msra.mxu0 0
        %2347 = vmatprep.mubr.bf16.mxu0 0
        %2348 = vmatmul.mubr.bf16.gmra.mxu0 %v1455
        %v2349 = vpop.f32.mrf.mxu0
        %v2350 = vadd.f32 %v2310, %v2349
        %v2351 = vpop.f32.mrf.mxu0
        %v2352 = vpop.f32.mrf.mxu0
        %v2353 = vpop.f32.mrf.mxu0
        %2354 = vdwg.mxu0
        %v2355 = vtanh.pop %v2229
        %v2356 = vtanh.pop %v2231
        %v2357 = vtanh.pop %v2350
        %v2358 = vld [vmem:[#allocation11] sm:$0xff]
        %v2359 = vld [vmem:[#allocation11 + $0x8] sm:$0xff]
        %v2360 = vld [vmem:[#allocation11 + $0x10] sm:$0xff]
        %v2361 = vld [vmem:[#allocation11 + $0x18] sm:$0xff]
        %v2362 = vld [vmem:[#allocation11 + $0x20] sm:$0xff]
        %v2363 = vld [vmem:[#allocation11 + $0x28] sm:$0xff]
        %v2364 = vld [vmem:[#allocation11 + $0x30] sm:$0xff]
        %v2365 = vld [vmem:[#allocation11 + $0x38] sm:$0xff]
        %v2366 = vld [vmem:[#allocation11 + $0x40] sm:$0xff]
        %v2367 = vld [vmem:[#allocation11 + $0x48] sm:$0xff]
        %v2368 = vld [vmem:[#allocation11 + $0x50] sm:$0xff]
        %v2369 = vld [vmem:[#allocation11 + $0x58] sm:$0xff]
        %v2370 = vld [vmem:[#allocation11 + $0x60] sm:$0xff]
        %v2371 = vld [vmem:[#allocation11 + $0x68] sm:$0xff]
        %v2372 = vld [vmem:[#allocation11 + $0x70] sm:$0xff]
        %v2373 = vld [vmem:[#allocation11 + $0x78] sm:$0xff]
        %v2374 = vld [vmem:[#allocation11 + $0x80] sm:$0xff]
        %v2375 = vld [vmem:[#allocation11 + $0x88] sm:$0xff]
        %v2376 = vld [vmem:[#allocation11 + $0x90] sm:$0xff]
        %v2377 = vld [vmem:[#allocation11 + $0x98] sm:$0xff]
        %v2378 = vld [vmem:[#allocation11 + $0xa0] sm:$0xff]
        %v2379 = vld [vmem:[#allocation11 + $0xa8] sm:$0xff]
        %v2380 = vld [vmem:[#allocation11 + $0xb0] sm:$0xff]
        %v2381 = vld [vmem:[#allocation11 + $0xb8] sm:$0xff]
        %v2382 = vld [vmem:[#allocation11 + $0xc0] sm:$0xff]
        %v2383 = vld [vmem:[#allocation11 + $0xc8] sm:$0xff]
        %v2384 = vld [vmem:[#allocation11 + $0xd0] sm:$0xff]
        %v2385 = vld [vmem:[#allocation11 + $0xd8] sm:$0xff]
        %v2386 = vld [vmem:[#allocation11 + $0xe0] sm:$0xff]
        %v2387 = vld [vmem:[#allocation11 + $0xe8] sm:$0xff]
        %v2388 = vld [vmem:[#allocation11 + $0xf0] sm:$0xff]
        %v2389 = vld [vmem:[#allocation11 + $0xf8] sm:$0xff]
        %v2390 = vld [vmem:[#allocation11 + $0x100] sm:$0xff]
        %v2391 = vld [vmem:[#allocation11 + $0x108] sm:$0xff]
        %v2392 = vld [vmem:[#allocation11 + $0x110] sm:$0xff]
        %v2393 = vld [vmem:[#allocation11 + $0x118] sm:$0xff]
        %v2394 = vld [vmem:[#allocation11 + $0x120] sm:$0xff]
        %v2395 = vld [vmem:[#allocation11 + $0x128] sm:$0xff]
        %v2396 = vld [vmem:[#allocation11 + $0x130] sm:$0xff]
        %v2397 = vld [vmem:[#allocation11 + $0x138] sm:$0xff]
        %v2398 = vld [vmem:[#allocation11 + $0x140] sm:$0xff]
        %v2399 = vld [vmem:[#allocation11 + $0x148] sm:$0xff]
        %v2400 = vld [vmem:[#allocation11 + $0x150] sm:$0xff]
        %v2401 = vld [vmem:[#allocation11 + $0x158] sm:$0xff]
        %v2402 = vld [vmem:[#allocation11 + $0x160] sm:$0xff]
        %v2403 = vld [vmem:[#allocation11 + $0x168] sm:$0xff]
        %v2404 = vld [vmem:[#allocation11 + $0x170] sm:$0xff]
        %v2405 = vld [vmem:[#allocation11 + $0x178] sm:$0xff]
        %v2406 = vld [vmem:[#allocation11 + $0x180] sm:$0xff]
        %v2407 = vld [vmem:[#allocation11 + $0x188] sm:$0xff]
        %v2408 = vld [vmem:[#allocation11 + $0x190] sm:$0xff]
        %v2409 = vld [vmem:[#allocation11 + $0x198] sm:$0xff]
        %v2410 = vld [vmem:[#allocation11 + $0x1a0] sm:$0xff]
        %v2411 = vld [vmem:[#allocation11 + $0x1a8] sm:$0xff]
        %v2412 = vld [vmem:[#allocation11 + $0x1b0] sm:$0xff]
        %v2413 = vld [vmem:[#allocation11 + $0x1b8] sm:$0xff]
        %v2414 = vld [vmem:[#allocation11 + $0x1c0] sm:$0xff]
        %v2415 = vld [vmem:[#allocation11 + $0x1c8] sm:$0xff]
        %v2416 = vld [vmem:[#allocation11 + $0x1d0] sm:$0xff]
        %v2417 = vld [vmem:[#allocation11 + $0x1d8] sm:$0xff]
        %v2418 = vld [vmem:[#allocation11 + $0x1e0] sm:$0xff]
        %v2419 = vld [vmem:[#allocation11 + $0x1e8] sm:$0xff]
        %v2420 = vld [vmem:[#allocation11 + $0x1f0] sm:$0xff]
        %v2421 = vld [vmem:[#allocation11 + $0x1f8] sm:$0xff]
        %v2422 = vld [vmem:[#allocation11 + $0x200] sm:$0xff]
        %v2423 = vld [vmem:[#allocation11 + $0x208] sm:$0xff]
        %v2424 = vld [vmem:[#allocation11 + $0x210] sm:$0xff]
        %v2425 = vld [vmem:[#allocation11 + $0x218] sm:$0xff]
        %v2426 = vld [vmem:[#allocation11 + $0x220] sm:$0xff]
        %v2427 = vld [vmem:[#allocation11 + $0x228] sm:$0xff]
        %v2428 = vld [vmem:[#allocation11 + $0x230] sm:$0xff]
        %v2429 = vld [vmem:[#allocation11 + $0x238] sm:$0xff]
        %v2430 = vld [vmem:[#allocation11 + $0x240] sm:$0xff]
        %v2431 = vld [vmem:[#allocation11 + $0x248] sm:$0xff]
        %v2432 = vld [vmem:[#allocation11 + $0x250] sm:$0xff]
        %v2433 = vld [vmem:[#allocation11 + $0x258] sm:$0xff]
        %v2434 = vld [vmem:[#allocation11 + $0x260] sm:$0xff]
        %v2435 = vld [vmem:[#allocation11 + $0x268] sm:$0xff]
        %v2436 = vld [vmem:[#allocation11 + $0x270] sm:$0xff]
        %v2437 = vld [vmem:[#allocation11 + $0x278] sm:$0xff]
        %v2438 = vld [vmem:[#allocation11 + $0x280] sm:$0xff]
        %v2439 = vld [vmem:[#allocation11 + $0x288] sm:$0xff]
        %v2440 = vld [vmem:[#allocation11 + $0x290] sm:$0xff]
        %v2441 = vld [vmem:[#allocation11 + $0x298] sm:$0xff]
        %v2442 = vld [vmem:[#allocation11 + $0x2a0] sm:$0xff]
        %v2443 = vld [vmem:[#allocation11 + $0x2a8] sm:$0xff]
        %v2444 = vld [vmem:[#allocation11 + $0x2b0] sm:$0xff]
        %v2445 = vld [vmem:[#allocation11 + $0x2b8] sm:$0xff]
        %v2446 = vld [vmem:[#allocation11 + $0x2c0] sm:$0xff]
        %v2447 = vld [vmem:[#allocation11 + $0x2c8] sm:$0xff]
        %v2448 = vld [vmem:[#allocation11 + $0x2d0] sm:$0xff]
        %v2449 = vld [vmem:[#allocation11 + $0x2d8] sm:$0xff]
        %v2450 = vld [vmem:[#allocation11 + $0x2e0] sm:$0xff]
        %v2451 = vld [vmem:[#allocation11 + $0x2e8] sm:$0xff]
        %v2452 = vld [vmem:[#allocation11 + $0x2f0] sm:$0xff]
        %v2453 = vld [vmem:[#allocation11 + $0x2f8] sm:$0xff]
        %v2454 = vld [vmem:[#allocation11 + $0x300] sm:$0xff]
        %v2455 = vld [vmem:[#allocation11 + $0x308] sm:$0xff]
        %v2456 = vld [vmem:[#allocation11 + $0x310] sm:$0xff]
        %v2457 = vld [vmem:[#allocation11 + $0x318] sm:$0xff]
        %v2458 = vld [vmem:[#allocation11 + $0x320] sm:$0xff]
        %v2459 = vld [vmem:[#allocation11 + $0x328] sm:$0xff]
        %v2460 = vld [vmem:[#allocation11 + $0x330] sm:$0xff]
        %v2461 = vld [vmem:[#allocation11 + $0x338] sm:$0xff]
        %v2462 = vld [vmem:[#allocation11 + $0x340] sm:$0xff]
        %v2463 = vld [vmem:[#allocation11 + $0x348] sm:$0xff]
        %v2464 = vld [vmem:[#allocation11 + $0x350] sm:$0xff]
        %v2465 = vld [vmem:[#allocation11 + $0x358] sm:$0xff]
        %v2466 = vld [vmem:[#allocation11 + $0x360] sm:$0xff]
        %v2467 = vld [vmem:[#allocation11 + $0x368] sm:$0xff]
        %v2468 = vld [vmem:[#allocation11 + $0x370] sm:$0xff]
        %v2469 = vld [vmem:[#allocation11 + $0x378] sm:$0xff]
        %v2470 = vld [vmem:[#allocation11 + $0x380] sm:$0xff]
        %v2471 = vld [vmem:[#allocation11 + $0x388] sm:$0xff]
        %v2472 = vld [vmem:[#allocation11 + $0x390] sm:$0xff]
        %v2473 = vld [vmem:[#allocation11 + $0x398] sm:$0xff]
        %v2474 = vld [vmem:[#allocation11 + $0x3a0] sm:$0xff]
        %v2475 = vld [vmem:[#allocation11 + $0x3a8] sm:$0xff]
        %v2476 = vld [vmem:[#allocation11 + $0x3b0] sm:$0xff]
        %v2477 = vld [vmem:[#allocation11 + $0x3b8] sm:$0xff]
        %v2478 = vld [vmem:[#allocation11 + $0x3c0] sm:$0xff]
        %v2479 = vld [vmem:[#allocation11 + $0x3c8] sm:$0xff]
        %v2480 = vld [vmem:[#allocation11 + $0x3d0] sm:$0xff]
        %v2481 = vld [vmem:[#allocation11 + $0x3d8] sm:$0xff]
        %v2482 = vld [vmem:[#allocation11 + $0x3e0] sm:$0xff]
        %v2483 = vld [vmem:[#allocation11 + $0x3e8] sm:$0xff]
        %v2484 = vld [vmem:[#allocation11 + $0x3f0] sm:$0xff]
        %v2485 = vld [vmem:[#allocation11 + $0x3f8] sm:$0xff]
        %v2486 = vld [vmem:[#allocation11 + $0x400] sm:$0xff]
        %v2487 = vld [vmem:[#allocation11 + $0x408] sm:$0xff]
        %v2488 = vld [vmem:[#allocation11 + $0x410] sm:$0xff]
        %v2489 = vld [vmem:[#allocation11 + $0x418] sm:$0xff]
        %v2490 = vld [vmem:[#allocation11 + $0x420] sm:$0xff]
        %v2491 = vld [vmem:[#allocation11 + $0x428] sm:$0xff]
        %v2492 = vld [vmem:[#allocation11 + $0x430] sm:$0xff]
        %v2493 = vld [vmem:[#allocation11 + $0x438] sm:$0xff]
        %v2494 = vld [vmem:[#allocation11 + $0x440] sm:$0xff]
        %v2495 = vld [vmem:[#allocation11 + $0x448] sm:$0xff]
        %v2496 = vld [vmem:[#allocation11 + $0x450] sm:$0xff]
        %v2497 = vld [vmem:[#allocation11 + $0x458] sm:$0xff]
        %v2498 = vld [vmem:[#allocation11 + $0x460] sm:$0xff]
        %v2499 = vld [vmem:[#allocation11 + $0x468] sm:$0xff]
        %v2500 = vld [vmem:[#allocation11 + $0x470] sm:$0xff]
        %v2501 = vld [vmem:[#allocation11 + $0x478] sm:$0xff]
        %v2502 = vld [vmem:[#allocation11 + $0x480] sm:$0xff]
        %v2503 = vld [vmem:[#allocation11 + $0x488] sm:$0xff]
        %v2504 = vld [vmem:[#allocation11 + $0x490] sm:$0xff]
        %v2505 = vld [vmem:[#allocation11 + $0x498] sm:$0xff]
        %v2506 = vld [vmem:[#allocation11 + $0x4a0] sm:$0xff]
        %v2507 = vld [vmem:[#allocation11 + $0x4a8] sm:$0xff]
        %v2508 = vld [vmem:[#allocation11 + $0x4b0] sm:$0xff]
        %v2509 = vld [vmem:[#allocation11 + $0x4b8] sm:$0xff]
        %v2510 = vld [vmem:[#allocation11 + $0x4c0] sm:$0xff]
        %v2511 = vld [vmem:[#allocation11 + $0x4c8] sm:$0xff]
        %v2512 = vld [vmem:[#allocation11 + $0x4d0] sm:$0xff]
        %v2513 = vld [vmem:[#allocation11 + $0x4d8] sm:$0xff]
        %v2514 = vld [vmem:[#allocation11 + $0x4e0] sm:$0xff]
        %v2515 = vld [vmem:[#allocation11 + $0x4e8] sm:$0xff]
        %v2516 = vld [vmem:[#allocation11 + $0x4f0] sm:$0xff]
        %v2517 = vld [vmem:[#allocation11 + $0x4f8] sm:$0xff]
        %v2518 = vld [vmem:[#allocation11 + $0x500] sm:$0xff]
        %v2519 = vld [vmem:[#allocation11 + $0x508] sm:$0xff]
        %v2520 = vld [vmem:[#allocation11 + $0x510] sm:$0xff]
        %v2521 = vld [vmem:[#allocation11 + $0x518] sm:$0xff]
        %v2522 = vld [vmem:[#allocation11 + $0x520] sm:$0xff]
        %v2523 = vld [vmem:[#allocation11 + $0x528] sm:$0xff]
        %v2524 = vld [vmem:[#allocation11 + $0x530] sm:$0xff]
        %v2525 = vld [vmem:[#allocation11 + $0x538] sm:$0xff]
        %v2526 = vld [vmem:[#allocation11 + $0x540] sm:$0xff]
        %v2527 = vld [vmem:[#allocation11 + $0x548] sm:$0xff]
        %v2528 = vld [vmem:[#allocation11 + $0x550] sm:$0xff]
        %v2529 = vld [vmem:[#allocation11 + $0x558] sm:$0xff]
        %v2530 = vld [vmem:[#allocation11 + $0x560] sm:$0xff]
        %v2531 = vld [vmem:[#allocation11 + $0x568] sm:$0xff]
        %v2532 = vld [vmem:[#allocation11 + $0x570] sm:$0xff]
        %v2533 = vld [vmem:[#allocation11 + $0x578] sm:$0xff]
        %v2534 = vld [vmem:[#allocation11 + $0x580] sm:$0xff]
        %v2535 = vld [vmem:[#allocation11 + $0x588] sm:$0xff]
        %v2536 = vld [vmem:[#allocation11 + $0x590] sm:$0xff]
        %v2537 = vld [vmem:[#allocation11 + $0x598] sm:$0xff]
        %v2538 = vld [vmem:[#allocation11 + $0x5a0] sm:$0xff]
        %v2539 = vld [vmem:[#allocation11 + $0x5a8] sm:$0xff]
        %v2540 = vld [vmem:[#allocation11 + $0x5b0] sm:$0xff]
        %v2541 = vld [vmem:[#allocation11 + $0x5b8] sm:$0xff]
        %v2542 = vld [vmem:[#allocation11 + $0x5c0] sm:$0xff]
        %v2543 = vld [vmem:[#allocation11 + $0x5c8] sm:$0xff]
        %v2544 = vld [vmem:[#allocation11 + $0x5d0] sm:$0xff]
        %v2545 = vld [vmem:[#allocation11 + $0x5d8] sm:$0xff]
        %v2546 = vld [vmem:[#allocation11 + $0x5e0] sm:$0xff]
        %v2547 = vld [vmem:[#allocation11 + $0x5e8] sm:$0xff]
        %v2548 = vld [vmem:[#allocation11 + $0x5f0] sm:$0xff]
        %v2549 = vld [vmem:[#allocation11 + $0x5f8] sm:$0xff]
        %v2550 = vld [vmem:[#allocation13] sm:$0xff]
        %v2551 = vpack.c.bf16 %v2355, %v2355
        %v2552 = vpack.c.bf16 %v2356, %v2356
        %v2553 = vpack.c.bf16 %v2357, %v2357
        %v2555 = vlaneseq
        %v2556 = vshrl.u32 %v2555, 7
        %v2557 = vsub.s32 0, %v2556
        %v2558 = vrot.slane %v2550, %v2557
        %v2559 = vlaneseq
        %v2560 = vshrl.u32 %v2559, 7
        %v2561 = vsub.s32 1, %v2560
        %v2562 = vrot.slane %v2550, %v2561
        %v2563 = vlaneseq
        %v2564 = vshrl.u32 %v2563, 7
        %v2565 = vsub.s32 2, %v2564
        %v2566 = vrot.slane %v2550, %v2565
        %v2567 = vlaneseq
        %v2568 = vshrl.u32 %v2567, 7
        %v2569 = vsub.s32 3, %v2568
        %v2570 = vrot.slane %v2550, %v2569
        %v2571 = vlaneseq
        %v2572 = vshrl.u32 %v2571, 7
        %v2573 = vsub.s32 4, %v2572
        %v2574 = vrot.slane %v2550, %v2573
        %v2575 = vlaneseq
        %v2576 = vshrl.u32 %v2575, 7
        %v2577 = vsub.s32 5, %v2576
        %v2578 = vrot.slane %v2550, %v2577
        %v2579 = vlaneseq
        %v2580 = vshrl.u32 %v2579, 7
        %v2581 = vsub.s32 6, %v2580
        %v2582 = vrot.slane %v2550, %v2581
        %v2583 = vlaneseq
        %v2584 = vshrl.u32 %v2583, 7
        %v2585 = vsub.s32 7, %v2584
        %v2586 = vrot.slane %v2550, %v2585
        %v2787 = vunpack.c.l.b16 %v2358
        %v2788 = vunpack.c.h.b16 %v2358
        %v2789 = vunpack.c.l.b16 %v2359
        %v2790 = vunpack.c.h.b16 %v2359
        %v2791 = vunpack.c.l.b16 %v2360
        %v2792 = vunpack.c.h.b16 %v2360
        %v2793 = vunpack.c.l.b16 %v2361
        %v2794 = vunpack.c.h.b16 %v2361
        %v2795 = vunpack.c.l.b16 %v2362
        %v2796 = vunpack.c.h.b16 %v2362
        %v2797 = vunpack.c.l.b16 %v2363
        %v2798 = vunpack.c.h.b16 %v2363
        %v2799 = vunpack.c.l.b16 %v2364
        %v2800 = vunpack.c.h.b16 %v2364
        %v2801 = vunpack.c.l.b16 %v2365
        %v2802 = vunpack.c.h.b16 %v2365
        %v2803 = vunpack.c.l.b16 %v2366
        %v2804 = vunpack.c.h.b16 %v2366
        %v2805 = vunpack.c.l.b16 %v2367
        %v2806 = vunpack.c.h.b16 %v2367
        %v2807 = vunpack.c.l.b16 %v2368
        %v2808 = vunpack.c.h.b16 %v2368
        %v2809 = vunpack.c.l.b16 %v2369
        %v2810 = vunpack.c.h.b16 %v2369
        %v2811 = vunpack.c.l.b16 %v2370
        %v2812 = vunpack.c.h.b16 %v2370
        %v2813 = vunpack.c.l.b16 %v2371
        %v2814 = vunpack.c.h.b16 %v2371
        %v2815 = vunpack.c.l.b16 %v2372
        %v2816 = vunpack.c.h.b16 %v2372
        %v2817 = vunpack.c.l.b16 %v2373
        %v2818 = vunpack.c.h.b16 %v2373
        %v2819 = vunpack.c.l.b16 %v2374
        %v2820 = vunpack.c.h.b16 %v2374
        %v2821 = vunpack.c.l.b16 %v2375
        %v2822 = vunpack.c.h.b16 %v2375
        %v2823 = vunpack.c.l.b16 %v2376
        %v2824 = vunpack.c.h.b16 %v2376
        %v2825 = vunpack.c.l.b16 %v2377
        %v2826 = vunpack.c.h.b16 %v2377
        %v2827 = vunpack.c.l.b16 %v2378
        %v2828 = vunpack.c.h.b16 %v2378
        %v2829 = vunpack.c.l.b16 %v2379
        %v2830 = vunpack.c.h.b16 %v2379
        %v2831 = vunpack.c.l.b16 %v2380
        %v2832 = vunpack.c.h.b16 %v2380
        %v2833 = vunpack.c.l.b16 %v2381
        %v2834 = vunpack.c.h.b16 %v2381
        %v2835 = vunpack.c.l.b16 %v2382
        %v2836 = vunpack.c.h.b16 %v2382
        %v2837 = vunpack.c.l.b16 %v2383
        %v2838 = vunpack.c.h.b16 %v2383
        %v2839 = vunpack.c.l.b16 %v2384
        %v2840 = vunpack.c.h.b16 %v2384
        %v2841 = vunpack.c.l.b16 %v2385
        %v2842 = vunpack.c.h.b16 %v2385
        %v2843 = vunpack.c.l.b16 %v2386
        %v2844 = vunpack.c.h.b16 %v2386
        %v2845 = vunpack.c.l.b16 %v2387
        %v2846 = vunpack.c.h.b16 %v2387
        %v2847 = vunpack.c.l.b16 %v2388
        %v2848 = vunpack.c.h.b16 %v2388
        %v2849 = vunpack.c.l.b16 %v2389
        %v2850 = vunpack.c.h.b16 %v2389
        %v2851 = vunpack.c.l.b16 %v2390
        %v2852 = vunpack.c.h.b16 %v2390
        %v2853 = vunpack.c.l.b16 %v2391
        %v2854 = vunpack.c.h.b16 %v2391
        %v2855 = vunpack.c.l.b16 %v2392
        %v2856 = vunpack.c.h.b16 %v2392
        %v2857 = vunpack.c.l.b16 %v2393
        %v2858 = vunpack.c.h.b16 %v2393
        %v2859 = vunpack.c.l.b16 %v2394
        %v2860 = vunpack.c.h.b16 %v2394
        %v2861 = vunpack.c.l.b16 %v2395
        %v2862 = vunpack.c.h.b16 %v2395
        %v2863 = vunpack.c.l.b16 %v2396
        %v2864 = vunpack.c.h.b16 %v2396
        %v2865 = vunpack.c.l.b16 %v2397
        %v2866 = vunpack.c.h.b16 %v2397
        %v2867 = vunpack.c.l.b16 %v2398
        %v2868 = vunpack.c.h.b16 %v2398
        %v2869 = vunpack.c.l.b16 %v2399
        %v2870 = vunpack.c.h.b16 %v2399
        %v2871 = vunpack.c.l.b16 %v2400
        %v2872 = vunpack.c.h.b16 %v2400
        %v2873 = vunpack.c.l.b16 %v2401
        %v2874 = vunpack.c.h.b16 %v2401
        %v2875 = vunpack.c.l.b16 %v2402
        %v2876 = vunpack.c.h.b16 %v2402
        %v2877 = vunpack.c.l.b16 %v2403
        %v2878 = vunpack.c.h.b16 %v2403
        %v2879 = vunpack.c.l.b16 %v2404
        %v2880 = vunpack.c.h.b16 %v2404
        %v2881 = vunpack.c.l.b16 %v2405
        %v2882 = vunpack.c.h.b16 %v2405
        %v2883 = vunpack.c.l.b16 %v2406
        %v2884 = vunpack.c.h.b16 %v2406
        %v2885 = vunpack.c.l.b16 %v2407
        %v2886 = vunpack.c.h.b16 %v2407
        %v2887 = vunpack.c.l.b16 %v2408
        %v2888 = vunpack.c.h.b16 %v2408
        %v2889 = vunpack.c.l.b16 %v2409
        %v2890 = vunpack.c.h.b16 %v2409
        %v2891 = vunpack.c.l.b16 %v2410
        %v2892 = vunpack.c.h.b16 %v2410
        %v2893 = vunpack.c.l.b16 %v2411
        %v2894 = vunpack.c.h.b16 %v2411
        %v2895 = vunpack.c.l.b16 %v2412
        %v2896 = vunpack.c.h.b16 %v2412
        %v2897 = vunpack.c.l.b16 %v2413
        %v2898 = vunpack.c.h.b16 %v2413
        %v2899 = vunpack.c.l.b16 %v2414
        %v2900 = vunpack.c.h.b16 %v2414
        %v2901 = vunpack.c.l.b16 %v2415
        %v2902 = vunpack.c.h.b16 %v2415
        %v2903 = vunpack.c.l.b16 %v2416
        %v2904 = vunpack.c.h.b16 %v2416
        %v2905 = vunpack.c.l.b16 %v2417
        %v2906 = vunpack.c.h.b16 %v2417
        %v2907 = vunpack.c.l.b16 %v2418
        %v2908 = vunpack.c.h.b16 %v2418
        %v2909 = vunpack.c.l.b16 %v2419
        %v2910 = vunpack.c.h.b16 %v2419
        %v2911 = vunpack.c.l.b16 %v2420
        %v2912 = vunpack.c.h.b16 %v2420
        %v2913 = vunpack.c.l.b16 %v2421
        %v2914 = vunpack.c.h.b16 %v2421
        %v2915 = vunpack.c.l.b16 %v2422
        %v2916 = vunpack.c.h.b16 %v2422
        %v2917 = vunpack.c.l.b16 %v2423
        %v2918 = vunpack.c.h.b16 %v2423
        %v2919 = vunpack.c.l.b16 %v2424
        %v2920 = vunpack.c.h.b16 %v2424
        %v2921 = vunpack.c.l.b16 %v2425
        %v2922 = vunpack.c.h.b16 %v2425
        %v2923 = vunpack.c.l.b16 %v2426
        %v2924 = vunpack.c.h.b16 %v2426
        %v2925 = vunpack.c.l.b16 %v2427
        %v2926 = vunpack.c.h.b16 %v2427
        %v2927 = vunpack.c.l.b16 %v2428
        %v2928 = vunpack.c.h.b16 %v2428
        %v2929 = vunpack.c.l.b16 %v2429
        %v2930 = vunpack.c.h.b16 %v2429
        %v2931 = vunpack.c.l.b16 %v2430
        %v2932 = vunpack.c.h.b16 %v2430
        %v2933 = vunpack.c.l.b16 %v2431
        %v2934 = vunpack.c.h.b16 %v2431
        %v2935 = vunpack.c.l.b16 %v2432
        %v2936 = vunpack.c.h.b16 %v2432
        %v2937 = vunpack.c.l.b16 %v2433
        %v2938 = vunpack.c.h.b16 %v2433
        %v2939 = vunpack.c.l.b16 %v2434
        %v2940 = vunpack.c.h.b16 %v2434
        %v2941 = vunpack.c.l.b16 %v2435
        %v2942 = vunpack.c.h.b16 %v2435
        %v2943 = vunpack.c.l.b16 %v2436
        %v2944 = vunpack.c.h.b16 %v2436
        %v2945 = vunpack.c.l.b16 %v2437
        %v2946 = vunpack.c.h.b16 %v2437
        %v2947 = vunpack.c.l.b16 %v2438
        %v2948 = vunpack.c.h.b16 %v2438
        %v2949 = vunpack.c.l.b16 %v2439
        %v2950 = vunpack.c.h.b16 %v2439
        %v2951 = vunpack.c.l.b16 %v2440
        %v2952 = vunpack.c.h.b16 %v2440
        %v2953 = vunpack.c.l.b16 %v2441
        %v2954 = vunpack.c.h.b16 %v2441
        %v2955 = vunpack.c.l.b16 %v2442
        %v2956 = vunpack.c.h.b16 %v2442
        %v2957 = vunpack.c.l.b16 %v2443
        %v2958 = vunpack.c.h.b16 %v2443
        %v2959 = vunpack.c.l.b16 %v2444
        %v2960 = vunpack.c.h.b16 %v2444
        %v2961 = vunpack.c.l.b16 %v2445
        %v2962 = vunpack.c.h.b16 %v2445
        %v2963 = vunpack.c.l.b16 %v2446
        %v2964 = vunpack.c.h.b16 %v2446
        %v2965 = vunpack.c.l.b16 %v2447
        %v2966 = vunpack.c.h.b16 %v2447
        %v2967 = vunpack.c.l.b16 %v2448
        %v2968 = vunpack.c.h.b16 %v2448
        %v2969 = vunpack.c.l.b16 %v2449
        %v2970 = vunpack.c.h.b16 %v2449
        %v2971 = vunpack.c.l.b16 %v2450
        %v2972 = vunpack.c.h.b16 %v2450
        %v2973 = vunpack.c.l.b16 %v2451
        %v2974 = vunpack.c.h.b16 %v2451
        %v2975 = vunpack.c.l.b16 %v2452
        %v2976 = vunpack.c.h.b16 %v2452
        %v2977 = vunpack.c.l.b16 %v2453
        %v2978 = vunpack.c.h.b16 %v2453
        %v2979 = vunpack.c.l.b16 %v2454
        %v2980 = vunpack.c.h.b16 %v2454
        %v2981 = vunpack.c.l.b16 %v2455
        %v2982 = vunpack.c.h.b16 %v2455
        %v2983 = vunpack.c.l.b16 %v2456
        %v2984 = vunpack.c.h.b16 %v2456
        %v2985 = vunpack.c.l.b16 %v2457
        %v2986 = vunpack.c.h.b16 %v2457
        %v2987 = vunpack.c.l.b16 %v2458
        %v2988 = vunpack.c.h.b16 %v2458
        %v2989 = vunpack.c.l.b16 %v2459
        %v2990 = vunpack.c.h.b16 %v2459
        %v2991 = vunpack.c.l.b16 %v2460
        %v2992 = vunpack.c.h.b16 %v2460
        %v2993 = vunpack.c.l.b16 %v2461
        %v2994 = vunpack.c.h.b16 %v2461
        %v2995 = vunpack.c.l.b16 %v2462
        %v2996 = vunpack.c.h.b16 %v2462
        %v2997 = vunpack.c.l.b16 %v2463
        %v2998 = vunpack.c.h.b16 %v2463
        %v2999 = vunpack.c.l.b16 %v2464
        %v3000 = vunpack.c.h.b16 %v2464
        %v3001 = vunpack.c.l.b16 %v2465
        %v3002 = vunpack.c.h.b16 %v2465
        %v3003 = vunpack.c.l.b16 %v2466
        %v3004 = vunpack.c.h.b16 %v2466
        %v3005 = vunpack.c.l.b16 %v2467
        %v3006 = vunpack.c.h.b16 %v2467
        %v3007 = vunpack.c.l.b16 %v2468
        %v3008 = vunpack.c.h.b16 %v2468
        %v3009 = vunpack.c.l.b16 %v2469
        %v3010 = vunpack.c.h.b16 %v2469
        %v3011 = vunpack.c.l.b16 %v2470
        %v3012 = vunpack.c.h.b16 %v2470
        %v3013 = vunpack.c.l.b16 %v2471
        %v3014 = vunpack.c.h.b16 %v2471
        %v3015 = vunpack.c.l.b16 %v2472
        %v3016 = vunpack.c.h.b16 %v2472
        %v3017 = vunpack.c.l.b16 %v2473
        %v3018 = vunpack.c.h.b16 %v2473
        %v3019 = vunpack.c.l.b16 %v2474
        %v3020 = vunpack.c.h.b16 %v2474
        %v3021 = vunpack.c.l.b16 %v2475
        %v3022 = vunpack.c.h.b16 %v2475
        %v3023 = vunpack.c.l.b16 %v2476
        %v3024 = vunpack.c.h.b16 %v2476
        %v3025 = vunpack.c.l.b16 %v2477
        %v3026 = vunpack.c.h.b16 %v2477
        %v3027 = vunpack.c.l.b16 %v2478
        %v3028 = vunpack.c.h.b16 %v2478
        %v3029 = vunpack.c.l.b16 %v2479
        %v3030 = vunpack.c.h.b16 %v2479
        %v3031 = vunpack.c.l.b16 %v2480
        %v3032 = vunpack.c.h.b16 %v2480
        %v3033 = vunpack.c.l.b16 %v2481
        %v3034 = vunpack.c.h.b16 %v2481
        %v3035 = vunpack.c.l.b16 %v2482
        %v3036 = vunpack.c.h.b16 %v2482
        %v3037 = vunpack.c.l.b16 %v2483
        %v3038 = vunpack.c.h.b16 %v2483
        %v3039 = vunpack.c.l.b16 %v2484
        %v3040 = vunpack.c.h.b16 %v2484
        %v3041 = vunpack.c.l.b16 %v2485
        %v3042 = vunpack.c.h.b16 %v2485
        %v3043 = vunpack.c.l.b16 %v2486
        %v3044 = vunpack.c.h.b16 %v2486
        %v3045 = vunpack.c.l.b16 %v2487
        %v3046 = vunpack.c.h.b16 %v2487
        %v3047 = vunpack.c.l.b16 %v2488
        %v3048 = vunpack.c.h.b16 %v2488
        %v3049 = vunpack.c.l.b16 %v2489
        %v3050 = vunpack.c.h.b16 %v2489
        %v3051 = vunpack.c.l.b16 %v2490
        %v3052 = vunpack.c.h.b16 %v2490
        %v3053 = vunpack.c.l.b16 %v2491
        %v3054 = vunpack.c.h.b16 %v2491
        %v3055 = vunpack.c.l.b16 %v2492
        %v3056 = vunpack.c.h.b16 %v2492
        %v3057 = vunpack.c.l.b16 %v2493
        %v3058 = vunpack.c.h.b16 %v2493
        %v3059 = vunpack.c.l.b16 %v2494
        %v3060 = vunpack.c.h.b16 %v2494
        %v3061 = vunpack.c.l.b16 %v2495
        %v3062 = vunpack.c.h.b16 %v2495
        %v3063 = vunpack.c.l.b16 %v2496
        %v3064 = vunpack.c.h.b16 %v2496
        %v3065 = vunpack.c.l.b16 %v2497
        %v3066 = vunpack.c.h.b16 %v2497
        %v3067 = vunpack.c.l.b16 %v2498
        %v3068 = vunpack.c.h.b16 %v2498
        %v3069 = vunpack.c.l.b16 %v2499
        %v3070 = vunpack.c.h.b16 %v2499
        %v3071 = vunpack.c.l.b16 %v2500
        %v3072 = vunpack.c.h.b16 %v2500
        %v3073 = vunpack.c.l.b16 %v2501
        %v3074 = vunpack.c.h.b16 %v2501
        %v3075 = vunpack.c.l.b16 %v2502
        %v3076 = vunpack.c.h.b16 %v2502
        %v3077 = vunpack.c.l.b16 %v2503
        %v3078 = vunpack.c.h.b16 %v2503
        %v3079 = vunpack.c.l.b16 %v2504
        %v3080 = vunpack.c.h.b16 %v2504
        %v3081 = vunpack.c.l.b16 %v2505
        %v3082 = vunpack.c.h.b16 %v2505
        %v3083 = vunpack.c.l.b16 %v2506
        %v3084 = vunpack.c.h.b16 %v2506
        %v3085 = vunpack.c.l.b16 %v2507
        %v3086 = vunpack.c.h.b16 %v2507
        %v3087 = vunpack.c.l.b16 %v2508
        %v3088 = vunpack.c.h.b16 %v2508
        %v3089 = vunpack.c.l.b16 %v2509
        %v3090 = vunpack.c.h.b16 %v2509
        %v3091 = vunpack.c.l.b16 %v2510
        %v3092 = vunpack.c.h.b16 %v2510
        %v3093 = vunpack.c.l.b16 %v2511
        %v3094 = vunpack.c.h.b16 %v2511
        %v3095 = vunpack.c.l.b16 %v2512
        %v3096 = vunpack.c.h.b16 %v2512
        %v3097 = vunpack.c.l.b16 %v2513
        %v3098 = vunpack.c.h.b16 %v2513
        %v3099 = vunpack.c.l.b16 %v2514
        %v3100 = vunpack.c.h.b16 %v2514
        %v3101 = vunpack.c.l.b16 %v2515
        %v3102 = vunpack.c.h.b16 %v2515
        %v3103 = vunpack.c.l.b16 %v2516
        %v3104 = vunpack.c.h.b16 %v2516
        %v3105 = vunpack.c.l.b16 %v2517
        %v3106 = vunpack.c.h.b16 %v2517
        %v3107 = vunpack.c.l.b16 %v2518
        %v3108 = vunpack.c.h.b16 %v2518
        %v3109 = vunpack.c.l.b16 %v2519
        %v3110 = vunpack.c.h.b16 %v2519
        %v3111 = vunpack.c.l.b16 %v2520
        %v3112 = vunpack.c.h.b16 %v2520
        %v3113 = vunpack.c.l.b16 %v2521
        %v3114 = vunpack.c.h.b16 %v2521
        %v3115 = vunpack.c.l.b16 %v2522
        %v3116 = vunpack.c.h.b16 %v2522
        %v3117 = vunpack.c.l.b16 %v2523
        %v3118 = vunpack.c.h.b16 %v2523
        %v3119 = vunpack.c.l.b16 %v2524
        %v3120 = vunpack.c.h.b16 %v2524
        %v3121 = vunpack.c.l.b16 %v2525
        %v3122 = vunpack.c.h.b16 %v2525
        %v3123 = vunpack.c.l.b16 %v2526
        %v3124 = vunpack.c.h.b16 %v2526
        %v3125 = vunpack.c.l.b16 %v2527
        %v3126 = vunpack.c.h.b16 %v2527
        %v3127 = vunpack.c.l.b16 %v2528
        %v3128 = vunpack.c.h.b16 %v2528
        %v3129 = vunpack.c.l.b16 %v2529
        %v3130 = vunpack.c.h.b16 %v2529
        %v3131 = vunpack.c.l.b16 %v2530
        %v3132 = vunpack.c.h.b16 %v2530
        %v3133 = vunpack.c.l.b16 %v2531
        %v3134 = vunpack.c.h.b16 %v2531
        %v3135 = vunpack.c.l.b16 %v2532
        %v3136 = vunpack.c.h.b16 %v2532
        %v3137 = vunpack.c.l.b16 %v2533
        %v3138 = vunpack.c.h.b16 %v2533
        %v3139 = vunpack.c.l.b16 %v2534
        %v3140 = vunpack.c.h.b16 %v2534
        %v3141 = vunpack.c.l.b16 %v2535
        %v3142 = vunpack.c.h.b16 %v2535
        %v3143 = vunpack.c.l.b16 %v2536
        %v3144 = vunpack.c.h.b16 %v2536
        %v3145 = vunpack.c.l.b16 %v2537
        %v3146 = vunpack.c.h.b16 %v2537
        %v3147 = vunpack.c.l.b16 %v2538
        %v3148 = vunpack.c.h.b16 %v2538
        %v3149 = vunpack.c.l.b16 %v2539
        %v3150 = vunpack.c.h.b16 %v2539
        %v3151 = vunpack.c.l.b16 %v2540
        %v3152 = vunpack.c.h.b16 %v2540
        %v3153 = vunpack.c.l.b16 %v2541
        %v3154 = vunpack.c.h.b16 %v2541
        %v3155 = vunpack.c.l.b16 %v2542
        %v3156 = vunpack.c.h.b16 %v2542
        %v3157 = vunpack.c.l.b16 %v2543
        %v3158 = vunpack.c.h.b16 %v2543
        %v3159 = vunpack.c.l.b16 %v2544
        %v3160 = vunpack.c.h.b16 %v2544
        %v3161 = vunpack.c.l.b16 %v2545
        %v3162 = vunpack.c.h.b16 %v2545
        %v3163 = vunpack.c.l.b16 %v2546
        %v3164 = vunpack.c.h.b16 %v2546
        %v3165 = vunpack.c.l.b16 %v2547
        %v3166 = vunpack.c.h.b16 %v2547
        %v3167 = vunpack.c.l.b16 %v2548
        %v3168 = vunpack.c.h.b16 %v2548
        %v3169 = vunpack.c.l.b16 %v2549
        %v3170 = vunpack.c.h.b16 %v2549
        %v3171 = vpack.c.b16 %v2795, %v2787
        %v3172 = vpack.c.b16 %v2796, %v2788
        %v3173 = vpack.c.b16 %v2797, %v2789
        %v3174 = vpack.c.b16 %v2798, %v2790
        %v3175 = vpack.c.b16 %v2799, %v2791
        %v3176 = vpack.c.b16 %v2800, %v2792
        %v3177 = vpack.c.b16 %v2801, %v2793
        %v3178 = vpack.c.b16 %v2802, %v2794
        %v3179 = vpack.c.b16 %v2811, %v2803
        %v3180 = vpack.c.b16 %v2812, %v2804
        %v3181 = vpack.c.b16 %v2813, %v2805
        %v3182 = vpack.c.b16 %v2814, %v2806
        %v3183 = vpack.c.b16 %v2815, %v2807
        %v3184 = vpack.c.b16 %v2816, %v2808
        %v3185 = vpack.c.b16 %v2817, %v2809
        %v3186 = vpack.c.b16 %v2818, %v2810
        %v3187 = vpack.c.b16 %v2827, %v2819
        %v3188 = vpack.c.b16 %v2828, %v2820
        %v3189 = vpack.c.b16 %v2829, %v2821
        %v3190 = vpack.c.b16 %v2830, %v2822
        %v3191 = vpack.c.b16 %v2831, %v2823
        %v3192 = vpack.c.b16 %v2832, %v2824
        %v3193 = vpack.c.b16 %v2833, %v2825
        %v3194 = vpack.c.b16 %v2834, %v2826
        %v3195 = vpack.c.b16 %v2843, %v2835
        %v3196 = vpack.c.b16 %v2844, %v2836
        %v3197 = vpack.c.b16 %v2845, %v2837
        %v3198 = vpack.c.b16 %v2846, %v2838
        %v3199 = vpack.c.b16 %v2847, %v2839
        %v3200 = vpack.c.b16 %v2848, %v2840
        %v3201 = vpack.c.b16 %v2849, %v2841
        %v3202 = vpack.c.b16 %v2850, %v2842
        %v3203 = vpack.c.b16 %v2859, %v2851
        %v3204 = vpack.c.b16 %v2860, %v2852
        %v3205 = vpack.c.b16 %v2861, %v2853
        %v3206 = vpack.c.b16 %v2862, %v2854
        %v3207 = vpack.c.b16 %v2863, %v2855
        %v3208 = vpack.c.b16 %v2864, %v2856
        %v3209 = vpack.c.b16 %v2865, %v2857
        %v3210 = vpack.c.b16 %v2866, %v2858
        %v3211 = vpack.c.b16 %v2875, %v2867
        %v3212 = vpack.c.b16 %v2876, %v2868
        %v3213 = vpack.c.b16 %v2877, %v2869
        %v3214 = vpack.c.b16 %v2878, %v2870
        %v3215 = vpack.c.b16 %v2879, %v2871
        %v3216 = vpack.c.b16 %v2880, %v2872
        %v3217 = vpack.c.b16 %v2881, %v2873
        %v3218 = vpack.c.b16 %v2882, %v2874
        %v3219 = vpack.c.b16 %v2891, %v2883
        %v3220 = vpack.c.b16 %v2892, %v2884
        %v3221 = vpack.c.b16 %v2893, %v2885
        %v3222 = vpack.c.b16 %v2894, %v2886
        %v3223 = vpack.c.b16 %v2895, %v2887
        %v3224 = vpack.c.b16 %v2896, %v2888
        %v3225 = vpack.c.b16 %v2897, %v2889
        %v3226 = vpack.c.b16 %v2898, %v2890
        %v3227 = vpack.c.b16 %v2907, %v2899
        %v3228 = vpack.c.b16 %v2908, %v2900
        %v3229 = vpack.c.b16 %v2909, %v2901
        %v3230 = vpack.c.b16 %v2910, %v2902
        %v3231 = vpack.c.b16 %v2911, %v2903
        %v3232 = vpack.c.b16 %v2912, %v2904
        %v3233 = vpack.c.b16 %v2913, %v2905
        %v3234 = vpack.c.b16 %v2914, %v2906
        %v3235 = vpack.c.b16 %v2923, %v2915
        %v3236 = vpack.c.b16 %v2924, %v2916
        %v3237 = vpack.c.b16 %v2925, %v2917
        %v3238 = vpack.c.b16 %v2926, %v2918
        %v3239 = vpack.c.b16 %v2927, %v2919
        %v3240 = vpack.c.b16 %v2928, %v2920
        %v3241 = vpack.c.b16 %v2929, %v2921
        %v3242 = vpack.c.b16 %v2930, %v2922
        %v3243 = vpack.c.b16 %v2939, %v2931
        %v3244 = vpack.c.b16 %v2940, %v2932
        %v3245 = vpack.c.b16 %v2941, %v2933
        %v3246 = vpack.c.b16 %v2942, %v2934
        %v3247 = vpack.c.b16 %v2943, %v2935
        %v3248 = vpack.c.b16 %v2944, %v2936
        %v3249 = vpack.c.b16 %v2945, %v2937
        %v3250 = vpack.c.b16 %v2946, %v2938
        %v3251 = vpack.c.b16 %v2955, %v2947
        %v3252 = vpack.c.b16 %v2956, %v2948
        %v3253 = vpack.c.b16 %v2957, %v2949
        %v3254 = vpack.c.b16 %v2958, %v2950
        %v3255 = vpack.c.b16 %v2959, %v2951
        %v3256 = vpack.c.b16 %v2960, %v2952
        %v3257 = vpack.c.b16 %v2961, %v2953
        %v3258 = vpack.c.b16 %v2962, %v2954
        %v3259 = vpack.c.b16 %v2971, %v2963
        %v3260 = vpack.c.b16 %v2972, %v2964
        %v3261 = vpack.c.b16 %v2973, %v2965
        %v3262 = vpack.c.b16 %v2974, %v2966
        %v3263 = vpack.c.b16 %v2975, %v2967
        %v3264 = vpack.c.b16 %v2976, %v2968
        %v3265 = vpack.c.b16 %v2977, %v2969
        %v3266 = vpack.c.b16 %v2978, %v2970
        %v3267 = vpack.c.b16 %v2987, %v2979
        %v3268 = vpack.c.b16 %v2988, %v2980
        %v3269 = vpack.c.b16 %v2989, %v2981
        %v3270 = vpack.c.b16 %v2990, %v2982
        %v3271 = vpack.c.b16 %v2991, %v2983
        %v3272 = vpack.c.b16 %v2992, %v2984
        %v3273 = vpack.c.b16 %v2993, %v2985
        %v3274 = vpack.c.b16 %v2994, %v2986
        %v3275 = vpack.c.b16 %v3003, %v2995
        %v3276 = vpack.c.b16 %v3004, %v2996
        %v3277 = vpack.c.b16 %v3005, %v2997
        %v3278 = vpack.c.b16 %v3006, %v2998
        %v3279 = vpack.c.b16 %v3007, %v2999
        %v3280 = vpack.c.b16 %v3008, %v3000
        %v3281 = vpack.c.b16 %v3009, %v3001
        %v3282 = vpack.c.b16 %v3010, %v3002
        %v3283 = vpack.c.b16 %v3019, %v3011
        %v3284 = vpack.c.b16 %v3020, %v3012
        %v3285 = vpack.c.b16 %v3021, %v3013
        %v3286 = vpack.c.b16 %v3022, %v3014
        %v3287 = vpack.c.b16 %v3023, %v3015
        %v3288 = vpack.c.b16 %v3024, %v3016
        %v3289 = vpack.c.b16 %v3025, %v3017
        %v3290 = vpack.c.b16 %v3026, %v3018
        %v3291 = vpack.c.b16 %v3035, %v3027
        %v3292 = vpack.c.b16 %v3036, %v3028
        %v3293 = vpack.c.b16 %v3037, %v3029
        %v3294 = vpack.c.b16 %v3038, %v3030
        %v3295 = vpack.c.b16 %v3039, %v3031
        %v3296 = vpack.c.b16 %v3040, %v3032
        %v3297 = vpack.c.b16 %v3041, %v3033
        %v3298 = vpack.c.b16 %v3042, %v3034
        %v3299 = vpack.c.b16 %v3051, %v3043
        %v3300 = vpack.c.b16 %v3052, %v3044
        %v3301 = vpack.c.b16 %v3053, %v3045
        %v3302 = vpack.c.b16 %v3054, %v3046
        %v3303 = vpack.c.b16 %v3055, %v3047
        %v3304 = vpack.c.b16 %v3056, %v3048
        %v3305 = vpack.c.b16 %v3057, %v3049
        %v3306 = vpack.c.b16 %v3058, %v3050
        %v3307 = vpack.c.b16 %v3067, %v3059
        %v3308 = vpack.c.b16 %v3068, %v3060
        %v3309 = vpack.c.b16 %v3069, %v3061
        %v3310 = vpack.c.b16 %v3070, %v3062
        %v3311 = vpack.c.b16 %v3071, %v3063
        %v3312 = vpack.c.b16 %v3072, %v3064
        %v3313 = vpack.c.b16 %v3073, %v3065
        %v3314 = vpack.c.b16 %v3074, %v3066
        %v3315 = vpack.c.b16 %v3083, %v3075
        %v3316 = vpack.c.b16 %v3084, %v3076
        %v3317 = vpack.c.b16 %v3085, %v3077
        %v3318 = vpack.c.b16 %v3086, %v3078
        %v3319 = vpack.c.b16 %v3087, %v3079
        %v3320 = vpack.c.b16 %v3088, %v3080
        %v3321 = vpack.c.b16 %v3089, %v3081
        %v3322 = vpack.c.b16 %v3090, %v3082
        %v3323 = vpack.c.b16 %v3099, %v3091
        %v3324 = vpack.c.b16 %v3100, %v3092
        %v3325 = vpack.c.b16 %v3101, %v3093
        %v3326 = vpack.c.b16 %v3102, %v3094
        %v3327 = vpack.c.b16 %v3103, %v3095
        %v3328 = vpack.c.b16 %v3104, %v3096
        %v3329 = vpack.c.b16 %v3105, %v3097
        %v3330 = vpack.c.b16 %v3106, %v3098
        %v3331 = vpack.c.b16 %v3115, %v3107
        %v3332 = vpack.c.b16 %v3116, %v3108
        %v3333 = vpack.c.b16 %v3117, %v3109
        %v3334 = vpack.c.b16 %v3118, %v3110
        %v3335 = vpack.c.b16 %v3119, %v3111
        %v3336 = vpack.c.b16 %v3120, %v3112
        %v3337 = vpack.c.b16 %v3121, %v3113
        %v3338 = vpack.c.b16 %v3122, %v3114
        %v3339 = vpack.c.b16 %v3131, %v3123
        %v3340 = vpack.c.b16 %v3132, %v3124
        %v3341 = vpack.c.b16 %v3133, %v3125
        %v3342 = vpack.c.b16 %v3134, %v3126
        %v3343 = vpack.c.b16 %v3135, %v3127
        %v3344 = vpack.c.b16 %v3136, %v3128
        %v3345 = vpack.c.b16 %v3137, %v3129
        %v3346 = vpack.c.b16 %v3138, %v3130
        %v3347 = vpack.c.b16 %v3147, %v3139
        %v3348 = vpack.c.b16 %v3148, %v3140
        %v3349 = vpack.c.b16 %v3149, %v3141
        %v3350 = vpack.c.b16 %v3150, %v3142
        %v3351 = vpack.c.b16 %v3151, %v3143
        %v3352 = vpack.c.b16 %v3152, %v3144
        %v3353 = vpack.c.b16 %v3153, %v3145
        %v3354 = vpack.c.b16 %v3154, %v3146
        %v3355 = vpack.c.b16 %v3163, %v3155
        %v3356 = vpack.c.b16 %v3164, %v3156
        %v3357 = vpack.c.b16 %v3165, %v3157
        %v3358 = vpack.c.b16 %v3166, %v3158
        %v3359 = vpack.c.b16 %v3167, %v3159
        %v3360 = vpack.c.b16 %v3168, %v3160
        %v3361 = vpack.c.b16 %v3169, %v3161
        %v3362 = vpack.c.b16 %v3170, %v3162
        %3555 = vmatprep.subr.bf16.mxu0 %v3228
        %3556 = vmatpush1.bf16.msra.mxu0 %v3227
        %3557 = vmatprep.subr.bf16.mxu0 %v3220
        %3558 = vmatpush1.bf16.msra.mxu0 %v3219
        %3559 = vmatprep.subr.bf16.mxu0 %v3212
        %3560 = vmatpush1.bf16.msra.mxu0 %v3211
        %3561 = vmatprep.subr.bf16.mxu0 %v3204
        %3562 = vmatpush1.bf16.msra.mxu0 %v3203
        %3563 = vmatprep.subr.bf16.mxu0 %v3196
        %3564 = vmatpush1.bf16.msra.mxu0 %v3195
        %3565 = vmatprep.subr.bf16.mxu0 %v3188
        %3566 = vmatpush1.bf16.msra.mxu0 %v3187
        %3567 = vmatprep.subr.bf16.mxu0 %v3180
        %3568 = vmatpush1.bf16.msra.mxu0 %v3179
        %3569 = vmatprep.subr.bf16.mxu0 %v3172
        %3570 = vmatpush1.bf16.msra.mxu0 %v3171
        %3571 = vmatprep.subr.bf16.mxu0 %v3292
        %3572 = vmatpush2.bf16.msra.mxu0 %v3291
        %3573 = vmatprep.subr.bf16.mxu0 %v3284
        %3574 = vmatpush2.bf16.msra.mxu0 %v3283
        %3575 = vmatprep.subr.bf16.mxu0 %v3276
        %3576 = vmatpush2.bf16.msra.mxu0 %v3275
        %3577 = vmatprep.subr.bf16.mxu0 %v3268
        %3578 = vmatpush2.bf16.msra.mxu0 %v3267
        %3579 = vmatprep.subr.bf16.mxu0 %v3260
        %3580 = vmatpush2.bf16.msra.mxu0 %v3259
        %3581 = vmatprep.subr.bf16.mxu0 %v3252
        %3582 = vmatpush2.bf16.msra.mxu0 %v3251
        %3583 = vmatprep.subr.bf16.mxu0 %v3244
        %3584 = vmatpush2.bf16.msra.mxu0 %v3243
        %3585 = vmatprep.subr.bf16.mxu0 %v3236
        %3586 = vmatpush2.bf16.msra.mxu0 %v3235
        %3587 = vmatprep.mubr.bf16.mxu0 %v2552
        %3588 = vmatmul.mubr.bf16.gmra.mxu0 %v2551
        %v3589 = vpop.f32.mrf.mxu0
        %v3590 = vadd.f32 %v2558, %v3589
        %v3591 = vpop.f32.mrf.mxu0
        %v3592 = vadd.f32 %v2562, %v3591
        %v3593 = vpop.f32.mrf.mxu0
        %v3594 = vpop.f32.mrf.mxu0
        %3595 = vdwg.mxu0
        %3596 = vmatprep.subr.bf16.mxu0 %v3356
        %3597 = vmatpush1.bf16.msra.mxu0 %v3355
        %3598 = vmatprep.subr.bf16.mxu0 %v3348
        %3599 = vmatpush1.bf16.msra.mxu0 %v3347
        %3600 = vmatprep.subr.bf16.mxu0 %v3340
        %3601 = vmatpush1.bf16.msra.mxu0 %v3339
        %3602 = vmatprep.subr.bf16.mxu0 %v3332
        %3603 = vmatpush1.bf16.msra.mxu0 %v3331
        %3604 = vmatprep.subr.bf16.mxu0 %v3324
        %3605 = vmatpush1.bf16.msra.mxu0 %v3323
        %3606 = vmatprep.subr.bf16.mxu0 %v3316
        %3607 = vmatpush1.bf16.msra.mxu0 %v3315
        %3608 = vmatprep.subr.bf16.mxu0 %v3308
        %3609 = vmatpush1.bf16.msra.mxu0 %v3307
        %3610 = vmatprep.subr.bf16.mxu0 %v3300
        %3611 = vmatpush1.bf16.msra.mxu0 %v3299
        %3612 = vmatprep.subr.bf16.mxu0 0
        %3613 = vmatpush2.bf16.msra.mxu0 0
        %3614 = vmatprep.subr.bf16.mxu0 0
        %3615 = vmatpush2.bf16.msra.mxu0 0
        %3616 = vmatprep.subr.bf16.mxu0 0
        %3617 = vmatpush2.bf16.msra.mxu0 0
        %3618 = vmatprep.subr.bf16.mxu0 0
        %3619 = vmatpush2.bf16.msra.mxu0 0
        %3620 = vmatprep.subr.bf16.mxu0 0
        %3621 = vmatpush2.bf16.msra.mxu0 0
        %3622 = vmatprep.subr.bf16.mxu0 0
        %3623 = vmatpush2.bf16.msra.mxu0 0
        %3624 = vmatprep.subr.bf16.mxu0 0
        %3625 = vmatpush2.bf16.msra.mxu0 0
        %3626 = vmatprep.subr.bf16.mxu0 0
        %3627 = vmatpush2.bf16.msra.mxu0 0
        %3628 = vmatprep.mubr.bf16.mxu0 0
        %3629 = vmatmul.mubr.bf16.gmra.mxu0 %v2553
        %v3630 = vpop.f32.mrf.mxu0
        %v3631 = vadd.f32 %v3590, %v3630
        %v3632 = vpop.f32.mrf.mxu0
        %v3633 = vadd.f32 %v3592, %v3632
        %v3634 = vpop.f32.mrf.mxu0
        %v3635 = vpop.f32.mrf.mxu0
        %3636 = vdwg.mxu0
        %3637 = vmatprep.subr.bf16.mxu0 %v3230
        %3638 = vmatpush1.bf16.msra.mxu0 %v3229
        %3639 = vmatprep.subr.bf16.mxu0 %v3222
        %3640 = vmatpush1.bf16.msra.mxu0 %v3221
        %3641 = vmatprep.subr.bf16.mxu0 %v3214
        %3642 = vmatpush1.bf16.msra.mxu0 %v3213
        %3643 = vmatprep.subr.bf16.mxu0 %v3206
        %3644 = vmatpush1.bf16.msra.mxu0 %v3205
        %3645 = vmatprep.subr.bf16.mxu0 %v3198
        %3646 = vmatpush1.bf16.msra.mxu0 %v3197
        %3647 = vmatprep.subr.bf16.mxu0 %v3190
        %3648 = vmatpush1.bf16.msra.mxu0 %v3189
        %3649 = vmatprep.subr.bf16.mxu0 %v3182
        %3650 = vmatpush1.bf16.msra.mxu0 %v3181
        %3651 = vmatprep.subr.bf16.mxu0 %v3174
        %3652 = vmatpush1.bf16.msra.mxu0 %v3173
        %3653 = vmatprep.subr.bf16.mxu0 %v3294
        %3654 = vmatpush2.bf16.msra.mxu0 %v3293
        %3655 = vmatprep.subr.bf16.mxu0 %v3286
        %3656 = vmatpush2.bf16.msra.mxu0 %v3285
        %3657 = vmatprep.subr.bf16.mxu0 %v3278
        %3658 = vmatpush2.bf16.msra.mxu0 %v3277
        %3659 = vmatprep.subr.bf16.mxu0 %v3270
        %3660 = vmatpush2.bf16.msra.mxu0 %v3269
        %3661 = vmatprep.subr.bf16.mxu0 %v3262
        %3662 = vmatpush2.bf16.msra.mxu0 %v3261
        %3663 = vmatprep.subr.bf16.mxu0 %v3254
        %3664 = vmatpush2.bf16.msra.mxu0 %v3253
        %3665 = vmatprep.subr.bf16.mxu0 %v3246
        %3666 = vmatpush2.bf16.msra.mxu0 %v3245
        %3667 = vmatprep.subr.bf16.mxu0 %v3238
        %3668 = vmatpush2.bf16.msra.mxu0 %v3237
        %3669 = vmatprep.mubr.bf16.mxu0 %v2552
        %3670 = vmatmul.mubr.bf16.gmra.mxu0 %v2551
        %v3671 = vpop.f32.mrf.mxu0
        %v3672 = vadd.f32 %v2566, %v3671
        %v3673 = vpop.f32.mrf.mxu0
        %v3674 = vadd.f32 %v2570, %v3673
        %v3675 = vpop.f32.mrf.mxu0
        %v3676 = vpop.f32.mrf.mxu0
        %3677 = vdwg.mxu0
        %3678 = vmatprep.subr.bf16.mxu0 %v3358
        %3679 = vmatpush1.bf16.msra.mxu0 %v3357
        %3680 = vmatprep.subr.bf16.mxu0 %v3350
        %3681 = vmatpush1.bf16.msra.mxu0 %v3349
        %3682 = vmatprep.subr.bf16.mxu0 %v3342
        %3683 = vmatpush1.bf16.msra.mxu0 %v3341
        %3684 = vmatprep.subr.bf16.mxu0 %v3334
        %3685 = vmatpush1.bf16.msra.mxu0 %v3333
        %3686 = vmatprep.subr.bf16.mxu0 %v3326
        %3687 = vmatpush1.bf16.msra.mxu0 %v3325
        %3688 = vmatprep.subr.bf16.mxu0 %v3318
        %3689 = vmatpush1.bf16.msra.mxu0 %v3317
        %3690 = vmatprep.subr.bf16.mxu0 %v3310
        %3691 = vmatpush1.bf16.msra.mxu0 %v3309
        %3692 = vmatprep.subr.bf16.mxu0 %v3302
        %3693 = vmatpush1.bf16.msra.mxu0 %v3301
        %3694 = vmatprep.subr.bf16.mxu0 0
        %3695 = vmatpush2.bf16.msra.mxu0 0
        %3696 = vmatprep.subr.bf16.mxu0 0
        %3697 = vmatpush2.bf16.msra.mxu0 0
        %3698 = vmatprep.subr.bf16.mxu0 0
        %3699 = vmatpush2.bf16.msra.mxu0 0
        %3700 = vmatprep.subr.bf16.mxu0 0
        %3701 = vmatpush2.bf16.msra.mxu0 0
        %3702 = vmatprep.subr.bf16.mxu0 0
        %3703 = vmatpush2.bf16.msra.mxu0 0
        %3704 = vmatprep.subr.bf16.mxu0 0
        %3705 = vmatpush2.bf16.msra.mxu0 0
        %3706 = vmatprep.subr.bf16.mxu0 0
        %3707 = vmatpush2.bf16.msra.mxu0 0
        %3708 = vmatprep.subr.bf16.mxu0 0
        %3709 = vmatpush2.bf16.msra.mxu0 0
        %3710 = vmatprep.mubr.bf16.mxu0 0
        %3711 = vmatmul.mubr.bf16.gmra.mxu0 %v2553
        %v3712 = vpop.f32.mrf.mxu0
        %v3713 = vadd.f32 %v3672, %v3712
        %v3714 = vpop.f32.mrf.mxu0
        %v3715 = vadd.f32 %v3674, %v3714
        %v3716 = vpop.f32.mrf.mxu0
        %v3717 = vpop.f32.mrf.mxu0
        %3718 = vdwg.mxu0
        %3719 = vmatprep.subr.bf16.mxu0 %v3232
        %3720 = vmatpush1.bf16.msra.mxu0 %v3231
        %3721 = vmatprep.subr.bf16.mxu0 %v3224
        %3722 = vmatpush1.bf16.msra.mxu0 %v3223
        %3723 = vmatprep.subr.bf16.mxu0 %v3216
        %3724 = vmatpush1.bf16.msra.mxu0 %v3215
        %3725 = vmatprep.subr.bf16.mxu0 %v3208
        %3726 = vmatpush1.bf16.msra.mxu0 %v3207
        %3727 = vmatprep.subr.bf16.mxu0 %v3200
        %3728 = vmatpush1.bf16.msra.mxu0 %v3199
        %3729 = vmatprep.subr.bf16.mxu0 %v3192
        %3730 = vmatpush1.bf16.msra.mxu0 %v3191
        %3731 = vmatprep.subr.bf16.mxu0 %v3184
        %3732 = vmatpush1.bf16.msra.mxu0 %v3183
        %3733 = vmatprep.subr.bf16.mxu0 %v3176
        %3734 = vmatpush1.bf16.msra.mxu0 %v3175
        %3735 = vmatprep.subr.bf16.mxu0 %v3296
        %3736 = vmatpush2.bf16.msra.mxu0 %v3295
        %3737 = vmatprep.subr.bf16.mxu0 %v3288
        %3738 = vmatpush2.bf16.msra.mxu0 %v3287
        %3739 = vmatprep.subr.bf16.mxu0 %v3280
        %3740 = vmatpush2.bf16.msra.mxu0 %v3279
        %3741 = vmatprep.subr.bf16.mxu0 %v3272
        %3742 = vmatpush2.bf16.msra.mxu0 %v3271
        %3743 = vmatprep.subr.bf16.mxu0 %v3264
        %3744 = vmatpush2.bf16.msra.mxu0 %v3263
        %3745 = vmatprep.subr.bf16.mxu0 %v3256
        %3746 = vmatpush2.bf16.msra.mxu0 %v3255
        %3747 = vmatprep.subr.bf16.mxu0 %v3248
        %3748 = vmatpush2.bf16.msra.mxu0 %v3247
        %3749 = vmatprep.subr.bf16.mxu0 %v3240
        %3750 = vmatpush2.bf16.msra.mxu0 %v3239
        %3751 = vmatprep.mubr.bf16.mxu0 %v2552
        %3752 = vmatmul.mubr.bf16.gmra.mxu0 %v2551
        %v3753 = vpop.f32.mrf.mxu0
        %v3754 = vadd.f32 %v2574, %v3753
        %v3755 = vpop.f32.mrf.mxu0
        %v3756 = vadd.f32 %v2578, %v3755
        %v3757 = vpop.f32.mrf.mxu0
        %v3758 = vpop.f32.mrf.mxu0
        %3759 = vdwg.mxu0
        %3760 = vmatprep.subr.bf16.mxu0 %v3360
        %3761 = vmatpush1.bf16.msra.mxu0 %v3359
        %3762 = vmatprep.subr.bf16.mxu0 %v3352
        %3763 = vmatpush1.bf16.msra.mxu0 %v3351
        %3764 = vmatprep.subr.bf16.mxu0 %v3344
        %3765 = vmatpush1.bf16.msra.mxu0 %v3343
        %3766 = vmatprep.subr.bf16.mxu0 %v3336
        %3767 = vmatpush1.bf16.msra.mxu0 %v3335
        %3768 = vmatprep.subr.bf16.mxu0 %v3328
        %3769 = vmatpush1.bf16.msra.mxu0 %v3327
        %3770 = vmatprep.subr.bf16.mxu0 %v3320
        %3771 = vmatpush1.bf16.msra.mxu0 %v3319
        %3772 = vmatprep.subr.bf16.mxu0 %v3312
        %3773 = vmatpush1.bf16.msra.mxu0 %v3311
        %3774 = vmatprep.subr.bf16.mxu0 %v3304
        %3775 = vmatpush1.bf16.msra.mxu0 %v3303
        %3776 = vmatprep.subr.bf16.mxu0 0
        %3777 = vmatpush2.bf16.msra.mxu0 0
        %3778 = vmatprep.subr.bf16.mxu0 0
        %3779 = vmatpush2.bf16.msra.mxu0 0
        %3780 = vmatprep.subr.bf16.mxu0 0
        %3781 = vmatpush2.bf16.msra.mxu0 0
        %3782 = vmatprep.subr.bf16.mxu0 0
        %3783 = vmatpush2.bf16.msra.mxu0 0
        %3784 = vmatprep.subr.bf16.mxu0 0
        %3785 = vmatpush2.bf16.msra.mxu0 0
        %3786 = vmatprep.subr.bf16.mxu0 0
        %3787 = vmatpush2.bf16.msra.mxu0 0
        %3788 = vmatprep.subr.bf16.mxu0 0
        %3789 = vmatpush2.bf16.msra.mxu0 0
        %3790 = vmatprep.subr.bf16.mxu0 0
        %3791 = vmatpush2.bf16.msra.mxu0 0
        %3792 = vmatprep.mubr.bf16.mxu0 0
        %3793 = vmatmul.mubr.bf16.gmra.mxu0 %v2553
        %v3794 = vpop.f32.mrf.mxu0
        %v3795 = vadd.f32 %v3754, %v3794
        %v3796 = vpop.f32.mrf.mxu0
        %v3797 = vadd.f32 %v3756, %v3796
        %v3798 = vpop.f32.mrf.mxu0
        %v3799 = vpop.f32.mrf.mxu0
        %3800 = vdwg.mxu0
        %3801 = vmatprep.subr.bf16.mxu0 %v3234
        %3802 = vmatpush1.bf16.msra.mxu0 %v3233
        %3803 = vmatprep.subr.bf16.mxu0 %v3226
        %3804 = vmatpush1.bf16.msra.mxu0 %v3225
        %3805 = vmatprep.subr.bf16.mxu0 %v3218
        %3806 = vmatpush1.bf16.msra.mxu0 %v3217
        %3807 = vmatprep.subr.bf16.mxu0 %v3210
        %3808 = vmatpush1.bf16.msra.mxu0 %v3209
        %3809 = vmatprep.subr.bf16.mxu0 %v3202
        %3810 = vmatpush1.bf16.msra.mxu0 %v3201
        %3811 = vmatprep.subr.bf16.mxu0 %v3194
        %3812 = vmatpush1.bf16.msra.mxu0 %v3193
        %3813 = vmatprep.subr.bf16.mxu0 %v3186
        %3814 = vmatpush1.bf16.msra.mxu0 %v3185
        %3815 = vmatprep.subr.bf16.mxu0 %v3178
        %3816 = vmatpush1.bf16.msra.mxu0 %v3177
        %3817 = vmatprep.subr.bf16.mxu0 %v3298
        %3818 = vmatpush2.bf16.msra.mxu0 %v3297
        %3819 = vmatprep.subr.bf16.mxu0 %v3290
        %3820 = vmatpush2.bf16.msra.mxu0 %v3289
        %3821 = vmatprep.subr.bf16.mxu0 %v3282
        %3822 = vmatpush2.bf16.msra.mxu0 %v3281
        %3823 = vmatprep.subr.bf16.mxu0 %v3274
        %3824 = vmatpush2.bf16.msra.mxu0 %v3273
        %3825 = vmatprep.subr.bf16.mxu0 %v3266
        %3826 = vmatpush2.bf16.msra.mxu0 %v3265
        %3827 = vmatprep.subr.bf16.mxu0 %v3258
        %3828 = vmatpush2.bf16.msra.mxu0 %v3257
        %3829 = vmatprep.subr.bf16.mxu0 %v3250
        %3830 = vmatpush2.bf16.msra.mxu0 %v3249
        %3831 = vmatprep.subr.bf16.mxu0 %v3242
        %3832 = vmatpush2.bf16.msra.mxu0 %v3241
        %3833 = vmatprep.mubr.bf16.mxu0 %v2552
        %3834 = vmatmul.mubr.bf16.gmra.mxu0 %v2551
        %v3835 = vpop.f32.mrf.mxu0
        %v3836 = vadd.f32 %v2582, %v3835
        %v3837 = vpop.f32.mrf.mxu0
        %v3838 = vadd.f32 %v2586, %v3837
        %v3839 = vpop.f32.mrf.mxu0
        %v3840 = vpop.f32.mrf.mxu0
        %3841 = vdwg.mxu0
        %3842 = vmatprep.subr.bf16.mxu0 %v3362
        %3843 = vmatpush1.bf16.msra.mxu0 %v3361
        %3844 = vmatprep.subr.bf16.mxu0 %v3354
        %3845 = vmatpush1.bf16.msra.mxu0 %v3353
        %3846 = vmatprep.subr.bf16.mxu0 %v3346
        %3847 = vmatpush1.bf16.msra.mxu0 %v3345
        %3848 = vmatprep.subr.bf16.mxu0 %v3338
        %3849 = vmatpush1.bf16.msra.mxu0 %v3337
        %3850 = vmatprep.subr.bf16.mxu0 %v3330
        %3851 = vmatpush1.bf16.msra.mxu0 %v3329
        %3852 = vmatprep.subr.bf16.mxu0 %v3322
        %3853 = vmatpush1.bf16.msra.mxu0 %v3321
        %3854 = vmatprep.subr.bf16.mxu0 %v3314
        %3855 = vmatpush1.bf16.msra.mxu0 %v3313
        %3856 = vmatprep.subr.bf16.mxu0 %v3306
        %3857 = vmatpush1.bf16.msra.mxu0 %v3305
        %3858 = vmatprep.subr.bf16.mxu0 0
        %3859 = vmatpush2.bf16.msra.mxu0 0
        %3860 = vmatprep.subr.bf16.mxu0 0
        %3861 = vmatpush2.bf16.msra.mxu0 0
        %3862 = vmatprep.subr.bf16.mxu0 0
        %3863 = vmatpush2.bf16.msra.mxu0 0
        %3864 = vmatprep.subr.bf16.mxu0 0
        %3865 = vmatpush2.bf16.msra.mxu0 0
        %3866 = vmatprep.subr.bf16.mxu0 0
        %3867 = vmatpush2.bf16.msra.mxu0 0
        %3868 = vmatprep.subr.bf16.mxu0 0
        %3869 = vmatpush2.bf16.msra.mxu0 0
        %3870 = vmatprep.subr.bf16.mxu0 0
        %3871 = vmatpush2.bf16.msra.mxu0 0
        %3872 = vmatprep.subr.bf16.mxu0 0
        %3873 = vmatpush2.bf16.msra.mxu0 0
        %3874 = vmatprep.mubr.bf16.mxu0 0
        %3875 = vmatmul.mubr.bf16.gmra.mxu0 %v2553
        %v3876 = vpop.f32.mrf.mxu0
        %v3877 = vadd.f32 %v3836, %v3876
        %v3878 = vpop.f32.mrf.mxu0
        %v3879 = vadd.f32 %v3838, %v3878
        %v3880 = vpop.f32.mrf.mxu0
        %v3881 = vpop.f32.mrf.mxu0
        %3882 = vdwg.mxu0
        %v3883 = vtanh.pop %v3631
        %v3884 = vtanh.pop %v3633
        %v3885 = vtanh.pop %v3713
        %v3886 = vtanh.pop %v3715
        %v3887 = vtanh.pop %v3795
        %v3888 = vtanh.pop %v3797
        %v3889 = vtanh.pop %v3877
        %v3890 = vtanh.pop %v3879
        %v3891 = vld [vmem:[#allocation14] sm:$0xff]
        %v3892 = vld [vmem:[#allocation14 + $0x8] sm:$0xff]
        %v3893 = vld [vmem:[#allocation14 + $0x10] sm:$0xff]
        %v3894 = vld [vmem:[#allocation14 + $0x18] sm:$0xff]
        %v3895 = vld [vmem:[#allocation14 + $0x20] sm:$0xff]
        %v3896 = vld [vmem:[#allocation14 + $0x28] sm:$0xff]
        %v3897 = vld [vmem:[#allocation14 + $0x30] sm:$0xff]
        %v3898 = vld [vmem:[#allocation14 + $0x38] sm:$0xff]
        %v3899 = vld [vmem:[#allocation14 + $0x40] sm:$0xff]
        %v3900 = vld [vmem:[#allocation14 + $0x48] sm:$0xff]
        %v3901 = vld [vmem:[#allocation14 + $0x50] sm:$0xff]
        %v3902 = vld [vmem:[#allocation14 + $0x58] sm:$0xff]
        %v3903 = vld [vmem:[#allocation14 + $0x60] sm:$0xff]
        %v3904 = vld [vmem:[#allocation14 + $0x68] sm:$0xff]
        %v3905 = vld [vmem:[#allocation14 + $0x70] sm:$0xff]
        %v3906 = vld [vmem:[#allocation14 + $0x78] sm:$0xff]
        %v3907 = vld [vmem:[#allocation14 + $0x80] sm:$0xff]
        %v3908 = vld [vmem:[#allocation14 + $0x88] sm:$0xff]
        %v3909 = vld [vmem:[#allocation14 + $0x90] sm:$0xff]
        %v3910 = vld [vmem:[#allocation14 + $0x98] sm:$0xff]
        %v3911 = vld [vmem:[#allocation14 + $0xa0] sm:$0xff]
        %v3912 = vld [vmem:[#allocation14 + $0xa8] sm:$0xff]
        %v3913 = vld [vmem:[#allocation14 + $0xb0] sm:$0xff]
        %v3914 = vld [vmem:[#allocation14 + $0xb8] sm:$0xff]
        %v3915 = vld [vmem:[#allocation14 + $0xc0] sm:$0xff]
        %v3916 = vld [vmem:[#allocation14 + $0xc8] sm:$0xff]
        %v3917 = vld [vmem:[#allocation14 + $0xd0] sm:$0xff]
        %v3918 = vld [vmem:[#allocation14 + $0xd8] sm:$0xff]
        %v3919 = vld [vmem:[#allocation14 + $0xe0] sm:$0xff]
        %v3920 = vld [vmem:[#allocation14 + $0xe8] sm:$0xff]
        %v3921 = vld [vmem:[#allocation14 + $0xf0] sm:$0xff]
        %v3922 = vld [vmem:[#allocation14 + $0xf8] sm:$0xff]
        %v3923 = vld [vmem:[#allocation14 + $0x100] sm:$0xff]
        %v3924 = vld [vmem:[#allocation14 + $0x108] sm:$0xff]
        %v3925 = vld [vmem:[#allocation14 + $0x110] sm:$0xff]
        %v3926 = vld [vmem:[#allocation14 + $0x118] sm:$0xff]
        %v3927 = vld [vmem:[#allocation14 + $0x120] sm:$0xff]
        %v3928 = vld [vmem:[#allocation14 + $0x128] sm:$0xff]
        %v3929 = vld [vmem:[#allocation14 + $0x130] sm:$0xff]
        %v3930 = vld [vmem:[#allocation14 + $0x138] sm:$0xff]
        %v3931 = vld [vmem:[#allocation14 + $0x140] sm:$0xff]
        %v3932 = vld [vmem:[#allocation14 + $0x148] sm:$0xff]
        %v3933 = vld [vmem:[#allocation14 + $0x150] sm:$0xff]
        %v3934 = vld [vmem:[#allocation14 + $0x158] sm:$0xff]
        %v3935 = vld [vmem:[#allocation14 + $0x160] sm:$0xff]
        %v3936 = vld [vmem:[#allocation14 + $0x168] sm:$0xff]
        %v3937 = vld [vmem:[#allocation14 + $0x170] sm:$0xff]
        %v3938 = vld [vmem:[#allocation14 + $0x178] sm:$0xff]
        %v3939 = vld [vmem:[#allocation14 + $0x180] sm:$0xff]
        %v3940 = vld [vmem:[#allocation14 + $0x188] sm:$0xff]
        %v3941 = vld [vmem:[#allocation14 + $0x190] sm:$0xff]
        %v3942 = vld [vmem:[#allocation14 + $0x198] sm:$0xff]
        %v3943 = vld [vmem:[#allocation14 + $0x1a0] sm:$0xff]
        %v3944 = vld [vmem:[#allocation14 + $0x1a8] sm:$0xff]
        %v3945 = vld [vmem:[#allocation14 + $0x1b0] sm:$0xff]
        %v3946 = vld [vmem:[#allocation14 + $0x1b8] sm:$0xff]
        %v3947 = vld [vmem:[#allocation14 + $0x1c0] sm:$0xff]
        %v3948 = vld [vmem:[#allocation14 + $0x1c8] sm:$0xff]
        %v3949 = vld [vmem:[#allocation14 + $0x1d0] sm:$0xff]
        %v3950 = vld [vmem:[#allocation14 + $0x1d8] sm:$0xff]
        %v3951 = vld [vmem:[#allocation14 + $0x1e0] sm:$0xff]
        %v3952 = vld [vmem:[#allocation14 + $0x1e8] sm:$0xff]
        %v3953 = vld [vmem:[#allocation14 + $0x1f0] sm:$0xff]
        %v3954 = vld [vmem:[#allocation14 + $0x1f8] sm:$0xff]
        %v3955 = vld [vmem:[#allocation14 + $0x200] sm:$0xff]
        %v3956 = vld [vmem:[#allocation14 + $0x208] sm:$0xff]
        %v3957 = vld [vmem:[#allocation14 + $0x210] sm:$0xff]
        %v3958 = vld [vmem:[#allocation14 + $0x218] sm:$0xff]
        %v3959 = vld [vmem:[#allocation14 + $0x220] sm:$0xff]
        %v3960 = vld [vmem:[#allocation14 + $0x228] sm:$0xff]
        %v3961 = vld [vmem:[#allocation14 + $0x230] sm:$0xff]
        %v3962 = vld [vmem:[#allocation14 + $0x238] sm:$0xff]
        %v3963 = vld [vmem:[#allocation14 + $0x240] sm:$0xff]
        %v3964 = vld [vmem:[#allocation14 + $0x248] sm:$0xff]
        %v3965 = vld [vmem:[#allocation14 + $0x250] sm:$0xff]
        %v3966 = vld [vmem:[#allocation14 + $0x258] sm:$0xff]
        %v3967 = vld [vmem:[#allocation14 + $0x260] sm:$0xff]
        %v3968 = vld [vmem:[#allocation14 + $0x268] sm:$0xff]
        %v3969 = vld [vmem:[#allocation14 + $0x270] sm:$0xff]
        %v3970 = vld [vmem:[#allocation14 + $0x278] sm:$0xff]
        %v3971 = vld [vmem:[#allocation14 + $0x280] sm:$0xff]
        %v3972 = vld [vmem:[#allocation14 + $0x288] sm:$0xff]
        %v3973 = vld [vmem:[#allocation14 + $0x290] sm:$0xff]
        %v3974 = vld [vmem:[#allocation14 + $0x298] sm:$0xff]
        %v3975 = vld [vmem:[#allocation14 + $0x2a0] sm:$0xff]
        %v3976 = vld [vmem:[#allocation14 + $0x2a8] sm:$0xff]
        %v3977 = vld [vmem:[#allocation14 + $0x2b0] sm:$0xff]
        %v3978 = vld [vmem:[#allocation14 + $0x2b8] sm:$0xff]
        %v3979 = vld [vmem:[#allocation14 + $0x2c0] sm:$0xff]
        %v3980 = vld [vmem:[#allocation14 + $0x2c8] sm:$0xff]
        %v3981 = vld [vmem:[#allocation14 + $0x2d0] sm:$0xff]
        %v3982 = vld [vmem:[#allocation14 + $0x2d8] sm:$0xff]
        %v3983 = vld [vmem:[#allocation14 + $0x2e0] sm:$0xff]
        %v3984 = vld [vmem:[#allocation14 + $0x2e8] sm:$0xff]
        %v3985 = vld [vmem:[#allocation14 + $0x2f0] sm:$0xff]
        %v3986 = vld [vmem:[#allocation14 + $0x2f8] sm:$0xff]
        %v3987 = vld [vmem:[#allocation14 + $0x300] sm:$0xff]
        %v3988 = vld [vmem:[#allocation14 + $0x308] sm:$0xff]
        %v3989 = vld [vmem:[#allocation14 + $0x310] sm:$0xff]
        %v3990 = vld [vmem:[#allocation14 + $0x318] sm:$0xff]
        %v3991 = vld [vmem:[#allocation14 + $0x320] sm:$0xff]
        %v3992 = vld [vmem:[#allocation14 + $0x328] sm:$0xff]
        %v3993 = vld [vmem:[#allocation14 + $0x330] sm:$0xff]
        %v3994 = vld [vmem:[#allocation14 + $0x338] sm:$0xff]
        %v3995 = vld [vmem:[#allocation14 + $0x340] sm:$0xff]
        %v3996 = vld [vmem:[#allocation14 + $0x348] sm:$0xff]
        %v3997 = vld [vmem:[#allocation14 + $0x350] sm:$0xff]
        %v3998 = vld [vmem:[#allocation14 + $0x358] sm:$0xff]
        %v3999 = vld [vmem:[#allocation14 + $0x360] sm:$0xff]
        %v4000 = vld [vmem:[#allocation14 + $0x368] sm:$0xff]
        %v4001 = vld [vmem:[#allocation14 + $0x370] sm:$0xff]
        %v4002 = vld [vmem:[#allocation14 + $0x378] sm:$0xff]
        %v4003 = vld [vmem:[#allocation14 + $0x380] sm:$0xff]
        %v4004 = vld [vmem:[#allocation14 + $0x388] sm:$0xff]
        %v4005 = vld [vmem:[#allocation14 + $0x390] sm:$0xff]
        %v4006 = vld [vmem:[#allocation14 + $0x398] sm:$0xff]
        %v4007 = vld [vmem:[#allocation14 + $0x3a0] sm:$0xff]
        %v4008 = vld [vmem:[#allocation14 + $0x3a8] sm:$0xff]
        %v4009 = vld [vmem:[#allocation14 + $0x3b0] sm:$0xff]
        %v4010 = vld [vmem:[#allocation14 + $0x3b8] sm:$0xff]
        %v4011 = vld [vmem:[#allocation14 + $0x3c0] sm:$0xff]
        %v4012 = vld [vmem:[#allocation14 + $0x3c8] sm:$0xff]
        %v4013 = vld [vmem:[#allocation14 + $0x3d0] sm:$0xff]
        %v4014 = vld [vmem:[#allocation14 + $0x3d8] sm:$0xff]
        %v4015 = vld [vmem:[#allocation14 + $0x3e0] sm:$0xff]
        %v4016 = vld [vmem:[#allocation14 + $0x3e8] sm:$0xff]
        %v4017 = vld [vmem:[#allocation14 + $0x3f0] sm:$0xff]
        %v4018 = vld [vmem:[#allocation14 + $0x3f8] sm:$0xff]
        %v4019 = vld [vmem:[#allocation14 + $0x400] sm:$0xff]
        %v4020 = vld [vmem:[#allocation14 + $0x408] sm:$0xff]
        %v4021 = vld [vmem:[#allocation14 + $0x410] sm:$0xff]
        %v4022 = vld [vmem:[#allocation14 + $0x418] sm:$0xff]
        %v4023 = vld [vmem:[#allocation14 + $0x420] sm:$0xff]
        %v4024 = vld [vmem:[#allocation14 + $0x428] sm:$0xff]
        %v4025 = vld [vmem:[#allocation14 + $0x430] sm:$0xff]
        %v4026 = vld [vmem:[#allocation14 + $0x438] sm:$0xff]
        %v4027 = vld [vmem:[#allocation14 + $0x440] sm:$0xff]
        %v4028 = vld [vmem:[#allocation14 + $0x448] sm:$0xff]
        %v4029 = vld [vmem:[#allocation14 + $0x450] sm:$0xff]
        %v4030 = vld [vmem:[#allocation14 + $0x458] sm:$0xff]
        %v4031 = vld [vmem:[#allocation14 + $0x460] sm:$0xff]
        %v4032 = vld [vmem:[#allocation14 + $0x468] sm:$0xff]
        %v4033 = vld [vmem:[#allocation14 + $0x470] sm:$0xff]
        %v4034 = vld [vmem:[#allocation14 + $0x478] sm:$0xff]
        %v4035 = vld [vmem:[#allocation14 + $0x480] sm:$0xff]
        %v4036 = vld [vmem:[#allocation14 + $0x488] sm:$0xff]
        %v4037 = vld [vmem:[#allocation14 + $0x490] sm:$0xff]
        %v4038 = vld [vmem:[#allocation14 + $0x498] sm:$0xff]
        %v4039 = vld [vmem:[#allocation14 + $0x4a0] sm:$0xff]
        %v4040 = vld [vmem:[#allocation14 + $0x4a8] sm:$0xff]
        %v4041 = vld [vmem:[#allocation14 + $0x4b0] sm:$0xff]
        %v4042 = vld [vmem:[#allocation14 + $0x4b8] sm:$0xff]
        %v4043 = vld [vmem:[#allocation14 + $0x4c0] sm:$0xff]
        %v4044 = vld [vmem:[#allocation14 + $0x4c8] sm:$0xff]
        %v4045 = vld [vmem:[#allocation14 + $0x4d0] sm:$0xff]
        %v4046 = vld [vmem:[#allocation14 + $0x4d8] sm:$0xff]
        %v4047 = vld [vmem:[#allocation14 + $0x4e0] sm:$0xff]
        %v4048 = vld [vmem:[#allocation14 + $0x4e8] sm:$0xff]
        %v4049 = vld [vmem:[#allocation14 + $0x4f0] sm:$0xff]
        %v4050 = vld [vmem:[#allocation14 + $0x4f8] sm:$0xff]
        %v4051 = vld [vmem:[#allocation14 + $0x500] sm:$0xff]
        %v4052 = vld [vmem:[#allocation14 + $0x508] sm:$0xff]
        %v4053 = vld [vmem:[#allocation14 + $0x510] sm:$0xff]
        %v4054 = vld [vmem:[#allocation14 + $0x518] sm:$0xff]
        %v4055 = vld [vmem:[#allocation14 + $0x520] sm:$0xff]
        %v4056 = vld [vmem:[#allocation14 + $0x528] sm:$0xff]
        %v4057 = vld [vmem:[#allocation14 + $0x530] sm:$0xff]
        %v4058 = vld [vmem:[#allocation14 + $0x538] sm:$0xff]
        %v4059 = vld [vmem:[#allocation14 + $0x540] sm:$0xff]
        %v4060 = vld [vmem:[#allocation14 + $0x548] sm:$0xff]
        %v4061 = vld [vmem:[#allocation14 + $0x550] sm:$0xff]
        %v4062 = vld [vmem:[#allocation14 + $0x558] sm:$0xff]
        %v4063 = vld [vmem:[#allocation14 + $0x560] sm:$0xff]
        %v4064 = vld [vmem:[#allocation14 + $0x568] sm:$0xff]
        %v4065 = vld [vmem:[#allocation14 + $0x570] sm:$0xff]
        %v4066 = vld [vmem:[#allocation14 + $0x578] sm:$0xff]
        %v4067 = vld [vmem:[#allocation14 + $0x580] sm:$0xff]
        %v4068 = vld [vmem:[#allocation14 + $0x588] sm:$0xff]
        %v4069 = vld [vmem:[#allocation14 + $0x590] sm:$0xff]
        %v4070 = vld [vmem:[#allocation14 + $0x598] sm:$0xff]
        %v4071 = vld [vmem:[#allocation14 + $0x5a0] sm:$0xff]
        %v4072 = vld [vmem:[#allocation14 + $0x5a8] sm:$0xff]
        %v4073 = vld [vmem:[#allocation14 + $0x5b0] sm:$0xff]
        %v4074 = vld [vmem:[#allocation14 + $0x5b8] sm:$0xff]
        %v4075 = vld [vmem:[#allocation14 + $0x5c0] sm:$0xff]
        %v4076 = vld [vmem:[#allocation14 + $0x5c8] sm:$0xff]
        %v4077 = vld [vmem:[#allocation14 + $0x5d0] sm:$0xff]
        %v4078 = vld [vmem:[#allocation14 + $0x5d8] sm:$0xff]
        %v4079 = vld [vmem:[#allocation14 + $0x5e0] sm:$0xff]
        %v4080 = vld [vmem:[#allocation14 + $0x5e8] sm:$0xff]
        %v4081 = vld [vmem:[#allocation14 + $0x5f0] sm:$0xff]
        %v4082 = vld [vmem:[#allocation14 + $0x5f8] sm:$0xff]
        %v4083 = vld [vmem:[#allocation14 + $0x600] sm:$0xff]
        %v4084 = vld [vmem:[#allocation14 + $0x608] sm:$0xff]
        %v4085 = vld [vmem:[#allocation14 + $0x610] sm:$0xff]
        %v4086 = vld [vmem:[#allocation14 + $0x618] sm:$0xff]
        %v4087 = vld [vmem:[#allocation14 + $0x620] sm:$0xff]
        %v4088 = vld [vmem:[#allocation14 + $0x628] sm:$0xff]
        %v4089 = vld [vmem:[#allocation14 + $0x630] sm:$0xff]
        %v4090 = vld [vmem:[#allocation14 + $0x638] sm:$0xff]
        %v4091 = vld [vmem:[#allocation14 + $0x640] sm:$0xff]
        %v4092 = vld [vmem:[#allocation14 + $0x648] sm:$0xff]
        %v4093 = vld [vmem:[#allocation14 + $0x650] sm:$0xff]
        %v4094 = vld [vmem:[#allocation14 + $0x658] sm:$0xff]
        %v4095 = vld [vmem:[#allocation14 + $0x660] sm:$0xff]
        %v4096 = vld [vmem:[#allocation14 + $0x668] sm:$0xff]
        %v4097 = vld [vmem:[#allocation14 + $0x670] sm:$0xff]
        %v4098 = vld [vmem:[#allocation14 + $0x678] sm:$0xff]
        %v4099 = vld [vmem:[#allocation14 + $0x680] sm:$0xff]
        %v4100 = vld [vmem:[#allocation14 + $0x688] sm:$0xff]
        %v4101 = vld [vmem:[#allocation14 + $0x690] sm:$0xff]
        %v4102 = vld [vmem:[#allocation14 + $0x698] sm:$0xff]
        %v4103 = vld [vmem:[#allocation14 + $0x6a0] sm:$0xff]
        %v4104 = vld [vmem:[#allocation14 + $0x6a8] sm:$0xff]
        %v4105 = vld [vmem:[#allocation14 + $0x6b0] sm:$0xff]
        %v4106 = vld [vmem:[#allocation14 + $0x6b8] sm:$0xff]
        %v4107 = vld [vmem:[#allocation14 + $0x6c0] sm:$0xff]
        %v4108 = vld [vmem:[#allocation14 + $0x6c8] sm:$0xff]
        %v4109 = vld [vmem:[#allocation14 + $0x6d0] sm:$0xff]
        %v4110 = vld [vmem:[#allocation14 + $0x6d8] sm:$0xff]
        %v4111 = vld [vmem:[#allocation14 + $0x6e0] sm:$0xff]
        %v4112 = vld [vmem:[#allocation14 + $0x6e8] sm:$0xff]
        %v4113 = vld [vmem:[#allocation14 + $0x6f0] sm:$0xff]
        %v4114 = vld [vmem:[#allocation14 + $0x6f8] sm:$0xff]
        %v4115 = vld [vmem:[#allocation14 + $0x700] sm:$0xff]
        %v4116 = vld [vmem:[#allocation14 + $0x708] sm:$0xff]
        %v4117 = vld [vmem:[#allocation14 + $0x710] sm:$0xff]
        %v4118 = vld [vmem:[#allocation14 + $0x718] sm:$0xff]
        %v4119 = vld [vmem:[#allocation14 + $0x720] sm:$0xff]
        %v4120 = vld [vmem:[#allocation14 + $0x728] sm:$0xff]
        %v4121 = vld [vmem:[#allocation14 + $0x730] sm:$0xff]
        %v4122 = vld [vmem:[#allocation14 + $0x738] sm:$0xff]
        %v4123 = vld [vmem:[#allocation14 + $0x740] sm:$0xff]
        %v4124 = vld [vmem:[#allocation14 + $0x748] sm:$0xff]
        %v4125 = vld [vmem:[#allocation14 + $0x750] sm:$0xff]
        %v4126 = vld [vmem:[#allocation14 + $0x758] sm:$0xff]
        %v4127 = vld [vmem:[#allocation14 + $0x760] sm:$0xff]
        %v4128 = vld [vmem:[#allocation14 + $0x768] sm:$0xff]
        %v4129 = vld [vmem:[#allocation14 + $0x770] sm:$0xff]
        %v4130 = vld [vmem:[#allocation14 + $0x778] sm:$0xff]
        %v4131 = vld [vmem:[#allocation14 + $0x780] sm:$0xff]
        %v4132 = vld [vmem:[#allocation14 + $0x788] sm:$0xff]
        %v4133 = vld [vmem:[#allocation14 + $0x790] sm:$0xff]
        %v4134 = vld [vmem:[#allocation14 + $0x798] sm:$0xff]
        %v4135 = vld [vmem:[#allocation14 + $0x7a0] sm:$0xff]
        %v4136 = vld [vmem:[#allocation14 + $0x7a8] sm:$0xff]
        %v4137 = vld [vmem:[#allocation14 + $0x7b0] sm:$0xff]
        %v4138 = vld [vmem:[#allocation14 + $0x7b8] sm:$0xff]
        %v4139 = vld [vmem:[#allocation14 + $0x7c0] sm:$0xff]
        %v4140 = vld [vmem:[#allocation14 + $0x7c8] sm:$0xff]
        %v4141 = vld [vmem:[#allocation14 + $0x7d0] sm:$0xff]
        %v4142 = vld [vmem:[#allocation14 + $0x7d8] sm:$0xff]
        %v4143 = vld [vmem:[#allocation14 + $0x7e0] sm:$0xff]
        %v4144 = vld [vmem:[#allocation14 + $0x7e8] sm:$0xff]
        %v4145 = vld [vmem:[#allocation14 + $0x7f0] sm:$0xff]
        %v4146 = vld [vmem:[#allocation14 + $0x7f8] sm:$0xff]
        %v4147 = vld [vmem:[#allocation14 + $0x800] sm:$0xff]
        %v4148 = vld [vmem:[#allocation14 + $0x808] sm:$0xff]
        %v4149 = vld [vmem:[#allocation14 + $0x810] sm:$0xff]
        %v4150 = vld [vmem:[#allocation14 + $0x818] sm:$0xff]
        %v4151 = vld [vmem:[#allocation14 + $0x820] sm:$0xff]
        %v4152 = vld [vmem:[#allocation14 + $0x828] sm:$0xff]
        %v4153 = vld [vmem:[#allocation14 + $0x830] sm:$0xff]
        %v4154 = vld [vmem:[#allocation14 + $0x838] sm:$0xff]
        %v4155 = vld [vmem:[#allocation14 + $0x840] sm:$0xff]
        %v4156 = vld [vmem:[#allocation14 + $0x848] sm:$0xff]
        %v4157 = vld [vmem:[#allocation14 + $0x850] sm:$0xff]
        %v4158 = vld [vmem:[#allocation14 + $0x858] sm:$0xff]
        %v4159 = vld [vmem:[#allocation14 + $0x860] sm:$0xff]
        %v4160 = vld [vmem:[#allocation14 + $0x868] sm:$0xff]
        %v4161 = vld [vmem:[#allocation14 + $0x870] sm:$0xff]
        %v4162 = vld [vmem:[#allocation14 + $0x878] sm:$0xff]
        %v4163 = vld [vmem:[#allocation14 + $0x880] sm:$0xff]
        %v4164 = vld [vmem:[#allocation14 + $0x888] sm:$0xff]
        %v4165 = vld [vmem:[#allocation14 + $0x890] sm:$0xff]
        %v4166 = vld [vmem:[#allocation14 + $0x898] sm:$0xff]
        %v4167 = vld [vmem:[#allocation14 + $0x8a0] sm:$0xff]
        %v4168 = vld [vmem:[#allocation14 + $0x8a8] sm:$0xff]
        %v4169 = vld [vmem:[#allocation14 + $0x8b0] sm:$0xff]
        %v4170 = vld [vmem:[#allocation14 + $0x8b8] sm:$0xff]
        %v4171 = vld [vmem:[#allocation14 + $0x8c0] sm:$0xff]
        %v4172 = vld [vmem:[#allocation14 + $0x8c8] sm:$0xff]
        %v4173 = vld [vmem:[#allocation14 + $0x8d0] sm:$0xff]
        %v4174 = vld [vmem:[#allocation14 + $0x8d8] sm:$0xff]
        %v4175 = vld [vmem:[#allocation14 + $0x8e0] sm:$0xff]
        %v4176 = vld [vmem:[#allocation14 + $0x8e8] sm:$0xff]
        %v4177 = vld [vmem:[#allocation14 + $0x8f0] sm:$0xff]
        %v4178 = vld [vmem:[#allocation14 + $0x8f8] sm:$0xff]
        %v4179 = vld [vmem:[#allocation14 + $0x900] sm:$0xff]
        %v4180 = vld [vmem:[#allocation14 + $0x908] sm:$0xff]
        %v4181 = vld [vmem:[#allocation14 + $0x910] sm:$0xff]
        %v4182 = vld [vmem:[#allocation14 + $0x918] sm:$0xff]
        %v4183 = vld [vmem:[#allocation14 + $0x920] sm:$0xff]
        %v4184 = vld [vmem:[#allocation14 + $0x928] sm:$0xff]
        %v4185 = vld [vmem:[#allocation14 + $0x930] sm:$0xff]
        %v4186 = vld [vmem:[#allocation14 + $0x938] sm:$0xff]
        %v4187 = vld [vmem:[#allocation14 + $0x940] sm:$0xff]
        %v4188 = vld [vmem:[#allocation14 + $0x948] sm:$0xff]
        %v4189 = vld [vmem:[#allocation14 + $0x950] sm:$0xff]
        %v4190 = vld [vmem:[#allocation14 + $0x958] sm:$0xff]
        %v4191 = vld [vmem:[#allocation14 + $0x960] sm:$0xff]
        %v4192 = vld [vmem:[#allocation14 + $0x968] sm:$0xff]
        %v4193 = vld [vmem:[#allocation14 + $0x970] sm:$0xff]
        %v4194 = vld [vmem:[#allocation14 + $0x978] sm:$0xff]
        %v4195 = vld [vmem:[#allocation14 + $0x980] sm:$0xff]
        %v4196 = vld [vmem:[#allocation14 + $0x988] sm:$0xff]
        %v4197 = vld [vmem:[#allocation14 + $0x990] sm:$0xff]
        %v4198 = vld [vmem:[#allocation14 + $0x998] sm:$0xff]
        %v4199 = vld [vmem:[#allocation14 + $0x9a0] sm:$0xff]
        %v4200 = vld [vmem:[#allocation14 + $0x9a8] sm:$0xff]
        %v4201 = vld [vmem:[#allocation14 + $0x9b0] sm:$0xff]
        %v4202 = vld [vmem:[#allocation14 + $0x9b8] sm:$0xff]
        %v4203 = vld [vmem:[#allocation14 + $0x9c0] sm:$0xff]
        %v4204 = vld [vmem:[#allocation14 + $0x9c8] sm:$0xff]
        %v4205 = vld [vmem:[#allocation14 + $0x9d0] sm:$0xff]
        %v4206 = vld [vmem:[#allocation14 + $0x9d8] sm:$0xff]
        %v4207 = vld [vmem:[#allocation14 + $0x9e0] sm:$0xff]
        %v4208 = vld [vmem:[#allocation14 + $0x9e8] sm:$0xff]
        %v4209 = vld [vmem:[#allocation14 + $0x9f0] sm:$0xff]
        %v4210 = vld [vmem:[#allocation14 + $0x9f8] sm:$0xff]
        %v4211 = vld [vmem:[#allocation14 + $0xa00] sm:$0xff]
        %v4212 = vld [vmem:[#allocation14 + $0xa08] sm:$0xff]
        %v4213 = vld [vmem:[#allocation14 + $0xa10] sm:$0xff]
        %v4214 = vld [vmem:[#allocation14 + $0xa18] sm:$0xff]
        %v4215 = vld [vmem:[#allocation14 + $0xa20] sm:$0xff]
        %v4216 = vld [vmem:[#allocation14 + $0xa28] sm:$0xff]
        %v4217 = vld [vmem:[#allocation14 + $0xa30] sm:$0xff]
        %v4218 = vld [vmem:[#allocation14 + $0xa38] sm:$0xff]
        %v4219 = vld [vmem:[#allocation14 + $0xa40] sm:$0xff]
        %v4220 = vld [vmem:[#allocation14 + $0xa48] sm:$0xff]
        %v4221 = vld [vmem:[#allocation14 + $0xa50] sm:$0xff]
        %v4222 = vld [vmem:[#allocation14 + $0xa58] sm:$0xff]
        %v4223 = vld [vmem:[#allocation14 + $0xa60] sm:$0xff]
        %v4224 = vld [vmem:[#allocation14 + $0xa68] sm:$0xff]
        %v4225 = vld [vmem:[#allocation14 + $0xa70] sm:$0xff]
        %v4226 = vld [vmem:[#allocation14 + $0xa78] sm:$0xff]
        %v4227 = vld [vmem:[#allocation14 + $0xa80] sm:$0xff]
        %v4228 = vld [vmem:[#allocation14 + $0xa88] sm:$0xff]
        %v4229 = vld [vmem:[#allocation14 + $0xa90] sm:$0xff]
        %v4230 = vld [vmem:[#allocation14 + $0xa98] sm:$0xff]
        %v4231 = vld [vmem:[#allocation14 + $0xaa0] sm:$0xff]
        %v4232 = vld [vmem:[#allocation14 + $0xaa8] sm:$0xff]
        %v4233 = vld [vmem:[#allocation14 + $0xab0] sm:$0xff]
        %v4234 = vld [vmem:[#allocation14 + $0xab8] sm:$0xff]
        %v4235 = vld [vmem:[#allocation14 + $0xac0] sm:$0xff]
        %v4236 = vld [vmem:[#allocation14 + $0xac8] sm:$0xff]
        %v4237 = vld [vmem:[#allocation14 + $0xad0] sm:$0xff]
        %v4238 = vld [vmem:[#allocation14 + $0xad8] sm:$0xff]
        %v4239 = vld [vmem:[#allocation14 + $0xae0] sm:$0xff]
        %v4240 = vld [vmem:[#allocation14 + $0xae8] sm:$0xff]
        %v4241 = vld [vmem:[#allocation14 + $0xaf0] sm:$0xff]
        %v4242 = vld [vmem:[#allocation14 + $0xaf8] sm:$0xff]
        %v4243 = vld [vmem:[#allocation14 + $0xb00] sm:$0xff]
        %v4244 = vld [vmem:[#allocation14 + $0xb08] sm:$0xff]
        %v4245 = vld [vmem:[#allocation14 + $0xb10] sm:$0xff]
        %v4246 = vld [vmem:[#allocation14 + $0xb18] sm:$0xff]
        %v4247 = vld [vmem:[#allocation14 + $0xb20] sm:$0xff]
        %v4248 = vld [vmem:[#allocation14 + $0xb28] sm:$0xff]
        %v4249 = vld [vmem:[#allocation14 + $0xb30] sm:$0xff]
        %v4250 = vld [vmem:[#allocation14 + $0xb38] sm:$0xff]
        %v4251 = vld [vmem:[#allocation14 + $0xb40] sm:$0xff]
        %v4252 = vld [vmem:[#allocation14 + $0xb48] sm:$0xff]
        %v4253 = vld [vmem:[#allocation14 + $0xb50] sm:$0xff]
        %v4254 = vld [vmem:[#allocation14 + $0xb58] sm:$0xff]
        %v4255 = vld [vmem:[#allocation14 + $0xb60] sm:$0xff]
        %v4256 = vld [vmem:[#allocation14 + $0xb68] sm:$0xff]
        %v4257 = vld [vmem:[#allocation14 + $0xb70] sm:$0xff]
        %v4258 = vld [vmem:[#allocation14 + $0xb78] sm:$0xff]
        %v4259 = vld [vmem:[#allocation14 + $0xb80] sm:$0xff]
        %v4260 = vld [vmem:[#allocation14 + $0xb88] sm:$0xff]
        %v4261 = vld [vmem:[#allocation14 + $0xb90] sm:$0xff]
        %v4262 = vld [vmem:[#allocation14 + $0xb98] sm:$0xff]
        %v4263 = vld [vmem:[#allocation14 + $0xba0] sm:$0xff]
        %v4264 = vld [vmem:[#allocation14 + $0xba8] sm:$0xff]
        %v4265 = vld [vmem:[#allocation14 + $0xbb0] sm:$0xff]
        %v4266 = vld [vmem:[#allocation14 + $0xbb8] sm:$0xff]
        %v4267 = vld [vmem:[#allocation14 + $0xbc0] sm:$0xff]
        %v4268 = vld [vmem:[#allocation14 + $0xbc8] sm:$0xff]
        %v4269 = vld [vmem:[#allocation14 + $0xbd0] sm:$0xff]
        %v4270 = vld [vmem:[#allocation14 + $0xbd8] sm:$0xff]
        %v4271 = vld [vmem:[#allocation14 + $0xbe0] sm:$0xff]
        %v4272 = vld [vmem:[#allocation14 + $0xbe8] sm:$0xff]
        %v4273 = vld [vmem:[#allocation14 + $0xbf0] sm:$0xff]
        %v4274 = vld [vmem:[#allocation14 + $0xbf8] sm:$0xff]
        %v4275 = vld [vmem:[#allocation16] sm:$0x3f]
        %v4276 = vpack.c.bf16 %v3883, %v3883
        %v4277 = vpack.c.bf16 %v3884, %v3884
        %v4278 = vpack.c.bf16 %v3885, %v3885
        %v4279 = vpack.c.bf16 %v3886, %v3886
        %v4280 = vpack.c.bf16 %v3887, %v3887
        %v4281 = vpack.c.bf16 %v3888, %v3888
        %v4282 = vpack.c.bf16 %v3889, %v3889
        %v4283 = vpack.c.bf16 %v3890, %v3890
        %v4285 = vlaneseq
        %v4286 = vshrl.u32 %v4285, 7
        %v4287 = vsub.s32 0, %v4286
        %v4288 = vrot.slane %v4275, %v4287
        %v4289 = vlaneseq
        %v4290 = vshrl.u32 %v4289, 7
        %v4291 = vsub.s32 1, %v4290
        %v4292 = vrot.slane %v4275, %v4291
        %v4293 = vlaneseq
        %v4294 = vshrl.u32 %v4293, 7
        %v4295 = vsub.s32 2, %v4294
        %v4296 = vrot.slane %v4275, %v4295
        %v4297 = vlaneseq
        %v4298 = vshrl.u32 %v4297, 7
        %v4299 = vsub.s32 3, %v4298
        %v4300 = vrot.slane %v4275, %v4299
        %v4301 = vlaneseq
        %v4302 = vshrl.u32 %v4301, 7
        %v4303 = vsub.s32 4, %v4302
        %v4304 = vrot.slane %v4275, %v4303
        %v4305 = vlaneseq
        %v4306 = vshrl.u32 %v4305, 7
        %v4307 = vsub.s32 5, %v4306
        %v4308 = vrot.slane %v4275, %v4307
        %v4699 = vunpack.c.l.b16 %v3891
        %v4700 = vunpack.c.h.b16 %v3891
        %v4701 = vunpack.c.l.b16 %v3892
        %v4702 = vunpack.c.h.b16 %v3892
        %v4703 = vunpack.c.l.b16 %v3893
        %v4704 = vunpack.c.h.b16 %v3893
        %v4705 = vunpack.c.l.b16 %v3894
        %v4706 = vunpack.c.h.b16 %v3894
        %v4707 = vunpack.c.l.b16 %v3895
        %v4708 = vunpack.c.h.b16 %v3895
        %v4709 = vunpack.c.l.b16 %v3896
        %v4710 = vunpack.c.h.b16 %v3896
        %v4711 = vunpack.c.l.b16 %v3897
        %v4712 = vunpack.c.h.b16 %v3897
        %v4713 = vunpack.c.l.b16 %v3898
        %v4714 = vunpack.c.h.b16 %v3898
        %v4715 = vunpack.c.l.b16 %v3899
        %v4716 = vunpack.c.h.b16 %v3899
        %v4717 = vunpack.c.l.b16 %v3900
        %v4718 = vunpack.c.h.b16 %v3900
        %v4719 = vunpack.c.l.b16 %v3901
        %v4720 = vunpack.c.h.b16 %v3901
        %v4721 = vunpack.c.l.b16 %v3902
        %v4722 = vunpack.c.h.b16 %v3902
        %v4723 = vunpack.c.l.b16 %v3903
        %v4724 = vunpack.c.h.b16 %v3903
        %v4725 = vunpack.c.l.b16 %v3904
        %v4726 = vunpack.c.h.b16 %v3904
        %v4727 = vunpack.c.l.b16 %v3905
        %v4728 = vunpack.c.h.b16 %v3905
        %v4729 = vunpack.c.l.b16 %v3906
        %v4730 = vunpack.c.h.b16 %v3906
        %v4731 = vunpack.c.l.b16 %v3907
        %v4732 = vunpack.c.h.b16 %v3907
        %v4733 = vunpack.c.l.b16 %v3908
        %v4734 = vunpack.c.h.b16 %v3908
        %v4735 = vunpack.c.l.b16 %v3909
        %v4736 = vunpack.c.h.b16 %v3909
        %v4737 = vunpack.c.l.b16 %v3910
        %v4738 = vunpack.c.h.b16 %v3910
        %v4739 = vunpack.c.l.b16 %v3911
        %v4740 = vunpack.c.h.b16 %v3911
        %v4741 = vunpack.c.l.b16 %v3912
        %v4742 = vunpack.c.h.b16 %v3912
        %v4743 = vunpack.c.l.b16 %v3913
        %v4744 = vunpack.c.h.b16 %v3913
        %v4745 = vunpack.c.l.b16 %v3914
        %v4746 = vunpack.c.h.b16 %v3914
        %v4747 = vunpack.c.l.b16 %v3915
        %v4748 = vunpack.c.h.b16 %v3915
        %v4749 = vunpack.c.l.b16 %v3916
        %v4750 = vunpack.c.h.b16 %v3916
        %v4751 = vunpack.c.l.b16 %v3917
        %v4752 = vunpack.c.h.b16 %v3917
        %v4753 = vunpack.c.l.b16 %v3918
        %v4754 = vunpack.c.h.b16 %v3918
        %v4755 = vunpack.c.l.b16 %v3919
        %v4756 = vunpack.c.h.b16 %v3919
        %v4757 = vunpack.c.l.b16 %v3920
        %v4758 = vunpack.c.h.b16 %v3920
        %v4759 = vunpack.c.l.b16 %v3921
        %v4760 = vunpack.c.h.b16 %v3921
        %v4761 = vunpack.c.l.b16 %v3922
        %v4762 = vunpack.c.h.b16 %v3922
        %v4763 = vunpack.c.l.b16 %v3923
        %v4764 = vunpack.c.h.b16 %v3923
        %v4765 = vunpack.c.l.b16 %v3924
        %v4766 = vunpack.c.h.b16 %v3924
        %v4767 = vunpack.c.l.b16 %v3925
        %v4768 = vunpack.c.h.b16 %v3925
        %v4769 = vunpack.c.l.b16 %v3926
        %v4770 = vunpack.c.h.b16 %v3926
        %v4771 = vunpack.c.l.b16 %v3927
        %v4772 = vunpack.c.h.b16 %v3927
        %v4773 = vunpack.c.l.b16 %v3928
        %v4774 = vunpack.c.h.b16 %v3928
        %v4775 = vunpack.c.l.b16 %v3929
        %v4776 = vunpack.c.h.b16 %v3929
        %v4777 = vunpack.c.l.b16 %v3930
        %v4778 = vunpack.c.h.b16 %v3930
        %v4779 = vunpack.c.l.b16 %v3931
        %v4780 = vunpack.c.h.b16 %v3931
        %v4781 = vunpack.c.l.b16 %v3932
        %v4782 = vunpack.c.h.b16 %v3932
        %v4783 = vunpack.c.l.b16 %v3933
        %v4784 = vunpack.c.h.b16 %v3933
        %v4785 = vunpack.c.l.b16 %v3934
        %v4786 = vunpack.c.h.b16 %v3934
        %v4787 = vunpack.c.l.b16 %v3935
        %v4788 = vunpack.c.h.b16 %v3935
        %v4789 = vunpack.c.l.b16 %v3936
        %v4790 = vunpack.c.h.b16 %v3936
        %v4791 = vunpack.c.l.b16 %v3937
        %v4792 = vunpack.c.h.b16 %v3937
        %v4793 = vunpack.c.l.b16 %v3938
        %v4794 = vunpack.c.h.b16 %v3938
        %v4795 = vunpack.c.l.b16 %v3939
        %v4796 = vunpack.c.h.b16 %v3939
        %v4797 = vunpack.c.l.b16 %v3940
        %v4798 = vunpack.c.h.b16 %v3940
        %v4799 = vunpack.c.l.b16 %v3941
        %v4800 = vunpack.c.h.b16 %v3941
        %v4801 = vunpack.c.l.b16 %v3942
        %v4802 = vunpack.c.h.b16 %v3942
        %v4803 = vunpack.c.l.b16 %v3943
        %v4804 = vunpack.c.h.b16 %v3943
        %v4805 = vunpack.c.l.b16 %v3944
        %v4806 = vunpack.c.h.b16 %v3944
        %v4807 = vunpack.c.l.b16 %v3945
        %v4808 = vunpack.c.h.b16 %v3945
        %v4809 = vunpack.c.l.b16 %v3946
        %v4810 = vunpack.c.h.b16 %v3946
        %v4811 = vunpack.c.l.b16 %v3947
        %v4812 = vunpack.c.h.b16 %v3947
        %v4813 = vunpack.c.l.b16 %v3948
        %v4814 = vunpack.c.h.b16 %v3948
        %v4815 = vunpack.c.l.b16 %v3949
        %v4816 = vunpack.c.h.b16 %v3949
        %v4817 = vunpack.c.l.b16 %v3950
        %v4818 = vunpack.c.h.b16 %v3950
        %v4819 = vunpack.c.l.b16 %v3951
        %v4820 = vunpack.c.h.b16 %v3951
        %v4821 = vunpack.c.l.b16 %v3952
        %v4822 = vunpack.c.h.b16 %v3952
        %v4823 = vunpack.c.l.b16 %v3953
        %v4824 = vunpack.c.h.b16 %v3953
        %v4825 = vunpack.c.l.b16 %v3954
        %v4826 = vunpack.c.h.b16 %v3954
        %v4827 = vunpack.c.l.b16 %v3955
        %v4828 = vunpack.c.h.b16 %v3955
        %v4829 = vunpack.c.l.b16 %v3956
        %v4830 = vunpack.c.h.b16 %v3956
        %v4831 = vunpack.c.l.b16 %v3957
        %v4832 = vunpack.c.h.b16 %v3957
        %v4833 = vunpack.c.l.b16 %v3958
        %v4834 = vunpack.c.h.b16 %v3958
        %v4835 = vunpack.c.l.b16 %v3959
        %v4836 = vunpack.c.h.b16 %v3959
        %v4837 = vunpack.c.l.b16 %v3960
        %v4838 = vunpack.c.h.b16 %v3960
        %v4839 = vunpack.c.l.b16 %v3961
        %v4840 = vunpack.c.h.b16 %v3961
        %v4841 = vunpack.c.l.b16 %v3962
        %v4842 = vunpack.c.h.b16 %v3962
        %v4843 = vunpack.c.l.b16 %v3963
        %v4844 = vunpack.c.h.b16 %v3963
        %v4845 = vunpack.c.l.b16 %v3964
        %v4846 = vunpack.c.h.b16 %v3964
        %v4847 = vunpack.c.l.b16 %v3965
        %v4848 = vunpack.c.h.b16 %v3965
        %v4849 = vunpack.c.l.b16 %v3966
        %v4850 = vunpack.c.h.b16 %v3966
        %v4851 = vunpack.c.l.b16 %v3967
        %v4852 = vunpack.c.h.b16 %v3967
        %v4853 = vunpack.c.l.b16 %v3968
        %v4854 = vunpack.c.h.b16 %v3968
        %v4855 = vunpack.c.l.b16 %v3969
        %v4856 = vunpack.c.h.b16 %v3969
        %v4857 = vunpack.c.l.b16 %v3970
        %v4858 = vunpack.c.h.b16 %v3970
        %v4859 = vunpack.c.l.b16 %v3971
        %v4860 = vunpack.c.h.b16 %v3971
        %v4861 = vunpack.c.l.b16 %v3972
        %v4862 = vunpack.c.h.b16 %v3972
        %v4863 = vunpack.c.l.b16 %v3973
        %v4864 = vunpack.c.h.b16 %v3973
        %v4865 = vunpack.c.l.b16 %v3974
        %v4866 = vunpack.c.h.b16 %v3974
        %v4867 = vunpack.c.l.b16 %v3975
        %v4868 = vunpack.c.h.b16 %v3975
        %v4869 = vunpack.c.l.b16 %v3976
        %v4870 = vunpack.c.h.b16 %v3976
        %v4871 = vunpack.c.l.b16 %v3977
        %v4872 = vunpack.c.h.b16 %v3977
        %v4873 = vunpack.c.l.b16 %v3978
        %v4874 = vunpack.c.h.b16 %v3978
        %v4875 = vunpack.c.l.b16 %v3979
        %v4876 = vunpack.c.h.b16 %v3979
        %v4877 = vunpack.c.l.b16 %v3980
        %v4878 = vunpack.c.h.b16 %v3980
        %v4879 = vunpack.c.l.b16 %v3981
        %v4880 = vunpack.c.h.b16 %v3981
        %v4881 = vunpack.c.l.b16 %v3982
        %v4882 = vunpack.c.h.b16 %v3982
        %v4883 = vunpack.c.l.b16 %v3983
        %v4884 = vunpack.c.h.b16 %v3983
        %v4885 = vunpack.c.l.b16 %v3984
        %v4886 = vunpack.c.h.b16 %v3984
        %v4887 = vunpack.c.l.b16 %v3985
        %v4888 = vunpack.c.h.b16 %v3985
        %v4889 = vunpack.c.l.b16 %v3986
        %v4890 = vunpack.c.h.b16 %v3986
        %v4891 = vunpack.c.l.b16 %v3987
        %v4892 = vunpack.c.h.b16 %v3987
        %v4893 = vunpack.c.l.b16 %v3988
        %v4894 = vunpack.c.h.b16 %v3988
        %v4895 = vunpack.c.l.b16 %v3989
        %v4896 = vunpack.c.h.b16 %v3989
        %v4897 = vunpack.c.l.b16 %v3990
        %v4898 = vunpack.c.h.b16 %v3990
        %v4899 = vunpack.c.l.b16 %v3991
        %v4900 = vunpack.c.h.b16 %v3991
        %v4901 = vunpack.c.l.b16 %v3992
        %v4902 = vunpack.c.h.b16 %v3992
        %v4903 = vunpack.c.l.b16 %v3993
        %v4904 = vunpack.c.h.b16 %v3993
        %v4905 = vunpack.c.l.b16 %v3994
        %v4906 = vunpack.c.h.b16 %v3994
        %v4907 = vunpack.c.l.b16 %v3995
        %v4908 = vunpack.c.h.b16 %v3995
        %v4909 = vunpack.c.l.b16 %v3996
        %v4910 = vunpack.c.h.b16 %v3996
        %v4911 = vunpack.c.l.b16 %v3997
        %v4912 = vunpack.c.h.b16 %v3997
        %v4913 = vunpack.c.l.b16 %v3998
        %v4914 = vunpack.c.h.b16 %v3998
        %v4915 = vunpack.c.l.b16 %v3999
        %v4916 = vunpack.c.h.b16 %v3999
        %v4917 = vunpack.c.l.b16 %v4000
        %v4918 = vunpack.c.h.b16 %v4000
        %v4919 = vunpack.c.l.b16 %v4001
        %v4920 = vunpack.c.h.b16 %v4001
        %v4921 = vunpack.c.l.b16 %v4002
        %v4922 = vunpack.c.h.b16 %v4002
        %v4923 = vunpack.c.l.b16 %v4003
        %v4924 = vunpack.c.h.b16 %v4003
        %v4925 = vunpack.c.l.b16 %v4004
        %v4926 = vunpack.c.h.b16 %v4004
        %v4927 = vunpack.c.l.b16 %v4005
        %v4928 = vunpack.c.h.b16 %v4005
        %v4929 = vunpack.c.l.b16 %v4006
        %v4930 = vunpack.c.h.b16 %v4006
        %v4931 = vunpack.c.l.b16 %v4007
        %v4932 = vunpack.c.h.b16 %v4007
        %v4933 = vunpack.c.l.b16 %v4008
        %v4934 = vunpack.c.h.b16 %v4008
        %v4935 = vunpack.c.l.b16 %v4009
        %v4936 = vunpack.c.h.b16 %v4009
        %v4937 = vunpack.c.l.b16 %v4010
        %v4938 = vunpack.c.h.b16 %v4010
        %v4939 = vunpack.c.l.b16 %v4011
        %v4940 = vunpack.c.h.b16 %v4011
        %v4941 = vunpack.c.l.b16 %v4012
        %v4942 = vunpack.c.h.b16 %v4012
        %v4943 = vunpack.c.l.b16 %v4013
        %v4944 = vunpack.c.h.b16 %v4013
        %v4945 = vunpack.c.l.b16 %v4014
        %v4946 = vunpack.c.h.b16 %v4014
        %v4947 = vunpack.c.l.b16 %v4015
        %v4948 = vunpack.c.h.b16 %v4015
        %v4949 = vunpack.c.l.b16 %v4016
        %v4950 = vunpack.c.h.b16 %v4016
        %v4951 = vunpack.c.l.b16 %v4017
        %v4952 = vunpack.c.h.b16 %v4017
        %v4953 = vunpack.c.l.b16 %v4018
        %v4954 = vunpack.c.h.b16 %v4018
        %v4955 = vunpack.c.l.b16 %v4019
        %v4956 = vunpack.c.h.b16 %v4019
        %v4957 = vunpack.c.l.b16 %v4020
        %v4958 = vunpack.c.h.b16 %v4020
        %v4959 = vunpack.c.l.b16 %v4021
        %v4960 = vunpack.c.h.b16 %v4021
        %v4961 = vunpack.c.l.b16 %v4022
        %v4962 = vunpack.c.h.b16 %v4022
        %v4963 = vunpack.c.l.b16 %v4023
        %v4964 = vunpack.c.h.b16 %v4023
        %v4965 = vunpack.c.l.b16 %v4024
        %v4966 = vunpack.c.h.b16 %v4024
        %v4967 = vunpack.c.l.b16 %v4025
        %v4968 = vunpack.c.h.b16 %v4025
        %v4969 = vunpack.c.l.b16 %v4026
        %v4970 = vunpack.c.h.b16 %v4026
        %v4971 = vunpack.c.l.b16 %v4027
        %v4972 = vunpack.c.h.b16 %v4027
        %v4973 = vunpack.c.l.b16 %v4028
        %v4974 = vunpack.c.h.b16 %v4028
        %v4975 = vunpack.c.l.b16 %v4029
        %v4976 = vunpack.c.h.b16 %v4029
        %v4977 = vunpack.c.l.b16 %v4030
        %v4978 = vunpack.c.h.b16 %v4030
        %v4979 = vunpack.c.l.b16 %v4031
        %v4980 = vunpack.c.h.b16 %v4031
        %v4981 = vunpack.c.l.b16 %v4032
        %v4982 = vunpack.c.h.b16 %v4032
        %v4983 = vunpack.c.l.b16 %v4033
        %v4984 = vunpack.c.h.b16 %v4033
        %v4985 = vunpack.c.l.b16 %v4034
        %v4986 = vunpack.c.h.b16 %v4034
        %v4987 = vunpack.c.l.b16 %v4035
        %v4988 = vunpack.c.h.b16 %v4035
        %v4989 = vunpack.c.l.b16 %v4036
        %v4990 = vunpack.c.h.b16 %v4036
        %v4991 = vunpack.c.l.b16 %v4037
        %v4992 = vunpack.c.h.b16 %v4037
        %v4993 = vunpack.c.l.b16 %v4038
        %v4994 = vunpack.c.h.b16 %v4038
        %v4995 = vunpack.c.l.b16 %v4039
        %v4996 = vunpack.c.h.b16 %v4039
        %v4997 = vunpack.c.l.b16 %v4040
        %v4998 = vunpack.c.h.b16 %v4040
        %v4999 = vunpack.c.l.b16 %v4041
        %v5000 = vunpack.c.h.b16 %v4041
        %v5001 = vunpack.c.l.b16 %v4042
        %v5002 = vunpack.c.h.b16 %v4042
        %v5003 = vunpack.c.l.b16 %v4043
        %v5004 = vunpack.c.h.b16 %v4043
        %v5005 = vunpack.c.l.b16 %v4044
        %v5006 = vunpack.c.h.b16 %v4044
        %v5007 = vunpack.c.l.b16 %v4045
        %v5008 = vunpack.c.h.b16 %v4045
        %v5009 = vunpack.c.l.b16 %v4046
        %v5010 = vunpack.c.h.b16 %v4046
        %v5011 = vunpack.c.l.b16 %v4047
        %v5012 = vunpack.c.h.b16 %v4047
        %v5013 = vunpack.c.l.b16 %v4048
        %v5014 = vunpack.c.h.b16 %v4048
        %v5015 = vunpack.c.l.b16 %v4049
        %v5016 = vunpack.c.h.b16 %v4049
        %v5017 = vunpack.c.l.b16 %v4050
        %v5018 = vunpack.c.h.b16 %v4050
        %v5019 = vunpack.c.l.b16 %v4051
        %v5020 = vunpack.c.h.b16 %v4051
        %v5021 = vunpack.c.l.b16 %v4052
        %v5022 = vunpack.c.h.b16 %v4052
        %v5023 = vunpack.c.l.b16 %v4053
        %v5024 = vunpack.c.h.b16 %v4053
        %v5025 = vunpack.c.l.b16 %v4054
        %v5026 = vunpack.c.h.b16 %v4054
        %v5027 = vunpack.c.l.b16 %v4055
        %v5028 = vunpack.c.h.b16 %v4055
        %v5029 = vunpack.c.l.b16 %v4056
        %v5030 = vunpack.c.h.b16 %v4056
        %v5031 = vunpack.c.l.b16 %v4057
        %v5032 = vunpack.c.h.b16 %v4057
        %v5033 = vunpack.c.l.b16 %v4058
        %v5034 = vunpack.c.h.b16 %v4058
        %v5035 = vunpack.c.l.b16 %v4059
        %v5036 = vunpack.c.h.b16 %v4059
        %v5037 = vunpack.c.l.b16 %v4060
        %v5038 = vunpack.c.h.b16 %v4060
        %v5039 = vunpack.c.l.b16 %v4061
        %v5040 = vunpack.c.h.b16 %v4061
        %v5041 = vunpack.c.l.b16 %v4062
        %v5042 = vunpack.c.h.b16 %v4062
        %v5043 = vunpack.c.l.b16 %v4063
        %v5044 = vunpack.c.h.b16 %v4063
        %v5045 = vunpack.c.l.b16 %v4064
        %v5046 = vunpack.c.h.b16 %v4064
        %v5047 = vunpack.c.l.b16 %v4065
        %v5048 = vunpack.c.h.b16 %v4065
        %v5049 = vunpack.c.l.b16 %v4066
        %v5050 = vunpack.c.h.b16 %v4066
        %v5051 = vunpack.c.l.b16 %v4067
        %v5052 = vunpack.c.h.b16 %v4067
        %v5053 = vunpack.c.l.b16 %v4068
        %v5054 = vunpack.c.h.b16 %v4068
        %v5055 = vunpack.c.l.b16 %v4069
        %v5056 = vunpack.c.h.b16 %v4069
        %v5057 = vunpack.c.l.b16 %v4070
        %v5058 = vunpack.c.h.b16 %v4070
        %v5059 = vunpack.c.l.b16 %v4071
        %v5060 = vunpack.c.h.b16 %v4071
        %v5061 = vunpack.c.l.b16 %v4072
        %v5062 = vunpack.c.h.b16 %v4072
        %v5063 = vunpack.c.l.b16 %v4073
        %v5064 = vunpack.c.h.b16 %v4073
        %v5065 = vunpack.c.l.b16 %v4074
        %v5066 = vunpack.c.h.b16 %v4074
        %v5067 = vunpack.c.l.b16 %v4075
        %v5068 = vunpack.c.h.b16 %v4075
        %v5069 = vunpack.c.l.b16 %v4076
        %v5070 = vunpack.c.h.b16 %v4076
        %v5071 = vunpack.c.l.b16 %v4077
        %v5072 = vunpack.c.h.b16 %v4077
        %v5073 = vunpack.c.l.b16 %v4078
        %v5074 = vunpack.c.h.b16 %v4078
        %v5075 = vunpack.c.l.b16 %v4079
        %v5076 = vunpack.c.h.b16 %v4079
        %v5077 = vunpack.c.l.b16 %v4080
        %v5078 = vunpack.c.h.b16 %v4080
        %v5079 = vunpack.c.l.b16 %v4081
        %v5080 = vunpack.c.h.b16 %v4081
        %v5081 = vunpack.c.l.b16 %v4082
        %v5082 = vunpack.c.h.b16 %v4082
        %v5083 = vunpack.c.l.b16 %v4083
        %v5084 = vunpack.c.h.b16 %v4083
        %v5085 = vunpack.c.l.b16 %v4084
        %v5086 = vunpack.c.h.b16 %v4084
        %v5087 = vunpack.c.l.b16 %v4085
        %v5088 = vunpack.c.h.b16 %v4085
        %v5089 = vunpack.c.l.b16 %v4086
        %v5090 = vunpack.c.h.b16 %v4086
        %v5091 = vunpack.c.l.b16 %v4087
        %v5092 = vunpack.c.h.b16 %v4087
        %v5093 = vunpack.c.l.b16 %v4088
        %v5094 = vunpack.c.h.b16 %v4088
        %v5095 = vunpack.c.l.b16 %v4089
        %v5096 = vunpack.c.h.b16 %v4089
        %v5097 = vunpack.c.l.b16 %v4090
        %v5098 = vunpack.c.h.b16 %v4090
        %v5099 = vunpack.c.l.b16 %v4091
        %v5100 = vunpack.c.h.b16 %v4091
        %v5101 = vunpack.c.l.b16 %v4092
        %v5102 = vunpack.c.h.b16 %v4092
        %v5103 = vunpack.c.l.b16 %v4093
        %v5104 = vunpack.c.h.b16 %v4093
        %v5105 = vunpack.c.l.b16 %v4094
        %v5106 = vunpack.c.h.b16 %v4094
        %v5107 = vunpack.c.l.b16 %v4095
        %v5108 = vunpack.c.h.b16 %v4095
        %v5109 = vunpack.c.l.b16 %v4096
        %v5110 = vunpack.c.h.b16 %v4096
        %v5111 = vunpack.c.l.b16 %v4097
        %v5112 = vunpack.c.h.b16 %v4097
        %v5113 = vunpack.c.l.b16 %v4098
        %v5114 = vunpack.c.h.b16 %v4098
        %v5115 = vunpack.c.l.b16 %v4099
        %v5116 = vunpack.c.h.b16 %v4099
        %v5117 = vunpack.c.l.b16 %v4100
        %v5118 = vunpack.c.h.b16 %v4100
        %v5119 = vunpack.c.l.b16 %v4101
        %v5120 = vunpack.c.h.b16 %v4101
        %v5121 = vunpack.c.l.b16 %v4102
        %v5122 = vunpack.c.h.b16 %v4102
        %v5123 = vunpack.c.l.b16 %v4103
        %v5124 = vunpack.c.h.b16 %v4103
        %v5125 = vunpack.c.l.b16 %v4104
        %v5126 = vunpack.c.h.b16 %v4104
        %v5127 = vunpack.c.l.b16 %v4105
        %v5128 = vunpack.c.h.b16 %v4105
        %v5129 = vunpack.c.l.b16 %v4106
        %v5130 = vunpack.c.h.b16 %v4106
        %v5131 = vunpack.c.l.b16 %v4107
        %v5132 = vunpack.c.h.b16 %v4107
        %v5133 = vunpack.c.l.b16 %v4108
        %v5134 = vunpack.c.h.b16 %v4108
        %v5135 = vunpack.c.l.b16 %v4109
        %v5136 = vunpack.c.h.b16 %v4109
        %v5137 = vunpack.c.l.b16 %v4110
        %v5138 = vunpack.c.h.b16 %v4110
        %v5139 = vunpack.c.l.b16 %v4111
        %v5140 = vunpack.c.h.b16 %v4111
        %v5141 = vunpack.c.l.b16 %v4112
        %v5142 = vunpack.c.h.b16 %v4112
        %v5143 = vunpack.c.l.b16 %v4113
        %v5144 = vunpack.c.h.b16 %v4113
        %v5145 = vunpack.c.l.b16 %v4114
        %v5146 = vunpack.c.h.b16 %v4114
        %v5147 = vunpack.c.l.b16 %v4115
        %v5148 = vunpack.c.h.b16 %v4115
        %v5149 = vunpack.c.l.b16 %v4116
        %v5150 = vunpack.c.h.b16 %v4116
        %v5151 = vunpack.c.l.b16 %v4117
        %v5152 = vunpack.c.h.b16 %v4117
        %v5153 = vunpack.c.l.b16 %v4118
        %v5154 = vunpack.c.h.b16 %v4118
        %v5155 = vunpack.c.l.b16 %v4119
        %v5156 = vunpack.c.h.b16 %v4119
        %v5157 = vunpack.c.l.b16 %v4120
        %v5158 = vunpack.c.h.b16 %v4120
        %v5159 = vunpack.c.l.b16 %v4121
        %v5160 = vunpack.c.h.b16 %v4121
        %v5161 = vunpack.c.l.b16 %v4122
        %v5162 = vunpack.c.h.b16 %v4122
        %v5163 = vunpack.c.l.b16 %v4123
        %v5164 = vunpack.c.h.b16 %v4123
        %v5165 = vunpack.c.l.b16 %v4124
        %v5166 = vunpack.c.h.b16 %v4124
        %v5167 = vunpack.c.l.b16 %v4125
        %v5168 = vunpack.c.h.b16 %v4125
        %v5169 = vunpack.c.l.b16 %v4126
        %v5170 = vunpack.c.h.b16 %v4126
        %v5171 = vunpack.c.l.b16 %v4127
        %v5172 = vunpack.c.h.b16 %v4127
        %v5173 = vunpack.c.l.b16 %v4128
        %v5174 = vunpack.c.h.b16 %v4128
        %v5175 = vunpack.c.l.b16 %v4129
        %v5176 = vunpack.c.h.b16 %v4129
        %v5177 = vunpack.c.l.b16 %v4130
        %v5178 = vunpack.c.h.b16 %v4130
        %v5179 = vunpack.c.l.b16 %v4131
        %v5180 = vunpack.c.h.b16 %v4131
        %v5181 = vunpack.c.l.b16 %v4132
        %v5182 = vunpack.c.h.b16 %v4132
        %v5183 = vunpack.c.l.b16 %v4133
        %v5184 = vunpack.c.h.b16 %v4133
        %v5185 = vunpack.c.l.b16 %v4134
        %v5186 = vunpack.c.h.b16 %v4134
        %v5187 = vunpack.c.l.b16 %v4135
        %v5188 = vunpack.c.h.b16 %v4135
        %v5189 = vunpack.c.l.b16 %v4136
        %v5190 = vunpack.c.h.b16 %v4136
        %v5191 = vunpack.c.l.b16 %v4137
        %v5192 = vunpack.c.h.b16 %v4137
        %v5193 = vunpack.c.l.b16 %v4138
        %v5194 = vunpack.c.h.b16 %v4138
        %v5195 = vunpack.c.l.b16 %v4139
        %v5196 = vunpack.c.h.b16 %v4139
        %v5197 = vunpack.c.l.b16 %v4140
        %v5198 = vunpack.c.h.b16 %v4140
        %v5199 = vunpack.c.l.b16 %v4141
        %v5200 = vunpack.c.h.b16 %v4141
        %v5201 = vunpack.c.l.b16 %v4142
        %v5202 = vunpack.c.h.b16 %v4142
        %v5203 = vunpack.c.l.b16 %v4143
        %v5204 = vunpack.c.h.b16 %v4143
        %v5205 = vunpack.c.l.b16 %v4144
        %v5206 = vunpack.c.h.b16 %v4144
        %v5207 = vunpack.c.l.b16 %v4145
        %v5208 = vunpack.c.h.b16 %v4145
        %v5209 = vunpack.c.l.b16 %v4146
        %v5210 = vunpack.c.h.b16 %v4146
        %v5211 = vunpack.c.l.b16 %v4147
        %v5212 = vunpack.c.h.b16 %v4147
        %v5213 = vunpack.c.l.b16 %v4148
        %v5214 = vunpack.c.h.b16 %v4148
        %v5215 = vunpack.c.l.b16 %v4149
        %v5216 = vunpack.c.h.b16 %v4149
        %v5217 = vunpack.c.l.b16 %v4150
        %v5218 = vunpack.c.h.b16 %v4150
        %v5219 = vunpack.c.l.b16 %v4151
        %v5220 = vunpack.c.h.b16 %v4151
        %v5221 = vunpack.c.l.b16 %v4152
        %v5222 = vunpack.c.h.b16 %v4152
        %v5223 = vunpack.c.l.b16 %v4153
        %v5224 = vunpack.c.h.b16 %v4153
        %v5225 = vunpack.c.l.b16 %v4154
        %v5226 = vunpack.c.h.b16 %v4154
        %v5227 = vunpack.c.l.b16 %v4155
        %v5228 = vunpack.c.h.b16 %v4155
        %v5229 = vunpack.c.l.b16 %v4156
        %v5230 = vunpack.c.h.b16 %v4156
        %v5231 = vunpack.c.l.b16 %v4157
        %v5232 = vunpack.c.h.b16 %v4157
        %v5233 = vunpack.c.l.b16 %v4158
        %v5234 = vunpack.c.h.b16 %v4158
        %v5235 = vunpack.c.l.b16 %v4159
        %v5236 = vunpack.c.h.b16 %v4159
        %v5237 = vunpack.c.l.b16 %v4160
        %v5238 = vunpack.c.h.b16 %v4160
        %v5239 = vunpack.c.l.b16 %v4161
        %v5240 = vunpack.c.h.b16 %v4161
        %v5241 = vunpack.c.l.b16 %v4162
        %v5242 = vunpack.c.h.b16 %v4162
        %v5243 = vunpack.c.l.b16 %v4163
        %v5244 = vunpack.c.h.b16 %v4163
        %v5245 = vunpack.c.l.b16 %v4164
        %v5246 = vunpack.c.h.b16 %v4164
        %v5247 = vunpack.c.l.b16 %v4165
        %v5248 = vunpack.c.h.b16 %v4165
        %v5249 = vunpack.c.l.b16 %v4166
        %v5250 = vunpack.c.h.b16 %v4166
        %v5251 = vunpack.c.l.b16 %v4167
        %v5252 = vunpack.c.h.b16 %v4167
        %v5253 = vunpack.c.l.b16 %v4168
        %v5254 = vunpack.c.h.b16 %v4168
        %v5255 = vunpack.c.l.b16 %v4169
        %v5256 = vunpack.c.h.b16 %v4169
        %v5257 = vunpack.c.l.b16 %v4170
        %v5258 = vunpack.c.h.b16 %v4170
        %v5259 = vunpack.c.l.b16 %v4171
        %v5260 = vunpack.c.h.b16 %v4171
        %v5261 = vunpack.c.l.b16 %v4172
        %v5262 = vunpack.c.h.b16 %v4172
        %v5263 = vunpack.c.l.b16 %v4173
        %v5264 = vunpack.c.h.b16 %v4173
        %v5265 = vunpack.c.l.b16 %v4174
        %v5266 = vunpack.c.h.b16 %v4174
        %v5267 = vunpack.c.l.b16 %v4175
        %v5268 = vunpack.c.h.b16 %v4175
        %v5269 = vunpack.c.l.b16 %v4176
        %v5270 = vunpack.c.h.b16 %v4176
        %v5271 = vunpack.c.l.b16 %v4177
        %v5272 = vunpack.c.h.b16 %v4177
        %v5273 = vunpack.c.l.b16 %v4178
        %v5274 = vunpack.c.h.b16 %v4178
        %v5275 = vunpack.c.l.b16 %v4179
        %v5276 = vunpack.c.h.b16 %v4179
        %v5277 = vunpack.c.l.b16 %v4180
        %v5278 = vunpack.c.h.b16 %v4180
        %v5279 = vunpack.c.l.b16 %v4181
        %v5280 = vunpack.c.h.b16 %v4181
        %v5281 = vunpack.c.l.b16 %v4182
        %v5282 = vunpack.c.h.b16 %v4182
        %v5283 = vunpack.c.l.b16 %v4183
        %v5284 = vunpack.c.h.b16 %v4183
        %v5285 = vunpack.c.l.b16 %v4184
        %v5286 = vunpack.c.h.b16 %v4184
        %v5287 = vunpack.c.l.b16 %v4185
        %v5288 = vunpack.c.h.b16 %v4185
        %v5289 = vunpack.c.l.b16 %v4186
        %v5290 = vunpack.c.h.b16 %v4186
        %v5291 = vunpack.c.l.b16 %v4187
        %v5292 = vunpack.c.h.b16 %v4187
        %v5293 = vunpack.c.l.b16 %v4188
        %v5294 = vunpack.c.h.b16 %v4188
        %v5295 = vunpack.c.l.b16 %v4189
        %v5296 = vunpack.c.h.b16 %v4189
        %v5297 = vunpack.c.l.b16 %v4190
        %v5298 = vunpack.c.h.b16 %v4190
        %v5299 = vunpack.c.l.b16 %v4191
        %v5300 = vunpack.c.h.b16 %v4191
        %v5301 = vunpack.c.l.b16 %v4192
        %v5302 = vunpack.c.h.b16 %v4192
        %v5303 = vunpack.c.l.b16 %v4193
        %v5304 = vunpack.c.h.b16 %v4193
        %v5305 = vunpack.c.l.b16 %v4194
        %v5306 = vunpack.c.h.b16 %v4194
        %v5307 = vunpack.c.l.b16 %v4195
        %v5308 = vunpack.c.h.b16 %v4195
        %v5309 = vunpack.c.l.b16 %v4196
        %v5310 = vunpack.c.h.b16 %v4196
        %v5311 = vunpack.c.l.b16 %v4197
        %v5312 = vunpack.c.h.b16 %v4197
        %v5313 = vunpack.c.l.b16 %v4198
        %v5314 = vunpack.c.h.b16 %v4198
        %v5315 = vunpack.c.l.b16 %v4199
        %v5316 = vunpack.c.h.b16 %v4199
        %v5317 = vunpack.c.l.b16 %v4200
        %v5318 = vunpack.c.h.b16 %v4200
        %v5319 = vunpack.c.l.b16 %v4201
        %v5320 = vunpack.c.h.b16 %v4201
        %v5321 = vunpack.c.l.b16 %v4202
        %v5322 = vunpack.c.h.b16 %v4202
        %v5323 = vunpack.c.l.b16 %v4203
        %v5324 = vunpack.c.h.b16 %v4203
        %v5325 = vunpack.c.l.b16 %v4204
        %v5326 = vunpack.c.h.b16 %v4204
        %v5327 = vunpack.c.l.b16 %v4205
        %v5328 = vunpack.c.h.b16 %v4205
        %v5329 = vunpack.c.l.b16 %v4206
        %v5330 = vunpack.c.h.b16 %v4206
        %v5331 = vunpack.c.l.b16 %v4207
        %v5332 = vunpack.c.h.b16 %v4207
        %v5333 = vunpack.c.l.b16 %v4208
        %v5334 = vunpack.c.h.b16 %v4208
        %v5335 = vunpack.c.l.b16 %v4209
        %v5336 = vunpack.c.h.b16 %v4209
        %v5337 = vunpack.c.l.b16 %v4210
        %v5338 = vunpack.c.h.b16 %v4210
        %v5339 = vunpack.c.l.b16 %v4211
        %v5340 = vunpack.c.h.b16 %v4211
        %v5341 = vunpack.c.l.b16 %v4212
        %v5342 = vunpack.c.h.b16 %v4212
        %v5343 = vunpack.c.l.b16 %v4213
        %v5344 = vunpack.c.h.b16 %v4213
        %v5345 = vunpack.c.l.b16 %v4214
        %v5346 = vunpack.c.h.b16 %v4214
        %v5347 = vunpack.c.l.b16 %v4215
        %v5348 = vunpack.c.h.b16 %v4215
        %v5349 = vunpack.c.l.b16 %v4216
        %v5350 = vunpack.c.h.b16 %v4216
        %v5351 = vunpack.c.l.b16 %v4217
        %v5352 = vunpack.c.h.b16 %v4217
        %v5353 = vunpack.c.l.b16 %v4218
        %v5354 = vunpack.c.h.b16 %v4218
        %v5355 = vunpack.c.l.b16 %v4219
        %v5356 = vunpack.c.h.b16 %v4219
        %v5357 = vunpack.c.l.b16 %v4220
        %v5358 = vunpack.c.h.b16 %v4220
        %v5359 = vunpack.c.l.b16 %v4221
        %v5360 = vunpack.c.h.b16 %v4221
        %v5361 = vunpack.c.l.b16 %v4222
        %v5362 = vunpack.c.h.b16 %v4222
        %v5363 = vunpack.c.l.b16 %v4223
        %v5364 = vunpack.c.h.b16 %v4223
        %v5365 = vunpack.c.l.b16 %v4224
        %v5366 = vunpack.c.h.b16 %v4224
        %v5367 = vunpack.c.l.b16 %v4225
        %v5368 = vunpack.c.h.b16 %v4225
        %v5369 = vunpack.c.l.b16 %v4226
        %v5370 = vunpack.c.h.b16 %v4226
        %v5371 = vunpack.c.l.b16 %v4227
        %v5372 = vunpack.c.h.b16 %v4227
        %v5373 = vunpack.c.l.b16 %v4228
        %v5374 = vunpack.c.h.b16 %v4228
        %v5375 = vunpack.c.l.b16 %v4229
        %v5376 = vunpack.c.h.b16 %v4229
        %v5377 = vunpack.c.l.b16 %v4230
        %v5378 = vunpack.c.h.b16 %v4230
        %v5379 = vunpack.c.l.b16 %v4231
        %v5380 = vunpack.c.h.b16 %v4231
        %v5381 = vunpack.c.l.b16 %v4232
        %v5382 = vunpack.c.h.b16 %v4232
        %v5383 = vunpack.c.l.b16 %v4233
        %v5384 = vunpack.c.h.b16 %v4233
        %v5385 = vunpack.c.l.b16 %v4234
        %v5386 = vunpack.c.h.b16 %v4234
        %v5387 = vunpack.c.l.b16 %v4235
        %v5388 = vunpack.c.h.b16 %v4235
        %v5389 = vunpack.c.l.b16 %v4236
        %v5390 = vunpack.c.h.b16 %v4236
        %v5391 = vunpack.c.l.b16 %v4237
        %v5392 = vunpack.c.h.b16 %v4237
        %v5393 = vunpack.c.l.b16 %v4238
        %v5394 = vunpack.c.h.b16 %v4238
        %v5395 = vunpack.c.l.b16 %v4239
        %v5396 = vunpack.c.h.b16 %v4239
        %v5397 = vunpack.c.l.b16 %v4240
        %v5398 = vunpack.c.h.b16 %v4240
        %v5399 = vunpack.c.l.b16 %v4241
        %v5400 = vunpack.c.h.b16 %v4241
        %v5401 = vunpack.c.l.b16 %v4242
        %v5402 = vunpack.c.h.b16 %v4242
        %v5403 = vunpack.c.l.b16 %v4243
        %v5404 = vunpack.c.h.b16 %v4243
        %v5405 = vunpack.c.l.b16 %v4244
        %v5406 = vunpack.c.h.b16 %v4244
        %v5407 = vunpack.c.l.b16 %v4245
        %v5408 = vunpack.c.h.b16 %v4245
        %v5409 = vunpack.c.l.b16 %v4246
        %v5410 = vunpack.c.h.b16 %v4246
        %v5411 = vunpack.c.l.b16 %v4247
        %v5412 = vunpack.c.h.b16 %v4247
        %v5413 = vunpack.c.l.b16 %v4248
        %v5414 = vunpack.c.h.b16 %v4248
        %v5415 = vunpack.c.l.b16 %v4249
        %v5416 = vunpack.c.h.b16 %v4249
        %v5417 = vunpack.c.l.b16 %v4250
        %v5418 = vunpack.c.h.b16 %v4250
        %v5419 = vunpack.c.l.b16 %v4251
        %v5420 = vunpack.c.h.b16 %v4251
        %v5421 = vunpack.c.l.b16 %v4252
        %v5422 = vunpack.c.h.b16 %v4252
        %v5423 = vunpack.c.l.b16 %v4253
        %v5424 = vunpack.c.h.b16 %v4253
        %v5425 = vunpack.c.l.b16 %v4254
        %v5426 = vunpack.c.h.b16 %v4254
        %v5427 = vunpack.c.l.b16 %v4255
        %v5428 = vunpack.c.h.b16 %v4255
        %v5429 = vunpack.c.l.b16 %v4256
        %v5430 = vunpack.c.h.b16 %v4256
        %v5431 = vunpack.c.l.b16 %v4257
        %v5432 = vunpack.c.h.b16 %v4257
        %v5433 = vunpack.c.l.b16 %v4258
        %v5434 = vunpack.c.h.b16 %v4258
        %v5435 = vunpack.c.l.b16 %v4259
        %v5436 = vunpack.c.h.b16 %v4259
        %v5437 = vunpack.c.l.b16 %v4260
        %v5438 = vunpack.c.h.b16 %v4260
        %v5439 = vunpack.c.l.b16 %v4261
        %v5440 = vunpack.c.h.b16 %v4261
        %v5441 = vunpack.c.l.b16 %v4262
        %v5442 = vunpack.c.h.b16 %v4262
        %v5443 = vunpack.c.l.b16 %v4263
        %v5444 = vunpack.c.h.b16 %v4263
        %v5445 = vunpack.c.l.b16 %v4264
        %v5446 = vunpack.c.h.b16 %v4264
        %v5447 = vunpack.c.l.b16 %v4265
        %v5448 = vunpack.c.h.b16 %v4265
        %v5449 = vunpack.c.l.b16 %v4266
        %v5450 = vunpack.c.h.b16 %v4266
        %v5451 = vunpack.c.l.b16 %v4267
        %v5452 = vunpack.c.h.b16 %v4267
        %v5453 = vunpack.c.l.b16 %v4268
        %v5454 = vunpack.c.h.b16 %v4268
        %v5455 = vunpack.c.l.b16 %v4269
        %v5456 = vunpack.c.h.b16 %v4269
        %v5457 = vunpack.c.l.b16 %v4270
        %v5458 = vunpack.c.h.b16 %v4270
        %v5459 = vunpack.c.l.b16 %v4271
        %v5460 = vunpack.c.h.b16 %v4271
        %v5461 = vunpack.c.l.b16 %v4272
        %v5462 = vunpack.c.h.b16 %v4272
        %v5463 = vunpack.c.l.b16 %v4273
        %v5464 = vunpack.c.h.b16 %v4273
        %v5465 = vunpack.c.l.b16 %v4274
        %v5466 = vunpack.c.h.b16 %v4274
        %v5467 = vpack.c.b16 %v4705, %v4699
        %v5468 = vpack.c.b16 %v4706, %v4700
        %v5469 = vpack.c.b16 %v4707, %v4701
        %v5470 = vpack.c.b16 %v4708, %v4702
        %v5471 = vpack.c.b16 %v4709, %v4703
        %v5472 = vpack.c.b16 %v4710, %v4704
        %v5473 = vpack.c.b16 %v4717, %v4711
        %v5474 = vpack.c.b16 %v4718, %v4712
        %v5475 = vpack.c.b16 %v4719, %v4713
        %v5476 = vpack.c.b16 %v4720, %v4714
        %v5477 = vpack.c.b16 %v4721, %v4715
        %v5478 = vpack.c.b16 %v4722, %v4716
        %v5479 = vpack.c.b16 %v4729, %v4723
        %v5480 = vpack.c.b16 %v4730, %v4724
        %v5481 = vpack.c.b16 %v4731, %v4725
        %v5482 = vpack.c.b16 %v4732, %v4726
        %v5483 = vpack.c.b16 %v4733, %v4727
        %v5484 = vpack.c.b16 %v4734, %v4728
        %v5485 = vpack.c.b16 %v4741, %v4735
        %v5486 = vpack.c.b16 %v4742, %v4736
        %v5487 = vpack.c.b16 %v4743, %v4737
        %v5488 = vpack.c.b16 %v4744, %v4738
        %v5489 = vpack.c.b16 %v4745, %v4739
        %v5490 = vpack.c.b16 %v4746, %v4740
        %v5491 = vpack.c.b16 %v4753, %v4747
        %v5492 = vpack.c.b16 %v4754, %v4748
        %v5493 = vpack.c.b16 %v4755, %v4749
        %v5494 = vpack.c.b16 %v4756, %v4750
        %v5495 = vpack.c.b16 %v4757, %v4751
        %v5496 = vpack.c.b16 %v4758, %v4752
        %v5497 = vpack.c.b16 %v4765, %v4759
        %v5498 = vpack.c.b16 %v4766, %v4760
        %v5499 = vpack.c.b16 %v4767, %v4761
        %v5500 = vpack.c.b16 %v4768, %v4762
        %v5501 = vpack.c.b16 %v4769, %v4763
        %v5502 = vpack.c.b16 %v4770, %v4764
        %v5503 = vpack.c.b16 %v4777, %v4771
        %v5504 = vpack.c.b16 %v4778, %v4772
        %v5505 = vpack.c.b16 %v4779, %v4773
        %v5506 = vpack.c.b16 %v4780, %v4774
        %v5507 = vpack.c.b16 %v4781, %v4775
        %v5508 = vpack.c.b16 %v4782, %v4776
        %v5509 = vpack.c.b16 %v4789, %v4783
        %v5510 = vpack.c.b16 %v4790, %v4784
        %v5511 = vpack.c.b16 %v4791, %v4785
        %v5512 = vpack.c.b16 %v4792, %v4786
        %v5513 = vpack.c.b16 %v4793, %v4787
        %v5514 = vpack.c.b16 %v4794, %v4788
        %v5515 = vpack.c.b16 %v4801, %v4795
        %v5516 = vpack.c.b16 %v4802, %v4796
        %v5517 = vpack.c.b16 %v4803, %v4797
        %v5518 = vpack.c.b16 %v4804, %v4798
        %v5519 = vpack.c.b16 %v4805, %v4799
        %v5520 = vpack.c.b16 %v4806, %v4800
        %v5521 = vpack.c.b16 %v4813, %v4807
        %v5522 = vpack.c.b16 %v4814, %v4808
        %v5523 = vpack.c.b16 %v4815, %v4809
        %v5524 = vpack.c.b16 %v4816, %v4810
        %v5525 = vpack.c.b16 %v4817, %v4811
        %v5526 = vpack.c.b16 %v4818, %v4812
        %v5527 = vpack.c.b16 %v4825, %v4819
        %v5528 = vpack.c.b16 %v4826, %v4820
        %v5529 = vpack.c.b16 %v4827, %v4821
        %v5530 = vpack.c.b16 %v4828, %v4822
        %v5531 = vpack.c.b16 %v4829, %v4823
        %v5532 = vpack.c.b16 %v4830, %v4824
        %v5533 = vpack.c.b16 %v4837, %v4831
        %v5534 = vpack.c.b16 %v4838, %v4832
        %v5535 = vpack.c.b16 %v4839, %v4833
        %v5536 = vpack.c.b16 %v4840, %v4834
        %v5537 = vpack.c.b16 %v4841, %v4835
        %v5538 = vpack.c.b16 %v4842, %v4836
        %v5539 = vpack.c.b16 %v4849, %v4843
        %v5540 = vpack.c.b16 %v4850, %v4844
        %v5541 = vpack.c.b16 %v4851, %v4845
        %v5542 = vpack.c.b16 %v4852, %v4846
        %v5543 = vpack.c.b16 %v4853, %v4847
        %v5544 = vpack.c.b16 %v4854, %v4848
        %v5545 = vpack.c.b16 %v4861, %v4855
        %v5546 = vpack.c.b16 %v4862, %v4856
        %v5547 = vpack.c.b16 %v4863, %v4857
        %v5548 = vpack.c.b16 %v4864, %v4858
        %v5549 = vpack.c.b16 %v4865, %v4859
        %v5550 = vpack.c.b16 %v4866, %v4860
        %v5551 = vpack.c.b16 %v4873, %v4867
        %v5552 = vpack.c.b16 %v4874, %v4868
        %v5553 = vpack.c.b16 %v4875, %v4869
        %v5554 = vpack.c.b16 %v4876, %v4870
        %v5555 = vpack.c.b16 %v4877, %v4871
        %v5556 = vpack.c.b16 %v4878, %v4872
        %v5557 = vpack.c.b16 %v4885, %v4879
        %v5558 = vpack.c.b16 %v4886, %v4880
        %v5559 = vpack.c.b16 %v4887, %v4881
        %v5560 = vpack.c.b16 %v4888, %v4882
        %v5561 = vpack.c.b16 %v4889, %v4883
        %v5562 = vpack.c.b16 %v4890, %v4884
        %v5563 = vpack.c.b16 %v4897, %v4891
        %v5564 = vpack.c.b16 %v4898, %v4892
        %v5565 = vpack.c.b16 %v4899, %v4893
        %v5566 = vpack.c.b16 %v4900, %v4894
        %v5567 = vpack.c.b16 %v4901, %v4895
        %v5568 = vpack.c.b16 %v4902, %v4896
        %v5569 = vpack.c.b16 %v4909, %v4903
        %v5570 = vpack.c.b16 %v4910, %v4904
        %v5571 = vpack.c.b16 %v4911, %v4905
        %v5572 = vpack.c.b16 %v4912, %v4906
        %v5573 = vpack.c.b16 %v4913, %v4907
        %v5574 = vpack.c.b16 %v4914, %v4908
        %v5575 = vpack.c.b16 %v4921, %v4915
        %v5576 = vpack.c.b16 %v4922, %v4916
        %v5577 = vpack.c.b16 %v4923, %v4917
        %v5578 = vpack.c.b16 %v4924, %v4918
        %v5579 = vpack.c.b16 %v4925, %v4919
        %v5580 = vpack.c.b16 %v4926, %v4920
        %v5581 = vpack.c.b16 %v4933, %v4927
        %v5582 = vpack.c.b16 %v4934, %v4928
        %v5583 = vpack.c.b16 %v4935, %v4929
        %v5584 = vpack.c.b16 %v4936, %v4930
        %v5585 = vpack.c.b16 %v4937, %v4931
        %v5586 = vpack.c.b16 %v4938, %v4932
        %v5587 = vpack.c.b16 %v4945, %v4939
        %v5588 = vpack.c.b16 %v4946, %v4940
        %v5589 = vpack.c.b16 %v4947, %v4941
        %v5590 = vpack.c.b16 %v4948, %v4942
        %v5591 = vpack.c.b16 %v4949, %v4943
        %v5592 = vpack.c.b16 %v4950, %v4944
        %v5593 = vpack.c.b16 %v4957, %v4951
        %v5594 = vpack.c.b16 %v4958, %v4952
        %v5595 = vpack.c.b16 %v4959, %v4953
        %v5596 = vpack.c.b16 %v4960, %v4954
        %v5597 = vpack.c.b16 %v4961, %v4955
        %v5598 = vpack.c.b16 %v4962, %v4956
        %v5599 = vpack.c.b16 %v4969, %v4963
        %v5600 = vpack.c.b16 %v4970, %v4964
        %v5601 = vpack.c.b16 %v4971, %v4965
        %v5602 = vpack.c.b16 %v4972, %v4966
        %v5603 = vpack.c.b16 %v4973, %v4967
        %v5604 = vpack.c.b16 %v4974, %v4968
        %v5605 = vpack.c.b16 %v4981, %v4975
        %v5606 = vpack.c.b16 %v4982, %v4976
        %v5607 = vpack.c.b16 %v4983, %v4977
        %v5608 = vpack.c.b16 %v4984, %v4978
        %v5609 = vpack.c.b16 %v4985, %v4979
        %v5610 = vpack.c.b16 %v4986, %v4980
        %v5611 = vpack.c.b16 %v4993, %v4987
        %v5612 = vpack.c.b16 %v4994, %v4988
        %v5613 = vpack.c.b16 %v4995, %v4989
        %v5614 = vpack.c.b16 %v4996, %v4990
        %v5615 = vpack.c.b16 %v4997, %v4991
        %v5616 = vpack.c.b16 %v4998, %v4992
        %v5617 = vpack.c.b16 %v5005, %v4999
        %v5618 = vpack.c.b16 %v5006, %v5000
        %v5619 = vpack.c.b16 %v5007, %v5001
        %v5620 = vpack.c.b16 %v5008, %v5002
        %v5621 = vpack.c.b16 %v5009, %v5003
        %v5622 = vpack.c.b16 %v5010, %v5004
        %v5623 = vpack.c.b16 %v5017, %v5011
        %v5624 = vpack.c.b16 %v5018, %v5012
        %v5625 = vpack.c.b16 %v5019, %v5013
        %v5626 = vpack.c.b16 %v5020, %v5014
        %v5627 = vpack.c.b16 %v5021, %v5015
        %v5628 = vpack.c.b16 %v5022, %v5016
        %v5629 = vpack.c.b16 %v5029, %v5023
        %v5630 = vpack.c.b16 %v5030, %v5024
        %v5631 = vpack.c.b16 %v5031, %v5025
        %v5632 = vpack.c.b16 %v5032, %v5026
        %v5633 = vpack.c.b16 %v5033, %v5027
        %v5634 = vpack.c.b16 %v5034, %v5028
        %v5635 = vpack.c.b16 %v5041, %v5035
        %v5636 = vpack.c.b16 %v5042, %v5036
        %v5637 = vpack.c.b16 %v5043, %v5037
        %v5638 = vpack.c.b16 %v5044, %v5038
        %v5639 = vpack.c.b16 %v5045, %v5039
        %v5640 = vpack.c.b16 %v5046, %v5040
        %v5641 = vpack.c.b16 %v5053, %v5047
        %v5642 = vpack.c.b16 %v5054, %v5048
        %v5643 = vpack.c.b16 %v5055, %v5049
        %v5644 = vpack.c.b16 %v5056, %v5050
        %v5645 = vpack.c.b16 %v5057, %v5051
        %v5646 = vpack.c.b16 %v5058, %v5052
        %v5647 = vpack.c.b16 %v5065, %v5059
        %v5648 = vpack.c.b16 %v5066, %v5060
        %v5649 = vpack.c.b16 %v5067, %v5061
        %v5650 = vpack.c.b16 %v5068, %v5062
        %v5651 = vpack.c.b16 %v5069, %v5063
        %v5652 = vpack.c.b16 %v5070, %v5064
        %v5653 = vpack.c.b16 %v5077, %v5071
        %v5654 = vpack.c.b16 %v5078, %v5072
        %v5655 = vpack.c.b16 %v5079, %v5073
        %v5656 = vpack.c.b16 %v5080, %v5074
        %v5657 = vpack.c.b16 %v5081, %v5075
        %v5658 = vpack.c.b16 %v5082, %v5076
        %v5659 = vpack.c.b16 %v5089, %v5083
        %v5660 = vpack.c.b16 %v5090, %v5084
        %v5661 = vpack.c.b16 %v5091, %v5085
        %v5662 = vpack.c.b16 %v5092, %v5086
        %v5663 = vpack.c.b16 %v5093, %v5087
        %v5664 = vpack.c.b16 %v5094, %v5088
        %v5665 = vpack.c.b16 %v5101, %v5095
        %v5666 = vpack.c.b16 %v5102, %v5096
        %v5667 = vpack.c.b16 %v5103, %v5097
        %v5668 = vpack.c.b16 %v5104, %v5098
        %v5669 = vpack.c.b16 %v5105, %v5099
        %v5670 = vpack.c.b16 %v5106, %v5100
        %v5671 = vpack.c.b16 %v5113, %v5107
        %v5672 = vpack.c.b16 %v5114, %v5108
        %v5673 = vpack.c.b16 %v5115, %v5109
        %v5674 = vpack.c.b16 %v5116, %v5110
        %v5675 = vpack.c.b16 %v5117, %v5111
        %v5676 = vpack.c.b16 %v5118, %v5112
        %v5677 = vpack.c.b16 %v5125, %v5119
        %v5678 = vpack.c.b16 %v5126, %v5120
        %v5679 = vpack.c.b16 %v5127, %v5121
        %v5680 = vpack.c.b16 %v5128, %v5122
        %v5681 = vpack.c.b16 %v5129, %v5123
        %v5682 = vpack.c.b16 %v5130, %v5124
        %v5683 = vpack.c.b16 %v5137, %v5131
        %v5684 = vpack.c.b16 %v5138, %v5132
        %v5685 = vpack.c.b16 %v5139, %v5133
        %v5686 = vpack.c.b16 %v5140, %v5134
        %v5687 = vpack.c.b16 %v5141, %v5135
        %v5688 = vpack.c.b16 %v5142, %v5136
        %v5689 = vpack.c.b16 %v5149, %v5143
        %v5690 = vpack.c.b16 %v5150, %v5144
        %v5691 = vpack.c.b16 %v5151, %v5145
        %v5692 = vpack.c.b16 %v5152, %v5146
        %v5693 = vpack.c.b16 %v5153, %v5147
        %v5694 = vpack.c.b16 %v5154, %v5148
        %v5695 = vpack.c.b16 %v5161, %v5155
        %v5696 = vpack.c.b16 %v5162, %v5156
        %v5697 = vpack.c.b16 %v5163, %v5157
        %v5698 = vpack.c.b16 %v5164, %v5158
        %v5699 = vpack.c.b16 %v5165, %v5159
        %v5700 = vpack.c.b16 %v5166, %v5160
        %v5701 = vpack.c.b16 %v5173, %v5167
        %v5702 = vpack.c.b16 %v5174, %v5168
        %v5703 = vpack.c.b16 %v5175, %v5169
        %v5704 = vpack.c.b16 %v5176, %v5170
        %v5705 = vpack.c.b16 %v5177, %v5171
        %v5706 = vpack.c.b16 %v5178, %v5172
        %v5707 = vpack.c.b16 %v5185, %v5179
        %v5708 = vpack.c.b16 %v5186, %v5180
        %v5709 = vpack.c.b16 %v5187, %v5181
        %v5710 = vpack.c.b16 %v5188, %v5182
        %v5711 = vpack.c.b16 %v5189, %v5183
        %v5712 = vpack.c.b16 %v5190, %v5184
        %v5713 = vpack.c.b16 %v5197, %v5191
        %v5714 = vpack.c.b16 %v5198, %v5192
        %v5715 = vpack.c.b16 %v5199, %v5193
        %v5716 = vpack.c.b16 %v5200, %v5194
        %v5717 = vpack.c.b16 %v5201, %v5195
        %v5718 = vpack.c.b16 %v5202, %v5196
        %v5719 = vpack.c.b16 %v5209, %v5203
        %v5720 = vpack.c.b16 %v5210, %v5204
        %v5721 = vpack.c.b16 %v5211, %v5205
        %v5722 = vpack.c.b16 %v5212, %v5206
        %v5723 = vpack.c.b16 %v5213, %v5207
        %v5724 = vpack.c.b16 %v5214, %v5208
        %v5725 = vpack.c.b16 %v5221, %v5215
        %v5726 = vpack.c.b16 %v5222, %v5216
        %v5727 = vpack.c.b16 %v5223, %v5217
        %v5728 = vpack.c.b16 %v5224, %v5218
        %v5729 = vpack.c.b16 %v5225, %v5219
        %v5730 = vpack.c.b16 %v5226, %v5220
        %v5731 = vpack.c.b16 %v5233, %v5227
        %v5732 = vpack.c.b16 %v5234, %v5228
        %v5733 = vpack.c.b16 %v5235, %v5229
        %v5734 = vpack.c.b16 %v5236, %v5230
        %v5735 = vpack.c.b16 %v5237, %v5231
        %v5736 = vpack.c.b16 %v5238, %v5232
        %v5737 = vpack.c.b16 %v5245, %v5239
        %v5738 = vpack.c.b16 %v5246, %v5240
        %v5739 = vpack.c.b16 %v5247, %v5241
        %v5740 = vpack.c.b16 %v5248, %v5242
        %v5741 = vpack.c.b16 %v5249, %v5243
        %v5742 = vpack.c.b16 %v5250, %v5244
        %v5743 = vpack.c.b16 %v5257, %v5251
        %v5744 = vpack.c.b16 %v5258, %v5252
        %v5745 = vpack.c.b16 %v5259, %v5253
        %v5746 = vpack.c.b16 %v5260, %v5254
        %v5747 = vpack.c.b16 %v5261, %v5255
        %v5748 = vpack.c.b16 %v5262, %v5256
        %v5749 = vpack.c.b16 %v5269, %v5263
        %v5750 = vpack.c.b16 %v5270, %v5264
        %v5751 = vpack.c.b16 %v5271, %v5265
        %v5752 = vpack.c.b16 %v5272, %v5266
        %v5753 = vpack.c.b16 %v5273, %v5267
        %v5754 = vpack.c.b16 %v5274, %v5268
        %v5755 = vpack.c.b16 %v5281, %v5275
        %v5756 = vpack.c.b16 %v5282, %v5276
        %v5757 = vpack.c.b16 %v5283, %v5277
        %v5758 = vpack.c.b16 %v5284, %v5278
        %v5759 = vpack.c.b16 %v5285, %v5279
        %v5760 = vpack.c.b16 %v5286, %v5280
        %v5761 = vpack.c.b16 %v5293, %v5287
        %v5762 = vpack.c.b16 %v5294, %v5288
        %v5763 = vpack.c.b16 %v5295, %v5289
        %v5764 = vpack.c.b16 %v5296, %v5290
        %v5765 = vpack.c.b16 %v5297, %v5291
        %v5766 = vpack.c.b16 %v5298, %v5292
        %v5767 = vpack.c.b16 %v5305, %v5299
        %v5768 = vpack.c.b16 %v5306, %v5300
        %v5769 = vpack.c.b16 %v5307, %v5301
        %v5770 = vpack.c.b16 %v5308, %v5302
        %v5771 = vpack.c.b16 %v5309, %v5303
        %v5772 = vpack.c.b16 %v5310, %v5304
        %v5773 = vpack.c.b16 %v5317, %v5311
        %v5774 = vpack.c.b16 %v5318, %v5312
        %v5775 = vpack.c.b16 %v5319, %v5313
        %v5776 = vpack.c.b16 %v5320, %v5314
        %v5777 = vpack.c.b16 %v5321, %v5315
        %v5778 = vpack.c.b16 %v5322, %v5316
        %v5779 = vpack.c.b16 %v5329, %v5323
        %v5780 = vpack.c.b16 %v5330, %v5324
        %v5781 = vpack.c.b16 %v5331, %v5325
        %v5782 = vpack.c.b16 %v5332, %v5326
        %v5783 = vpack.c.b16 %v5333, %v5327
        %v5784 = vpack.c.b16 %v5334, %v5328
        %v5785 = vpack.c.b16 %v5341, %v5335
        %v5786 = vpack.c.b16 %v5342, %v5336
        %v5787 = vpack.c.b16 %v5343, %v5337
        %v5788 = vpack.c.b16 %v5344, %v5338
        %v5789 = vpack.c.b16 %v5345, %v5339
        %v5790 = vpack.c.b16 %v5346, %v5340
        %v5791 = vpack.c.b16 %v5353, %v5347
        %v5792 = vpack.c.b16 %v5354, %v5348
        %v5793 = vpack.c.b16 %v5355, %v5349
        %v5794 = vpack.c.b16 %v5356, %v5350
        %v5795 = vpack.c.b16 %v5357, %v5351
        %v5796 = vpack.c.b16 %v5358, %v5352
        %v5797 = vpack.c.b16 %v5365, %v5359
        %v5798 = vpack.c.b16 %v5366, %v5360
        %v5799 = vpack.c.b16 %v5367, %v5361
        %v5800 = vpack.c.b16 %v5368, %v5362
        %v5801 = vpack.c.b16 %v5369, %v5363
        %v5802 = vpack.c.b16 %v5370, %v5364
        %v5803 = vpack.c.b16 %v5377, %v5371
        %v5804 = vpack.c.b16 %v5378, %v5372
        %v5805 = vpack.c.b16 %v5379, %v5373
        %v5806 = vpack.c.b16 %v5380, %v5374
        %v5807 = vpack.c.b16 %v5381, %v5375
        %v5808 = vpack.c.b16 %v5382, %v5376
        %v5809 = vpack.c.b16 %v5389, %v5383
        %v5810 = vpack.c.b16 %v5390, %v5384
        %v5811 = vpack.c.b16 %v5391, %v5385
        %v5812 = vpack.c.b16 %v5392, %v5386
        %v5813 = vpack.c.b16 %v5393, %v5387
        %v5814 = vpack.c.b16 %v5394, %v5388
        %v5815 = vpack.c.b16 %v5401, %v5395
        %v5816 = vpack.c.b16 %v5402, %v5396
        %v5817 = vpack.c.b16 %v5403, %v5397
        %v5818 = vpack.c.b16 %v5404, %v5398
        %v5819 = vpack.c.b16 %v5405, %v5399
        %v5820 = vpack.c.b16 %v5406, %v5400
        %v5821 = vpack.c.b16 %v5413, %v5407
        %v5822 = vpack.c.b16 %v5414, %v5408
        %v5823 = vpack.c.b16 %v5415, %v5409
        %v5824 = vpack.c.b16 %v5416, %v5410
        %v5825 = vpack.c.b16 %v5417, %v5411
        %v5826 = vpack.c.b16 %v5418, %v5412
        %v5827 = vpack.c.b16 %v5425, %v5419
        %v5828 = vpack.c.b16 %v5426, %v5420
        %v5829 = vpack.c.b16 %v5427, %v5421
        %v5830 = vpack.c.b16 %v5428, %v5422
        %v5831 = vpack.c.b16 %v5429, %v5423
        %v5832 = vpack.c.b16 %v5430, %v5424
        %v5833 = vpack.c.b16 %v5437, %v5431
        %v5834 = vpack.c.b16 %v5438, %v5432
        %v5835 = vpack.c.b16 %v5439, %v5433
        %v5836 = vpack.c.b16 %v5440, %v5434
        %v5837 = vpack.c.b16 %v5441, %v5435
        %v5838 = vpack.c.b16 %v5442, %v5436
        %v5839 = vpack.c.b16 %v5449, %v5443
        %v5840 = vpack.c.b16 %v5450, %v5444
        %v5841 = vpack.c.b16 %v5451, %v5445
        %v5842 = vpack.c.b16 %v5452, %v5446
        %v5843 = vpack.c.b16 %v5453, %v5447
        %v5844 = vpack.c.b16 %v5454, %v5448
        %v5845 = vpack.c.b16 %v5461, %v5455
        %v5846 = vpack.c.b16 %v5462, %v5456
        %v5847 = vpack.c.b16 %v5463, %v5457
        %v5848 = vpack.c.b16 %v5464, %v5458
        %v5849 = vpack.c.b16 %v5465, %v5459
        %v5850 = vpack.c.b16 %v5466, %v5460
        %6235 = vmatprep.subr.bf16.mxu0 %v5510
        %6236 = vmatpush1.bf16.msra.mxu0 %v5509
        %6237 = vmatprep.subr.bf16.mxu0 %v5504
        %6238 = vmatpush1.bf16.msra.mxu0 %v5503
        %6239 = vmatprep.subr.bf16.mxu0 %v5498
        %6240 = vmatpush1.bf16.msra.mxu0 %v5497
        %6241 = vmatprep.subr.bf16.mxu0 %v5492
        %6242 = vmatpush1.bf16.msra.mxu0 %v5491
        %6243 = vmatprep.subr.bf16.mxu0 %v5486
        %6244 = vmatpush1.bf16.msra.mxu0 %v5485
        %6245 = vmatprep.subr.bf16.mxu0 %v5480
        %6246 = vmatpush1.bf16.msra.mxu0 %v5479
        %6247 = vmatprep.subr.bf16.mxu0 %v5474
        %6248 = vmatpush1.bf16.msra.mxu0 %v5473
        %6249 = vmatprep.subr.bf16.mxu0 %v5468
        %6250 = vmatpush1.bf16.msra.mxu0 %v5467
        %6251 = vmatprep.subr.bf16.mxu0 %v5558
        %6252 = vmatpush2.bf16.msra.mxu0 %v5557
        %6253 = vmatprep.subr.bf16.mxu0 %v5552
        %6254 = vmatpush2.bf16.msra.mxu0 %v5551
        %6255 = vmatprep.subr.bf16.mxu0 %v5546
        %6256 = vmatpush2.bf16.msra.mxu0 %v5545
        %6257 = vmatprep.subr.bf16.mxu0 %v5540
        %6258 = vmatpush2.bf16.msra.mxu0 %v5539
        %6259 = vmatprep.subr.bf16.mxu0 %v5534
        %6260 = vmatpush2.bf16.msra.mxu0 %v5533
        %6261 = vmatprep.subr.bf16.mxu0 %v5528
        %6262 = vmatpush2.bf16.msra.mxu0 %v5527
        %6263 = vmatprep.subr.bf16.mxu0 %v5522
        %6264 = vmatpush2.bf16.msra.mxu0 %v5521
        %6265 = vmatprep.subr.bf16.mxu0 %v5516
        %6266 = vmatpush2.bf16.msra.mxu0 %v5515
        %6267 = vmatprep.mubr.bf16.mxu0 %v4277
        %6268 = vmatmul.mubr.bf16.gmra.mxu0 %v4276
        %v6269 = vpop.f32.mrf.mxu0
        %v6270 = vadd.f32 %v4288, %v6269
        %v6271 = vpop.f32.mrf.mxu0
        %v6272 = vadd.f32 %v4292, %v6271
        %v6273 = vpop.f32.mrf.mxu0
        %v6274 = vpop.f32.mrf.mxu0
        %6275 = vdwg.mxu0
        %6276 = vmatprep.subr.bf16.mxu0 %v5606
        %6277 = vmatpush1.bf16.msra.mxu0 %v5605
        %6278 = vmatprep.subr.bf16.mxu0 %v5600
        %6279 = vmatpush1.bf16.msra.mxu0 %v5599
        %6280 = vmatprep.subr.bf16.mxu0 %v5594
        %6281 = vmatpush1.bf16.msra.mxu0 %v5593
        %6282 = vmatprep.subr.bf16.mxu0 %v5588
        %6283 = vmatpush1.bf16.msra.mxu0 %v5587
        %6284 = vmatprep.subr.bf16.mxu0 %v5582
        %6285 = vmatpush1.bf16.msra.mxu0 %v5581
        %6286 = vmatprep.subr.bf16.mxu0 %v5576
        %6287 = vmatpush1.bf16.msra.mxu0 %v5575
        %6288 = vmatprep.subr.bf16.mxu0 %v5570
        %6289 = vmatpush1.bf16.msra.mxu0 %v5569
        %6290 = vmatprep.subr.bf16.mxu0 %v5564
        %6291 = vmatpush1.bf16.msra.mxu0 %v5563
        %6292 = vmatprep.subr.bf16.mxu0 %v5654
        %6293 = vmatpush2.bf16.msra.mxu0 %v5653
        %6294 = vmatprep.subr.bf16.mxu0 %v5648
        %6295 = vmatpush2.bf16.msra.mxu0 %v5647
        %6296 = vmatprep.subr.bf16.mxu0 %v5642
        %6297 = vmatpush2.bf16.msra.mxu0 %v5641
        %6298 = vmatprep.subr.bf16.mxu0 %v5636
        %6299 = vmatpush2.bf16.msra.mxu0 %v5635
        %6300 = vmatprep.subr.bf16.mxu0 %v5630
        %6301 = vmatpush2.bf16.msra.mxu0 %v5629
        %6302 = vmatprep.subr.bf16.mxu0 %v5624
        %6303 = vmatpush2.bf16.msra.mxu0 %v5623
        %6304 = vmatprep.subr.bf16.mxu0 %v5618
        %6305 = vmatpush2.bf16.msra.mxu0 %v5617
        %6306 = vmatprep.subr.bf16.mxu0 %v5612
        %6307 = vmatpush2.bf16.msra.mxu0 %v5611
        %6308 = vmatprep.mubr.bf16.mxu0 %v4279
        %6309 = vmatmul.mubr.bf16.gmra.mxu0 %v4278
        %v6310 = vpop.f32.mrf.mxu0
        %v6311 = vadd.f32 %v6270, %v6310
        %v6312 = vpop.f32.mrf.mxu0
        %v6313 = vadd.f32 %v6272, %v6312
        %v6314 = vpop.f32.mrf.mxu0
        %v6315 = vpop.f32.mrf.mxu0
        %6316 = vdwg.mxu0
        %6317 = vmatprep.subr.bf16.mxu0 %v5702
        %6318 = vmatpush1.bf16.msra.mxu0 %v5701
        %6319 = vmatprep.subr.bf16.mxu0 %v5696
        %6320 = vmatpush1.bf16.msra.mxu0 %v5695
        %6321 = vmatprep.subr.bf16.mxu0 %v5690
        %6322 = vmatpush1.bf16.msra.mxu0 %v5689
        %6323 = vmatprep.subr.bf16.mxu0 %v5684
        %6324 = vmatpush1.bf16.msra.mxu0 %v5683
        %6325 = vmatprep.subr.bf16.mxu0 %v5678
        %6326 = vmatpush1.bf16.msra.mxu0 %v5677
        %6327 = vmatprep.subr.bf16.mxu0 %v5672
        %6328 = vmatpush1.bf16.msra.mxu0 %v5671
        %6329 = vmatprep.subr.bf16.mxu0 %v5666
        %6330 = vmatpush1.bf16.msra.mxu0 %v5665
        %6331 = vmatprep.subr.bf16.mxu0 %v5660
        %6332 = vmatpush1.bf16.msra.mxu0 %v5659
        %6333 = vmatprep.subr.bf16.mxu0 %v5750
        %6334 = vmatpush2.bf16.msra.mxu0 %v5749
        %6335 = vmatprep.subr.bf16.mxu0 %v5744
        %6336 = vmatpush2.bf16.msra.mxu0 %v5743
        %6337 = vmatprep.subr.bf16.mxu0 %v5738
        %6338 = vmatpush2.bf16.msra.mxu0 %v5737
        %6339 = vmatprep.subr.bf16.mxu0 %v5732
        %6340 = vmatpush2.bf16.msra.mxu0 %v5731
        %6341 = vmatprep.subr.bf16.mxu0 %v5726
        %6342 = vmatpush2.bf16.msra.mxu0 %v5725
        %6343 = vmatprep.subr.bf16.mxu0 %v5720
        %6344 = vmatpush2.bf16.msra.mxu0 %v5719
        %6345 = vmatprep.subr.bf16.mxu0 %v5714
        %6346 = vmatpush2.bf16.msra.mxu0 %v5713
        %6347 = vmatprep.subr.bf16.mxu0 %v5708
        %6348 = vmatpush2.bf16.msra.mxu0 %v5707
        %6349 = vmatprep.mubr.bf16.mxu0 %v4281
        %6350 = vmatmul.mubr.bf16.gmra.mxu0 %v4280
        %v6351 = vpop.f32.mrf.mxu0
        %v6352 = vadd.f32 %v6311, %v6351
        %v6353 = vpop.f32.mrf.mxu0
        %v6354 = vadd.f32 %v6313, %v6353
        %v6355 = vpop.f32.mrf.mxu0
        %v6356 = vpop.f32.mrf.mxu0
        %6357 = vdwg.mxu0
        %6358 = vmatprep.subr.bf16.mxu0 %v5798
        %6359 = vmatpush1.bf16.msra.mxu0 %v5797
        %6360 = vmatprep.subr.bf16.mxu0 %v5792
        %6361 = vmatpush1.bf16.msra.mxu0 %v5791
        %6362 = vmatprep.subr.bf16.mxu0 %v5786
        %6363 = vmatpush1.bf16.msra.mxu0 %v5785
        %6364 = vmatprep.subr.bf16.mxu0 %v5780
        %6365 = vmatpush1.bf16.msra.mxu0 %v5779
        %6366 = vmatprep.subr.bf16.mxu0 %v5774
        %6367 = vmatpush1.bf16.msra.mxu0 %v5773
        %6368 = vmatprep.subr.bf16.mxu0 %v5768
        %6369 = vmatpush1.bf16.msra.mxu0 %v5767
        %6370 = vmatprep.subr.bf16.mxu0 %v5762
        %6371 = vmatpush1.bf16.msra.mxu0 %v5761
        %6372 = vmatprep.subr.bf16.mxu0 %v5756
        %6373 = vmatpush1.bf16.msra.mxu0 %v5755
        %6374 = vmatprep.subr.bf16.mxu0 %v5846
        %6375 = vmatpush2.bf16.msra.mxu0 %v5845
        %6376 = vmatprep.subr.bf16.mxu0 %v5840
        %6377 = vmatpush2.bf16.msra.mxu0 %v5839
        %6378 = vmatprep.subr.bf16.mxu0 %v5834
        %6379 = vmatpush2.bf16.msra.mxu0 %v5833
        %6380 = vmatprep.subr.bf16.mxu0 %v5828
        %6381 = vmatpush2.bf16.msra.mxu0 %v5827
        %6382 = vmatprep.subr.bf16.mxu0 %v5822
        %6383 = vmatpush2.bf16.msra.mxu0 %v5821
        %6384 = vmatprep.subr.bf16.mxu0 %v5816
        %6385 = vmatpush2.bf16.msra.mxu0 %v5815
        %6386 = vmatprep.subr.bf16.mxu0 %v5810
        %6387 = vmatpush2.bf16.msra.mxu0 %v5809
        %6388 = vmatprep.subr.bf16.mxu0 %v5804
        %6389 = vmatpush2.bf16.msra.mxu0 %v5803
        %6390 = vmatprep.mubr.bf16.mxu0 %v4283
        %6391 = vmatmul.mubr.bf16.gmra.mxu0 %v4282
        %v6392 = vpop.f32.mrf.mxu0
        %v6393 = vadd.f32 %v6352, %v6392
        %v6394 = vpop.f32.mrf.mxu0
        %v6395 = vadd.f32 %v6354, %v6394
        %v6396 = vpop.f32.mrf.mxu0
        %v6397 = vpop.f32.mrf.mxu0
        %6398 = vdwg.mxu0
        %6399 = vmatprep.subr.bf16.mxu0 %v5512
        %6400 = vmatpush1.bf16.msra.mxu0 %v5511
        %6401 = vmatprep.subr.bf16.mxu0 %v5506
        %6402 = vmatpush1.bf16.msra.mxu0 %v5505
        %6403 = vmatprep.subr.bf16.mxu0 %v5500
        %6404 = vmatpush1.bf16.msra.mxu0 %v5499
        %6405 = vmatprep.subr.bf16.mxu0 %v5494
        %6406 = vmatpush1.bf16.msra.mxu0 %v5493
        %6407 = vmatprep.subr.bf16.mxu0 %v5488
        %6408 = vmatpush1.bf16.msra.mxu0 %v5487
        %6409 = vmatprep.subr.bf16.mxu0 %v5482
        %6410 = vmatpush1.bf16.msra.mxu0 %v5481
        %6411 = vmatprep.subr.bf16.mxu0 %v5476
        %6412 = vmatpush1.bf16.msra.mxu0 %v5475
        %6413 = vmatprep.subr.bf16.mxu0 %v5470
        %6414 = vmatpush1.bf16.msra.mxu0 %v5469
        %6415 = vmatprep.subr.bf16.mxu0 %v5560
        %6416 = vmatpush2.bf16.msra.mxu0 %v5559
        %6417 = vmatprep.subr.bf16.mxu0 %v5554
        %6418 = vmatpush2.bf16.msra.mxu0 %v5553
        %6419 = vmatprep.subr.bf16.mxu0 %v5548
        %6420 = vmatpush2.bf16.msra.mxu0 %v5547
        %6421 = vmatprep.subr.bf16.mxu0 %v5542
        %6422 = vmatpush2.bf16.msra.mxu0 %v5541
        %6423 = vmatprep.subr.bf16.mxu0 %v5536
        %6424 = vmatpush2.bf16.msra.mxu0 %v5535
        %6425 = vmatprep.subr.bf16.mxu0 %v5530
        %6426 = vmatpush2.bf16.msra.mxu0 %v5529
        %6427 = vmatprep.subr.bf16.mxu0 %v5524
        %6428 = vmatpush2.bf16.msra.mxu0 %v5523
        %6429 = vmatprep.subr.bf16.mxu0 %v5518
        %6430 = vmatpush2.bf16.msra.mxu0 %v5517
        %6431 = vmatprep.mubr.bf16.mxu0 %v4277
        %6432 = vmatmul.mubr.bf16.gmra.mxu0 %v4276
        %v6433 = vpop.f32.mrf.mxu0
        %v6434 = vadd.f32 %v4296, %v6433
        %v6435 = vpop.f32.mrf.mxu0
        %v6436 = vadd.f32 %v4300, %v6435
        %v6437 = vpop.f32.mrf.mxu0
        %v6438 = vpop.f32.mrf.mxu0
        %6439 = vdwg.mxu0
        %6440 = vmatprep.subr.bf16.mxu0 %v5608
        %6441 = vmatpush1.bf16.msra.mxu0 %v5607
        %6442 = vmatprep.subr.bf16.mxu0 %v5602
        %6443 = vmatpush1.bf16.msra.mxu0 %v5601
        %6444 = vmatprep.subr.bf16.mxu0 %v5596
        %6445 = vmatpush1.bf16.msra.mxu0 %v5595
        %6446 = vmatprep.subr.bf16.mxu0 %v5590
        %6447 = vmatpush1.bf16.msra.mxu0 %v5589
        %6448 = vmatprep.subr.bf16.mxu0 %v5584
        %6449 = vmatpush1.bf16.msra.mxu0 %v5583
        %6450 = vmatprep.subr.bf16.mxu0 %v5578
        %6451 = vmatpush1.bf16.msra.mxu0 %v5577
        %6452 = vmatprep.subr.bf16.mxu0 %v5572
        %6453 = vmatpush1.bf16.msra.mxu0 %v5571
        %6454 = vmatprep.subr.bf16.mxu0 %v5566
        %6455 = vmatpush1.bf16.msra.mxu0 %v5565
        %6456 = vmatprep.subr.bf16.mxu0 %v5656
        %6457 = vmatpush2.bf16.msra.mxu0 %v5655
        %6458 = vmatprep.subr.bf16.mxu0 %v5650
        %6459 = vmatpush2.bf16.msra.mxu0 %v5649
        %6460 = vmatprep.subr.bf16.mxu0 %v5644
        %6461 = vmatpush2.bf16.msra.mxu0 %v5643
        %6462 = vmatprep.subr.bf16.mxu0 %v5638
        %6463 = vmatpush2.bf16.msra.mxu0 %v5637
        %6464 = vmatprep.subr.bf16.mxu0 %v5632
        %6465 = vmatpush2.bf16.msra.mxu0 %v5631
        %6466 = vmatprep.subr.bf16.mxu0 %v5626
        %6467 = vmatpush2.bf16.msra.mxu0 %v5625
        %6468 = vmatprep.subr.bf16.mxu0 %v5620
        %6469 = vmatpush2.bf16.msra.mxu0 %v5619
        %6470 = vmatprep.subr.bf16.mxu0 %v5614
        %6471 = vmatpush2.bf16.msra.mxu0 %v5613
        %6472 = vmatprep.mubr.bf16.mxu0 %v4279
        %6473 = vmatmul.mubr.bf16.gmra.mxu0 %v4278
        %v6474 = vpop.f32.mrf.mxu0
        %v6475 = vadd.f32 %v6434, %v6474
        %v6476 = vpop.f32.mrf.mxu0
        %v6477 = vadd.f32 %v6436, %v6476
        %v6478 = vpop.f32.mrf.mxu0
        %v6479 = vpop.f32.mrf.mxu0
        %6480 = vdwg.mxu0
        %6481 = vmatprep.subr.bf16.mxu0 %v5704
        %6482 = vmatpush1.bf16.msra.mxu0 %v5703
        %6483 = vmatprep.subr.bf16.mxu0 %v5698
        %6484 = vmatpush1.bf16.msra.mxu0 %v5697
        %6485 = vmatprep.subr.bf16.mxu0 %v5692
        %6486 = vmatpush1.bf16.msra.mxu0 %v5691
        %6487 = vmatprep.subr.bf16.mxu0 %v5686
        %6488 = vmatpush1.bf16.msra.mxu0 %v5685
        %6489 = vmatprep.subr.bf16.mxu0 %v5680
        %6490 = vmatpush1.bf16.msra.mxu0 %v5679
        %6491 = vmatprep.subr.bf16.mxu0 %v5674
        %6492 = vmatpush1.bf16.msra.mxu0 %v5673
        %6493 = vmatprep.subr.bf16.mxu0 %v5668
        %6494 = vmatpush1.bf16.msra.mxu0 %v5667
        %6495 = vmatprep.subr.bf16.mxu0 %v5662
        %6496 = vmatpush1.bf16.msra.mxu0 %v5661
        %6497 = vmatprep.subr.bf16.mxu0 %v5752
        %6498 = vmatpush2.bf16.msra.mxu0 %v5751
        %6499 = vmatprep.subr.bf16.mxu0 %v5746
        %6500 = vmatpush2.bf16.msra.mxu0 %v5745
        %6501 = vmatprep.subr.bf16.mxu0 %v5740
        %6502 = vmatpush2.bf16.msra.mxu0 %v5739
        %6503 = vmatprep.subr.bf16.mxu0 %v5734
        %6504 = vmatpush2.bf16.msra.mxu0 %v5733
        %6505 = vmatprep.subr.bf16.mxu0 %v5728
        %6506 = vmatpush2.bf16.msra.mxu0 %v5727
        %6507 = vmatprep.subr.bf16.mxu0 %v5722
        %6508 = vmatpush2.bf16.msra.mxu0 %v5721
        %6509 = vmatprep.subr.bf16.mxu0 %v5716
        %6510 = vmatpush2.bf16.msra.mxu0 %v5715
        %6511 = vmatprep.subr.bf16.mxu0 %v5710
        %6512 = vmatpush2.bf16.msra.mxu0 %v5709
        %6513 = vmatprep.mubr.bf16.mxu0 %v4281
        %6514 = vmatmul.mubr.bf16.gmra.mxu0 %v4280
        %v6515 = vpop.f32.mrf.mxu0
        %v6516 = vadd.f32 %v6475, %v6515
        %v6517 = vpop.f32.mrf.mxu0
        %v6518 = vadd.f32 %v6477, %v6517
        %v6519 = vpop.f32.mrf.mxu0
        %v6520 = vpop.f32.mrf.mxu0
        %6521 = vdwg.mxu0
        %6522 = vmatprep.subr.bf16.mxu0 %v5800
        %6523 = vmatpush1.bf16.msra.mxu0 %v5799
        %6524 = vmatprep.subr.bf16.mxu0 %v5794
        %6525 = vmatpush1.bf16.msra.mxu0 %v5793
        %6526 = vmatprep.subr.bf16.mxu0 %v5788
        %6527 = vmatpush1.bf16.msra.mxu0 %v5787
        %6528 = vmatprep.subr.bf16.mxu0 %v5782
        %6529 = vmatpush1.bf16.msra.mxu0 %v5781
        %6530 = vmatprep.subr.bf16.mxu0 %v5776
        %6531 = vmatpush1.bf16.msra.mxu0 %v5775
        %6532 = vmatprep.subr.bf16.mxu0 %v5770
        %6533 = vmatpush1.bf16.msra.mxu0 %v5769
        %6534 = vmatprep.subr.bf16.mxu0 %v5764
        %6535 = vmatpush1.bf16.msra.mxu0 %v5763
        %6536 = vmatprep.subr.bf16.mxu0 %v5758
        %6537 = vmatpush1.bf16.msra.mxu0 %v5757
        %6538 = vmatprep.subr.bf16.mxu0 %v5848
        %6539 = vmatpush2.bf16.msra.mxu0 %v5847
        %6540 = vmatprep.subr.bf16.mxu0 %v5842
        %6541 = vmatpush2.bf16.msra.mxu0 %v5841
        %6542 = vmatprep.subr.bf16.mxu0 %v5836
        %6543 = vmatpush2.bf16.msra.mxu0 %v5835
        %6544 = vmatprep.subr.bf16.mxu0 %v5830
        %6545 = vmatpush2.bf16.msra.mxu0 %v5829
        %6546 = vmatprep.subr.bf16.mxu0 %v5824
        %6547 = vmatpush2.bf16.msra.mxu0 %v5823
        %6548 = vmatprep.subr.bf16.mxu0 %v5818
        %6549 = vmatpush2.bf16.msra.mxu0 %v5817
        %6550 = vmatprep.subr.bf16.mxu0 %v5812
        %6551 = vmatpush2.bf16.msra.mxu0 %v5811
        %6552 = vmatprep.subr.bf16.mxu0 %v5806
        %6553 = vmatpush2.bf16.msra.mxu0 %v5805
        %6554 = vmatprep.mubr.bf16.mxu0 %v4283
        %6555 = vmatmul.mubr.bf16.gmra.mxu0 %v4282
        %v6556 = vpop.f32.mrf.mxu0
        %v6557 = vadd.f32 %v6516, %v6556
        %v6558 = vpop.f32.mrf.mxu0
        %v6559 = vadd.f32 %v6518, %v6558
        %v6560 = vpop.f32.mrf.mxu0
        %v6561 = vpop.f32.mrf.mxu0
        %6562 = vdwg.mxu0
        %6563 = vmatprep.subr.bf16.mxu0 %v5514
        %6564 = vmatpush1.bf16.msra.mxu0 %v5513
        %6565 = vmatprep.subr.bf16.mxu0 %v5508
        %6566 = vmatpush1.bf16.msra.mxu0 %v5507
        %6567 = vmatprep.subr.bf16.mxu0 %v5502
        %6568 = vmatpush1.bf16.msra.mxu0 %v5501
        %6569 = vmatprep.subr.bf16.mxu0 %v5496
        %6570 = vmatpush1.bf16.msra.mxu0 %v5495
        %6571 = vmatprep.subr.bf16.mxu0 %v5490
        %6572 = vmatpush1.bf16.msra.mxu0 %v5489
        %6573 = vmatprep.subr.bf16.mxu0 %v5484
        %6574 = vmatpush1.bf16.msra.mxu0 %v5483
        %6575 = vmatprep.subr.bf16.mxu0 %v5478
        %6576 = vmatpush1.bf16.msra.mxu0 %v5477
        %6577 = vmatprep.subr.bf16.mxu0 %v5472
        %6578 = vmatpush1.bf16.msra.mxu0 %v5471
        %6579 = vmatprep.subr.bf16.mxu0 %v5562
        %6580 = vmatpush2.bf16.msra.mxu0 %v5561
        %6581 = vmatprep.subr.bf16.mxu0 %v5556
        %6582 = vmatpush2.bf16.msra.mxu0 %v5555
        %6583 = vmatprep.subr.bf16.mxu0 %v5550
        %6584 = vmatpush2.bf16.msra.mxu0 %v5549
        %6585 = vmatprep.subr.bf16.mxu0 %v5544
        %6586 = vmatpush2.bf16.msra.mxu0 %v5543
        %6587 = vmatprep.subr.bf16.mxu0 %v5538
        %6588 = vmatpush2.bf16.msra.mxu0 %v5537
        %6589 = vmatprep.subr.bf16.mxu0 %v5532
        %6590 = vmatpush2.bf16.msra.mxu0 %v5531
        %6591 = vmatprep.subr.bf16.mxu0 %v5526
        %6592 = vmatpush2.bf16.msra.mxu0 %v5525
        %6593 = vmatprep.subr.bf16.mxu0 %v5520
        %6594 = vmatpush2.bf16.msra.mxu0 %v5519
        %6595 = vmatprep.mubr.bf16.mxu0 %v4277
        %6596 = vmatmul.mubr.bf16.gmra.mxu0 %v4276
        %v6597 = vpop.f32.mrf.mxu0
        %v6598 = vadd.f32 %v4304, %v6597
        %v6599 = vpop.f32.mrf.mxu0
        %v6600 = vadd.f32 %v4308, %v6599
        %v6601 = vpop.f32.mrf.mxu0
        %v6602 = vpop.f32.mrf.mxu0
        %6603 = vdwg.mxu0
        %6604 = vmatprep.subr.bf16.mxu0 %v5610
        %6605 = vmatpush1.bf16.msra.mxu0 %v5609
        %6606 = vmatprep.subr.bf16.mxu0 %v5604
        %6607 = vmatpush1.bf16.msra.mxu0 %v5603
        %6608 = vmatprep.subr.bf16.mxu0 %v5598
        %6609 = vmatpush1.bf16.msra.mxu0 %v5597
        %6610 = vmatprep.subr.bf16.mxu0 %v5592
        %6611 = vmatpush1.bf16.msra.mxu0 %v5591
        %6612 = vmatprep.subr.bf16.mxu0 %v5586
        %6613 = vmatpush1.bf16.msra.mxu0 %v5585
        %6614 = vmatprep.subr.bf16.mxu0 %v5580
        %6615 = vmatpush1.bf16.msra.mxu0 %v5579
        %6616 = vmatprep.subr.bf16.mxu0 %v5574
        %6617 = vmatpush1.bf16.msra.mxu0 %v5573
        %6618 = vmatprep.subr.bf16.mxu0 %v5568
        %6619 = vmatpush1.bf16.msra.mxu0 %v5567
        %6620 = vmatprep.subr.bf16.mxu0 %v5658
        %6621 = vmatpush2.bf16.msra.mxu0 %v5657
        %6622 = vmatprep.subr.bf16.mxu0 %v5652
        %6623 = vmatpush2.bf16.msra.mxu0 %v5651
        %6624 = vmatprep.subr.bf16.mxu0 %v5646
        %6625 = vmatpush2.bf16.msra.mxu0 %v5645
        %6626 = vmatprep.subr.bf16.mxu0 %v5640
        %6627 = vmatpush2.bf16.msra.mxu0 %v5639
        %6628 = vmatprep.subr.bf16.mxu0 %v5634
        %6629 = vmatpush2.bf16.msra.mxu0 %v5633
        %6630 = vmatprep.subr.bf16.mxu0 %v5628
        %6631 = vmatpush2.bf16.msra.mxu0 %v5627
        %6632 = vmatprep.subr.bf16.mxu0 %v5622
        %6633 = vmatpush2.bf16.msra.mxu0 %v5621
        %6634 = vmatprep.subr.bf16.mxu0 %v5616
        %6635 = vmatpush2.bf16.msra.mxu0 %v5615
        %6636 = vmatprep.mubr.bf16.mxu0 %v4279
        %6637 = vmatmul.mubr.bf16.gmra.mxu0 %v4278
        %v6638 = vpop.f32.mrf.mxu0
        %v6639 = vadd.f32 %v6598, %v6638
        %v6640 = vpop.f32.mrf.mxu0
        %v6641 = vadd.f32 %v6600, %v6640
        %v6642 = vpop.f32.mrf.mxu0
        %v6643 = vpop.f32.mrf.mxu0
        %6644 = vdwg.mxu0
        %6645 = vmatprep.subr.bf16.mxu0 %v5706
        %6646 = vmatpush1.bf16.msra.mxu0 %v5705
        %6647 = vmatprep.subr.bf16.mxu0 %v5700
        %6648 = vmatpush1.bf16.msra.mxu0 %v5699
        %6649 = vmatprep.subr.bf16.mxu0 %v5694
        %6650 = vmatpush1.bf16.msra.mxu0 %v5693
        %6651 = vmatprep.subr.bf16.mxu0 %v5688
        %6652 = vmatpush1.bf16.msra.mxu0 %v5687
        %6653 = vmatprep.subr.bf16.mxu0 %v5682
        %6654 = vmatpush1.bf16.msra.mxu0 %v5681
        %6655 = vmatprep.subr.bf16.mxu0 %v5676
        %6656 = vmatpush1.bf16.msra.mxu0 %v5675
        %6657 = vmatprep.subr.bf16.mxu0 %v5670
        %6658 = vmatpush1.bf16.msra.mxu0 %v5669
        %6659 = vmatprep.subr.bf16.mxu0 %v5664
        %6660 = vmatpush1.bf16.msra.mxu0 %v5663
        %6661 = vmatprep.subr.bf16.mxu0 %v5754
        %6662 = vmatpush2.bf16.msra.mxu0 %v5753
        %6663 = vmatprep.subr.bf16.mxu0 %v5748
        %6664 = vmatpush2.bf16.msra.mxu0 %v5747
        %6665 = vmatprep.subr.bf16.mxu0 %v5742
        %6666 = vmatpush2.bf16.msra.mxu0 %v5741
        %6667 = vmatprep.subr.bf16.mxu0 %v5736
        %6668 = vmatpush2.bf16.msra.mxu0 %v5735
        %6669 = vmatprep.subr.bf16.mxu0 %v5730
        %6670 = vmatpush2.bf16.msra.mxu0 %v5729
        %6671 = vmatprep.subr.bf16.mxu0 %v5724
        %6672 = vmatpush2.bf16.msra.mxu0 %v5723
        %6673 = vmatprep.subr.bf16.mxu0 %v5718
        %6674 = vmatpush2.bf16.msra.mxu0 %v5717
        %6675 = vmatprep.subr.bf16.mxu0 %v5712
        %6676 = vmatpush2.bf16.msra.mxu0 %v5711
        %6677 = vmatprep.mubr.bf16.mxu0 %v4281
        %6678 = vmatmul.mubr.bf16.gmra.mxu0 %v4280
        %v6679 = vpop.f32.mrf.mxu0
        %v6680 = vadd.f32 %v6639, %v6679
        %v6681 = vpop.f32.mrf.mxu0
        %v6682 = vadd.f32 %v6641, %v6681
        %v6683 = vpop.f32.mrf.mxu0
        %v6684 = vpop.f32.mrf.mxu0
        %6685 = vdwg.mxu0
        %6686 = vmatprep.subr.bf16.mxu0 %v5802
        %6687 = vmatpush1.bf16.msra.mxu0 %v5801
        %6688 = vmatprep.subr.bf16.mxu0 %v5796
        %6689 = vmatpush1.bf16.msra.mxu0 %v5795
        %6690 = vmatprep.subr.bf16.mxu0 %v5790
        %6691 = vmatpush1.bf16.msra.mxu0 %v5789
        %6692 = vmatprep.subr.bf16.mxu0 %v5784
        %6693 = vmatpush1.bf16.msra.mxu0 %v5783
        %6694 = vmatprep.subr.bf16.mxu0 %v5778
        %6695 = vmatpush1.bf16.msra.mxu0 %v5777
        %6696 = vmatprep.subr.bf16.mxu0 %v5772
        %6697 = vmatpush1.bf16.msra.mxu0 %v5771
        %6698 = vmatprep.subr.bf16.mxu0 %v5766
        %6699 = vmatpush1.bf16.msra.mxu0 %v5765
        %6700 = vmatprep.subr.bf16.mxu0 %v5760
        %6701 = vmatpush1.bf16.msra.mxu0 %v5759
        %6702 = vmatprep.subr.bf16.mxu0 %v5850
        %6703 = vmatpush2.bf16.msra.mxu0 %v5849
        %6704 = vmatprep.subr.bf16.mxu0 %v5844
        %6705 = vmatpush2.bf16.msra.mxu0 %v5843
        %6706 = vmatprep.subr.bf16.mxu0 %v5838
        %6707 = vmatpush2.bf16.msra.mxu0 %v5837
        %6708 = vmatprep.subr.bf16.mxu0 %v5832
        %6709 = vmatpush2.bf16.msra.mxu0 %v5831
        %6710 = vmatprep.subr.bf16.mxu0 %v5826
        %6711 = vmatpush2.bf16.msra.mxu0 %v5825
        %6712 = vmatprep.subr.bf16.mxu0 %v5820
        %6713 = vmatpush2.bf16.msra.mxu0 %v5819
        %6714 = vmatprep.subr.bf16.mxu0 %v5814
        %6715 = vmatpush2.bf16.msra.mxu0 %v5813
        %6716 = vmatprep.subr.bf16.mxu0 %v5808
        %6717 = vmatpush2.bf16.msra.mxu0 %v5807
        %6718 = vmatprep.mubr.bf16.mxu0 %v4283
        %6719 = vmatmul.mubr.bf16.gmra.mxu0 %v4282
        %v6720 = vpop.f32.mrf.mxu0
        %v6721 = vadd.f32 %v6680, %v6720
        %v6722 = vpop.f32.mrf.mxu0
        %v6723 = vadd.f32 %v6682, %v6722
        %v6724 = vpop.f32.mrf.mxu0
        %v6725 = vpop.f32.mrf.mxu0
        %6726 = vdwg.mxu0
        %v6727 = vtanh.pop %v6393
        %v6728 = vtanh.pop %v6395
        %v6729 = vtanh.pop %v6557
        %v6730 = vtanh.pop %v6559
        %v6731 = vtanh.pop %v6721
        %v6732 = vtanh.pop %v6723
        %v6733 = vld [vmem:[#allocation17] sm:$0xff]
        %v6734 = vld [vmem:[#allocation17 + $0x8] sm:$0xff]
        %v6735 = vld [vmem:[#allocation17 + $0x10] sm:$0xf]
        %v6736 = vld [vmem:[#allocation17 + $0x14] sm:$0xff]
        %v6737 = vld [vmem:[#allocation17 + $0x1c] sm:$0xff]
        %v6738 = vld [vmem:[#allocation17 + $0x24] sm:$0xf]
        %v6739 = vld [vmem:[#allocation17 + $0x28] sm:$0xff]
        %v6740 = vld [vmem:[#allocation17 + $0x30] sm:$0xff]
        %v6741 = vld [vmem:[#allocation17 + $0x38] sm:$0xf]
        %v6742 = vld [vmem:[#allocation17 + $0x3c] sm:$0xff]
        %v6743 = vld [vmem:[#allocation17 + $0x44] sm:$0xff]
        %v6744 = vld [vmem:[#allocation17 + $0x4c] sm:$0xf]
        %v6745 = vld [vmem:[#allocation17 + $0x50] sm:$0xff]
        %v6746 = vld [vmem:[#allocation17 + $0x58] sm:$0xff]
        %v6747 = vld [vmem:[#allocation17 + $0x60] sm:$0xf]
        %v6748 = vld [vmem:[#allocation17 + $0x64] sm:$0xff]
        %v6749 = vld [vmem:[#allocation17 + $0x6c] sm:$0xff]
        %v6750 = vld [vmem:[#allocation17 + $0x74] sm:$0xf]
        %v6751 = vld [vmem:[#allocation17 + $0x78] sm:$0xff]
        %v6752 = vld [vmem:[#allocation17 + $0x80] sm:$0xff]
        %v6753 = vld [vmem:[#allocation17 + $0x88] sm:$0xf]
        %v6754 = vld [vmem:[#allocation17 + $0x8c] sm:$0xff]
        %v6755 = vld [vmem:[#allocation17 + $0x94] sm:$0xff]
        %v6756 = vld [vmem:[#allocation17 + $0x9c] sm:$0xf]
        %v6757 = vld [vmem:[#allocation17 + $0xa0] sm:$0xff]
        %v6758 = vld [vmem:[#allocation17 + $0xa8] sm:$0xff]
        %v6759 = vld [vmem:[#allocation17 + $0xb0] sm:$0xf]
        %v6760 = vld [vmem:[#allocation17 + $0xb4] sm:$0xff]
        %v6761 = vld [vmem:[#allocation17 + $0xbc] sm:$0xff]
        %v6762 = vld [vmem:[#allocation17 + $0xc4] sm:$0xf]
        %v6763 = vld [vmem:[#allocation17 + $0xc8] sm:$0xff]
        %v6764 = vld [vmem:[#allocation17 + $0xd0] sm:$0xff]
        %v6765 = vld [vmem:[#allocation17 + $0xd8] sm:$0xf]
        %v6766 = vld [vmem:[#allocation17 + $0xdc] sm:$0xff]
        %v6767 = vld [vmem:[#allocation17 + $0xe4] sm:$0xff]
        %v6768 = vld [vmem:[#allocation17 + $0xec] sm:$0xf]
        %v6769 = vld [vmem:[#allocation17 + $0xf0] sm:$0xff]
        %v6770 = vld [vmem:[#allocation17 + $0xf8] sm:$0xff]
        %v6771 = vld [vmem:[#allocation17 + $0x100] sm:$0xf]
        %v6772 = vld [vmem:[#allocation17 + $0x104] sm:$0xff]
        %v6773 = vld [vmem:[#allocation17 + $0x10c] sm:$0xff]
        %v6774 = vld [vmem:[#allocation17 + $0x114] sm:$0xf]
        %v6775 = vld [vmem:[#allocation17 + $0x118] sm:$0xff]
        %v6776 = vld [vmem:[#allocation17 + $0x120] sm:$0xff]
        %v6777 = vld [vmem:[#allocation17 + $0x128] sm:$0xf]
        %v6778 = vld [vmem:[#allocation17 + $0x12c] sm:$0xff]
        %v6779 = vld [vmem:[#allocation17 + $0x134] sm:$0xff]
        %v6780 = vld [vmem:[#allocation17 + $0x13c] sm:$0xf]
        %v6781 = vld [vmem:[#allocation17 + $0x140] sm:$0xff]
        %v6782 = vld [vmem:[#allocation17 + $0x148] sm:$0xff]
        %v6783 = vld [vmem:[#allocation17 + $0x150] sm:$0xf]
        %v6784 = vld [vmem:[#allocation17 + $0x154] sm:$0xff]
        %v6785 = vld [vmem:[#allocation17 + $0x15c] sm:$0xff]
        %v6786 = vld [vmem:[#allocation17 + $0x164] sm:$0xf]
        %v6787 = vld [vmem:[#allocation17 + $0x168] sm:$0xff]
        %v6788 = vld [vmem:[#allocation17 + $0x170] sm:$0xff]
        %v6789 = vld [vmem:[#allocation17 + $0x178] sm:$0xf]
        %v6790 = vld [vmem:[#allocation17 + $0x17c] sm:$0xff]
        %v6791 = vld [vmem:[#allocation17 + $0x184] sm:$0xff]
        %v6792 = vld [vmem:[#allocation17 + $0x18c] sm:$0xf]
        %v6793 = vld [vmem:[#allocation17 + $0x190] sm:$0xff]
        %v6794 = vld [vmem:[#allocation17 + $0x198] sm:$0xff]
        %v6795 = vld [vmem:[#allocation17 + $0x1a0] sm:$0xf]
        %v6796 = vld [vmem:[#allocation17 + $0x1a4] sm:$0xff]
        %v6797 = vld [vmem:[#allocation17 + $0x1ac] sm:$0xff]
        %v6798 = vld [vmem:[#allocation17 + $0x1b4] sm:$0xf]
        %v6799 = vld [vmem:[#allocation17 + $0x1b8] sm:$0xff]
        %v6800 = vld [vmem:[#allocation17 + $0x1c0] sm:$0xff]
        %v6801 = vld [vmem:[#allocation17 + $0x1c8] sm:$0xf]
        %v6802 = vld [vmem:[#allocation17 + $0x1cc] sm:$0xff]
        %v6803 = vld [vmem:[#allocation17 + $0x1d4] sm:$0xff]
        %v6804 = vld [vmem:[#allocation17 + $0x1dc] sm:$0xf]
        %v6805 = vld [vmem:[#allocation17 + $0x1e0] sm:$0xff]
        %v6806 = vld [vmem:[#allocation17 + $0x1e8] sm:$0xff]
        %v6807 = vld [vmem:[#allocation17 + $0x1f0] sm:$0xf]
        %v6808 = vld [vmem:[#allocation17 + $0x1f4] sm:$0xff]
        %v6809 = vld [vmem:[#allocation17 + $0x1fc] sm:$0xff]
        %v6810 = vld [vmem:[#allocation17 + $0x204] sm:$0xf]
        %v6811 = vld [vmem:[#allocation17 + $0x208] sm:$0xff]
        %v6812 = vld [vmem:[#allocation17 + $0x210] sm:$0xff]
        %v6813 = vld [vmem:[#allocation17 + $0x218] sm:$0xf]
        %v6814 = vld [vmem:[#allocation17 + $0x21c] sm:$0xff]
        %v6815 = vld [vmem:[#allocation17 + $0x224] sm:$0xff]
        %v6816 = vld [vmem:[#allocation17 + $0x22c] sm:$0xf]
        %v6817 = vld [vmem:[#allocation17 + $0x230] sm:$0xff]
        %v6818 = vld [vmem:[#allocation17 + $0x238] sm:$0xff]
        %v6819 = vld [vmem:[#allocation17 + $0x240] sm:$0xf]
        %v6820 = vld [vmem:[#allocation17 + $0x244] sm:$0xff]
        %v6821 = vld [vmem:[#allocation17 + $0x24c] sm:$0xff]
        %v6822 = vld [vmem:[#allocation17 + $0x254] sm:$0xf]
        %v6823 = vld [vmem:[#allocation17 + $0x258] sm:$0xff]
        %v6824 = vld [vmem:[#allocation17 + $0x260] sm:$0xff]
        %v6825 = vld [vmem:[#allocation17 + $0x268] sm:$0xf]
        %v6826 = vld [vmem:[#allocation17 + $0x26c] sm:$0xff]
        %v6827 = vld [vmem:[#allocation17 + $0x274] sm:$0xff]
        %v6828 = vld [vmem:[#allocation17 + $0x27c] sm:$0xf]
        %v6829 = vld [vmem:[#allocation17 + $0x280] sm:$0xff]
        %v6830 = vld [vmem:[#allocation17 + $0x288] sm:$0xff]
        %v6831 = vld [vmem:[#allocation17 + $0x290] sm:$0xf]
        %v6832 = vld [vmem:[#allocation17 + $0x294] sm:$0xff]
        %v6833 = vld [vmem:[#allocation17 + $0x29c] sm:$0xff]
        %v6834 = vld [vmem:[#allocation17 + $0x2a4] sm:$0xf]
        %v6835 = vld [vmem:[#allocation17 + $0x2a8] sm:$0xff]
        %v6836 = vld [vmem:[#allocation17 + $0x2b0] sm:$0xff]
        %v6837 = vld [vmem:[#allocation17 + $0x2b8] sm:$0xf]
        %v6838 = vld [vmem:[#allocation17 + $0x2bc] sm:$0xff]
        %v6839 = vld [vmem:[#allocation17 + $0x2c4] sm:$0xff]
        %v6840 = vld [vmem:[#allocation17 + $0x2cc] sm:$0xf]
        %v6841 = vld [vmem:[#allocation17 + $0x2d0] sm:$0xff]
        %v6842 = vld [vmem:[#allocation17 + $0x2d8] sm:$0xff]
        %v6843 = vld [vmem:[#allocation17 + $0x2e0] sm:$0xf]
        %v6844 = vld [vmem:[#allocation17 + $0x2e4] sm:$0xff]
        %v6845 = vld [vmem:[#allocation17 + $0x2ec] sm:$0xff]
        %v6846 = vld [vmem:[#allocation17 + $0x2f4] sm:$0xf]
        %v6847 = vld [vmem:[#allocation17 + $0x2f8] sm:$0xff]
        %v6848 = vld [vmem:[#allocation17 + $0x300] sm:$0xff]
        %v6849 = vld [vmem:[#allocation17 + $0x308] sm:$0xf]
        %v6850 = vld [vmem:[#allocation17 + $0x30c] sm:$0xff]
        %v6851 = vld [vmem:[#allocation17 + $0x314] sm:$0xff]
        %v6852 = vld [vmem:[#allocation17 + $0x31c] sm:$0xf]
        %v6853 = vld [vmem:[#allocation17 + $0x320] sm:$0xff]
        %v6854 = vld [vmem:[#allocation17 + $0x328] sm:$0xff]
        %v6855 = vld [vmem:[#allocation17 + $0x330] sm:$0xf]
        %v6856 = vld [vmem:[#allocation17 + $0x334] sm:$0xff]
        %v6857 = vld [vmem:[#allocation17 + $0x33c] sm:$0xff]
        %v6858 = vld [vmem:[#allocation17 + $0x344] sm:$0xf]
        %v6859 = vld [vmem:[#allocation17 + $0x348] sm:$0xff]
        %v6860 = vld [vmem:[#allocation17 + $0x350] sm:$0xff]
        %v6861 = vld [vmem:[#allocation17 + $0x358] sm:$0xf]
        %v6862 = vld [vmem:[#allocation17 + $0x35c] sm:$0xff]
        %v6863 = vld [vmem:[#allocation17 + $0x364] sm:$0xff]
        %v6864 = vld [vmem:[#allocation17 + $0x36c] sm:$0xf]
        %v6865 = vld [vmem:[#allocation17 + $0x370] sm:$0xff]
        %v6866 = vld [vmem:[#allocation17 + $0x378] sm:$0xff]
        %v6867 = vld [vmem:[#allocation17 + $0x380] sm:$0xf]
        %v6868 = vld [vmem:[#allocation17 + $0x384] sm:$0xff]
        %v6869 = vld [vmem:[#allocation17 + $0x38c] sm:$0xff]
        %v6870 = vld [vmem:[#allocation17 + $0x394] sm:$0xf]
        %v6871 = vld [vmem:[#allocation17 + $0x398] sm:$0xff]
        %v6872 = vld [vmem:[#allocation17 + $0x3a0] sm:$0xff]
        %v6873 = vld [vmem:[#allocation17 + $0x3a8] sm:$0xf]
        %v6874 = vld [vmem:[#allocation17 + $0x3ac] sm:$0xff]
        %v6875 = vld [vmem:[#allocation17 + $0x3b4] sm:$0xff]
        %v6876 = vld [vmem:[#allocation17 + $0x3bc] sm:$0xf]
        %v6877 = vld [vmem:[#allocation17 + $0x3c0] sm:$0xff]
        %v6878 = vld [vmem:[#allocation17 + $0x3c8] sm:$0xff]
        %v6879 = vld [vmem:[#allocation17 + $0x3d0] sm:$0xf]
        %v6880 = vld [vmem:[#allocation17 + $0x3d4] sm:$0xff]
        %v6881 = vld [vmem:[#allocation17 + $0x3dc] sm:$0xff]
        %v6882 = vld [vmem:[#allocation17 + $0x3e4] sm:$0xf]
        %v6883 = vld [vmem:[#allocation17 + $0x3e8] sm:$0xff]
        %v6884 = vld [vmem:[#allocation17 + $0x3f0] sm:$0xff]
        %v6885 = vld [vmem:[#allocation17 + $0x3f8] sm:$0xf]
        %v6886 = vld [vmem:[#allocation17 + $0x3fc] sm:$0xff]
        %v6887 = vld [vmem:[#allocation17 + $0x404] sm:$0xff]
        %v6888 = vld [vmem:[#allocation17 + $0x40c] sm:$0xf]
        %v6889 = vld [vmem:[#allocation17 + $0x410] sm:$0xff]
        %v6890 = vld [vmem:[#allocation17 + $0x418] sm:$0xff]
        %v6891 = vld [vmem:[#allocation17 + $0x420] sm:$0xf]
        %v6892 = vld [vmem:[#allocation17 + $0x424] sm:$0xff]
        %v6893 = vld [vmem:[#allocation17 + $0x42c] sm:$0xff]
        %v6894 = vld [vmem:[#allocation17 + $0x434] sm:$0xf]
        %v6895 = vld [vmem:[#allocation17 + $0x438] sm:$0xff]
        %v6896 = vld [vmem:[#allocation17 + $0x440] sm:$0xff]
        %v6897 = vld [vmem:[#allocation17 + $0x448] sm:$0xf]
        %v6898 = vld [vmem:[#allocation17 + $0x44c] sm:$0xff]
        %v6899 = vld [vmem:[#allocation17 + $0x454] sm:$0xff]
        %v6900 = vld [vmem:[#allocation17 + $0x45c] sm:$0xf]
        %v6901 = vld [vmem:[#allocation17 + $0x460] sm:$0xff]
        %v6902 = vld [vmem:[#allocation17 + $0x468] sm:$0xff]
        %v6903 = vld [vmem:[#allocation17 + $0x470] sm:$0xf]
        %v6904 = vld [vmem:[#allocation17 + $0x474] sm:$0xff]
        %v6905 = vld [vmem:[#allocation17 + $0x47c] sm:$0xff]
        %v6906 = vld [vmem:[#allocation17 + $0x484] sm:$0xf]
        %v6907 = vld [vmem:[#allocation17 + $0x488] sm:$0xff]
        %v6908 = vld [vmem:[#allocation17 + $0x490] sm:$0xff]
        %v6909 = vld [vmem:[#allocation17 + $0x498] sm:$0xf]
        %v6910 = vld [vmem:[#allocation17 + $0x49c] sm:$0xff]
        %v6911 = vld [vmem:[#allocation17 + $0x4a4] sm:$0xff]
        %v6912 = vld [vmem:[#allocation17 + $0x4ac] sm:$0xf]
        %v6913 = vld [vmem:[#allocation17 + $0x4b0] sm:$0xff]
        %v6914 = vld [vmem:[#allocation17 + $0x4b8] sm:$0xff]
        %v6915 = vld [vmem:[#allocation17 + $0x4c0] sm:$0xf]
        %v6916 = vld [vmem:[#allocation17 + $0x4c4] sm:$0xff]
        %v6917 = vld [vmem:[#allocation17 + $0x4cc] sm:$0xff]
        %v6918 = vld [vmem:[#allocation17 + $0x4d4] sm:$0xf]
        %v6919 = vld [vmem:[#allocation17 + $0x4d8] sm:$0xff]
        %v6920 = vld [vmem:[#allocation17 + $0x4e0] sm:$0xff]
        %v6921 = vld [vmem:[#allocation17 + $0x4e8] sm:$0xf]
        %v6922 = vld [vmem:[#allocation17 + $0x4ec] sm:$0xff]
        %v6923 = vld [vmem:[#allocation17 + $0x4f4] sm:$0xff]
        %v6924 = vld [vmem:[#allocation17 + $0x4fc] sm:$0xf]
        %v6925 = vld [vmem:[#allocation17 + $0x500] sm:$0xff]
        %v6926 = vld [vmem:[#allocation17 + $0x508] sm:$0xff]
        %v6927 = vld [vmem:[#allocation17 + $0x510] sm:$0xf]
        %v6928 = vld [vmem:[#allocation17 + $0x514] sm:$0xff]
        %v6929 = vld [vmem:[#allocation17 + $0x51c] sm:$0xff]
        %v6930 = vld [vmem:[#allocation17 + $0x524] sm:$0xf]
        %v6931 = vld [vmem:[#allocation17 + $0x528] sm:$0xff]
        %v6932 = vld [vmem:[#allocation17 + $0x530] sm:$0xff]
        %v6933 = vld [vmem:[#allocation17 + $0x538] sm:$0xf]
        %v6934 = vld [vmem:[#allocation17 + $0x53c] sm:$0xff]
        %v6935 = vld [vmem:[#allocation17 + $0x544] sm:$0xff]
        %v6936 = vld [vmem:[#allocation17 + $0x54c] sm:$0xf]
        %v6937 = vld [vmem:[#allocation17 + $0x550] sm:$0xff]
        %v6938 = vld [vmem:[#allocation17 + $0x558] sm:$0xff]
        %v6939 = vld [vmem:[#allocation17 + $0x560] sm:$0xf]
        %v6940 = vld [vmem:[#allocation17 + $0x564] sm:$0xff]
        %v6941 = vld [vmem:[#allocation17 + $0x56c] sm:$0xff]
        %v6942 = vld [vmem:[#allocation17 + $0x574] sm:$0xf]
        %v6943 = vld [vmem:[#allocation17 + $0x578] sm:$0xff]
        %v6944 = vld [vmem:[#allocation17 + $0x580] sm:$0xff]
        %v6945 = vld [vmem:[#allocation17 + $0x588] sm:$0xf]
        %v6946 = vld [vmem:[#allocation17 + $0x58c] sm:$0xff]
        %v6947 = vld [vmem:[#allocation17 + $0x594] sm:$0xff]
        %v6948 = vld [vmem:[#allocation17 + $0x59c] sm:$0xf]
        %v6949 = vld [vmem:[#allocation17 + $0x5a0] sm:$0xff]
        %v6950 = vld [vmem:[#allocation17 + $0x5a8] sm:$0xff]
        %v6951 = vld [vmem:[#allocation17 + $0x5b0] sm:$0xf]
        %v6952 = vld [vmem:[#allocation17 + $0x5b4] sm:$0xff]
        %v6953 = vld [vmem:[#allocation17 + $0x5bc] sm:$0xff]
        %v6954 = vld [vmem:[#allocation17 + $0x5c4] sm:$0xf]
        %v6955 = vld [vmem:[#allocation17 + $0x5c8] sm:$0xff]
        %v6956 = vld [vmem:[#allocation17 + $0x5d0] sm:$0xff]
        %v6957 = vld [vmem:[#allocation17 + $0x5d8] sm:$0xf]
        %v6958 = vld [vmem:[#allocation17 + $0x5dc] sm:$0xff]
        %v6959 = vld [vmem:[#allocation17 + $0x5e4] sm:$0xff]
        %v6960 = vld [vmem:[#allocation17 + $0x5ec] sm:$0xf]
        %v6961 = vld [vmem:[#allocation17 + $0x5f0] sm:$0xff]
        %v6962 = vld [vmem:[#allocation17 + $0x5f8] sm:$0xff]
        %v6963 = vld [vmem:[#allocation17 + $0x600] sm:$0xf]
        %v6964 = vld [vmem:[#allocation17 + $0x604] sm:$0xff]
        %v6965 = vld [vmem:[#allocation17 + $0x60c] sm:$0xff]
        %v6966 = vld [vmem:[#allocation17 + $0x614] sm:$0xf]
        %v6967 = vld [vmem:[#allocation17 + $0x618] sm:$0xff]
        %v6968 = vld [vmem:[#allocation17 + $0x620] sm:$0xff]
        %v6969 = vld [vmem:[#allocation17 + $0x628] sm:$0xf]
        %v6970 = vld [vmem:[#allocation17 + $0x62c] sm:$0xff]
        %v6971 = vld [vmem:[#allocation17 + $0x634] sm:$0xff]
        %v6972 = vld [vmem:[#allocation17 + $0x63c] sm:$0xf]
        %v6973 = vld [vmem:[#allocation17 + $0x640] sm:$0xff]
        %v6974 = vld [vmem:[#allocation17 + $0x648] sm:$0xff]
        %v6975 = vld [vmem:[#allocation17 + $0x650] sm:$0xf]
        %v6976 = vld [vmem:[#allocation17 + $0x654] sm:$0xff]
        %v6977 = vld [vmem:[#allocation17 + $0x65c] sm:$0xff]
        %v6978 = vld [vmem:[#allocation17 + $0x664] sm:$0xf]
        %v6979 = vld [vmem:[#allocation17 + $0x668] sm:$0xff]
        %v6980 = vld [vmem:[#allocation17 + $0x670] sm:$0xff]
        %v6981 = vld [vmem:[#allocation17 + $0x678] sm:$0xf]
        %v6982 = vld [vmem:[#allocation17 + $0x67c] sm:$0xff]
        %v6983 = vld [vmem:[#allocation17 + $0x684] sm:$0xff]
        %v6984 = vld [vmem:[#allocation17 + $0x68c] sm:$0xf]
        %v6985 = vld [vmem:[#allocation17 + $0x690] sm:$0xff]
        %v6986 = vld [vmem:[#allocation17 + $0x698] sm:$0xff]
        %v6987 = vld [vmem:[#allocation17 + $0x6a0] sm:$0xf]
        %v6988 = vld [vmem:[#allocation17 + $0x6a4] sm:$0xff]
        %v6989 = vld [vmem:[#allocation17 + $0x6ac] sm:$0xff]
        %v6990 = vld [vmem:[#allocation17 + $0x6b4] sm:$0xf]
        %v6991 = vld [vmem:[#allocation17 + $0x6b8] sm:$0xff]
        %v6992 = vld [vmem:[#allocation17 + $0x6c0] sm:$0xff]
        %v6993 = vld [vmem:[#allocation17 + $0x6c8] sm:$0xf]
        %v6994 = vld [vmem:[#allocation17 + $0x6cc] sm:$0xff]
        %v6995 = vld [vmem:[#allocation17 + $0x6d4] sm:$0xff]
        %v6996 = vld [vmem:[#allocation17 + $0x6dc] sm:$0xf]
        %v6997 = vld [vmem:[#allocation17 + $0x6e0] sm:$0xff]
        %v6998 = vld [vmem:[#allocation17 + $0x6e8] sm:$0xff]
        %v6999 = vld [vmem:[#allocation17 + $0x6f0] sm:$0xf]
        %v7000 = vld [vmem:[#allocation17 + $0x6f4] sm:$0xff]
        %v7001 = vld [vmem:[#allocation17 + $0x6fc] sm:$0xff]
        %v7002 = vld [vmem:[#allocation17 + $0x704] sm:$0xf]
        %v7003 = vld [vmem:[#allocation17 + $0x708] sm:$0xff]
        %v7004 = vld [vmem:[#allocation17 + $0x710] sm:$0xff]
        %v7005 = vld [vmem:[#allocation17 + $0x718] sm:$0xf]
        %v7006 = vld [vmem:[#allocation17 + $0x71c] sm:$0xff]
        %v7007 = vld [vmem:[#allocation17 + $0x724] sm:$0xff]
        %v7008 = vld [vmem:[#allocation17 + $0x72c] sm:$0xf]
        %v7009 = vld [vmem:[#allocation17 + $0x730] sm:$0xff]
        %v7010 = vld [vmem:[#allocation17 + $0x738] sm:$0xff]
        %v7011 = vld [vmem:[#allocation17 + $0x740] sm:$0xf]
        %v7012 = vld [vmem:[#allocation17 + $0x744] sm:$0xff]
        %v7013 = vld [vmem:[#allocation17 + $0x74c] sm:$0xff]
        %v7014 = vld [vmem:[#allocation17 + $0x754] sm:$0xf]
        %v7015 = vld [vmem:[#allocation17 + $0x758] sm:$0xff]
        %v7016 = vld [vmem:[#allocation17 + $0x760] sm:$0xff]
        %v7017 = vld [vmem:[#allocation17 + $0x768] sm:$0xf]
        %v7018 = vld [vmem:[#allocation17 + $0x76c] sm:$0xff]
        %v7019 = vld [vmem:[#allocation17 + $0x774] sm:$0xff]
        %v7020 = vld [vmem:[#allocation17 + $0x77c] sm:$0xf]
        %v7021 = vld [vmem:[#allocation19] sm:$0x1f]
        %v7022 = vpack.c.bf16 %v6727, %v6727
        %v7023 = vpack.c.bf16 %v6728, %v6728
        %v7024 = vpack.c.bf16 %v6729, %v6729
        %v7025 = vpack.c.bf16 %v6730, %v6730
        %v7026 = vpack.c.bf16 %v6731, %v6731
        %v7027 = vpack.c.bf16 %v6732, %v6732
        %v7029 = vlaneseq
        %v7030 = vshrl.u32 %v7029, 7
        %v7031 = vsub.s32 0, %v7030
        %v7032 = vrot.slane %v7021, %v7031
        %v7033 = vlaneseq
        %v7034 = vshrl.u32 %v7033, 7
        %v7035 = vsub.s32 1, %v7034
        %v7036 = vrot.slane %v7021, %v7035
        %v7037 = vlaneseq
        %v7038 = vshrl.u32 %v7037, 7
        %v7039 = vsub.s32 2, %v7038
        %v7040 = vrot.slane %v7021, %v7039
        %v7041 = vlaneseq
        %v7042 = vshrl.u32 %v7041, 7
        %v7043 = vsub.s32 3, %v7042
        %v7044 = vrot.slane %v7021, %v7043
        %v7045 = vlaneseq
        %v7046 = vshrl.u32 %v7045, 7
        %v7047 = vsub.s32 4, %v7046
        %v7048 = vrot.slane %v7021, %v7047
        %v7342 = vunpack.c.l.b16 %v6733
        %v7343 = vunpack.c.h.b16 %v6733
        %v7344 = vunpack.c.l.b16 %v6734
        %v7345 = vunpack.c.h.b16 %v6734
        %v7346 = vunpack.c.l.b16 %v6735
        %v7347 = vunpack.c.l.b16 %v6736
        %v7348 = vunpack.c.h.b16 %v6736
        %v7349 = vunpack.c.l.b16 %v6737
        %v7350 = vunpack.c.h.b16 %v6737
        %v7351 = vunpack.c.l.b16 %v6738
        %v7352 = vunpack.c.l.b16 %v6739
        %v7353 = vunpack.c.h.b16 %v6739
        %v7354 = vunpack.c.l.b16 %v6740
        %v7355 = vunpack.c.h.b16 %v6740
        %v7356 = vunpack.c.l.b16 %v6741
        %v7357 = vunpack.c.l.b16 %v6742
        %v7358 = vunpack.c.h.b16 %v6742
        %v7359 = vunpack.c.l.b16 %v6743
        %v7360 = vunpack.c.h.b16 %v6743
        %v7361 = vunpack.c.l.b16 %v6744
        %v7362 = vunpack.c.l.b16 %v6745
        %v7363 = vunpack.c.h.b16 %v6745
        %v7364 = vunpack.c.l.b16 %v6746
        %v7365 = vunpack.c.h.b16 %v6746
        %v7366 = vunpack.c.l.b16 %v6747
        %v7367 = vunpack.c.l.b16 %v6748
        %v7368 = vunpack.c.h.b16 %v6748
        %v7369 = vunpack.c.l.b16 %v6749
        %v7370 = vunpack.c.h.b16 %v6749
        %v7371 = vunpack.c.l.b16 %v6750
        %v7372 = vunpack.c.l.b16 %v6751
        %v7373 = vunpack.c.h.b16 %v6751
        %v7374 = vunpack.c.l.b16 %v6752
        %v7375 = vunpack.c.h.b16 %v6752
        %v7376 = vunpack.c.l.b16 %v6753
        %v7377 = vunpack.c.l.b16 %v6754
        %v7378 = vunpack.c.h.b16 %v6754
        %v7379 = vunpack.c.l.b16 %v6755
        %v7380 = vunpack.c.h.b16 %v6755
        %v7381 = vunpack.c.l.b16 %v6756
        %v7382 = vunpack.c.l.b16 %v6757
        %v7383 = vunpack.c.h.b16 %v6757
        %v7384 = vunpack.c.l.b16 %v6758
        %v7385 = vunpack.c.h.b16 %v6758
        %v7386 = vunpack.c.l.b16 %v6759
        %v7387 = vunpack.c.l.b16 %v6760
        %v7388 = vunpack.c.h.b16 %v6760
        %v7389 = vunpack.c.l.b16 %v6761
        %v7390 = vunpack.c.h.b16 %v6761
        %v7391 = vunpack.c.l.b16 %v6762
        %v7392 = vunpack.c.l.b16 %v6763
        %v7393 = vunpack.c.h.b16 %v6763
        %v7394 = vunpack.c.l.b16 %v6764
        %v7395 = vunpack.c.h.b16 %v6764
        %v7396 = vunpack.c.l.b16 %v6765
        %v7397 = vunpack.c.l.b16 %v6766
        %v7398 = vunpack.c.h.b16 %v6766
        %v7399 = vunpack.c.l.b16 %v6767
        %v7400 = vunpack.c.h.b16 %v6767
        %v7401 = vunpack.c.l.b16 %v6768
        %v7402 = vunpack.c.l.b16 %v6769
        %v7403 = vunpack.c.h.b16 %v6769
        %v7404 = vunpack.c.l.b16 %v6770
        %v7405 = vunpack.c.h.b16 %v6770
        %v7406 = vunpack.c.l.b16 %v6771
        %v7407 = vunpack.c.l.b16 %v6772
        %v7408 = vunpack.c.h.b16 %v6772
        %v7409 = vunpack.c.l.b16 %v6773
        %v7410 = vunpack.c.h.b16 %v6773
        %v7411 = vunpack.c.l.b16 %v6774
        %v7412 = vunpack.c.l.b16 %v6775
        %v7413 = vunpack.c.h.b16 %v6775
        %v7414 = vunpack.c.l.b16 %v6776
        %v7415 = vunpack.c.h.b16 %v6776
        %v7416 = vunpack.c.l.b16 %v6777
        %v7417 = vunpack.c.l.b16 %v6778
        %v7418 = vunpack.c.h.b16 %v6778
        %v7419 = vunpack.c.l.b16 %v6779
        %v7420 = vunpack.c.h.b16 %v6779
        %v7421 = vunpack.c.l.b16 %v6780
        %v7422 = vunpack.c.l.b16 %v6781
        %v7423 = vunpack.c.h.b16 %v6781
        %v7424 = vunpack.c.l.b16 %v6782
        %v7425 = vunpack.c.h.b16 %v6782
        %v7426 = vunpack.c.l.b16 %v6783
        %v7427 = vunpack.c.l.b16 %v6784
        %v7428 = vunpack.c.h.b16 %v6784
        %v7429 = vunpack.c.l.b16 %v6785
        %v7430 = vunpack.c.h.b16 %v6785
        %v7431 = vunpack.c.l.b16 %v6786
        %v7432 = vunpack.c.l.b16 %v6787
        %v7433 = vunpack.c.h.b16 %v6787
        %v7434 = vunpack.c.l.b16 %v6788
        %v7435 = vunpack.c.h.b16 %v6788
        %v7436 = vunpack.c.l.b16 %v6789
        %v7437 = vunpack.c.l.b16 %v6790
        %v7438 = vunpack.c.h.b16 %v6790
        %v7439 = vunpack.c.l.b16 %v6791
        %v7440 = vunpack.c.h.b16 %v6791
        %v7441 = vunpack.c.l.b16 %v6792
        %v7442 = vunpack.c.l.b16 %v6793
        %v7443 = vunpack.c.h.b16 %v6793
        %v7444 = vunpack.c.l.b16 %v6794
        %v7445 = vunpack.c.h.b16 %v6794
        %v7446 = vunpack.c.l.b16 %v6795
        %v7447 = vunpack.c.l.b16 %v6796
        %v7448 = vunpack.c.h.b16 %v6796
        %v7449 = vunpack.c.l.b16 %v6797
        %v7450 = vunpack.c.h.b16 %v6797
        %v7451 = vunpack.c.l.b16 %v6798
        %v7452 = vunpack.c.l.b16 %v6799
        %v7453 = vunpack.c.h.b16 %v6799
        %v7454 = vunpack.c.l.b16 %v6800
        %v7455 = vunpack.c.h.b16 %v6800
        %v7456 = vunpack.c.l.b16 %v6801
        %v7457 = vunpack.c.l.b16 %v6802
        %v7458 = vunpack.c.h.b16 %v6802
        %v7459 = vunpack.c.l.b16 %v6803
        %v7460 = vunpack.c.h.b16 %v6803
        %v7461 = vunpack.c.l.b16 %v6804
        %v7462 = vunpack.c.l.b16 %v6805
        %v7463 = vunpack.c.h.b16 %v6805
        %v7464 = vunpack.c.l.b16 %v6806
        %v7465 = vunpack.c.h.b16 %v6806
        %v7466 = vunpack.c.l.b16 %v6807
        %v7467 = vunpack.c.l.b16 %v6808
        %v7468 = vunpack.c.h.b16 %v6808
        %v7469 = vunpack.c.l.b16 %v6809
        %v7470 = vunpack.c.h.b16 %v6809
        %v7471 = vunpack.c.l.b16 %v6810
        %v7472 = vunpack.c.l.b16 %v6811
        %v7473 = vunpack.c.h.b16 %v6811
        %v7474 = vunpack.c.l.b16 %v6812
        %v7475 = vunpack.c.h.b16 %v6812
        %v7476 = vunpack.c.l.b16 %v6813
        %v7477 = vunpack.c.l.b16 %v6814
        %v7478 = vunpack.c.h.b16 %v6814
        %v7479 = vunpack.c.l.b16 %v6815
        %v7480 = vunpack.c.h.b16 %v6815
        %v7481 = vunpack.c.l.b16 %v6816
        %v7482 = vunpack.c.l.b16 %v6817
        %v7483 = vunpack.c.h.b16 %v6817
        %v7484 = vunpack.c.l.b16 %v6818
        %v7485 = vunpack.c.h.b16 %v6818
        %v7486 = vunpack.c.l.b16 %v6819
        %v7487 = vunpack.c.l.b16 %v6820
        %v7488 = vunpack.c.h.b16 %v6820
        %v7489 = vunpack.c.l.b16 %v6821
        %v7490 = vunpack.c.h.b16 %v6821
        %v7491 = vunpack.c.l.b16 %v6822
        %v7492 = vunpack.c.l.b16 %v6823
        %v7493 = vunpack.c.h.b16 %v6823
        %v7494 = vunpack.c.l.b16 %v6824
        %v7495 = vunpack.c.h.b16 %v6824
        %v7496 = vunpack.c.l.b16 %v6825
        %v7497 = vunpack.c.l.b16 %v6826
        %v7498 = vunpack.c.h.b16 %v6826
        %v7499 = vunpack.c.l.b16 %v6827
        %v7500 = vunpack.c.h.b16 %v6827
        %v7501 = vunpack.c.l.b16 %v6828
        %v7502 = vunpack.c.l.b16 %v6829
        %v7503 = vunpack.c.h.b16 %v6829
        %v7504 = vunpack.c.l.b16 %v6830
        %v7505 = vunpack.c.h.b16 %v6830
        %v7506 = vunpack.c.l.b16 %v6831
        %v7507 = vunpack.c.l.b16 %v6832
        %v7508 = vunpack.c.h.b16 %v6832
        %v7509 = vunpack.c.l.b16 %v6833
        %v7510 = vunpack.c.h.b16 %v6833
        %v7511 = vunpack.c.l.b16 %v6834
        %v7512 = vunpack.c.l.b16 %v6835
        %v7513 = vunpack.c.h.b16 %v6835
        %v7514 = vunpack.c.l.b16 %v6836
        %v7515 = vunpack.c.h.b16 %v6836
        %v7516 = vunpack.c.l.b16 %v6837
        %v7517 = vunpack.c.l.b16 %v6838
        %v7518 = vunpack.c.h.b16 %v6838
        %v7519 = vunpack.c.l.b16 %v6839
        %v7520 = vunpack.c.h.b16 %v6839
        %v7521 = vunpack.c.l.b16 %v6840
        %v7522 = vunpack.c.l.b16 %v6841
        %v7523 = vunpack.c.h.b16 %v6841
        %v7524 = vunpack.c.l.b16 %v6842
        %v7525 = vunpack.c.h.b16 %v6842
        %v7526 = vunpack.c.l.b16 %v6843
        %v7527 = vunpack.c.l.b16 %v6844
        %v7528 = vunpack.c.h.b16 %v6844
        %v7529 = vunpack.c.l.b16 %v6845
        %v7530 = vunpack.c.h.b16 %v6845
        %v7531 = vunpack.c.l.b16 %v6846
        %v7532 = vunpack.c.l.b16 %v6847
        %v7533 = vunpack.c.h.b16 %v6847
        %v7534 = vunpack.c.l.b16 %v6848
        %v7535 = vunpack.c.h.b16 %v6848
        %v7536 = vunpack.c.l.b16 %v6849
        %v7537 = vunpack.c.l.b16 %v6850
        %v7538 = vunpack.c.h.b16 %v6850
        %v7539 = vunpack.c.l.b16 %v6851
        %v7540 = vunpack.c.h.b16 %v6851
        %v7541 = vunpack.c.l.b16 %v6852
        %v7542 = vunpack.c.l.b16 %v6853
        %v7543 = vunpack.c.h.b16 %v6853
        %v7544 = vunpack.c.l.b16 %v6854
        %v7545 = vunpack.c.h.b16 %v6854
        %v7546 = vunpack.c.l.b16 %v6855
        %v7547 = vunpack.c.l.b16 %v6856
        %v7548 = vunpack.c.h.b16 %v6856
        %v7549 = vunpack.c.l.b16 %v6857
        %v7550 = vunpack.c.h.b16 %v6857
        %v7551 = vunpack.c.l.b16 %v6858
        %v7552 = vunpack.c.l.b16 %v6859
        %v7553 = vunpack.c.h.b16 %v6859
        %v7554 = vunpack.c.l.b16 %v6860
        %v7555 = vunpack.c.h.b16 %v6860
        %v7556 = vunpack.c.l.b16 %v6861
        %v7557 = vunpack.c.l.b16 %v6862
        %v7558 = vunpack.c.h.b16 %v6862
        %v7559 = vunpack.c.l.b16 %v6863
        %v7560 = vunpack.c.h.b16 %v6863
        %v7561 = vunpack.c.l.b16 %v6864
        %v7562 = vunpack.c.l.b16 %v6865
        %v7563 = vunpack.c.h.b16 %v6865
        %v7564 = vunpack.c.l.b16 %v6866
        %v7565 = vunpack.c.h.b16 %v6866
        %v7566 = vunpack.c.l.b16 %v6867
        %v7567 = vunpack.c.l.b16 %v6868
        %v7568 = vunpack.c.h.b16 %v6868
        %v7569 = vunpack.c.l.b16 %v6869
        %v7570 = vunpack.c.h.b16 %v6869
        %v7571 = vunpack.c.l.b16 %v6870
        %v7572 = vunpack.c.l.b16 %v6871
        %v7573 = vunpack.c.h.b16 %v6871
        %v7574 = vunpack.c.l.b16 %v6872
        %v7575 = vunpack.c.h.b16 %v6872
        %v7576 = vunpack.c.l.b16 %v6873
        %v7577 = vunpack.c.l.b16 %v6874
        %v7578 = vunpack.c.h.b16 %v6874
        %v7579 = vunpack.c.l.b16 %v6875
        %v7580 = vunpack.c.h.b16 %v6875
        %v7581 = vunpack.c.l.b16 %v6876
        %v7582 = vunpack.c.l.b16 %v6877
        %v7583 = vunpack.c.h.b16 %v6877
        %v7584 = vunpack.c.l.b16 %v6878
        %v7585 = vunpack.c.h.b16 %v6878
        %v7586 = vunpack.c.l.b16 %v6879
        %v7587 = vunpack.c.l.b16 %v6880
        %v7588 = vunpack.c.h.b16 %v6880
        %v7589 = vunpack.c.l.b16 %v6881
        %v7590 = vunpack.c.h.b16 %v6881
        %v7591 = vunpack.c.l.b16 %v6882
        %v7592 = vunpack.c.l.b16 %v6883
        %v7593 = vunpack.c.h.b16 %v6883
        %v7594 = vunpack.c.l.b16 %v6884
        %v7595 = vunpack.c.h.b16 %v6884
        %v7596 = vunpack.c.l.b16 %v6885
        %v7597 = vunpack.c.l.b16 %v6886
        %v7598 = vunpack.c.h.b16 %v6886
        %v7599 = vunpack.c.l.b16 %v6887
        %v7600 = vunpack.c.h.b16 %v6887
        %v7601 = vunpack.c.l.b16 %v6888
        %v7602 = vunpack.c.l.b16 %v6889
        %v7603 = vunpack.c.h.b16 %v6889
        %v7604 = vunpack.c.l.b16 %v6890
        %v7605 = vunpack.c.h.b16 %v6890
        %v7606 = vunpack.c.l.b16 %v6891
        %v7607 = vunpack.c.l.b16 %v6892
        %v7608 = vunpack.c.h.b16 %v6892
        %v7609 = vunpack.c.l.b16 %v6893
        %v7610 = vunpack.c.h.b16 %v6893
        %v7611 = vunpack.c.l.b16 %v6894
        %v7612 = vunpack.c.l.b16 %v6895
        %v7613 = vunpack.c.h.b16 %v6895
        %v7614 = vunpack.c.l.b16 %v6896
        %v7615 = vunpack.c.h.b16 %v6896
        %v7616 = vunpack.c.l.b16 %v6897
        %v7617 = vunpack.c.l.b16 %v6898
        %v7618 = vunpack.c.h.b16 %v6898
        %v7619 = vunpack.c.l.b16 %v6899
        %v7620 = vunpack.c.h.b16 %v6899
        %v7621 = vunpack.c.l.b16 %v6900
        %v7622 = vunpack.c.l.b16 %v6901
        %v7623 = vunpack.c.h.b16 %v6901
        %v7624 = vunpack.c.l.b16 %v6902
        %v7625 = vunpack.c.h.b16 %v6902
        %v7626 = vunpack.c.l.b16 %v6903
        %v7627 = vunpack.c.l.b16 %v6904
        %v7628 = vunpack.c.h.b16 %v6904
        %v7629 = vunpack.c.l.b16 %v6905
        %v7630 = vunpack.c.h.b16 %v6905
        %v7631 = vunpack.c.l.b16 %v6906
        %v7632 = vunpack.c.l.b16 %v6907
        %v7633 = vunpack.c.h.b16 %v6907
        %v7634 = vunpack.c.l.b16 %v6908
        %v7635 = vunpack.c.h.b16 %v6908
        %v7636 = vunpack.c.l.b16 %v6909
        %v7637 = vunpack.c.l.b16 %v6910
        %v7638 = vunpack.c.h.b16 %v6910
        %v7639 = vunpack.c.l.b16 %v6911
        %v7640 = vunpack.c.h.b16 %v6911
        %v7641 = vunpack.c.l.b16 %v6912
        %v7642 = vunpack.c.l.b16 %v6913
        %v7643 = vunpack.c.h.b16 %v6913
        %v7644 = vunpack.c.l.b16 %v6914
        %v7645 = vunpack.c.h.b16 %v6914
        %v7646 = vunpack.c.l.b16 %v6915
        %v7647 = vunpack.c.l.b16 %v6916
        %v7648 = vunpack.c.h.b16 %v6916
        %v7649 = vunpack.c.l.b16 %v6917
        %v7650 = vunpack.c.h.b16 %v6917
        %v7651 = vunpack.c.l.b16 %v6918
        %v7652 = vunpack.c.l.b16 %v6919
        %v7653 = vunpack.c.h.b16 %v6919
        %v7654 = vunpack.c.l.b16 %v6920
        %v7655 = vunpack.c.h.b16 %v6920
        %v7656 = vunpack.c.l.b16 %v6921
        %v7657 = vunpack.c.l.b16 %v6922
        %v7658 = vunpack.c.h.b16 %v6922
        %v7659 = vunpack.c.l.b16 %v6923
        %v7660 = vunpack.c.h.b16 %v6923
        %v7661 = vunpack.c.l.b16 %v6924
        %v7662 = vunpack.c.l.b16 %v6925
        %v7663 = vunpack.c.h.b16 %v6925
        %v7664 = vunpack.c.l.b16 %v6926
        %v7665 = vunpack.c.h.b16 %v6926
        %v7666 = vunpack.c.l.b16 %v6927
        %v7667 = vunpack.c.l.b16 %v6928
        %v7668 = vunpack.c.h.b16 %v6928
        %v7669 = vunpack.c.l.b16 %v6929
        %v7670 = vunpack.c.h.b16 %v6929
        %v7671 = vunpack.c.l.b16 %v6930
        %v7672 = vunpack.c.l.b16 %v6931
        %v7673 = vunpack.c.h.b16 %v6931
        %v7674 = vunpack.c.l.b16 %v6932
        %v7675 = vunpack.c.h.b16 %v6932
        %v7676 = vunpack.c.l.b16 %v6933
        %v7677 = vunpack.c.l.b16 %v6934
        %v7678 = vunpack.c.h.b16 %v6934
        %v7679 = vunpack.c.l.b16 %v6935
        %v7680 = vunpack.c.h.b16 %v6935
        %v7681 = vunpack.c.l.b16 %v6936
        %v7682 = vunpack.c.l.b16 %v6937
        %v7683 = vunpack.c.h.b16 %v6937
        %v7684 = vunpack.c.l.b16 %v6938
        %v7685 = vunpack.c.h.b16 %v6938
        %v7686 = vunpack.c.l.b16 %v6939
        %v7687 = vunpack.c.l.b16 %v6940
        %v7688 = vunpack.c.h.b16 %v6940
        %v7689 = vunpack.c.l.b16 %v6941
        %v7690 = vunpack.c.h.b16 %v6941
        %v7691 = vunpack.c.l.b16 %v6942
        %v7692 = vunpack.c.l.b16 %v6943
        %v7693 = vunpack.c.h.b16 %v6943
        %v7694 = vunpack.c.l.b16 %v6944
        %v7695 = vunpack.c.h.b16 %v6944
        %v7696 = vunpack.c.l.b16 %v6945
        %v7697 = vunpack.c.l.b16 %v6946
        %v7698 = vunpack.c.h.b16 %v6946
        %v7699 = vunpack.c.l.b16 %v6947
        %v7700 = vunpack.c.h.b16 %v6947
        %v7701 = vunpack.c.l.b16 %v6948
        %v7702 = vunpack.c.l.b16 %v6949
        %v7703 = vunpack.c.h.b16 %v6949
        %v7704 = vunpack.c.l.b16 %v6950
        %v7705 = vunpack.c.h.b16 %v6950
        %v7706 = vunpack.c.l.b16 %v6951
        %v7707 = vunpack.c.l.b16 %v6952
        %v7708 = vunpack.c.h.b16 %v6952
        %v7709 = vunpack.c.l.b16 %v6953
        %v7710 = vunpack.c.h.b16 %v6953
        %v7711 = vunpack.c.l.b16 %v6954
        %v7712 = vunpack.c.l.b16 %v6955
        %v7713 = vunpack.c.h.b16 %v6955
        %v7714 = vunpack.c.l.b16 %v6956
        %v7715 = vunpack.c.h.b16 %v6956
        %v7716 = vunpack.c.l.b16 %v6957
        %v7717 = vunpack.c.l.b16 %v6958
        %v7718 = vunpack.c.h.b16 %v6958
        %v7719 = vunpack.c.l.b16 %v6959
        %v7720 = vunpack.c.h.b16 %v6959
        %v7721 = vunpack.c.l.b16 %v6960
        %v7722 = vunpack.c.l.b16 %v6961
        %v7723 = vunpack.c.h.b16 %v6961
        %v7724 = vunpack.c.l.b16 %v6962
        %v7725 = vunpack.c.h.b16 %v6962
        %v7726 = vunpack.c.l.b16 %v6963
        %v7727 = vunpack.c.l.b16 %v6964
        %v7728 = vunpack.c.h.b16 %v6964
        %v7729 = vunpack.c.l.b16 %v6965
        %v7730 = vunpack.c.h.b16 %v6965
        %v7731 = vunpack.c.l.b16 %v6966
        %v7732 = vunpack.c.l.b16 %v6967
        %v7733 = vunpack.c.h.b16 %v6967
        %v7734 = vunpack.c.l.b16 %v6968
        %v7735 = vunpack.c.h.b16 %v6968
        %v7736 = vunpack.c.l.b16 %v6969
        %v7737 = vunpack.c.l.b16 %v6970
        %v7738 = vunpack.c.h.b16 %v6970
        %v7739 = vunpack.c.l.b16 %v6971
        %v7740 = vunpack.c.h.b16 %v6971
        %v7741 = vunpack.c.l.b16 %v6972
        %v7742 = vunpack.c.l.b16 %v6973
        %v7743 = vunpack.c.h.b16 %v6973
        %v7744 = vunpack.c.l.b16 %v6974
        %v7745 = vunpack.c.h.b16 %v6974
        %v7746 = vunpack.c.l.b16 %v6975
        %v7747 = vunpack.c.l.b16 %v6976
        %v7748 = vunpack.c.h.b16 %v6976
        %v7749 = vunpack.c.l.b16 %v6977
        %v7750 = vunpack.c.h.b16 %v6977
        %v7751 = vunpack.c.l.b16 %v6978
        %v7752 = vunpack.c.l.b16 %v6979
        %v7753 = vunpack.c.h.b16 %v6979
        %v7754 = vunpack.c.l.b16 %v6980
        %v7755 = vunpack.c.h.b16 %v6980
        %v7756 = vunpack.c.l.b16 %v6981
        %v7757 = vunpack.c.l.b16 %v6982
        %v7758 = vunpack.c.h.b16 %v6982
        %v7759 = vunpack.c.l.b16 %v6983
        %v7760 = vunpack.c.h.b16 %v6983
        %v7761 = vunpack.c.l.b16 %v6984
        %v7762 = vunpack.c.l.b16 %v6985
        %v7763 = vunpack.c.h.b16 %v6985
        %v7764 = vunpack.c.l.b16 %v6986
        %v7765 = vunpack.c.h.b16 %v6986
        %v7766 = vunpack.c.l.b16 %v6987
        %v7767 = vunpack.c.l.b16 %v6988
        %v7768 = vunpack.c.h.b16 %v6988
        %v7769 = vunpack.c.l.b16 %v6989
        %v7770 = vunpack.c.h.b16 %v6989
        %v7771 = vunpack.c.l.b16 %v6990
        %v7772 = vunpack.c.l.b16 %v6991
        %v7773 = vunpack.c.h.b16 %v6991
        %v7774 = vunpack.c.l.b16 %v6992
        %v7775 = vunpack.c.h.b16 %v6992
        %v7776 = vunpack.c.l.b16 %v6993
        %v7777 = vunpack.c.l.b16 %v6994
        %v7778 = vunpack.c.h.b16 %v6994
        %v7779 = vunpack.c.l.b16 %v6995
        %v7780 = vunpack.c.h.b16 %v6995
        %v7781 = vunpack.c.l.b16 %v6996
        %v7782 = vunpack.c.l.b16 %v6997
        %v7783 = vunpack.c.h.b16 %v6997
        %v7784 = vunpack.c.l.b16 %v6998
        %v7785 = vunpack.c.h.b16 %v6998
        %v7786 = vunpack.c.l.b16 %v6999
        %v7787 = vunpack.c.l.b16 %v7000
        %v7788 = vunpack.c.h.b16 %v7000
        %v7789 = vunpack.c.l.b16 %v7001
        %v7790 = vunpack.c.h.b16 %v7001
        %v7791 = vunpack.c.l.b16 %v7002
        %v7792 = vunpack.c.l.b16 %v7003
        %v7793 = vunpack.c.h.b16 %v7003
        %v7794 = vunpack.c.l.b16 %v7004
        %v7795 = vunpack.c.h.b16 %v7004
        %v7796 = vunpack.c.l.b16 %v7005
        %v7797 = vunpack.c.l.b16 %v7006
        %v7798 = vunpack.c.h.b16 %v7006
        %v7799 = vunpack.c.l.b16 %v7007
        %v7800 = vunpack.c.h.b16 %v7007
        %v7801 = vunpack.c.l.b16 %v7008
        %v7802 = vunpack.c.l.b16 %v7009
        %v7803 = vunpack.c.h.b16 %v7009
        %v7804 = vunpack.c.l.b16 %v7010
        %v7805 = vunpack.c.h.b16 %v7010
        %v7806 = vunpack.c.l.b16 %v7011
        %v7807 = vunpack.c.l.b16 %v7012
        %v7808 = vunpack.c.h.b16 %v7012
        %v7809 = vunpack.c.l.b16 %v7013
        %v7810 = vunpack.c.h.b16 %v7013
        %v7811 = vunpack.c.l.b16 %v7014
        %v7812 = vunpack.c.l.b16 %v7015
        %v7813 = vunpack.c.h.b16 %v7015
        %v7814 = vunpack.c.l.b16 %v7016
        %v7815 = vunpack.c.h.b16 %v7016
        %v7816 = vunpack.c.l.b16 %v7017
        %v7817 = vunpack.c.l.b16 %v7018
        %v7818 = vunpack.c.h.b16 %v7018
        %v7819 = vunpack.c.l.b16 %v7019
        %v7820 = vunpack.c.h.b16 %v7019
        %v7821 = vunpack.c.l.b16 %v7020
        %v7822 = vpack.c.b16 %v7347, %v7342
        %v7823 = vpack.c.b16 %v7348, %v7343
        %v7824 = vpack.c.b16 %v7349, %v7344
        %v7825 = vpack.c.b16 %v7350, %v7345
        %v7826 = vpack.c.b16 %v7351, %v7346
        %v7827 = vpack.c.b16 %v7357, %v7352
        %v7828 = vpack.c.b16 %v7358, %v7353
        %v7829 = vpack.c.b16 %v7359, %v7354
        %v7830 = vpack.c.b16 %v7360, %v7355
        %v7831 = vpack.c.b16 %v7361, %v7356
        %v7832 = vpack.c.b16 %v7367, %v7362
        %v7833 = vpack.c.b16 %v7368, %v7363
        %v7834 = vpack.c.b16 %v7369, %v7364
        %v7835 = vpack.c.b16 %v7370, %v7365
        %v7836 = vpack.c.b16 %v7371, %v7366
        %v7837 = vpack.c.b16 %v7377, %v7372
        %v7838 = vpack.c.b16 %v7378, %v7373
        %v7839 = vpack.c.b16 %v7379, %v7374
        %v7840 = vpack.c.b16 %v7380, %v7375
        %v7841 = vpack.c.b16 %v7381, %v7376
        %v7842 = vpack.c.b16 %v7387, %v7382
        %v7843 = vpack.c.b16 %v7388, %v7383
        %v7844 = vpack.c.b16 %v7389, %v7384
        %v7845 = vpack.c.b16 %v7390, %v7385
        %v7846 = vpack.c.b16 %v7391, %v7386
        %v7847 = vpack.c.b16 %v7397, %v7392
        %v7848 = vpack.c.b16 %v7398, %v7393
        %v7849 = vpack.c.b16 %v7399, %v7394
        %v7850 = vpack.c.b16 %v7400, %v7395
        %v7851 = vpack.c.b16 %v7401, %v7396
        %v7852 = vpack.c.b16 %v7407, %v7402
        %v7853 = vpack.c.b16 %v7408, %v7403
        %v7854 = vpack.c.b16 %v7409, %v7404
        %v7855 = vpack.c.b16 %v7410, %v7405
        %v7856 = vpack.c.b16 %v7411, %v7406
        %v7857 = vpack.c.b16 %v7417, %v7412
        %v7858 = vpack.c.b16 %v7418, %v7413
        %v7859 = vpack.c.b16 %v7419, %v7414
        %v7860 = vpack.c.b16 %v7420, %v7415
        %v7861 = vpack.c.b16 %v7421, %v7416
        %v7862 = vpack.c.b16 %v7427, %v7422
        %v7863 = vpack.c.b16 %v7428, %v7423
        %v7864 = vpack.c.b16 %v7429, %v7424
        %v7865 = vpack.c.b16 %v7430, %v7425
        %v7866 = vpack.c.b16 %v7431, %v7426
        %v7867 = vpack.c.b16 %v7437, %v7432
        %v7868 = vpack.c.b16 %v7438, %v7433
        %v7869 = vpack.c.b16 %v7439, %v7434
        %v7870 = vpack.c.b16 %v7440, %v7435
        %v7871 = vpack.c.b16 %v7441, %v7436
        %v7872 = vpack.c.b16 %v7447, %v7442
        %v7873 = vpack.c.b16 %v7448, %v7443
        %v7874 = vpack.c.b16 %v7449, %v7444
        %v7875 = vpack.c.b16 %v7450, %v7445
        %v7876 = vpack.c.b16 %v7451, %v7446
        %v7877 = vpack.c.b16 %v7457, %v7452
        %v7878 = vpack.c.b16 %v7458, %v7453
        %v7879 = vpack.c.b16 %v7459, %v7454
        %v7880 = vpack.c.b16 %v7460, %v7455
        %v7881 = vpack.c.b16 %v7461, %v7456
        %v7882 = vpack.c.b16 %v7467, %v7462
        %v7883 = vpack.c.b16 %v7468, %v7463
        %v7884 = vpack.c.b16 %v7469, %v7464
        %v7885 = vpack.c.b16 %v7470, %v7465
        %v7886 = vpack.c.b16 %v7471, %v7466
        %v7887 = vpack.c.b16 %v7477, %v7472
        %v7888 = vpack.c.b16 %v7478, %v7473
        %v7889 = vpack.c.b16 %v7479, %v7474
        %v7890 = vpack.c.b16 %v7480, %v7475
        %v7891 = vpack.c.b16 %v7481, %v7476
        %v7892 = vpack.c.b16 %v7487, %v7482
        %v7893 = vpack.c.b16 %v7488, %v7483
        %v7894 = vpack.c.b16 %v7489, %v7484
        %v7895 = vpack.c.b16 %v7490, %v7485
        %v7896 = vpack.c.b16 %v7491, %v7486
        %v7897 = vpack.c.b16 %v7497, %v7492
        %v7898 = vpack.c.b16 %v7498, %v7493
        %v7899 = vpack.c.b16 %v7499, %v7494
        %v7900 = vpack.c.b16 %v7500, %v7495
        %v7901 = vpack.c.b16 %v7501, %v7496
        %v7902 = vpack.c.b16 %v7507, %v7502
        %v7903 = vpack.c.b16 %v7508, %v7503
        %v7904 = vpack.c.b16 %v7509, %v7504
        %v7905 = vpack.c.b16 %v7510, %v7505
        %v7906 = vpack.c.b16 %v7511, %v7506
        %v7907 = vpack.c.b16 %v7517, %v7512
        %v7908 = vpack.c.b16 %v7518, %v7513
        %v7909 = vpack.c.b16 %v7519, %v7514
        %v7910 = vpack.c.b16 %v7520, %v7515
        %v7911 = vpack.c.b16 %v7521, %v7516
        %v7912 = vpack.c.b16 %v7527, %v7522
        %v7913 = vpack.c.b16 %v7528, %v7523
        %v7914 = vpack.c.b16 %v7529, %v7524
        %v7915 = vpack.c.b16 %v7530, %v7525
        %v7916 = vpack.c.b16 %v7531, %v7526
        %v7917 = vpack.c.b16 %v7537, %v7532
        %v7918 = vpack.c.b16 %v7538, %v7533
        %v7919 = vpack.c.b16 %v7539, %v7534
        %v7920 = vpack.c.b16 %v7540, %v7535
        %v7921 = vpack.c.b16 %v7541, %v7536
        %v7922 = vpack.c.b16 %v7547, %v7542
        %v7923 = vpack.c.b16 %v7548, %v7543
        %v7924 = vpack.c.b16 %v7549, %v7544
        %v7925 = vpack.c.b16 %v7550, %v7545
        %v7926 = vpack.c.b16 %v7551, %v7546
        %v7927 = vpack.c.b16 %v7557, %v7552
        %v7928 = vpack.c.b16 %v7558, %v7553
        %v7929 = vpack.c.b16 %v7559, %v7554
        %v7930 = vpack.c.b16 %v7560, %v7555
        %v7931 = vpack.c.b16 %v7561, %v7556
        %v7932 = vpack.c.b16 %v7567, %v7562
        %v7933 = vpack.c.b16 %v7568, %v7563
        %v7934 = vpack.c.b16 %v7569, %v7564
        %v7935 = vpack.c.b16 %v7570, %v7565
        %v7936 = vpack.c.b16 %v7571, %v7566
        %v7937 = vpack.c.b16 %v7577, %v7572
        %v7938 = vpack.c.b16 %v7578, %v7573
        %v7939 = vpack.c.b16 %v7579, %v7574
        %v7940 = vpack.c.b16 %v7580, %v7575
        %v7941 = vpack.c.b16 %v7581, %v7576
        %v7942 = vpack.c.b16 %v7587, %v7582
        %v7943 = vpack.c.b16 %v7588, %v7583
        %v7944 = vpack.c.b16 %v7589, %v7584
        %v7945 = vpack.c.b16 %v7590, %v7585
        %v7946 = vpack.c.b16 %v7591, %v7586
        %v7947 = vpack.c.b16 %v7597, %v7592
        %v7948 = vpack.c.b16 %v7598, %v7593
        %v7949 = vpack.c.b16 %v7599, %v7594
        %v7950 = vpack.c.b16 %v7600, %v7595
        %v7951 = vpack.c.b16 %v7601, %v7596
        %v7952 = vpack.c.b16 %v7607, %v7602
        %v7953 = vpack.c.b16 %v7608, %v7603
        %v7954 = vpack.c.b16 %v7609, %v7604
        %v7955 = vpack.c.b16 %v7610, %v7605
        %v7956 = vpack.c.b16 %v7611, %v7606
        %v7957 = vpack.c.b16 %v7617, %v7612
        %v7958 = vpack.c.b16 %v7618, %v7613
        %v7959 = vpack.c.b16 %v7619, %v7614
        %v7960 = vpack.c.b16 %v7620, %v7615
        %v7961 = vpack.c.b16 %v7621, %v7616
        %v7962 = vpack.c.b16 %v7627, %v7622
        %v7963 = vpack.c.b16 %v7628, %v7623
        %v7964 = vpack.c.b16 %v7629, %v7624
        %v7965 = vpack.c.b16 %v7630, %v7625
        %v7966 = vpack.c.b16 %v7631, %v7626
        %v7967 = vpack.c.b16 %v7637, %v7632
        %v7968 = vpack.c.b16 %v7638, %v7633
        %v7969 = vpack.c.b16 %v7639, %v7634
        %v7970 = vpack.c.b16 %v7640, %v7635
        %v7971 = vpack.c.b16 %v7641, %v7636
        %v7972 = vpack.c.b16 %v7647, %v7642
        %v7973 = vpack.c.b16 %v7648, %v7643
        %v7974 = vpack.c.b16 %v7649, %v7644
        %v7975 = vpack.c.b16 %v7650, %v7645
        %v7976 = vpack.c.b16 %v7651, %v7646
        %v7977 = vpack.c.b16 %v7657, %v7652
        %v7978 = vpack.c.b16 %v7658, %v7653
        %v7979 = vpack.c.b16 %v7659, %v7654
        %v7980 = vpack.c.b16 %v7660, %v7655
        %v7981 = vpack.c.b16 %v7661, %v7656
        %v7982 = vpack.c.b16 %v7667, %v7662
        %v7983 = vpack.c.b16 %v7668, %v7663
        %v7984 = vpack.c.b16 %v7669, %v7664
        %v7985 = vpack.c.b16 %v7670, %v7665
        %v7986 = vpack.c.b16 %v7671, %v7666
        %v7987 = vpack.c.b16 %v7677, %v7672
        %v7988 = vpack.c.b16 %v7678, %v7673
        %v7989 = vpack.c.b16 %v7679, %v7674
        %v7990 = vpack.c.b16 %v7680, %v7675
        %v7991 = vpack.c.b16 %v7681, %v7676
        %v7992 = vpack.c.b16 %v7687, %v7682
        %v7993 = vpack.c.b16 %v7688, %v7683
        %v7994 = vpack.c.b16 %v7689, %v7684
        %v7995 = vpack.c.b16 %v7690, %v7685
        %v7996 = vpack.c.b16 %v7691, %v7686
        %v7997 = vpack.c.b16 %v7697, %v7692
        %v7998 = vpack.c.b16 %v7698, %v7693
        %v7999 = vpack.c.b16 %v7699, %v7694
        %v8000 = vpack.c.b16 %v7700, %v7695
        %v8001 = vpack.c.b16 %v7701, %v7696
        %v8002 = vpack.c.b16 %v7707, %v7702
        %v8003 = vpack.c.b16 %v7708, %v7703
        %v8004 = vpack.c.b16 %v7709, %v7704
        %v8005 = vpack.c.b16 %v7710, %v7705
        %v8006 = vpack.c.b16 %v7711, %v7706
        %v8007 = vpack.c.b16 %v7717, %v7712
        %v8008 = vpack.c.b16 %v7718, %v7713
        %v8009 = vpack.c.b16 %v7719, %v7714
        %v8010 = vpack.c.b16 %v7720, %v7715
        %v8011 = vpack.c.b16 %v7721, %v7716
        %v8012 = vpack.c.b16 %v7727, %v7722
        %v8013 = vpack.c.b16 %v7728, %v7723
        %v8014 = vpack.c.b16 %v7729, %v7724
        %v8015 = vpack.c.b16 %v7730, %v7725
        %v8016 = vpack.c.b16 %v7731, %v7726
        %v8017 = vpack.c.b16 %v7737, %v7732
        %v8018 = vpack.c.b16 %v7738, %v7733
        %v8019 = vpack.c.b16 %v7739, %v7734
        %v8020 = vpack.c.b16 %v7740, %v7735
        %v8021 = vpack.c.b16 %v7741, %v7736
        %v8022 = vpack.c.b16 %v7747, %v7742
        %v8023 = vpack.c.b16 %v7748, %v7743
        %v8024 = vpack.c.b16 %v7749, %v7744
        %v8025 = vpack.c.b16 %v7750, %v7745
        %v8026 = vpack.c.b16 %v7751, %v7746
        %v8027 = vpack.c.b16 %v7757, %v7752
        %v8028 = vpack.c.b16 %v7758, %v7753
        %v8029 = vpack.c.b16 %v7759, %v7754
        %v8030 = vpack.c.b16 %v7760, %v7755
        %v8031 = vpack.c.b16 %v7761, %v7756
        %v8032 = vpack.c.b16 %v7767, %v7762
        %v8033 = vpack.c.b16 %v7768, %v7763
        %v8034 = vpack.c.b16 %v7769, %v7764
        %v8035 = vpack.c.b16 %v7770, %v7765
        %v8036 = vpack.c.b16 %v7771, %v7766
        %v8037 = vpack.c.b16 %v7777, %v7772
        %v8038 = vpack.c.b16 %v7778, %v7773
        %v8039 = vpack.c.b16 %v7779, %v7774
        %v8040 = vpack.c.b16 %v7780, %v7775
        %v8041 = vpack.c.b16 %v7781, %v7776
        %v8042 = vpack.c.b16 %v7787, %v7782
        %v8043 = vpack.c.b16 %v7788, %v7783
        %v8044 = vpack.c.b16 %v7789, %v7784
        %v8045 = vpack.c.b16 %v7790, %v7785
        %v8046 = vpack.c.b16 %v7791, %v7786
        %v8047 = vpack.c.b16 %v7797, %v7792
        %v8048 = vpack.c.b16 %v7798, %v7793
        %v8049 = vpack.c.b16 %v7799, %v7794
        %v8050 = vpack.c.b16 %v7800, %v7795
        %v8051 = vpack.c.b16 %v7801, %v7796
        %v8052 = vpack.c.b16 %v7807, %v7802
        %v8053 = vpack.c.b16 %v7808, %v7803
        %v8054 = vpack.c.b16 %v7809, %v7804
        %v8055 = vpack.c.b16 %v7810, %v7805
        %v8056 = vpack.c.b16 %v7811, %v7806
        %v8057 = vpack.c.b16 %v7817, %v7812
        %v8058 = vpack.c.b16 %v7818, %v7813
        %v8059 = vpack.c.b16 %v7819, %v7814
        %v8060 = vpack.c.b16 %v7820, %v7815
        %v8061 = vpack.c.b16 %v7821, %v7816
        %8302 = vmatprep.subr.bf16.mxu0 %v7858
        %8303 = vmatpush1.bf16.msra.mxu0 %v7857
        %8304 = vmatprep.subr.bf16.mxu0 %v7853
        %8305 = vmatpush1.bf16.msra.mxu0 %v7852
        %8306 = vmatprep.subr.bf16.mxu0 %v7848
        %8307 = vmatpush1.bf16.msra.mxu0 %v7847
        %8308 = vmatprep.subr.bf16.mxu0 %v7843
        %8309 = vmatpush1.bf16.msra.mxu0 %v7842
        %8310 = vmatprep.subr.bf16.mxu0 %v7838
        %8311 = vmatpush1.bf16.msra.mxu0 %v7837
        %8312 = vmatprep.subr.bf16.mxu0 %v7833
        %8313 = vmatpush1.bf16.msra.mxu0 %v7832
        %8314 = vmatprep.subr.bf16.mxu0 %v7828
        %8315 = vmatpush1.bf16.msra.mxu0 %v7827
        %8316 = vmatprep.subr.bf16.mxu0 %v7823
        %8317 = vmatpush1.bf16.msra.mxu0 %v7822
        %8318 = vmatprep.subr.bf16.mxu0 %v7898
        %8319 = vmatpush2.bf16.msra.mxu0 %v7897
        %8320 = vmatprep.subr.bf16.mxu0 %v7893
        %8321 = vmatpush2.bf16.msra.mxu0 %v7892
        %8322 = vmatprep.subr.bf16.mxu0 %v7888
        %8323 = vmatpush2.bf16.msra.mxu0 %v7887
        %8324 = vmatprep.subr.bf16.mxu0 %v7883
        %8325 = vmatpush2.bf16.msra.mxu0 %v7882
        %8326 = vmatprep.subr.bf16.mxu0 %v7878
        %8327 = vmatpush2.bf16.msra.mxu0 %v7877
        %8328 = vmatprep.subr.bf16.mxu0 %v7873
        %8329 = vmatpush2.bf16.msra.mxu0 %v7872
        %8330 = vmatprep.subr.bf16.mxu0 %v7868
        %8331 = vmatpush2.bf16.msra.mxu0 %v7867
        %8332 = vmatprep.subr.bf16.mxu0 %v7863
        %8333 = vmatpush2.bf16.msra.mxu0 %v7862
        %8334 = vmatprep.mubr.bf16.mxu0 %v7023
        %8335 = vmatmul.mubr.bf16.gmra.mxu0 %v7022
        %v8336 = vpop.f32.mrf.mxu0
        %v8337 = vadd.f32 %v7032, %v8336
        %v8338 = vpop.f32.mrf.mxu0
        %v8339 = vadd.f32 %v7036, %v8338
        %v8340 = vpop.f32.mrf.mxu0
        %v8341 = vpop.f32.mrf.mxu0
        %8342 = vdwg.mxu0
        %8343 = vmatprep.subr.bf16.mxu0 %v7938
        %8344 = vmatpush1.bf16.msra.mxu0 %v7937
        %8345 = vmatprep.subr.bf16.mxu0 %v7933
        %8346 = vmatpush1.bf16.msra.mxu0 %v7932
        %8347 = vmatprep.subr.bf16.mxu0 %v7928
        %8348 = vmatpush1.bf16.msra.mxu0 %v7927
        %8349 = vmatprep.subr.bf16.mxu0 %v7923
        %8350 = vmatpush1.bf16.msra.mxu0 %v7922
        %8351 = vmatprep.subr.bf16.mxu0 %v7918
        %8352 = vmatpush1.bf16.msra.mxu0 %v7917
        %8353 = vmatprep.subr.bf16.mxu0 %v7913
        %8354 = vmatpush1.bf16.msra.mxu0 %v7912
        %8355 = vmatprep.subr.bf16.mxu0 %v7908
        %8356 = vmatpush1.bf16.msra.mxu0 %v7907
        %8357 = vmatprep.subr.bf16.mxu0 %v7903
        %8358 = vmatpush1.bf16.msra.mxu0 %v7902
        %8359 = vmatprep.subr.bf16.mxu0 %v7978
        %8360 = vmatpush2.bf16.msra.mxu0 %v7977
        %8361 = vmatprep.subr.bf16.mxu0 %v7973
        %8362 = vmatpush2.bf16.msra.mxu0 %v7972
        %8363 = vmatprep.subr.bf16.mxu0 %v7968
        %8364 = vmatpush2.bf16.msra.mxu0 %v7967
        %8365 = vmatprep.subr.bf16.mxu0 %v7963
        %8366 = vmatpush2.bf16.msra.mxu0 %v7962
        %8367 = vmatprep.subr.bf16.mxu0 %v7958
        %8368 = vmatpush2.bf16.msra.mxu0 %v7957
        %8369 = vmatprep.subr.bf16.mxu0 %v7953
        %8370 = vmatpush2.bf16.msra.mxu0 %v7952
        %8371 = vmatprep.subr.bf16.mxu0 %v7948
        %8372 = vmatpush2.bf16.msra.mxu0 %v7947
        %8373 = vmatprep.subr.bf16.mxu0 %v7943
        %8374 = vmatpush2.bf16.msra.mxu0 %v7942
        %8375 = vmatprep.mubr.bf16.mxu0 %v7025
        %8376 = vmatmul.mubr.bf16.gmra.mxu0 %v7024
        %v8377 = vpop.f32.mrf.mxu0
        %v8378 = vadd.f32 %v8337, %v8377
        %v8379 = vpop.f32.mrf.mxu0
        %v8380 = vadd.f32 %v8339, %v8379
        %v8381 = vpop.f32.mrf.mxu0
        %v8382 = vpop.f32.mrf.mxu0
        %8383 = vdwg.mxu0
        %8384 = vmatprep.subr.bf16.mxu0 %v8018
        %8385 = vmatpush1.bf16.msra.mxu0 %v8017
        %8386 = vmatprep.subr.bf16.mxu0 %v8013
        %8387 = vmatpush1.bf16.msra.mxu0 %v8012
        %8388 = vmatprep.subr.bf16.mxu0 %v8008
        %8389 = vmatpush1.bf16.msra.mxu0 %v8007
        %8390 = vmatprep.subr.bf16.mxu0 %v8003
        %8391 = vmatpush1.bf16.msra.mxu0 %v8002
        %8392 = vmatprep.subr.bf16.mxu0 %v7998
        %8393 = vmatpush1.bf16.msra.mxu0 %v7997
        %8394 = vmatprep.subr.bf16.mxu0 %v7993
        %8395 = vmatpush1.bf16.msra.mxu0 %v7992
        %8396 = vmatprep.subr.bf16.mxu0 %v7988
        %8397 = vmatpush1.bf16.msra.mxu0 %v7987
        %8398 = vmatprep.subr.bf16.mxu0 %v7983
        %8399 = vmatpush1.bf16.msra.mxu0 %v7982
        %8400 = vmatprep.subr.bf16.mxu0 %v8058
        %8401 = vmatpush2.bf16.msra.mxu0 %v8057
        %8402 = vmatprep.subr.bf16.mxu0 %v8053
        %8403 = vmatpush2.bf16.msra.mxu0 %v8052
        %8404 = vmatprep.subr.bf16.mxu0 %v8048
        %8405 = vmatpush2.bf16.msra.mxu0 %v8047
        %8406 = vmatprep.subr.bf16.mxu0 %v8043
        %8407 = vmatpush2.bf16.msra.mxu0 %v8042
        %8408 = vmatprep.subr.bf16.mxu0 %v8038
        %8409 = vmatpush2.bf16.msra.mxu0 %v8037
        %8410 = vmatprep.subr.bf16.mxu0 %v8033
        %8411 = vmatpush2.bf16.msra.mxu0 %v8032
        %8412 = vmatprep.subr.bf16.mxu0 %v8028
        %8413 = vmatpush2.bf16.msra.mxu0 %v8027
        %8414 = vmatprep.subr.bf16.mxu0 %v8023
        %8415 = vmatpush2.bf16.msra.mxu0 %v8022
        %8416 = vmatprep.mubr.bf16.mxu0 %v7027
        %8417 = vmatmul.mubr.bf16.gmra.mxu0 %v7026
        %v8418 = vpop.f32.mrf.mxu0
        %v8419 = vadd.f32 %v8378, %v8418
        %v8420 = vpop.f32.mrf.mxu0
        %v8421 = vadd.f32 %v8380, %v8420
        %v8422 = vpop.f32.mrf.mxu0
        %v8423 = vpop.f32.mrf.mxu0
        %8424 = vdwg.mxu0
        %8425 = vmatprep.subr.bf16.mxu0 %v7860
        %8426 = vmatpush1.bf16.msra.mxu0 %v7859
        %8427 = vmatprep.subr.bf16.mxu0 %v7855
        %8428 = vmatpush1.bf16.msra.mxu0 %v7854
        %8429 = vmatprep.subr.bf16.mxu0 %v7850
        %8430 = vmatpush1.bf16.msra.mxu0 %v7849
        %8431 = vmatprep.subr.bf16.mxu0 %v7845
        %8432 = vmatpush1.bf16.msra.mxu0 %v7844
        %8433 = vmatprep.subr.bf16.mxu0 %v7840
        %8434 = vmatpush1.bf16.msra.mxu0 %v7839
        %8435 = vmatprep.subr.bf16.mxu0 %v7835
        %8436 = vmatpush1.bf16.msra.mxu0 %v7834
        %8437 = vmatprep.subr.bf16.mxu0 %v7830
        %8438 = vmatpush1.bf16.msra.mxu0 %v7829
        %8439 = vmatprep.subr.bf16.mxu0 %v7825
        %8440 = vmatpush1.bf16.msra.mxu0 %v7824
        %8441 = vmatprep.subr.bf16.mxu0 %v7900
        %8442 = vmatpush2.bf16.msra.mxu0 %v7899
        %8443 = vmatprep.subr.bf16.mxu0 %v7895
        %8444 = vmatpush2.bf16.msra.mxu0 %v7894
        %8445 = vmatprep.subr.bf16.mxu0 %v7890
        %8446 = vmatpush2.bf16.msra.mxu0 %v7889
        %8447 = vmatprep.subr.bf16.mxu0 %v7885
        %8448 = vmatpush2.bf16.msra.mxu0 %v7884
        %8449 = vmatprep.subr.bf16.mxu0 %v7880
        %8450 = vmatpush2.bf16.msra.mxu0 %v7879
        %8451 = vmatprep.subr.bf16.mxu0 %v7875
        %8452 = vmatpush2.bf16.msra.mxu0 %v7874
        %8453 = vmatprep.subr.bf16.mxu0 %v7870
        %8454 = vmatpush2.bf16.msra.mxu0 %v7869
        %8455 = vmatprep.subr.bf16.mxu0 %v7865
        %8456 = vmatpush2.bf16.msra.mxu0 %v7864
        %8457 = vmatprep.mubr.bf16.mxu0 %v7023
        %8458 = vmatmul.mubr.bf16.gmra.mxu0 %v7022
        %v8459 = vpop.f32.mrf.mxu0
        %v8460 = vadd.f32 %v7040, %v8459
        %v8461 = vpop.f32.mrf.mxu0
        %v8462 = vadd.f32 %v7044, %v8461
        %v8463 = vpop.f32.mrf.mxu0
        %v8464 = vpop.f32.mrf.mxu0
        %8465 = vdwg.mxu0
        %8466 = vmatprep.subr.bf16.mxu0 %v7940
        %8467 = vmatpush1.bf16.msra.mxu0 %v7939
        %8468 = vmatprep.subr.bf16.mxu0 %v7935
        %8469 = vmatpush1.bf16.msra.mxu0 %v7934
        %8470 = vmatprep.subr.bf16.mxu0 %v7930
        %8471 = vmatpush1.bf16.msra.mxu0 %v7929
        %8472 = vmatprep.subr.bf16.mxu0 %v7925
        %8473 = vmatpush1.bf16.msra.mxu0 %v7924
        %8474 = vmatprep.subr.bf16.mxu0 %v7920
        %8475 = vmatpush1.bf16.msra.mxu0 %v7919
        %8476 = vmatprep.subr.bf16.mxu0 %v7915
        %8477 = vmatpush1.bf16.msra.mxu0 %v7914
        %8478 = vmatprep.subr.bf16.mxu0 %v7910
        %8479 = vmatpush1.bf16.msra.mxu0 %v7909
        %8480 = vmatprep.subr.bf16.mxu0 %v7905
        %8481 = vmatpush1.bf16.msra.mxu0 %v7904
        %8482 = vmatprep.subr.bf16.mxu0 %v7980
        %8483 = vmatpush2.bf16.msra.mxu0 %v7979
        %8484 = vmatprep.subr.bf16.mxu0 %v7975
        %8485 = vmatpush2.bf16.msra.mxu0 %v7974
        %8486 = vmatprep.subr.bf16.mxu0 %v7970
        %8487 = vmatpush2.bf16.msra.mxu0 %v7969
        %8488 = vmatprep.subr.bf16.mxu0 %v7965
        %8489 = vmatpush2.bf16.msra.mxu0 %v7964
        %8490 = vmatprep.subr.bf16.mxu0 %v7960
        %8491 = vmatpush2.bf16.msra.mxu0 %v7959
        %8492 = vmatprep.subr.bf16.mxu0 %v7955
        %8493 = vmatpush2.bf16.msra.mxu0 %v7954
        %8494 = vmatprep.subr.bf16.mxu0 %v7950
        %8495 = vmatpush2.bf16.msra.mxu0 %v7949
        %8496 = vmatprep.subr.bf16.mxu0 %v7945
        %8497 = vmatpush2.bf16.msra.mxu0 %v7944
        %8498 = vmatprep.mubr.bf16.mxu0 %v7025
        %8499 = vmatmul.mubr.bf16.gmra.mxu0 %v7024
        %v8500 = vpop.f32.mrf.mxu0
        %v8501 = vadd.f32 %v8460, %v8500
        %v8502 = vpop.f32.mrf.mxu0
        %v8503 = vadd.f32 %v8462, %v8502
        %v8504 = vpop.f32.mrf.mxu0
        %v8505 = vpop.f32.mrf.mxu0
        %8506 = vdwg.mxu0
        %8507 = vmatprep.subr.bf16.mxu0 %v8020
        %8508 = vmatpush1.bf16.msra.mxu0 %v8019
        %8509 = vmatprep.subr.bf16.mxu0 %v8015
        %8510 = vmatpush1.bf16.msra.mxu0 %v8014
        %8511 = vmatprep.subr.bf16.mxu0 %v8010
        %8512 = vmatpush1.bf16.msra.mxu0 %v8009
        %8513 = vmatprep.subr.bf16.mxu0 %v8005
        %8514 = vmatpush1.bf16.msra.mxu0 %v8004
        %8515 = vmatprep.subr.bf16.mxu0 %v8000
        %8516 = vmatpush1.bf16.msra.mxu0 %v7999
        %8517 = vmatprep.subr.bf16.mxu0 %v7995
        %8518 = vmatpush1.bf16.msra.mxu0 %v7994
        %8519 = vmatprep.subr.bf16.mxu0 %v7990
        %8520 = vmatpush1.bf16.msra.mxu0 %v7989
        %8521 = vmatprep.subr.bf16.mxu0 %v7985
        %8522 = vmatpush1.bf16.msra.mxu0 %v7984
        %8523 = vmatprep.subr.bf16.mxu0 %v8060
        %8524 = vmatpush2.bf16.msra.mxu0 %v8059
        %8525 = vmatprep.subr.bf16.mxu0 %v8055
        %8526 = vmatpush2.bf16.msra.mxu0 %v8054
        %8527 = vmatprep.subr.bf16.mxu0 %v8050
        %8528 = vmatpush2.bf16.msra.mxu0 %v8049
        %8529 = vmatprep.subr.bf16.mxu0 %v8045
        %8530 = vmatpush2.bf16.msra.mxu0 %v8044
        %8531 = vmatprep.subr.bf16.mxu0 %v8040
        %8532 = vmatpush2.bf16.msra.mxu0 %v8039
        %8533 = vmatprep.subr.bf16.mxu0 %v8035
        %8534 = vmatpush2.bf16.msra.mxu0 %v8034
        %8535 = vmatprep.subr.bf16.mxu0 %v8030
        %8536 = vmatpush2.bf16.msra.mxu0 %v8029
        %8537 = vmatprep.subr.bf16.mxu0 %v8025
        %8538 = vmatpush2.bf16.msra.mxu0 %v8024
        %8539 = vmatprep.mubr.bf16.mxu0 %v7027
        %8540 = vmatmul.mubr.bf16.gmra.mxu0 %v7026
        %v8541 = vpop.f32.mrf.mxu0
        %v8542 = vadd.f32 %v8501, %v8541
        %v8543 = vpop.f32.mrf.mxu0
        %v8544 = vadd.f32 %v8503, %v8543
        %v8545 = vpop.f32.mrf.mxu0
        %v8546 = vpop.f32.mrf.mxu0
        %8547 = vdwg.mxu0
        %8548 = vmatprep.subr.bf16.mxu0 0
        %8549 = vmatpush1.bf16.msra.mxu0 %v7861
        %8550 = vmatprep.subr.bf16.mxu0 0
        %8551 = vmatpush1.bf16.msra.mxu0 %v7856
        %8552 = vmatprep.subr.bf16.mxu0 0
        %8553 = vmatpush1.bf16.msra.mxu0 %v7851
        %8554 = vmatprep.subr.bf16.mxu0 0
        %8555 = vmatpush1.bf16.msra.mxu0 %v7846
        %8556 = vmatprep.subr.bf16.mxu0 0
        %8557 = vmatpush1.bf16.msra.mxu0 %v7841
        %8558 = vmatprep.subr.bf16.mxu0 0
        %8559 = vmatpush1.bf16.msra.mxu0 %v7836
        %8560 = vmatprep.subr.bf16.mxu0 0
        %8561 = vmatpush1.bf16.msra.mxu0 %v7831
        %8562 = vmatprep.subr.bf16.mxu0 0
        %8563 = vmatpush1.bf16.msra.mxu0 %v7826
        %8564 = vmatprep.subr.bf16.mxu0 0
        %8565 = vmatpush2.bf16.msra.mxu0 %v7901
        %8566 = vmatprep.subr.bf16.mxu0 0
        %8567 = vmatpush2.bf16.msra.mxu0 %v7896
        %8568 = vmatprep.subr.bf16.mxu0 0
        %8569 = vmatpush2.bf16.msra.mxu0 %v7891
        %8570 = vmatprep.subr.bf16.mxu0 0
        %8571 = vmatpush2.bf16.msra.mxu0 %v7886
        %8572 = vmatprep.subr.bf16.mxu0 0
        %8573 = vmatpush2.bf16.msra.mxu0 %v7881
        %8574 = vmatprep.subr.bf16.mxu0 0
        %8575 = vmatpush2.bf16.msra.mxu0 %v7876
        %8576 = vmatprep.subr.bf16.mxu0 0
        %8577 = vmatpush2.bf16.msra.mxu0 %v7871
        %8578 = vmatprep.subr.bf16.mxu0 0
        %8579 = vmatpush2.bf16.msra.mxu0 %v7866
        %8580 = vmatprep.mubr.bf16.mxu0 %v7023
        %8581 = vmatmul.mubr.bf16.gmra.mxu0 %v7022
        %v8582 = vpop.f32.mrf.mxu0
        %v8583 = vadd.f32 %v7048, %v8582
        %v8584 = vpop.f32.mrf.mxu0
        %v8585 = vpop.f32.mrf.mxu0
        %v8586 = vpop.f32.mrf.mxu0
        %8587 = vdwg.mxu0
        %8588 = vmatprep.subr.bf16.mxu0 0
        %8589 = vmatpush1.bf16.msra.mxu0 %v7941
        %8590 = vmatprep.subr.bf16.mxu0 0
        %8591 = vmatpush1.bf16.msra.mxu0 %v7936
        %8592 = vmatprep.subr.bf16.mxu0 0
        %8593 = vmatpush1.bf16.msra.mxu0 %v7931
        %8594 = vmatprep.subr.bf16.mxu0 0
        %8595 = vmatpush1.bf16.msra.mxu0 %v7926
        %8596 = vmatprep.subr.bf16.mxu0 0
        %8597 = vmatpush1.bf16.msra.mxu0 %v7921
        %8598 = vmatprep.subr.bf16.mxu0 0
        %8599 = vmatpush1.bf16.msra.mxu0 %v7916
        %8600 = vmatprep.subr.bf16.mxu0 0
        %8601 = vmatpush1.bf16.msra.mxu0 %v7911
        %8602 = vmatprep.subr.bf16.mxu0 0
        %8603 = vmatpush1.bf16.msra.mxu0 %v7906
        %8604 = vmatprep.subr.bf16.mxu0 0
        %8605 = vmatpush2.bf16.msra.mxu0 %v7981
        %8606 = vmatprep.subr.bf16.mxu0 0
        %8607 = vmatpush2.bf16.msra.mxu0 %v7976
        %8608 = vmatprep.subr.bf16.mxu0 0
        %8609 = vmatpush2.bf16.msra.mxu0 %v7971
        %8610 = vmatprep.subr.bf16.mxu0 0
        %8611 = vmatpush2.bf16.msra.mxu0 %v7966
        %8612 = vmatprep.subr.bf16.mxu0 0
        %8613 = vmatpush2.bf16.msra.mxu0 %v7961
        %8614 = vmatprep.subr.bf16.mxu0 0
        %8615 = vmatpush2.bf16.msra.mxu0 %v7956
        %8616 = vmatprep.subr.bf16.mxu0 0
        %8617 = vmatpush2.bf16.msra.mxu0 %v7951
        %8618 = vmatprep.subr.bf16.mxu0 0
        %8619 = vmatpush2.bf16.msra.mxu0 %v7946
        %8620 = vmatprep.mubr.bf16.mxu0 %v7025
        %8621 = vmatmul.mubr.bf16.gmra.mxu0 %v7024
        %v8622 = vpop.f32.mrf.mxu0
        %v8623 = vadd.f32 %v8583, %v8622
        %v8624 = vpop.f32.mrf.mxu0
        %v8625 = vpop.f32.mrf.mxu0
        %v8626 = vpop.f32.mrf.mxu0
        %8627 = vdwg.mxu0
        %8628 = vmatprep.subr.bf16.mxu0 0
        %8629 = vmatpush1.bf16.msra.mxu0 %v8021
        %8630 = vmatprep.subr.bf16.mxu0 0
        %8631 = vmatpush1.bf16.msra.mxu0 %v8016
        %8632 = vmatprep.subr.bf16.mxu0 0
        %8633 = vmatpush1.bf16.msra.mxu0 %v8011
        %8634 = vmatprep.subr.bf16.mxu0 0
        %8635 = vmatpush1.bf16.msra.mxu0 %v8006
        %8636 = vmatprep.subr.bf16.mxu0 0
        %8637 = vmatpush1.bf16.msra.mxu0 %v8001
        %8638 = vmatprep.subr.bf16.mxu0 0
        %8639 = vmatpush1.bf16.msra.mxu0 %v7996
        %8640 = vmatprep.subr.bf16.mxu0 0
        %8641 = vmatpush1.bf16.msra.mxu0 %v7991
        %8642 = vmatprep.subr.bf16.mxu0 0
        %8643 = vmatpush1.bf16.msra.mxu0 %v7986
        %8644 = vmatprep.subr.bf16.mxu0 0
        %8645 = vmatpush2.bf16.msra.mxu0 %v8061
        %8646 = vmatprep.subr.bf16.mxu0 0
        %8647 = vmatpush2.bf16.msra.mxu0 %v8056
        %8648 = vmatprep.subr.bf16.mxu0 0
        %8649 = vmatpush2.bf16.msra.mxu0 %v8051
        %8650 = vmatprep.subr.bf16.mxu0 0
        %8651 = vmatpush2.bf16.msra.mxu0 %v8046
        %8652 = vmatprep.subr.bf16.mxu0 0
        %8653 = vmatpush2.bf16.msra.mxu0 %v8041
        %8654 = vmatprep.subr.bf16.mxu0 0
        %8655 = vmatpush2.bf16.msra.mxu0 %v8036
        %8656 = vmatprep.subr.bf16.mxu0 0
        %8657 = vmatpush2.bf16.msra.mxu0 %v8031
        %8658 = vmatprep.subr.bf16.mxu0 0
        %8659 = vmatpush2.bf16.msra.mxu0 %v8026
        %8660 = vmatprep.mubr.bf16.mxu0 %v7027
        %8661 = vmatmul.mubr.bf16.gmra.mxu0 %v7026
        %v8662 = vpop.f32.mrf.mxu0
        %v8663 = vadd.f32 %v8623, %v8662
        %v8664 = vpop.f32.mrf.mxu0
        %v8665 = vpop.f32.mrf.mxu0
        %v8666 = vpop.f32.mrf.mxu0
        %8667 = vdwg.mxu0
        %v8668 = vtanh.pop %v8419
        %v8669 = vtanh.pop %v8421
        %v8670 = vtanh.pop %v8542
        %v8671 = vtanh.pop %v8544
        %v8672 = vtanh.pop %v8663
        %v8673 = vld [vmem:[#allocation20] sm:$0xff]
        %v8674 = vld [vmem:[#allocation20 + $0x8] sm:$0xff]
        %v8675 = vld [vmem:[#allocation20 + $0x10] sm:$0xff]
        %v8676 = vld [vmem:[#allocation20 + $0x18] sm:$0xff]
        %v8677 = vld [vmem:[#allocation20 + $0x20] sm:$0xff]
        %v8678 = vld [vmem:[#allocation20 + $0x28] sm:$0xff]
        %v8679 = vld [vmem:[#allocation20 + $0x30] sm:$0xff]
        %v8680 = vld [vmem:[#allocation20 + $0x38] sm:$0xff]
        %v8681 = vld [vmem:[#allocation20 + $0x40] sm:$0xff]
        %v8682 = vld [vmem:[#allocation20 + $0x48] sm:$0xff]
        %v8683 = vld [vmem:[#allocation20 + $0x50] sm:$0xff]
        %v8684 = vld [vmem:[#allocation20 + $0x58] sm:$0xff]
        %v8685 = vld [vmem:[#allocation20 + $0x60] sm:$0xff]
        %v8686 = vld [vmem:[#allocation20 + $0x68] sm:$0xff]
        %v8687 = vld [vmem:[#allocation20 + $0x70] sm:$0xff]
        %v8688 = vld [vmem:[#allocation20 + $0x78] sm:$0xff]
        %v8689 = vld [vmem:[#allocation20 + $0x80] sm:$0xff]
        %v8690 = vld [vmem:[#allocation20 + $0x88] sm:$0xff]
        %v8691 = vld [vmem:[#allocation20 + $0x90] sm:$0xff]
        %v8692 = vld [vmem:[#allocation20 + $0x98] sm:$0xff]
        %v8693 = vld [vmem:[#allocation20 + $0xa0] sm:$0xff]
        %v8694 = vld [vmem:[#allocation20 + $0xa8] sm:$0xff]
        %v8695 = vld [vmem:[#allocation20 + $0xb0] sm:$0xff]
        %v8696 = vld [vmem:[#allocation20 + $0xb8] sm:$0xff]
        %v8697 = vld [vmem:[#allocation20 + $0xc0] sm:$0xff]
        %v8698 = vld [vmem:[#allocation20 + $0xc8] sm:$0xff]
        %v8699 = vld [vmem:[#allocation20 + $0xd0] sm:$0xff]
        %v8700 = vld [vmem:[#allocation20 + $0xd8] sm:$0xff]
        %v8701 = vld [vmem:[#allocation20 + $0xe0] sm:$0xff]
        %v8702 = vld [vmem:[#allocation20 + $0xe8] sm:$0xff]
        %v8703 = vld [vmem:[#allocation20 + $0xf0] sm:$0xff]
        %v8704 = vld [vmem:[#allocation20 + $0xf8] sm:$0xff]
        %v8705 = vld [vmem:[#allocation20 + $0x100] sm:$0xff]
        %v8706 = vld [vmem:[#allocation20 + $0x108] sm:$0xff]
        %v8707 = vld [vmem:[#allocation20 + $0x110] sm:$0xff]
        %v8708 = vld [vmem:[#allocation20 + $0x118] sm:$0xff]
        %v8709 = vld [vmem:[#allocation20 + $0x120] sm:$0xff]
        %v8710 = vld [vmem:[#allocation20 + $0x128] sm:$0xff]
        %v8711 = vld [vmem:[#allocation20 + $0x130] sm:$0xff]
        %v8712 = vld [vmem:[#allocation20 + $0x138] sm:$0xff]
        %v8713 = vld [vmem:[#allocation20 + $0x140] sm:$0xff]
        %v8714 = vld [vmem:[#allocation20 + $0x148] sm:$0xff]
        %v8715 = vld [vmem:[#allocation20 + $0x150] sm:$0xff]
        %v8716 = vld [vmem:[#allocation20 + $0x158] sm:$0xff]
        %v8717 = vld [vmem:[#allocation20 + $0x160] sm:$0xff]
        %v8718 = vld [vmem:[#allocation20 + $0x168] sm:$0xff]
        %v8719 = vld [vmem:[#allocation20 + $0x170] sm:$0xff]
        %v8720 = vld [vmem:[#allocation20 + $0x178] sm:$0xff]
        %v8721 = vld [vmem:[#allocation20 + $0x180] sm:$0xff]
        %v8722 = vld [vmem:[#allocation20 + $0x188] sm:$0xff]
        %v8723 = vld [vmem:[#allocation20 + $0x190] sm:$0xff]
        %v8724 = vld [vmem:[#allocation20 + $0x198] sm:$0xff]
        %v8725 = vld [vmem:[#allocation20 + $0x1a0] sm:$0xff]
        %v8726 = vld [vmem:[#allocation20 + $0x1a8] sm:$0xff]
        %v8727 = vld [vmem:[#allocation20 + $0x1b0] sm:$0xff]
        %v8728 = vld [vmem:[#allocation20 + $0x1b8] sm:$0xff]
        %v8729 = vld [vmem:[#allocation20 + $0x1c0] sm:$0xff]
        %v8730 = vld [vmem:[#allocation20 + $0x1c8] sm:$0xff]
        %v8731 = vld [vmem:[#allocation20 + $0x1d0] sm:$0xff]
        %v8732 = vld [vmem:[#allocation20 + $0x1d8] sm:$0xff]
        %v8733 = vld [vmem:[#allocation20 + $0x1e0] sm:$0xff]
        %v8734 = vld [vmem:[#allocation20 + $0x1e8] sm:$0xff]
        %v8735 = vld [vmem:[#allocation20 + $0x1f0] sm:$0xff]
        %v8736 = vld [vmem:[#allocation20 + $0x1f8] sm:$0xff]
        %v8737 = vld [vmem:[#allocation20 + $0x200] sm:$0xff]
        %v8738 = vld [vmem:[#allocation20 + $0x208] sm:$0xff]
        %v8739 = vld [vmem:[#allocation20 + $0x210] sm:$0xff]
        %v8740 = vld [vmem:[#allocation20 + $0x218] sm:$0xff]
        %v8741 = vld [vmem:[#allocation20 + $0x220] sm:$0xff]
        %v8742 = vld [vmem:[#allocation20 + $0x228] sm:$0xff]
        %v8743 = vld [vmem:[#allocation20 + $0x230] sm:$0xff]
        %v8744 = vld [vmem:[#allocation20 + $0x238] sm:$0xff]
        %v8745 = vld [vmem:[#allocation20 + $0x240] sm:$0xff]
        %v8746 = vld [vmem:[#allocation20 + $0x248] sm:$0xff]
        %v8747 = vld [vmem:[#allocation20 + $0x250] sm:$0xff]
        %v8748 = vld [vmem:[#allocation20 + $0x258] sm:$0xff]
        %v8749 = vld [vmem:[#allocation20 + $0x260] sm:$0xff]
        %v8750 = vld [vmem:[#allocation20 + $0x268] sm:$0xff]
        %v8751 = vld [vmem:[#allocation20 + $0x270] sm:$0xff]
        %v8752 = vld [vmem:[#allocation20 + $0x278] sm:$0xff]
        %v8753 = vld [vmem:[#allocation22] sm:$0x3]
        %v8754 = vpack.c.bf16 %v8668, %v8668
        %v8755 = vpack.c.bf16 %v8669, %v8669
        %v8756 = vpack.c.bf16 %v8670, %v8670
        %v8757 = vpack.c.bf16 %v8671, %v8671
        %v8758 = vpack.c.bf16 %v8672, %v8672
        %v8760 = vlaneseq
        %v8761 = vshrl.u32 %v8760, 7
        %v8762 = vsub.s32 0, %v8761
        %v8763 = vrot.slane %v8753, %v8762
        %v8764 = vlaneseq
        %v8765 = vshrl.u32 %v8764, 7
        %v8766 = vsub.s32 1, %v8765
        %v8767 = vrot.slane %v8753, %v8766
        %v8850 = vunpack.c.l.b16 %v8673
        %v8851 = vunpack.c.h.b16 %v8673
        %v8852 = vunpack.c.l.b16 %v8674
        %v8853 = vunpack.c.h.b16 %v8674
        %v8854 = vunpack.c.l.b16 %v8675
        %v8855 = vunpack.c.h.b16 %v8675
        %v8856 = vunpack.c.l.b16 %v8676
        %v8857 = vunpack.c.h.b16 %v8676
        %v8858 = vunpack.c.l.b16 %v8677
        %v8859 = vunpack.c.h.b16 %v8677
        %v8860 = vunpack.c.l.b16 %v8678
        %v8861 = vunpack.c.h.b16 %v8678
        %v8862 = vunpack.c.l.b16 %v8679
        %v8863 = vunpack.c.h.b16 %v8679
        %v8864 = vunpack.c.l.b16 %v8680
        %v8865 = vunpack.c.h.b16 %v8680
        %v8866 = vunpack.c.l.b16 %v8681
        %v8867 = vunpack.c.h.b16 %v8681
        %v8868 = vunpack.c.l.b16 %v8682
        %v8869 = vunpack.c.h.b16 %v8682
        %v8870 = vunpack.c.l.b16 %v8683
        %v8871 = vunpack.c.h.b16 %v8683
        %v8872 = vunpack.c.l.b16 %v8684
        %v8873 = vunpack.c.h.b16 %v8684
        %v8874 = vunpack.c.l.b16 %v8685
        %v8875 = vunpack.c.h.b16 %v8685
        %v8876 = vunpack.c.l.b16 %v8686
        %v8877 = vunpack.c.h.b16 %v8686
        %v8878 = vunpack.c.l.b16 %v8687
        %v8879 = vunpack.c.h.b16 %v8687
        %v8880 = vunpack.c.l.b16 %v8688
        %v8881 = vunpack.c.h.b16 %v8688
        %v8882 = vunpack.c.l.b16 %v8689
        %v8883 = vunpack.c.h.b16 %v8689
        %v8884 = vunpack.c.l.b16 %v8690
        %v8885 = vunpack.c.h.b16 %v8690
        %v8886 = vunpack.c.l.b16 %v8691
        %v8887 = vunpack.c.h.b16 %v8691
        %v8888 = vunpack.c.l.b16 %v8692
        %v8889 = vunpack.c.h.b16 %v8692
        %v8890 = vunpack.c.l.b16 %v8693
        %v8891 = vunpack.c.h.b16 %v8693
        %v8892 = vunpack.c.l.b16 %v8694
        %v8893 = vunpack.c.h.b16 %v8694
        %v8894 = vunpack.c.l.b16 %v8695
        %v8895 = vunpack.c.h.b16 %v8695
        %v8896 = vunpack.c.l.b16 %v8696
        %v8897 = vunpack.c.h.b16 %v8696
        %v8898 = vunpack.c.l.b16 %v8697
        %v8899 = vunpack.c.h.b16 %v8697
        %v8900 = vunpack.c.l.b16 %v8698
        %v8901 = vunpack.c.h.b16 %v8698
        %v8902 = vunpack.c.l.b16 %v8699
        %v8903 = vunpack.c.h.b16 %v8699
        %v8904 = vunpack.c.l.b16 %v8700
        %v8905 = vunpack.c.h.b16 %v8700
        %v8906 = vunpack.c.l.b16 %v8701
        %v8907 = vunpack.c.h.b16 %v8701
        %v8908 = vunpack.c.l.b16 %v8702
        %v8909 = vunpack.c.h.b16 %v8702
        %v8910 = vunpack.c.l.b16 %v8703
        %v8911 = vunpack.c.h.b16 %v8703
        %v8912 = vunpack.c.l.b16 %v8704
        %v8913 = vunpack.c.h.b16 %v8704
        %v8914 = vunpack.c.l.b16 %v8705
        %v8915 = vunpack.c.h.b16 %v8705
        %v8916 = vunpack.c.l.b16 %v8706
        %v8917 = vunpack.c.h.b16 %v8706
        %v8918 = vunpack.c.l.b16 %v8707
        %v8919 = vunpack.c.h.b16 %v8707
        %v8920 = vunpack.c.l.b16 %v8708
        %v8921 = vunpack.c.h.b16 %v8708
        %v8922 = vunpack.c.l.b16 %v8709
        %v8923 = vunpack.c.h.b16 %v8709
        %v8924 = vunpack.c.l.b16 %v8710
        %v8925 = vunpack.c.h.b16 %v8710
        %v8926 = vunpack.c.l.b16 %v8711
        %v8927 = vunpack.c.h.b16 %v8711
        %v8928 = vunpack.c.l.b16 %v8712
        %v8929 = vunpack.c.h.b16 %v8712
        %v8930 = vunpack.c.l.b16 %v8713
        %v8931 = vunpack.c.h.b16 %v8713
        %v8932 = vunpack.c.l.b16 %v8714
        %v8933 = vunpack.c.h.b16 %v8714
        %v8934 = vunpack.c.l.b16 %v8715
        %v8935 = vunpack.c.h.b16 %v8715
        %v8936 = vunpack.c.l.b16 %v8716
        %v8937 = vunpack.c.h.b16 %v8716
        %v8938 = vunpack.c.l.b16 %v8717
        %v8939 = vunpack.c.h.b16 %v8717
        %v8940 = vunpack.c.l.b16 %v8718
        %v8941 = vunpack.c.h.b16 %v8718
        %v8942 = vunpack.c.l.b16 %v8719
        %v8943 = vunpack.c.h.b16 %v8719
        %v8944 = vunpack.c.l.b16 %v8720
        %v8945 = vunpack.c.h.b16 %v8720
        %v8946 = vunpack.c.l.b16 %v8721
        %v8947 = vunpack.c.h.b16 %v8721
        %v8948 = vunpack.c.l.b16 %v8722
        %v8949 = vunpack.c.h.b16 %v8722
        %v8950 = vunpack.c.l.b16 %v8723
        %v8951 = vunpack.c.h.b16 %v8723
        %v8952 = vunpack.c.l.b16 %v8724
        %v8953 = vunpack.c.h.b16 %v8724
        %v8954 = vunpack.c.l.b16 %v8725
        %v8955 = vunpack.c.h.b16 %v8725
        %v8956 = vunpack.c.l.b16 %v8726
        %v8957 = vunpack.c.h.b16 %v8726
        %v8958 = vunpack.c.l.b16 %v8727
        %v8959 = vunpack.c.h.b16 %v8727
        %v8960 = vunpack.c.l.b16 %v8728
        %v8961 = vunpack.c.h.b16 %v8728
        %v8962 = vunpack.c.l.b16 %v8729
        %v8963 = vunpack.c.h.b16 %v8729
        %v8964 = vunpack.c.l.b16 %v8730
        %v8965 = vunpack.c.h.b16 %v8730
        %v8966 = vunpack.c.l.b16 %v8731
        %v8967 = vunpack.c.h.b16 %v8731
        %v8968 = vunpack.c.l.b16 %v8732
        %v8969 = vunpack.c.h.b16 %v8732
        %v8970 = vunpack.c.l.b16 %v8733
        %v8971 = vunpack.c.h.b16 %v8733
        %v8972 = vunpack.c.l.b16 %v8734
        %v8973 = vunpack.c.h.b16 %v8734
        %v8974 = vunpack.c.l.b16 %v8735
        %v8975 = vunpack.c.h.b16 %v8735
        %v8976 = vunpack.c.l.b16 %v8736
        %v8977 = vunpack.c.h.b16 %v8736
        %v8978 = vunpack.c.l.b16 %v8737
        %v8979 = vunpack.c.h.b16 %v8737
        %v8980 = vunpack.c.l.b16 %v8738
        %v8981 = vunpack.c.h.b16 %v8738
        %v8982 = vunpack.c.l.b16 %v8739
        %v8983 = vunpack.c.h.b16 %v8739
        %v8984 = vunpack.c.l.b16 %v8740
        %v8985 = vunpack.c.h.b16 %v8740
        %v8986 = vunpack.c.l.b16 %v8741
        %v8987 = vunpack.c.h.b16 %v8741
        %v8988 = vunpack.c.l.b16 %v8742
        %v8989 = vunpack.c.h.b16 %v8742
        %v8990 = vunpack.c.l.b16 %v8743
        %v8991 = vunpack.c.h.b16 %v8743
        %v8992 = vunpack.c.l.b16 %v8744
        %v8993 = vunpack.c.h.b16 %v8744
        %v8994 = vunpack.c.l.b16 %v8745
        %v8995 = vunpack.c.h.b16 %v8745
        %v8996 = vunpack.c.l.b16 %v8746
        %v8997 = vunpack.c.h.b16 %v8746
        %v8998 = vunpack.c.l.b16 %v8747
        %v8999 = vunpack.c.h.b16 %v8747
        %v9000 = vunpack.c.l.b16 %v8748
        %v9001 = vunpack.c.h.b16 %v8748
        %v9002 = vunpack.c.l.b16 %v8749
        %v9003 = vunpack.c.h.b16 %v8749
        %v9004 = vunpack.c.l.b16 %v8750
        %v9005 = vunpack.c.h.b16 %v8750
        %v9006 = vunpack.c.l.b16 %v8751
        %v9007 = vunpack.c.h.b16 %v8751
        %v9008 = vunpack.c.l.b16 %v8752
        %v9009 = vunpack.c.h.b16 %v8752
        %v9010 = vpack.c.b16 %v8852, %v8850
        %v9011 = vpack.c.b16 %v8853, %v8851
        %v9012 = vpack.c.b16 %v8856, %v8854
        %v9013 = vpack.c.b16 %v8857, %v8855
        %v9014 = vpack.c.b16 %v8860, %v8858
        %v9015 = vpack.c.b16 %v8861, %v8859
        %v9016 = vpack.c.b16 %v8864, %v8862
        %v9017 = vpack.c.b16 %v8865, %v8863
        %v9018 = vpack.c.b16 %v8868, %v8866
        %v9019 = vpack.c.b16 %v8869, %v8867
        %v9020 = vpack.c.b16 %v8872, %v8870
        %v9021 = vpack.c.b16 %v8873, %v8871
        %v9022 = vpack.c.b16 %v8876, %v8874
        %v9023 = vpack.c.b16 %v8877, %v8875
        %v9024 = vpack.c.b16 %v8880, %v8878
        %v9025 = vpack.c.b16 %v8881, %v8879
        %v9026 = vpack.c.b16 %v8884, %v8882
        %v9027 = vpack.c.b16 %v8885, %v8883
        %v9028 = vpack.c.b16 %v8888, %v8886
        %v9029 = vpack.c.b16 %v8889, %v8887
        %v9030 = vpack.c.b16 %v8892, %v8890
        %v9031 = vpack.c.b16 %v8893, %v8891
        %v9032 = vpack.c.b16 %v8896, %v8894
        %v9033 = vpack.c.b16 %v8897, %v8895
        %v9034 = vpack.c.b16 %v8900, %v8898
        %v9035 = vpack.c.b16 %v8901, %v8899
        %v9036 = vpack.c.b16 %v8904, %v8902
        %v9037 = vpack.c.b16 %v8905, %v8903
        %v9038 = vpack.c.b16 %v8908, %v8906
        %v9039 = vpack.c.b16 %v8909, %v8907
        %v9040 = vpack.c.b16 %v8912, %v8910
        %v9041 = vpack.c.b16 %v8913, %v8911
        %v9042 = vpack.c.b16 %v8916, %v8914
        %v9043 = vpack.c.b16 %v8917, %v8915
        %v9044 = vpack.c.b16 %v8920, %v8918
        %v9045 = vpack.c.b16 %v8921, %v8919
        %v9046 = vpack.c.b16 %v8924, %v8922
        %v9047 = vpack.c.b16 %v8925, %v8923
        %v9048 = vpack.c.b16 %v8928, %v8926
        %v9049 = vpack.c.b16 %v8929, %v8927
        %v9050 = vpack.c.b16 %v8932, %v8930
        %v9051 = vpack.c.b16 %v8933, %v8931
        %v9052 = vpack.c.b16 %v8936, %v8934
        %v9053 = vpack.c.b16 %v8937, %v8935
        %v9054 = vpack.c.b16 %v8940, %v8938
        %v9055 = vpack.c.b16 %v8941, %v8939
        %v9056 = vpack.c.b16 %v8944, %v8942
        %v9057 = vpack.c.b16 %v8945, %v8943
        %v9058 = vpack.c.b16 %v8948, %v8946
        %v9059 = vpack.c.b16 %v8949, %v8947
        %v9060 = vpack.c.b16 %v8952, %v8950
        %v9061 = vpack.c.b16 %v8953, %v8951
        %v9062 = vpack.c.b16 %v8956, %v8954
        %v9063 = vpack.c.b16 %v8957, %v8955
        %v9064 = vpack.c.b16 %v8960, %v8958
        %v9065 = vpack.c.b16 %v8961, %v8959
        %v9066 = vpack.c.b16 %v8964, %v8962
        %v9067 = vpack.c.b16 %v8965, %v8963
        %v9068 = vpack.c.b16 %v8968, %v8966
        %v9069 = vpack.c.b16 %v8969, %v8967
        %v9070 = vpack.c.b16 %v8972, %v8970
        %v9071 = vpack.c.b16 %v8973, %v8971
        %v9072 = vpack.c.b16 %v8976, %v8974
        %v9073 = vpack.c.b16 %v8977, %v8975
        %v9074 = vpack.c.b16 %v8980, %v8978
        %v9075 = vpack.c.b16 %v8981, %v8979
        %v9076 = vpack.c.b16 %v8984, %v8982
        %v9077 = vpack.c.b16 %v8985, %v8983
        %v9078 = vpack.c.b16 %v8988, %v8986
        %v9079 = vpack.c.b16 %v8989, %v8987
        %v9080 = vpack.c.b16 %v8992, %v8990
        %v9081 = vpack.c.b16 %v8993, %v8991
        %v9082 = vpack.c.b16 %v8996, %v8994
        %v9083 = vpack.c.b16 %v8997, %v8995
        %v9084 = vpack.c.b16 %v9000, %v8998
        %v9085 = vpack.c.b16 %v9001, %v8999
        %v9086 = vpack.c.b16 %v9004, %v9002
        %v9087 = vpack.c.b16 %v9005, %v9003
        %v9088 = vpack.c.b16 %v9008, %v9006
        %v9089 = vpack.c.b16 %v9009, %v9007
        %9170 = vmatprep.subr.bf16.mxu0 %v9025
        %9171 = vmatpush1.bf16.msra.mxu0 %v9024
        %9172 = vmatprep.subr.bf16.mxu0 %v9023
        %9173 = vmatpush1.bf16.msra.mxu0 %v9022
        %9174 = vmatprep.subr.bf16.mxu0 %v9021
        %9175 = vmatpush1.bf16.msra.mxu0 %v9020
        %9176 = vmatprep.subr.bf16.mxu0 %v9019
        %9177 = vmatpush1.bf16.msra.mxu0 %v9018
        %9178 = vmatprep.subr.bf16.mxu0 %v9017
        %9179 = vmatpush1.bf16.msra.mxu0 %v9016
        %9180 = vmatprep.subr.bf16.mxu0 %v9015
        %9181 = vmatpush1.bf16.msra.mxu0 %v9014
        %9182 = vmatprep.subr.bf16.mxu0 %v9013
        %9183 = vmatpush1.bf16.msra.mxu0 %v9012
        %9184 = vmatprep.subr.bf16.mxu0 %v9011
        %9185 = vmatpush1.bf16.msra.mxu0 %v9010
        %9186 = vmatprep.subr.bf16.mxu0 %v9041
        %9187 = vmatpush2.bf16.msra.mxu0 %v9040
        %9188 = vmatprep.subr.bf16.mxu0 %v9039
        %9189 = vmatpush2.bf16.msra.mxu0 %v9038
        %9190 = vmatprep.subr.bf16.mxu0 %v9037
        %9191 = vmatpush2.bf16.msra.mxu0 %v9036
        %9192 = vmatprep.subr.bf16.mxu0 %v9035
        %9193 = vmatpush2.bf16.msra.mxu0 %v9034
        %9194 = vmatprep.subr.bf16.mxu0 %v9033
        %9195 = vmatpush2.bf16.msra.mxu0 %v9032
        %9196 = vmatprep.subr.bf16.mxu0 %v9031
        %9197 = vmatpush2.bf16.msra.mxu0 %v9030
        %9198 = vmatprep.subr.bf16.mxu0 %v9029
        %9199 = vmatpush2.bf16.msra.mxu0 %v9028
        %9200 = vmatprep.subr.bf16.mxu0 %v9027
        %9201 = vmatpush2.bf16.msra.mxu0 %v9026
        %9202 = vmatprep.mubr.bf16.mxu0 %v8755
        %9203 = vmatmul.mubr.bf16.gmra.mxu0 %v8754
        %v9204 = vpop.f32.mrf.mxu0
        %v9205 = vadd.f32 %v8763, %v9204
        %v9206 = vpop.f32.mrf.mxu0
        %v9207 = vadd.f32 %v8767, %v9206
        %v9208 = vpop.f32.mrf.mxu0
        %v9209 = vpop.f32.mrf.mxu0
        %9210 = vdwg.mxu0
        %9211 = vmatprep.subr.bf16.mxu0 %v9057
        %9212 = vmatpush1.bf16.msra.mxu0 %v9056
        %9213 = vmatprep.subr.bf16.mxu0 %v9055
        %9214 = vmatpush1.bf16.msra.mxu0 %v9054
        %9215 = vmatprep.subr.bf16.mxu0 %v9053
        %9216 = vmatpush1.bf16.msra.mxu0 %v9052
        %9217 = vmatprep.subr.bf16.mxu0 %v9051
        %9218 = vmatpush1.bf16.msra.mxu0 %v9050
        %9219 = vmatprep.subr.bf16.mxu0 %v9049
        %9220 = vmatpush1.bf16.msra.mxu0 %v9048
        %9221 = vmatprep.subr.bf16.mxu0 %v9047
        %9222 = vmatpush1.bf16.msra.mxu0 %v9046
        %9223 = vmatprep.subr.bf16.mxu0 %v9045
        %9224 = vmatpush1.bf16.msra.mxu0 %v9044
        %9225 = vmatprep.subr.bf16.mxu0 %v9043
        %9226 = vmatpush1.bf16.msra.mxu0 %v9042
        %9227 = vmatprep.subr.bf16.mxu0 %v9073
        %9228 = vmatpush2.bf16.msra.mxu0 %v9072
        %9229 = vmatprep.subr.bf16.mxu0 %v9071
        %9230 = vmatpush2.bf16.msra.mxu0 %v9070
        %9231 = vmatprep.subr.bf16.mxu0 %v9069
        %9232 = vmatpush2.bf16.msra.mxu0 %v9068
        %9233 = vmatprep.subr.bf16.mxu0 %v9067
        %9234 = vmatpush2.bf16.msra.mxu0 %v9066
        %9235 = vmatprep.subr.bf16.mxu0 %v9065
        %9236 = vmatpush2.bf16.msra.mxu0 %v9064
        %9237 = vmatprep.subr.bf16.mxu0 %v9063
        %9238 = vmatpush2.bf16.msra.mxu0 %v9062
        %9239 = vmatprep.subr.bf16.mxu0 %v9061
        %9240 = vmatpush2.bf16.msra.mxu0 %v9060
        %9241 = vmatprep.subr.bf16.mxu0 %v9059
        %9242 = vmatpush2.bf16.msra.mxu0 %v9058
        %9243 = vmatprep.mubr.bf16.mxu0 %v8757
        %9244 = vmatmul.mubr.bf16.gmra.mxu0 %v8756
        %v9245 = vpop.f32.mrf.mxu0
        %v9246 = vadd.f32 %v9205, %v9245
        %v9247 = vpop.f32.mrf.mxu0
        %v9248 = vadd.f32 %v9207, %v9247
        %v9249 = vpop.f32.mrf.mxu0
        %v9250 = vpop.f32.mrf.mxu0
        %9251 = vdwg.mxu0
        %9252 = vmatprep.subr.bf16.mxu0 %v9089
        %9253 = vmatpush1.bf16.msra.mxu0 %v9088
        %9254 = vmatprep.subr.bf16.mxu0 %v9087
        %9255 = vmatpush1.bf16.msra.mxu0 %v9086
        %9256 = vmatprep.subr.bf16.mxu0 %v9085
        %9257 = vmatpush1.bf16.msra.mxu0 %v9084
        %9258 = vmatprep.subr.bf16.mxu0 %v9083
        %9259 = vmatpush1.bf16.msra.mxu0 %v9082
        %9260 = vmatprep.subr.bf16.mxu0 %v9081
        %9261 = vmatpush1.bf16.msra.mxu0 %v9080
        %9262 = vmatprep.subr.bf16.mxu0 %v9079
        %9263 = vmatpush1.bf16.msra.mxu0 %v9078
        %9264 = vmatprep.subr.bf16.mxu0 %v9077
        %9265 = vmatpush1.bf16.msra.mxu0 %v9076
        %9266 = vmatprep.subr.bf16.mxu0 %v9075
        %9267 = vmatpush1.bf16.msra.mxu0 %v9074
        %9268 = vmatprep.subr.bf16.mxu0 0
        %9269 = vmatpush2.bf16.msra.mxu0 0
        %9270 = vmatprep.subr.bf16.mxu0 0
        %9271 = vmatpush2.bf16.msra.mxu0 0
        %9272 = vmatprep.subr.bf16.mxu0 0
        %9273 = vmatpush2.bf16.msra.mxu0 0
        %9274 = vmatprep.subr.bf16.mxu0 0
        %9275 = vmatpush2.bf16.msra.mxu0 0
        %9276 = vmatprep.subr.bf16.mxu0 0
        %9277 = vmatpush2.bf16.msra.mxu0 0
        %9278 = vmatprep.subr.bf16.mxu0 0
        %9279 = vmatpush2.bf16.msra.mxu0 0
        %9280 = vmatprep.subr.bf16.mxu0 0
        %9281 = vmatpush2.bf16.msra.mxu0 0
        %9282 = vmatprep.subr.bf16.mxu0 0
        %9283 = vmatpush2.bf16.msra.mxu0 0
        %9284 = vmatprep.mubr.bf16.mxu0 0
        %9285 = vmatmul.mubr.bf16.gmra.mxu0 %v8758
        %v9286 = vpop.f32.mrf.mxu0
        %v9287 = vadd.f32 %v9246, %v9286
        %v9288 = vpop.f32.mrf.mxu0
        %v9289 = vadd.f32 %v9248, %v9288
        %v9290 = vpop.f32.mrf.mxu0
        %v9291 = vpop.f32.mrf.mxu0
        %9292 = vdwg.mxu0
        %9293 = vst [vmem:[%s618] sm:$0xff] %v9287
        %9294 = vst [vmem:[%s618 + $0x8] sm:$0xff] %v9289
        %s9295 = sand.u32 %s322, 1
        %s9296 = scalar_lea.sflag [#allocation4], %s9295
        %s9297 = sand.u32 %s322, 1
        %s9298 = smul.addr %s9297, 16
        %s9299 = scalar_lea.vmem [#allocation23], %s9298
        // Predicated region
        $region125: #{tpu_custom_call.1} parent=71 // pred_check
          %p9300 = pneg %p332
        $region126: #{tpu_custom_call.1} parent=71 // pred_check_branch
          %9302 = sbr.rel (%p9300) target = $region128
        $region127: #{tpu_custom_call.1} parent=71 // pred_region
          %s9304 = ssub.s32 256, 256
          %9305 = vsyncadd %s9296, %s9304
          %s9306 = smul.addr %s36, 2
          %s9307 = smul.addr %s9306, 128
          %s9308 = scalar_lea.hbm %s13, %s9307
          %s9310 = sshll.u32 %s9299, 4
          %s9311 = int_to_ptr.vmem [resolvable:$true] %s9310
          %9313 = dma.vmem_to_hbm [thread:$0]  %s9311, 256, %s9308, %s9296
        $region128: #{tpu_custom_call.1} parent=71 // pred_fallthru
          _
      $region72: #{tpu_custom_call.1} parent=5 // pred_fallthru
        _
      %p9314 = scmp.le.s32.totalorder 2, %s31
      // Predicated region
      $region129: #{tpu_custom_call.1} parent=5 // pred_check
        %p9315 = pneg %p9314
      $region130: #{tpu_custom_call.1} parent=5 // pred_check_branch
        %9317 = sbr.rel (%p9315) target = $region132
      $region131: #{tpu_custom_call.1} parent=5 // pred_region
        %s9318 = ssub.s32 %s31, 2
        // Predicated region
        $region133: #{tpu_custom_call.1} parent=131 // pred_check
          %p9319 = pneg %p338
        $region134: #{tpu_custom_call.1} parent=131 // pred_check_branch
          %9321 = sbr.rel (%p9319) target = $region136
        $region135: #{tpu_custom_call.1} parent=131 // pred_region
          %s9322 = sand.u32 %s323, 1
          %s9323 = scalar_lea.sflag [#allocation4], %s9322
          %s9324 = sand.u32 %s323, 1
          %s9325 = smul.addr %s9324, 16
          %s9326 = scalar_lea.vmem [#allocation23], %s9325
          %9327 = dma.done %s9323, 256
        $region136: #{tpu_custom_call.1} parent=131 // pred_fallthru
          _
      $region132: #{tpu_custom_call.1} parent=5 // pred_fallthru
        _
    $region6: #{tpu_custom_call.1} parent=1 // loop_footer
      %s35 = sadd.s32 1, %s31
    $region7: #{tpu_custom_call.1} parent=1 // loop_footer_branch
      %30 = sbr.rel target = $region3
    $region8: #{tpu_custom_call.1} parent=1 // loop_exit
      _
    %9328 = vsyncpa [#allocation3], 1
    %s9329 = scalar_lea.sflag [#allocation3], 1
    %9330 = vsyncpa %s9329, 1
    %9331 = vsyncpa [#allocation6], 1
    %9332 = vsyncpa [#allocation9], 1
    %9333 = vsyncpa [#allocation12], 1
    %9334 = vsyncpa [#allocation15], 1
    %9335 = vsyncpa [#allocation18], 1
    %9336 = vsyncpa [#allocation21], 1
    %9337 = vsyncpa [#allocation4], 1
    %s9338 = scalar_lea.sflag [#allocation4], 1
    %9339 = vsyncpa %s9338, 1

</llo_original>
